<compile_context>
chip_gen: v7x
topology: tpu7x:2x2x1
jax: 0.10.0
libtpu: 0.0.40
codegen_flags: <defaults>
</compile_context>

<pallas_src>
import functools

import jax
import jax.numpy as jnp
from jax.experimental import pallas as pl
from jax.experimental.pallas import tpu as pltpu

_BF16 = jnp.bfloat16
_LN_EPS = 1e-5


# ----------------------------------------------------------------------------
# Small helpers
# ----------------------------------------------------------------------------
def _round_up(x, m):
    return ((x + m - 1) // m) * m


def _pick_row_tile(m, cap=256):
    """Row tile: multiple of 8, <= cap, splitting the padded M ~evenly."""
    ma = _round_up(m, 8)
    if ma <= cap:
        return ma
    n = -(-ma // cap)
    return _round_up(-(-ma // n), 8)


def _pad2(a, rows, cols):
    pr, pc = rows - a.shape[0], cols - a.shape[1]
    if pr == 0 and pc == 0:
        return a
    return jnp.pad(a, ((0, pr), (0, pc)))


def _pad1(a, n):
    return a if a.shape[0] == n else jnp.pad(a, (0, n - a.shape[0]))


def _apply_act(y, activation):
    if activation == "gelu":
        # TODO(synk): nn.GELU default is exact erf-GELU; the tanh approximation
        # is used because it lowers cleanly onto the EUP.
        return jax.nn.gelu(y, approximate=True)
    if activation == "relu":
        return jnp.maximum(y, 0.0)
    return y


def _layernorm(x, gamma, beta, eps):
    mu = jnp.mean(x, axis=-1, keepdims=True)
    var = jnp.mean(jnp.square(x - mu), axis=-1, keepdims=True)
    return (x - mu) * jax.lax.rsqrt(var + eps) * gamma + beta


# ----------------------------------------------------------------------------
# Fused attention block:  out = x + proj(MHSA(LN?(x)))
# ----------------------------------------------------------------------------
def _fused_attn_kernel(x_ref, g_ref, b_ref, wq_ref, wk_ref, wv_ref,
                       bq_ref, bk_ref, bv_ref, wp_ref, pb_ref, o_ref, *,
                       num_heads, scale, pre_ln):
    x = x_ref[0].astype(jnp.float32)                              # (N, E)
    xn = _layernorm(x, g_ref[...], b_ref[...], _LN_EPS) if pre_ln else x
    xn = xn.astype(_BF16)
    acc = x + pb_ref[...]                                         # residual + proj bias
    for h in range(num_heads):                                    # static unroll
        q = jnp.dot(xn, wq_ref[h], preferred_element_type=jnp.float32) + bq_ref[h]
        k = jnp.dot(xn, wk_ref[h], preferred_element_type=jnp.float32) + bk_ref[h]
        v = jnp.dot(xn, wv_ref[h], preferred_element_type=jnp.float32) + bv_ref[h]
        s = jax.lax.dot_general(q.astype(_BF16), k.astype(_BF16),
                                (((1,), (1,)), ((), ())),
                                preferred_element_type=jnp.float32) * scale
        s = s - jnp.max(s, axis=-1, keepdims=True)
        p = jnp.exp(s)
        p = p * pl.reciprocal(jnp.sum(p, axis=-1, keepdims=True), approx=True)
        o = jnp.dot(p.astype(_BF16), v.astype(_BF16),
                    preferred_element_type=jnp.float32)
        acc = acc + jnp.dot(o.astype(_BF16), wp_ref[h],
                            preferred_element_type=jnp.float32)
    o_ref[0] = acc.astype(o_ref.dtype)


def pallas_attention_block(x, ln, p, num_heads):
    """x: (B, N, E) f32; ln=(gamma, beta) for pre-norm, None for post-norm."""
    B, N, E = x.shape
    dh = E // num_heads
    pre_ln = ln is not None
    g = (ln[0] if pre_ln else jnp.ones((E,))).reshape(1, E).astype(jnp.float32)
    bt = (ln[1] if pre_ln else jnp.zeros((E,))).reshape(1, E).astype(jnp.float32)
    kernel = functools.partial(_fused_attn_kernel, num_heads=num_heads,
                               scale=dh ** -0.5, pre_ln=pre_ln)
    return pl.pallas_call(
        kernel,
        out_shape=jax.ShapeDtypeStruct((B, N, E), jnp.float32),
        grid=(B,),
        in_specs=[
            pl.BlockSpec((1, N, E), lambda b: (b, 0, 0)),
            pl.BlockSpec((1, E), lambda b: (0, 0)),
            pl.BlockSpec((1, E), lambda b: (0, 0)),
            pl.BlockSpec((num_heads, E, dh), lambda b: (0, 0, 0)),
            pl.BlockSpec((num_heads, E, dh), lambda b: (0, 0, 0)),
            pl.BlockSpec((num_heads, E, dh), lambda b: (0, 0, 0)),
            pl.BlockSpec((num_heads, 1, dh), lambda b: (0, 0, 0)),
            pl.BlockSpec((num_heads, 1, dh), lambda b: (0, 0, 0)),
            pl.BlockSpec((num_heads, 1, dh), lambda b: (0, 0, 0)),
            pl.BlockSpec((num_heads, dh, E), lambda b: (0, 0, 0)),
            pl.BlockSpec((1, E), lambda b: (0, 0)),
        ],
        out_specs=pl.BlockSpec((1, N, E), lambda b: (b, 0, 0)),
        compiler_params=pltpu.CompilerParams(dimension_semantics=("parallel",)),
    )(x.astype(jnp.float32), g, bt, p["wq"], p["wk"], p["wv"],
      p["bq"], p["bk"], p["bv"], p["proj_w"], p["proj_b"])


# ----------------------------------------------------------------------------
# Fused MLP block:  out = x + fc2(act(fc1(LN?(x))))
# ----------------------------------------------------------------------------
def _fused_mlp_kernel(x_ref, g_ref, bt_ref, w1_ref, b1_ref, w2_ref, b2_ref,
                      o_ref, acc_ref, xn_ref, *, pre_ln, activation):
    @pl.when(pl.program_id(1) == 0)
    def _():
        x = x_ref[...].astype(jnp.float32)
        xn = _layernorm(x, g_ref[...], bt_ref[...], _LN_EPS) if pre_ln else x
        xn_ref[...] = xn.astype(_BF16)              # LN computed once per row tile
        acc_ref[...] = x + b2_ref[...]              # residual + fc2 bias fused

    h = jnp.dot(xn_ref[...], w1_ref[...], preferred_element_type=jnp.float32)
    h = _apply_act(h + b1_ref[...], activation).astype(_BF16)
    acc_ref[...] += jnp.dot(h, w2_ref[...], preferred_element_type=jnp.float32)

    @pl.when(pl.program_id(1) == pl.num_programs(1) - 1)
    def _():
        o_ref[...] = acc_ref[...].astype(o_ref.dtype)


def pallas_mlp_block(x, ln, w1, b1, w2, b2, activation="gelu",
                     tm_cap=256, th_cap=512):
    """x: (M, E) f32 -> (M, E) f32.  Hidden slab never leaves VMEM."""
    M, E = x.shape
    hidden = w1.shape[1]
    tm = _pick_row_tile(M, tm_cap)
    Mp = _round_up(M, tm)
    th = th_cap if (hidden > th_cap and hidden % th_cap == 0) else hidden
    pre_ln = ln is not None
    g = (ln[0] if pre_ln else jnp.ones((E,))).reshape(1, E).astype(jnp.float32)
    bt = (ln[1] if pre_ln else jnp.zeros((E,))).reshape(1, E).astype(jnp.float32)
    xp = _pad2(x.astype(jnp.float32), Mp, E)
    out = pl.pallas_call(
        functools.partial(_fused_mlp_kernel, pre_ln=pre_ln, activation=activation),
        out_shape=jax.ShapeDtypeStruct((Mp, E), jnp.float32),
        grid=(Mp // tm, hidden // th),
        in_specs=[
            pl.BlockSpec((tm, E), lambda i, k: (i, 0)),
            pl.BlockSpec((1, E), lambda i, k: (0, 0)),
            pl.BlockSpec((1, E), lambda i, k: (0, 0)),
            pl.BlockSpec((E, th), lambda i, k: (0, k)),
            pl.BlockSpec((1, th), lambda i, k: (0, k)),
            pl.BlockSpec((th, E), lambda i, k: (k, 0)),
            pl.BlockSpec((1, E), lambda i, k: (0, 0)),
        ],
        out_specs=pl.BlockSpec((tm, E), lambda i, k: (i, 0)),
        scratch_shapes=[pltpu.VMEM((tm, E), jnp.float32),
                        pltpu.VMEM((tm, E), _BF16)],
        compiler_params=pltpu.CompilerParams(
            dimension_semantics=("parallel", "arbitrary")),
    )(xp, g, bt, w1.astype(_BF16), b1.reshape(1, hidden).astype(jnp.float32),
      w2.astype(_BF16), b2.reshape(1, E).astype(jnp.float32))
    return out[:M] if Mp != M else out


# ----------------------------------------------------------------------------
# Generic tiled linear (bf16 MXU matmul, f32 accumulation, optional residual)
# ----------------------------------------------------------------------------
def _matmul_kernel(x_ref, w_ref, b_ref, o_ref, acc_ref, *, activation):
    @pl.when(pl.program_id(2) == 0)
    def _():
        acc_ref[...] = jnp.zeros_like(acc_ref)
    acc_ref[...] += jnp.dot(x_ref[...], w_ref[...],
                            preferred_element_type=jnp.float32)

    @pl.when(pl.program_id(2) == pl.num_programs(2) - 1)
    def _():
        y = _apply_act(acc_ref[...] + b_ref[...], activation)
        o_ref[...] = y.astype(o_ref.dtype)


def _matmul_res_kernel(x_ref, w_ref, b_ref, r_ref, o_ref, acc_ref, *, activation):
    @pl.when(pl.program_id(2) == 0)
    def _():
        acc_ref[...] = jnp.zeros_like(acc_ref)
    acc_ref[...] += jnp.dot(x_ref[...], w_ref[...],
                            preferred_element_type=jnp.float32)

    @pl.when(pl.program_id(2) == pl.num_programs(2) - 1)
    def _():
        y = _apply_act(acc_ref[...] + b_ref[...], activation) + r_ref[...]
        o_ref[...] = y.astype(o_ref.dtype)


def pallas_linear(x, w, b, activation=None, residual=None,
                  out_dtype=jnp.float32, tm_cap=512, tn_cap=512, tk_cap=512):
    """y = act(x @ w + b) [+ residual]."""
    M, K = x.shape
    N = w.shape[1]
    tm = _pick_row_tile(M, tm_cap)
    Mp = _round_up(M, tm)
    tk, Kp = (K, K) if K <= tk_cap else (tk_cap, _round_up(K, tk_cap))
    tn, Np = (N, N) if N <= tn_cap else (tn_cap, _round_up(N, tn_cap))

    xp = _pad2(x.astype(_BF16), Mp, Kp)
    wp = _pad2(w.astype(_BF16), Kp, Np)
    bp = _pad1(b.astype(jnp.float32), Np).reshape(1, Np)

    args = [xp, wp, bp]
    in_specs = [
        pl.BlockSpec((tm, tk), lambda i, j, k: (i, k)),
        pl.BlockSpec((tk, tn), lambda i, j, k: (k, j)),
        pl.BlockSpec((1, tn), lambda i, j, k: (0, j)),
    ]
    if residual is not None:
        args.append(_pad2(residual.astype(jnp.float32), Mp, Np))
        in_specs.append(pl.BlockSpec((tm, tn), lambda i, j, k: (i, j)))
        kernel = functools.partial(_matmul_res_kernel, activation=activation)
    else:
        kernel = functools.partial(_matmul_kernel, activation=activation)

    out = pl.pallas_call(
        kernel,
        out_shape=jax.ShapeDtypeStruct((Mp, Np), out_dtype),
        grid=(Mp // tm, Np // tn, Kp // tk),
        in_specs=in_specs,
        out_specs=pl.BlockSpec((tm, tn), lambda i, j, k: (i, j)),
        scratch_shapes=[pltpu.VMEM((tm, tn), jnp.float32)],
        compiler_params=pltpu.CompilerParams(
            dimension_semantics=("parallel", "parallel", "arbitrary")),
    )(*args)
    if (Mp, Np) != (M, N):
        out = out[:M, :N]
    return out


# ----------------------------------------------------------------------------
# Standalone LayerNorm (used only by the post-norm weight-generator encoder)
# ----------------------------------------------------------------------------
def _layernorm_kernel(x_ref, g_ref, b_ref, o_ref):
    x = x_ref[...].astype(jnp.float32)
    o_ref[...] = _layernorm(x, g_ref[...], b_ref[...], _LN_EPS).astype(o_ref.dtype)


def pallas_layernorm(x, gamma, beta, tm_cap=256):
    M, D = x.shape
    tm = _pick_row_tile(M, tm_cap)
    Mp = _round_up(M, tm)
    xp = _pad2(x.astype(jnp.float32), Mp, D)
    out = pl.pallas_call(
        _layernorm_kernel,
        out_shape=jax.ShapeDtypeStruct((Mp, D), jnp.float32),
        grid=(Mp // tm,),
        in_specs=[
            pl.BlockSpec((tm, D), lambda i: (i, 0)),
            pl.BlockSpec((1, D), lambda i: (0, 0)),
            pl.BlockSpec((1, D), lambda i: (0, 0)),
        ],
        out_specs=pl.BlockSpec((tm, D), lambda i: (i, 0)),
        compiler_params=pltpu.CompilerParams(dimension_semantics=("parallel",)),
    )(xp, gamma.reshape(1, D).astype(jnp.float32),
      beta.reshape(1, D).astype(jnp.float32))
    return out[:M] if Mp != M else out


# ----------------------------------------------------------------------------
# Model pieces (glue in plain JAX)
# ----------------------------------------------------------------------------
def vit_block(x, p, num_heads):
    """timm pre-norm Block: 2 fused pallas_calls per block."""
    B, N, E = x.shape
    x = pallas_attention_block(x, (p["norm1_g"], p["norm1_b"]), p, num_heads)
    x = pallas_mlp_block(x.reshape(B * N, E), (p["norm2_g"], p["norm2_b"]),
                         p["fc1_w"], p["fc1_b"], p["fc2_w"], p["fc2_b"],
                         activation="gelu")
    return x.reshape(B, N, E)


def transformer_encoder_layer(x, p, num_heads):
    """nn.TransformerEncoderLayer (post-norm, gelu), unbatched x:(S, E)."""
    x = pallas_attention_block(x[None], None, p, num_heads)[0]   # x + SA(x)
    x = pallas_layernorm(x, p["norm1_g"], p["norm1_b"])
    x = pallas_mlp_block(x, None, p["lin1_w"], p["lin1_b"],
                         p["lin2_w"], p["lin2_b"], activation="gelu")
    x = pallas_layernorm(x, p["norm2_g"], p["norm2_b"])
    return x


def fc_res_layer(x, p):
    y = pallas_linear(x, p["w1"], p["b1"], activation="relu")
    return pallas_linear(y, p["w2"], p["b2"], activation="relu", residual=x)


def sincos_1d(embed_dim, pos):
    omega = jnp.arange(embed_dim // 2, dtype=jnp.float32) / (embed_dim / 2.0)
    omega = 1.0 / (10000.0 ** omega)
    out = pos.reshape(-1)[:, None] * omega[None, :]
    return jnp.concatenate([jnp.sin(out), jnp.cos(out)], axis=1)


def dynamic_patch_embed(x_nchw, waves, p, *, kernel_size, embed_dim, wt_num,
                        wg_heads):
    """Dynamic_MLP_OFA: wavelength-conditioned patch-embedding conv."""
    cin = waves.shape[0]
    wv_planes = p["fcl"]["w1"].shape[0]
    scaler = 0.01

    wemb = sincos_1d(wv_planes, waves * 1000.0)                      # (Cin, wv)
    wemb = fc_res_layer(wemb, p["fcl"])
    tokens = jnp.concatenate([p["weight_tokens"], wemb, p["bias_token"]], axis=0)
    tokens = transformer_encoder_layer(tokens, p["wg"], wg_heads)
    weight_rows = tokens[wt_num:wt_num + cin]                        # (Cin, wv)
    bias_row = tokens[-1:]                                           # (1, wv)

    w_flat = pallas_linear(weight_rows, p["fc_weight_w"], p["fc_weight_b"])
    bias = pallas_linear(bias_row, p["fc_bias_w"], p["fc_bias_b"])[0] * scaler

    # Conv weight W[e, c, kh, kw] -> im2col matmul weight [(c, kh, kw), e].
    w_patch = (w_flat.reshape(cin, kernel_size, kernel_size, embed_dim) * scaler)
    w_patch = w_patch.reshape(cin * kernel_size * kernel_size, embed_dim)

    # Exact conv semantics: padding=1, stride=kernel_size -> pad, crop, tile.
    B, C, H, W = x_nchw.shape
    hw = (H + 2 - kernel_size) // kernel_size + 1
    xp = jnp.pad(x_nchw, ((0, 0), (0, 0), (1, 1), (1, 1)))
    xp = xp[:, :, :hw * kernel_size, :hw * kernel_size]
    patches = xp.reshape(B, C, hw, kernel_size, hw, kernel_size)
    patches = patches.transpose(0, 2, 4, 1, 3, 5)                    # (B,h,w,C,kh,kw)
    patches = patches.reshape(B * hw * hw, C * kernel_size * kernel_size)

    out = pallas_linear(patches, w_patch, bias)                      # (B*P, E)
    return out.reshape(B, hw * hw, embed_dim), wemb


def ofa_vit_forward(x, params, cfg):
    """forward_features of OFAViT (+ head logits from the final cls token)."""
    B = x.shape[0]
    E = cfg["embed_dim"]
    hw = cfg["img_size"] // cfg["patch_size"]

    tokens, _ = dynamic_patch_embed(
        x, params["waves"], params["patch_embed"],
        kernel_size=cfg["patch_size"], embed_dim=E,
        wt_num=cfg["wt_num"], wg_heads=cfg["wg_heads"])

    tokens = tokens + params["pos_embed"][:, 1:, :]
    cls = params["cls_token"] + params["pos_embed"][:, :1, :]
    cls = jnp.broadcast_to(cls, (B, 1, E))
    x_tok = jnp.concatenate([cls, tokens], axis=1)                   # (B, P+1, E)

    out_features = []
    for i, bp in enumerate(params["blocks"]):
        x_tok = vit_block(x_tok, bp, cfg["num_heads"])
        if i in cfg["out_indices"]:
            out = x_tok[:, 1:, :].reshape(B, hw, hw, E).transpose(0, 3, 1, 2)
            out_features.append(out)                                 # NCHW

    # TODO(synk): the reference OFAViT.forward indexes the returned feature
    # *list* as a tensor (`x[:, 0]`), which raises in PyTorch; we return the
    # backbone features and the head logits from the final cls token.
    logits = pallas_linear(x_tok[:, 0, :], params["head_w"], params["head_b"])
    return out_features, logits


def _dense_head(feat_nchw, w, b):
    """1x1 conv over channels implemented as a Pallas matmul."""
    B, C, H, W = feat_nchw.shape
    x2 = feat_nchw.transpose(0, 2, 3, 1).reshape(B * H * W, C)
    y = pallas_linear(x2, w, b)
    return y.reshape(B, H, W, -1).transpose(0, 3, 1, 2)


def upernet_forward(x, params, cfg):
    """UperNet.forward: backbone -> (neck) -> decode/aux heads -> resize."""
    feats, logits = ofa_vit_forward(x, params, cfg)
    # TODO(synk): the real UperNet neck (Feature2Pyramid) and decode/aux heads
    # (UPerHead / FCNHead) are constructor-injected modules not defined in the
    # reference file; stand-in 1x1-conv heads on the last two feature maps are
    # used so the forward still returns (out, out_a).
    out = _dense_head(feats[-1], params["decode_w"], params["decode_b"])
    out_a = _dense_head(feats[-2], params["aux_w"], params["aux_b"])
    size = (x.shape[0], out.shape[1], x.shape[2], x.shape[3])
    # F.interpolate(mode='bilinear', align_corners=False) equivalent (XLA).
    out = jax.image.resize(out, size, method="bilinear")
    out_a = jax.image.resize(out_a, size, method="bilinear")
    return out, out_a, feats, logits


# ----------------------------------------------------------------------------
# Deterministic synthetic parameters (weights laid out / cast once at init)
# ----------------------------------------------------------------------------
class _KeyGen:
    def __init__(self, key):
        self.key = key

    def __call__(self):
        self.key, sub = jax.random.split(self.key)
        return sub


def _nrm(kg, shape, std=0.02, dtype=jnp.float32):
    return (jax.random.normal(kg(), shape, jnp.float32) * std).astype(dtype)


def _mha_params(kg, e, num_heads):
    """Generate a fused (E, 3E) QKV weight then split per head once at init."""
    dh = e // num_heads
    qkv_w = _nrm(kg, (e, 3 * e))
    qkv_b = jnp.zeros((3 * e,), jnp.float32)
    proj_w = _nrm(kg, (e, e))
    w = qkv_w.reshape(e, 3, num_heads, dh)                # col = s*E + h*dh + d
    b = qkv_b.reshape(3, num_heads, 1, dh)
    return {
        "wq": jnp.transpose(w[:, 0], (1, 0, 2)).astype(_BF16),   # (H, E, Dh)
        "wk": jnp.transpose(w[:, 1], (1, 0, 2)).astype(_BF16),
        "wv": jnp.transpose(w[:, 2], (1, 0, 2)).astype(_BF16),
        "bq": b[0], "bk": b[1], "bv": b[2],                       # (H, 1, Dh)
        "proj_w": proj_w.reshape(num_heads, dh, e).astype(_BF16), # (H, Dh, E)
        "proj_b": jnp.zeros((1, e), jnp.float32),
    }


def init_params(key, cfg):
    kg = _KeyGen(key)
    E, wv, k = cfg["embed_dim"], cfg["wv_planes"], cfg["patch_size"]
    hidden = int(E * cfg["mlp_ratio"])
    num_patches = (cfg["img_size"] // k) ** 2

    blocks = []
    for _ in range(cfg["depth"]):
        bp = _mha_params(kg, E, cfg["num_heads"])
        bp.update({
            "norm1_g": jnp.ones((E,), jnp.float32), "norm1_b": jnp.zeros((E,), jnp.float32),
            "norm2_g": jnp.ones((E,), jnp.float32), "norm2_b": jnp.zeros((E,), jnp.float32),
            "fc1_w": _nrm(kg, (E, hidden), dtype=_BF16),
            "fc1_b": jnp.zeros((hidden,), jnp.float32),
            "fc2_w": _nrm(kg, (hidden, E), dtype=_BF16),
            "fc2_b": jnp.zeros((E,), jnp.float32),
        })
        blocks.append(bp)

    wg = _mha_params(kg, wv, cfg["wg_heads"])
    wg.update({
        "norm1_g": jnp.ones((wv,), jnp.float32), "norm1_b": jnp.zeros((wv,), jnp.float32),
        "norm2_g": jnp.ones((wv,), jnp.float32), "norm2_b": jnp.zeros((wv,), jnp.float32),
        "lin1_w": _nrm(kg, (wv, cfg["wg_ff"]), dtype=_BF16),
        "lin1_b": jnp.zeros((cfg["wg_ff"],), jnp.float32),
        "lin2_w": _nrm(kg, (cfg["wg_ff"], wv), dtype=_BF16),
        "lin2_b": jnp.zeros((wv,), jnp.float32),
    })

    patch_embed = {
        "fcl": {
            "w1": _nrm(kg, (wv, wv), dtype=_BF16), "b1": jnp.zeros((wv,), jnp.float32),
            "w2": _nrm(kg, (wv, wv), dtype=_BF16), "b2": jnp.zeros((wv,), jnp.float32),
        },
        "weight_tokens": _nrm(kg, (cfg["wt_num"], wv)),
        "bias_token": _nrm(kg, (1, wv)),
        "wg": wg,
        "fc_weight_w": _nrm(kg, (wv, k * k * E), dtype=_BF16),
        "fc_weight_b": jnp.zeros((k * k * E,), jnp.float32),
        "fc_bias_w": _nrm(kg, (wv, E), dtype=_BF16),
        "fc_bias_b": jnp.zeros((E,), jnp.float32),
    }

    return {
        "patch_embed": patch_embed,
        "blocks": blocks,
        "cls_token": _nrm(kg, (1, 1, E)),
        "pos_embed": jnp.zeros((1, num_patches + 1, E), jnp.float32),
        "head_w": _nrm(kg, (E, cfg["num_classes"]), dtype=_BF16),
        "head_b": jnp.zeros((cfg["num_classes"],), jnp.float32),
        "decode_w": _nrm(kg, (E, cfg["seg_classes"]), dtype=_BF16),
        "decode_b": jnp.zeros((cfg["seg_classes"],), jnp.float32),
        "aux_w": _nrm(kg, (E, cfg["seg_classes"]), dtype=_BF16),
        "aux_b": jnp.zeros((cfg["seg_classes"],), jnp.float32),
        "waves": jnp.asarray(cfg["wave_list"], jnp.float32),
    }


# ----------------------------------------------------------------------------
# Main
# ----------------------------------------------------------------------------
if __name__ == "__main__":
    cfg = {
        "img_size": 16,
        "patch_size": 4,          # small-scale stand-in for kernel_size=16
        "embed_dim": 32,
        "depth": 12,
        "num_heads": 4,
        "mlp_ratio": 4.0,
        "wv_planes": 32,
        "num_classes": 45,
        "seg_classes": 6,
        "out_indices": [3, 5, 7, 11],
        "wave_list": [0.665, 0.56, 0.49],
        "wt_num": 8,              # weight-generator query tokens (orig 128)
        "wg_heads": 4,
        "wg_ff": 64,
    }

    key = jax.random.PRNGKey(0)
    k_param, k_x = jax.random.split(key)
    params = init_params(k_param, cfg)

    B, Cin = 2, len(cfg["wave_list"])
    x = jax.random.normal(k_x, (B, Cin, cfg["img_size"], cfg["img_size"]),
                          jnp.float32)

    fwd = jax.jit(lambda xx, pp: upernet_forward(xx, pp, cfg))
    out, out_a, feats, logits = fwd(x, params)

    jax.block_until_ready(out)
    jax.block_until_ready(out_a)
    for f in feats:
        jax.block_until_ready(f)
    jax.block_until_ready(logits)

    hw = cfg["img_size"] // cfg["patch_size"]
    assert out.shape == (B, cfg["seg_classes"], cfg["img_size"], cfg["img_size"])
    assert out_a.shape == (B, cfg["seg_classes"], cfg["img_size"], cfg["img_size"])
    assert len(feats) == len(cfg["out_indices"])
    assert all(f.shape == (B, cfg["embed_dim"], hw, hw) for f in feats)
    assert logits.shape == (B, cfg["num_classes"])
    assert bool(jnp.all(jnp.isfinite(out)))

    print("KERNEL_OK")
</pallas_src>

<mosaic_0001>
module attributes {stable_mosaic.version = 11 : i64} {
  func.func @_matmul_res_kernel(%arg0: i32, %arg1: i32, %arg2: i32, %arg3: memref<8x32xbf16, #tpu.memory_space<vmem>>, %arg4: memref<32x32xbf16, #tpu.memory_space<vmem>>, %arg5: memref<1x32xf32, #tpu.memory_space<vmem>>, %arg6: memref<8x32xf32, #tpu.memory_space<vmem>>, %arg7: memref<8x32xf32, #tpu.memory_space<vmem>>, %arg8: memref<8x32xf32, #tpu.memory_space<vmem>>) attributes {dimension_semantics = [#tpu.dimension_semantics<parallel>, #tpu.dimension_semantics<parallel>, #tpu.dimension_semantics<arbitrary>], iteration_bounds = array<i64: 1, 1, 1>, scalar_prefetch = 0 : i64, scratch_operands = 1 : i64, tpu.core_type = #tpu.core_type<tc>, window_params = [{transform_indices = @transform_0, window_bounds = array<i64: 8, 32>}, {transform_indices = @transform_1, window_bounds = array<i64: 32, 32>}, {transform_indices = @transform_2, window_bounds = array<i64: 1, 32>}, {transform_indices = @transform_3, window_bounds = array<i64: 8, 32>}, {transform_indices = @transform_4, window_bounds = array<i64: 8, 32>}]} {
    %c0_i32 = arith.constant 0 : i32
    %0 = arith.cmpi eq, %arg2, %c0_i32 : i32
    %1 = arith.extui %0 : i1 to i32
    %c0_i32_0 = arith.constant 0 : i32
    %2 = arith.cmpi ne, %1, %c0_i32_0 : i32
    scf.if %2 {
      %cst_10 = arith.constant 0.000000e+00 : f32
      %12 = vector.broadcast %cst_10 : f32 to vector<8x32xf32>
      %c0_11 = arith.constant 0 : index
      %c0_12 = arith.constant 0 : index
      %13 = vector.load %arg8[%c0_11, %c0_12] : memref<8x32xf32, #tpu.memory_space<vmem>>, vector<8x32xf32>
      tpu.vector_store %arg8[%c0_11, %c0_12], %12 {strides = array<i32>} : memref<8x32xf32, #tpu.memory_space<vmem>>, vector<8x32xf32>,
    } else {
    }
    %c0 = arith.constant 0 : index
    %c0_1 = arith.constant 0 : index
    %3 = vector.load %arg8[%c0, %c0_1] : memref<8x32xf32, #tpu.memory_space<vmem>>, vector<8x32xf32>
    %c0_2 = arith.constant 0 : index
    %c0_3 = arith.constant 0 : index
    %4 = vector.load %arg3[%c0_2, %c0_3] : memref<8x32xbf16, #tpu.memory_space<vmem>>, vector<8x32xbf16>
    %c0_4 = arith.constant 0 : index
    %c0_5 = arith.constant 0 : index
    %5 = vector.load %arg4[%c0_4, %c0_5] : memref<32x32xbf16, #tpu.memory_space<vmem>>, vector<32x32xbf16>
    %cst = arith.constant dense<0.000000e+00> : vector<8x32xf32>
    %6 = tpu.matmul %4, %5, %cst {dimension_numbers = #tpu.dot_dimension_numbers<[1], [0], [0], [1], [0, 0, 1, 1], [], []>} : vector<8x32xbf16>, vector<32x32xbf16>, vector<8x32xf32> -> vector<8x32xf32>
    %7 = arith.addf %3, %6 : vector<8x32xf32>
    %c0_6 = arith.constant 0 : index
    %c0_7 = arith.constant 0 : index
    %8 = vector.load %arg8[%c0_6, %c0_7] : memref<8x32xf32, #tpu.memory_space<vmem>>, vector<8x32xf32>
    tpu.vector_store %arg8[%c0_6, %c0_7], %7 {strides = array<i32>} : memref<8x32xf32, #tpu.memory_space<vmem>>, vector<8x32xf32>,
    %c0_i32_8 = arith.constant 0 : i32
    %9 = arith.cmpi eq, %arg2, %c0_i32_8 : i32
    %10 = arith.extui %9 : i1 to i32
    %c0_i32_9 = arith.constant 0 : i32
    %11 = arith.cmpi ne, %10, %c0_i32_9 : i32
    scf.if %11 {
      %c0_10 = arith.constant 0 : index
      %c0_11 = arith.constant 0 : index
      %12 = vector.load %arg8[%c0_10, %c0_11] : memref<8x32xf32, #tpu.memory_space<vmem>>, vector<8x32xf32>
      %c0_12 = arith.constant 0 : index
      %c0_13 = arith.constant 0 : index
      %13 = vector.load %arg5[%c0_12, %c0_13] : memref<1x32xf32, #tpu.memory_space<vmem>>, vector<1x32xf32>
      %14 = vector.broadcast %13 : vector<1x32xf32> to vector<8x32xf32>
      %15 = arith.addf %12, %14 : vector<8x32xf32>
      %cst_14 = arith.constant 0.000000e+00 : f32
      %16 = vector.broadcast %cst_14 : f32 to vector<8x32xf32>
      %17 = arith.maximumf %15, %16 : vector<8x32xf32>
      %c0_15 = arith.constant 0 : index
      %c0_16 = arith.constant 0 : index
      %18 = vector.load %arg6[%c0_15, %c0_16] : memref<8x32xf32, #tpu.memory_space<vmem>>, vector<8x32xf32>
      %19 = arith.addf %17, %18 : vector<8x32xf32>
      %c0_17 = arith.constant 0 : index
      %c0_18 = arith.constant 0 : index
      %20 = vector.load %arg7[%c0_17, %c0_18] : memref<8x32xf32, #tpu.memory_space<vmem>>, vector<8x32xf32>
      tpu.vector_store %arg7[%c0_17, %c0_18], %19 {strides = array<i32>} : memref<8x32xf32, #tpu.memory_space<vmem>>, vector<8x32xf32>,
    } else {
    }
    return
  }
  func.func @transform_0(%arg0: i32, %arg1: i32, %arg2: i32) -> (i32, i32) {
    %c0_i32 = arith.constant 0 : i32
    return %arg0, %arg2 : i32, i32
  }
  func.func @transform_1(%arg0: i32, %arg1: i32, %arg2: i32) -> (i32, i32) {
    %c0_i32 = arith.constant 0 : i32
    return %arg2, %arg1 : i32, i32
  }
  func.func @transform_2(%arg0: i32, %arg1: i32, %arg2: i32) -> (i32, i32) {
    %c0_i32 = arith.constant 0 : i32
    %c0_i32_0 = arith.constant 0 : i32
    return %c0_i32, %arg1 : i32, i32
  }
  func.func @transform_3(%arg0: i32, %arg1: i32, %arg2: i32) -> (i32, i32) {
    %c0_i32 = arith.constant 0 : i32
    return %arg0, %arg1 : i32, i32
  }
  func.func @transform_4(%arg0: i32, %arg1: i32, %arg2: i32) -> (i32, i32) {
    %c0_i32 = arith.constant 0 : i32
    return %arg0, %arg1 : i32, i32
  }
}

module attributes {stable_mosaic.version = 11 : i64} {
  func.func @_matmul_kernel(%arg0: i32, %arg1: i32, %arg2: i32, %arg3: memref<8x32xbf16, #tpu.memory_space<vmem>>, %arg4: memref<32x32xbf16, #tpu.memory_space<vmem>>, %arg5: memref<1x32xf32, #tpu.memory_space<vmem>>, %arg6: memref<8x32xf32, #tpu.memory_space<vmem>>, %arg7: memref<8x32xf32, #tpu.memory_space<vmem>>) attributes {dimension_semantics = [#tpu.dimension_semantics<parallel>, #tpu.dimension_semantics<parallel>, #tpu.dimension_semantics<arbitrary>], iteration_bounds = array<i64: 1, 1, 1>, scalar_prefetch = 0 : i64, scratch_operands = 1 : i64, tpu.core_type = #tpu.core_type<tc>, window_params = [{transform_indices = @transform_0, window_bounds = array<i64: 8, 32>}, {transform_indices = @transform_1, window_bounds = array<i64: 32, 32>}, {transform_indices = @transform_2, window_bounds = array<i64: 1, 32>}, {transform_indices = @transform_3, window_bounds = array<i64: 8, 32>}]} {
    %c0_i32 = arith.constant 0 : i32
    %0 = arith.cmpi eq, %arg2, %c0_i32 : i32
    %1 = arith.extui %0 : i1 to i32
    %c0_i32_0 = arith.constant 0 : i32
    %2 = arith.cmpi ne, %1, %c0_i32_0 : i32
    scf.if %2 {
      %cst_10 = arith.constant 0.000000e+00 : f32
      %12 = vector.broadcast %cst_10 : f32 to vector<8x32xf32>
      %c0_11 = arith.constant 0 : index
      %c0_12 = arith.constant 0 : index
      %13 = vector.load %arg7[%c0_11, %c0_12] : memref<8x32xf32, #tpu.memory_space<vmem>>, vector<8x32xf32>
      tpu.vector_store %arg7[%c0_11, %c0_12], %12 {strides = array<i32>} : memref<8x32xf32, #tpu.memory_space<vmem>>, vector<8x32xf32>,
    } else {
    }
    %c0 = arith.constant 0 : index
    %c0_1 = arith.constant 0 : index
    %3 = vector.load %arg7[%c0, %c0_1] : memref<8x32xf32, #tpu.memory_space<vmem>>, vector<8x32xf32>
    %c0_2 = arith.constant 0 : index
    %c0_3 = arith.constant 0 : index
    %4 = vector.load %arg3[%c0_2, %c0_3] : memref<8x32xbf16, #tpu.memory_space<vmem>>, vector<8x32xbf16>
    %c0_4 = arith.constant 0 : index
    %c0_5 = arith.constant 0 : index
    %5 = vector.load %arg4[%c0_4, %c0_5] : memref<32x32xbf16, #tpu.memory_space<vmem>>, vector<32x32xbf16>
    %cst = arith.constant dense<0.000000e+00> : vector<8x32xf32>
    %6 = tpu.matmul %4, %5, %cst {dimension_numbers = #tpu.dot_dimension_numbers<[1], [0], [0], [1], [0, 0, 1, 1], [], []>} : vector<8x32xbf16>, vector<32x32xbf16>, vector<8x32xf32> -> vector<8x32xf32>
    %7 = arith.addf %3, %6 : vector<8x32xf32>
    %c0_6 = arith.constant 0 : index
    %c0_7 = arith.constant 0 : index
    %8 = vector.load %arg7[%c0_6, %c0_7] : memref<8x32xf32, #tpu.memory_space<vmem>>, vector<8x32xf32>
    tpu.vector_store %arg7[%c0_6, %c0_7], %7 {strides = array<i32>} : memref<8x32xf32, #tpu.memory_space<vmem>>, vector<8x32xf32>,
    %c0_i32_8 = arith.constant 0 : i32
    %9 = arith.cmpi eq, %arg2, %c0_i32_8 : i32
    %10 = arith.extui %9 : i1 to i32
    %c0_i32_9 = arith.constant 0 : i32
    %11 = arith.cmpi ne, %10, %c0_i32_9 : i32
    scf.if %11 {
      %c0_10 = arith.constant 0 : index
      %c0_11 = arith.constant 0 : index
      %12 = vector.load %arg7[%c0_10, %c0_11] : memref<8x32xf32, #tpu.memory_space<vmem>>, vector<8x32xf32>
      %c0_12 = arith.constant 0 : index
      %c0_13 = arith.constant 0 : index
      %13 = vector.load %arg5[%c0_12, %c0_13] : memref<1x32xf32, #tpu.memory_space<vmem>>, vector<1x32xf32>
      %14 = vector.broadcast %13 : vector<1x32xf32> to vector<8x32xf32>
      %15 = arith.addf %12, %14 : vector<8x32xf32>
      %cst_14 = arith.constant 0.000000e+00 : f32
      %16 = vector.broadcast %cst_14 : f32 to vector<8x32xf32>
      %17 = arith.maximumf %15, %16 : vector<8x32xf32>
      %c0_15 = arith.constant 0 : index
      %c0_16 = arith.constant 0 : index
      %18 = vector.load %arg6[%c0_15, %c0_16] : memref<8x32xf32, #tpu.memory_space<vmem>>, vector<8x32xf32>
      tpu.vector_store %arg6[%c0_15, %c0_16], %17 {strides = array<i32>} : memref<8x32xf32, #tpu.memory_space<vmem>>, vector<8x32xf32>,
    } else {
    }
    return
  }
  func.func @transform_0(%arg0: i32, %arg1: i32, %arg2: i32) -> (i32, i32) {
    %c0_i32 = arith.constant 0 : i32
    return %arg0, %arg2 : i32, i32
  }
  func.func @transform_1(%arg0: i32, %arg1: i32, %arg2: i32) -> (i32, i32) {
    %c0_i32 = arith.constant 0 : i32
    return %arg2, %arg1 : i32, i32
  }
  func.func @transform_2(%arg0: i32, %arg1: i32, %arg2: i32) -> (i32, i32) {
    %c0_i32 = arith.constant 0 : i32
    %c0_i32_0 = arith.constant 0 : i32
    return %c0_i32, %arg1 : i32, i32
  }
  func.func @transform_3(%arg0: i32, %arg1: i32, %arg2: i32) -> (i32, i32) {
    %c0_i32 = arith.constant 0 : i32
    return %arg0, %arg1 : i32, i32
  }
}

module attributes {stable_mosaic.version = 11 : i64} {
  func.func @_fused_attn_kernel(%arg0: i32, %arg1: memref<1x12x32xf32, #tpu.memory_space<vmem>>, %arg2: memref<1x32xf32, #tpu.memory_space<vmem>>, %arg3: memref<1x32xf32, #tpu.memory_space<vmem>>, %arg4: memref<4x32x8xbf16, #tpu.memory_space<vmem>>, %arg5: memref<4x32x8xbf16, #tpu.memory_space<vmem>>, %arg6: memref<4x32x8xbf16, #tpu.memory_space<vmem>>, %arg7: memref<4x1x8xf32, #tpu.memory_space<vmem>>, %arg8: memref<4x1x8xf32, #tpu.memory_space<vmem>>, %arg9: memref<4x1x8xf32, #tpu.memory_space<vmem>>, %arg10: memref<4x8x32xbf16, #tpu.memory_space<vmem>>, %arg11: memref<1x32xf32, #tpu.memory_space<vmem>>, %arg12: memref<1x12x32xf32, #tpu.memory_space<vmem>>) attributes {dimension_semantics = [#tpu.dimension_semantics<parallel>], iteration_bounds = array<i64: 1>, scalar_prefetch = 0 : i64, scratch_operands = 0 : i64, tpu.core_type = #tpu.core_type<tc>, window_params = [{transform_indices = @transform_0, window_bounds = array<i64: 1, 12, 32>}, {pipeline_mode = #tpu.pipeline_mode<synchronous>, transform_indices = @transform_1, window_bounds = array<i64: 1, 32>}, {pipeline_mode = #tpu.pipeline_mode<synchronous>, transform_indices = @transform_2, window_bounds = array<i64: 1, 32>}, {pipeline_mode = #tpu.pipeline_mode<synchronous>, transform_indices = @transform_3, window_bounds = array<i64: 4, 32, 8>}, {pipeline_mode = #tpu.pipeline_mode<synchronous>, transform_indices = @transform_4, window_bounds = array<i64: 4, 32, 8>}, {pipeline_mode = #tpu.pipeline_mode<synchronous>, transform_indices = @transform_5, window_bounds = array<i64: 4, 32, 8>}, {pipeline_mode = #tpu.pipeline_mode<synchronous>, transform_indices = @transform_6, window_bounds = array<i64: 4, 1, 8>}, {pipeline_mode = #tpu.pipeline_mode<synchronous>, transform_indices = @transform_7, window_bounds = array<i64: 4, 1, 8>}, {pipeline_mode = #tpu.pipeline_mode<synchronous>, transform_indices = @transform_8, window_bounds = array<i64: 4, 1, 8>}, {pipeline_mode = #tpu.pipeline_mode<synchronous>, transform_indices = @transform_9, window_bounds = array<i64: 4, 8, 32>}, {pipeline_mode = #tpu.pipeline_mode<synchronous>, transform_indices = @transform_10, window_bounds = array<i64: 1, 32>}, {transform_indices = @transform_11, window_bounds = array<i64: 1, 12, 32>}]} {
    %c0 = arith.constant 0 : index
    %c0_0 = arith.constant 0 : index
    %c0_1 = arith.constant 0 : index
    %0 = vector.load %arg1[%c0, %c0_0, %c0_1] : memref<1x12x32xf32, #tpu.memory_space<vmem>>, vector<1x12x32xf32>
    %1 = vector.shape_cast %0 : vector<1x12x32xf32> to vector<12x32xf32>
    %2 = arith.truncf %1 : vector<12x32xf32> to vector<12x32xbf16>
    %c0_2 = arith.constant 0 : index
    %c0_3 = arith.constant 0 : index
    %3 = vector.load %arg11[%c0_2, %c0_3] : memref<1x32xf32, #tpu.memory_space<vmem>>, vector<1x32xf32>
    %4 = vector.broadcast %3 : vector<1x32xf32> to vector<12x32xf32>
    %5 = arith.addf %1, %4 : vector<12x32xf32>
    %c0_4 = arith.constant 0 : index
    %c0_5 = arith.constant 0 : index
    %c0_6 = arith.constant 0 : index
    %6 = vector.load %arg4[%c0_4, %c0_5, %c0_6] : memref<4x32x8xbf16, #tpu.memory_space<vmem>>, vector<1x32x8xbf16>
    %7 = vector.shape_cast %6 : vector<1x32x8xbf16> to vector<32x8xbf16>
    %cst = arith.constant dense<0.000000e+00> : vector<12x8xf32>
    %8 = tpu.matmul %2, %7, %cst {dimension_numbers = #tpu.dot_dimension_numbers<[1], [0], [0], [1], [0, 0, 1, 1], [], []>} : vector<12x32xbf16>, vector<32x8xbf16>, vector<12x8xf32> -> vector<12x8xf32>
    %c0_7 = arith.constant 0 : index
    %c0_8 = arith.constant 0 : index
    %c0_9 = arith.constant 0 : index
    %9 = vector.load %arg7[%c0_7, %c0_8, %c0_9] : memref<4x1x8xf32, #tpu.memory_space<vmem>>, vector<1x1x8xf32>
    %10 = vector.shape_cast %9 : vector<1x1x8xf32> to vector<1x8xf32>
    %11 = vector.broadcast %10 : vector<1x8xf32> to vector<12x8xf32>
    %12 = arith.addf %8, %11 : vector<12x8xf32>
    %c0_10 = arith.constant 0 : index
    %c0_11 = arith.constant 0 : index
    %c0_12 = arith.constant 0 : index
    %13 = vector.load %arg5[%c0_10, %c0_11, %c0_12] : memref<4x32x8xbf16, #tpu.memory_space<vmem>>, vector<1x32x8xbf16>
    %14 = vector.shape_cast %13 : vector<1x32x8xbf16> to vector<32x8xbf16>
    %cst_13 = arith.constant dense<0.000000e+00> : vector<12x8xf32>
    %15 = tpu.matmul %2, %14, %cst_13 {dimension_numbers = #tpu.dot_dimension_numbers<[1], [0], [0], [1], [0, 0, 1, 1], [], []>} : vector<12x32xbf16>, vector<32x8xbf16>, vector<12x8xf32> -> vector<12x8xf32>
    %c0_14 = arith.constant 0 : index
    %c0_15 = arith.constant 0 : index
    %c0_16 = arith.constant 0 : index
    %16 = vector.load %arg8[%c0_14, %c0_15, %c0_16] : memref<4x1x8xf32, #tpu.memory_space<vmem>>, vector<1x1x8xf32>
    %17 = vector.shape_cast %16 : vector<1x1x8xf32> to vector<1x8xf32>
    %18 = vector.broadcast %17 : vector<1x8xf32> to vector<12x8xf32>
    %19 = arith.addf %15, %18 : vector<12x8xf32>
    %c0_17 = arith.constant 0 : index
    %c0_18 = arith.constant 0 : index
    %c0_19 = arith.constant 0 : index
    %20 = vector.load %arg6[%c0_17, %c0_18, %c0_19] : memref<4x32x8xbf16, #tpu.memory_space<vmem>>, vector<1x32x8xbf16>
    %21 = vector.shape_cast %20 : vector<1x32x8xbf16> to vector<32x8xbf16>
    %cst_20 = arith.constant dense<0.000000e+00> : vector<12x8xf32>
    %22 = tpu.matmul %2, %21, %cst_20 {dimension_numbers = #tpu.dot_dimension_numbers<[1], [0], [0], [1], [0, 0, 1, 1], [], []>} : vector<12x32xbf16>, vector<32x8xbf16>, vector<12x8xf32> -> vector<12x8xf32>
    %c0_21 = arith.constant 0 : index
    %c0_22 = arith.constant 0 : index
    %c0_23 = arith.constant 0 : index
    %23 = vector.load %arg9[%c0_21, %c0_22, %c0_23] : memref<4x1x8xf32, #tpu.memory_space<vmem>>, vector<1x1x8xf32>
    %24 = vector.shape_cast %23 : vector<1x1x8xf32> to vector<1x8xf32>
    %25 = vector.broadcast %24 : vector<1x8xf32> to vector<12x8xf32>
    %26 = arith.addf %22, %25 : vector<12x8xf32>
    %27 = arith.truncf %12 : vector<12x8xf32> to vector<12x8xbf16>
    %28 = arith.truncf %19 : vector<12x8xf32> to vector<12x8xbf16>
    %cst_24 = arith.constant dense<0.000000e+00> : vector<12x12xf32>
    %29 = tpu.matmul %27, %28, %cst_24 {dimension_numbers = #tpu.dot_dimension_numbers<[1], [1], [0], [0], [0, 0, 1, 0], [], []>} : vector<12x8xbf16>, vector<12x8xbf16>, vector<12x12xf32> -> vector<12x12xf32>
    %cst_25 = arith.constant 0.353553385 : f32
    %30 = vector.broadcast %cst_25 : f32 to vector<12x12xf32>
    %31 = arith.mulf %29, %30 : vector<12x12xf32>
    %cst_26 = arith.constant dense<0xFF800000> : vector<12xf32>
    %32 = vector.multi_reduction <maximumf>, %31, %cst_26 [1] : vector<12x12xf32> to vector<12xf32>
    %33 = vector.shape_cast %32 : vector<12xf32> to vector<12x1xf32>
    %34 = vector.broadcast %33 : vector<12x1xf32> to vector<12x12xf32>
    %35 = arith.subf %31, %34 : vector<12x12xf32>
    %36 = math.exp %35 : vector<12x12xf32>
    %cst_27 = arith.constant dense<0.000000e+00> : vector<12xf32>
    %37 = vector.multi_reduction <add>, %36, %cst_27 [1] : vector<12x12xf32> to vector<12xf32>
    %38 = vector.shape_cast %37 : vector<12xf32> to vector<12x1xf32>
    %39 = tpu.reciprocal %38 {approx = true} : vector<12x1xf32> -> vector<12x1xf32>
    %40 = vector.broadcast %39 : vector<12x1xf32> to vector<12x12xf32>
    %41 = arith.mulf %36, %40 : vector<12x12xf32>
    %42 = arith.truncf %41 : vector<12x12xf32> to vector<12x12xbf16>
    %43 = arith.truncf %26 : vector<12x8xf32> to vector<12x8xbf16>
    %cst_28 = arith.constant dense<0.000000e+00> : vector<12x8xf32>
    %44 = tpu.matmul %42, %43, %cst_28 {dimension_numbers = #tpu.dot_dimension_numbers<[1], [0], [0], [1], [0, 0, 1, 1], [], []>} : vector<12x12xbf16>, vector<12x8xbf16>, vector<12x8xf32> -> vector<12x8xf32>
    %45 = arith.truncf %44 : vector<12x8xf32> to vector<12x8xbf16>
    %c0_29 = arith.constant 0 : index
    %c0_30 = arith.constant 0 : index
    %c0_31 = arith.constant 0 : index
    %46 = vector.load %arg10[%c0_29, %c0_30, %c0_31] : memref<4x8x32xbf16, #tpu.memory_space<vmem>>, vector<1x8x32xbf16>
    %47 = vector.shape_cast %46 : vector<1x8x32xbf16> to vector<8x32xbf16>
    %cst_32 = arith.constant dense<0.000000e+00> : vector<12x32xf32>
    %48 = tpu.matmul %45, %47, %cst_32 {dimension_numbers = #tpu.dot_dimension_numbers<[1], [0], [0], [1], [0, 0, 1, 1], [], []>} : vector<12x8xbf16>, vector<8x32xbf16>, vector<12x32xf32> -> vector<12x32xf32>
    %49 = arith.addf %5, %48 : vector<12x32xf32>
    %c1 = arith.constant 1 : index
    %c0_33 = arith.constant 0 : index
    %c0_34 = arith.constant 0 : index
    %50 = vector.load %arg4[%c1, %c0_33, %c0_34] : memref<4x32x8xbf16, #tpu.memory_space<vmem>>, vector<1x32x8xbf16>
    %51 = vector.shape_cast %50 : vector<1x32x8xbf16> to vector<32x8xbf16>
    %cst_35 = arith.constant dense<0.000000e+00> : vector<12x8xf32>
    %52 = tpu.matmul %2, %51, %cst_35 {dimension_numbers = #tpu.dot_dimension_numbers<[1], [0], [0], [1], [0, 0, 1, 1], [], []>} : vector<12x32xbf16>, vector<32x8xbf16>, vector<12x8xf32> -> vector<12x8xf32>
    %c1_36 = arith.constant 1 : index
    %c0_37 = arith.constant 0 : index
    %c0_38 = arith.constant 0 : index
    %53 = vector.load %arg7[%c1_36, %c0_37, %c0_38] : memref<4x1x8xf32, #tpu.memory_space<vmem>>, vector<1x1x8xf32>
    %54 = vector.shape_cast %53 : vector<1x1x8xf32> to vector<1x8xf32>
    %55 = vector.broadcast %54 : vector<1x8xf32> to vector<12x8xf32>
    %56 = arith.addf %52, %55 : vector<12x8xf32>
    %c1_39 = arith.constant 1 : index
    %c0_40 = arith.constant 0 : index
    %c0_41 = arith.constant 0 : index
    %57 = vector.load %arg5[%c1_39, %c0_40, %c0_41] : memref<4x32x8xbf16, #tpu.memory_space<vmem>>, vector<1x32x8xbf16>
    %58 = vector.shape_cast %57 : vector<1x32x8xbf16> to vector<32x8xbf16>
    %cst_42 = arith.constant dense<0.000000e+00> : vector<12x8xf32>
    %59 = tpu.matmul %2, %58, %cst_42 {dimension_numbers = #tpu.dot_dimension_numbers<[1], [0], [0], [1], [0, 0, 1, 1], [], []>} : vector<12x32xbf16>, vector<32x8xbf16>, vector<12x8xf32> -> vector<12x8xf32>
    %c1_43 = arith.constant 1 : index
    %c0_44 = arith.constant 0 : index
    %c0_45 = arith.constant 0 : index
    %60 = vector.load %arg8[%c1_43, %c0_44, %c0_45] : memref<4x1x8xf32, #tpu.memory_space<vmem>>, vector<1x1x8xf32>
    %61 = vector.shape_cast %60 : vector<1x1x8xf32> to vector<1x8xf32>
    %62 = vector.broadcast %61 : vector<1x8xf32> to vector<12x8xf32>
    %63 = arith.addf %59, %62 : vector<12x8xf32>
    %c1_46 = arith.constant 1 : index
    %c0_47 = arith.constant 0 : index
    %c0_48 = arith.constant 0 : index
    %64 = vector.load %arg6[%c1_46, %c0_47, %c0_48] : memref<4x32x8xbf16, #tpu.memory_space<vmem>>, vector<1x32x8xbf16>
    %65 = vector.shape_cast %64 : vector<1x32x8xbf16> to vector<32x8xbf16>
    %cst_49 = arith.constant dense<0.000000e+00> : vector<12x8xf32>
    %66 = tpu.matmul %2, %65, %cst_49 {dimension_numbers = #tpu.dot_dimension_numbers<[1], [0], [0], [1], [0, 0, 1, 1], [], []>} : vector<12x32xbf16>, vector<32x8xbf16>, vector<12x8xf32> -> vector<12x8xf32>
    %c1_50 = arith.constant 1 : index
    %c0_51 = arith.constant 0 : index
    %c0_52 = arith.constant 0 : index
    %67 = vector.load %arg9[%c1_50, %c0_51, %c0_52] : memref<4x1x8xf32, #tpu.memory_space<vmem>>, vector<1x1x8xf32>
    %68 = vector.shape_cast %67 : vector<1x1x8xf32> to vector<1x8xf32>
    %69 = vector.broadcast %68 : vector<1x8xf32> to vector<12x8xf32>
    %70 = arith.addf %66, %69 : vector<12x8xf32>
    %71 = arith.truncf %56 : vector<12x8xf32> to vector<12x8xbf16>
    %72 = arith.truncf %63 : vector<12x8xf32> to vector<12x8xbf16>
    %cst_53 = arith.constant dense<0.000000e+00> : vector<12x12xf32>
    %73 = tpu.matmul %71, %72, %cst_53 {dimension_numbers = #tpu.dot_dimension_numbers<[1], [1], [0], [0], [0, 0, 1, 0], [], []>} : vector<12x8xbf16>, vector<12x8xbf16>, vector<12x12xf32> -> vector<12x12xf32>
    %cst_54 = arith.constant 0.353553385 : f32
    %74 = vector.broadcast %cst_54 : f32 to vector<12x12xf32>
    %75 = arith.mulf %73, %74 : vector<12x12xf32>
    %cst_55 = arith.constant dense<0xFF800000> : vector<12xf32>
    %76 = vector.multi_reduction <maximumf>, %75, %cst_55 [1] : vector<12x12xf32> to vector<12xf32>
    %77 = vector.shape_cast %76 : vector<12xf32> to vector<12x1xf32>
    %78 = vector.broadcast %77 : vector<12x1xf32> to vector<12x12xf32>
    %79 = arith.subf %75, %78 : vector<12x12xf32>
    %80 = math.exp %79 : vector<12x12xf32>
    %cst_56 = arith.constant dense<0.000000e+00> : vector<12xf32>
    %81 = vector.multi_reduction <add>, %80, %cst_56 [1] : vector<12x12xf32> to vector<12xf32>
    %82 = vector.shape_cast %81 : vector<12xf32> to vector<12x1xf32>
    %83 = tpu.reciprocal %82 {approx = true} : vector<12x1xf32> -> vector<12x1xf32>
    %84 = vector.broadcast %83 : vector<12x1xf32> to vector<12x12xf32>
    %85 = arith.mulf %80, %84 : vector<12x12xf32>
    %86 = arith.truncf %85 : vector<12x12xf32> to vector<12x12xbf16>
    %87 = arith.truncf %70 : vector<12x8xf32> to vector<12x8xbf16>
    %cst_57 = arith.constant dense<0.000000e+00> : vector<12x8xf32>
    %88 = tpu.matmul %86, %87, %cst_57 {dimension_numbers = #tpu.dot_dimension_numbers<[1], [0], [0], [1], [0, 0, 1, 1], [], []>} : vector<12x12xbf16>, vector<12x8xbf16>, vector<12x8xf32> -> vector<12x8xf32>
    %89 = arith.truncf %88 : vector<12x8xf32> to vector<12x8xbf16>
    %c1_58 = arith.constant 1 : index
    %c0_59 = arith.constant 0 : index
    %c0_60 = arith.constant 0 : index
    %90 = vector.load %arg10[%c1_58, %c0_59, %c0_60] : memref<4x8x32xbf16, #tpu.memory_space<vmem>>, vector<1x8x32xbf16>
    %91 = vector.shape_cast %90 : vector<1x8x32xbf16> to vector<8x32xbf16>
    %cst_61 = arith.constant dense<0.000000e+00> : vector<12x32xf32>
    %92 = tpu.matmul %89, %91, %cst_61 {dimension_numbers = #tpu.dot_dimension_numbers<[1], [0], [0], [1], [0, 0, 1, 1], [], []>} : vector<12x8xbf16>, vector<8x32xbf16>, vector<12x32xf32> -> vector<12x32xf32>
    %93 = arith.addf %49, %92 : vector<12x32xf32>
    %c2 = arith.constant 2 : index
    %c0_62 = arith.constant 0 : index
    %c0_63 = arith.constant 0 : index
    %94 = vector.load %arg4[%c2, %c0_62, %c0_63] : memref<4x32x8xbf16, #tpu.memory_space<vmem>>, vector<1x32x8xbf16>
    %95 = vector.shape_cast %94 : vector<1x32x8xbf16> to vector<32x8xbf16>
    %cst_64 = arith.constant dense<0.000000e+00> : vector<12x8xf32>
    %96 = tpu.matmul %2, %95, %cst_64 {dimension_numbers = #tpu.dot_dimension_numbers<[1], [0], [0], [1], [0, 0, 1, 1], [], []>} : vector<12x32xbf16>, vector<32x8xbf16>, vector<12x8xf32> -> vector<12x8xf32>
    %c2_65 = arith.constant 2 : index
    %c0_66 = arith.constant 0 : index
    %c0_67 = arith.constant 0 : index
    %97 = vector.load %arg7[%c2_65, %c0_66, %c0_67] : memref<4x1x8xf32, #tpu.memory_space<vmem>>, vector<1x1x8xf32>
    %98 = vector.shape_cast %97 : vector<1x1x8xf32> to vector<1x8xf32>
    %99 = vector.broadcast %98 : vector<1x8xf32> to vector<12x8xf32>
    %100 = arith.addf %96, %99 : vector<12x8xf32>
    %c2_68 = arith.constant 2 : index
    %c0_69 = arith.constant 0 : index
    %c0_70 = arith.constant 0 : index
    %101 = vector.load %arg5[%c2_68, %c0_69, %c0_70] : memref<4x32x8xbf16, #tpu.memory_space<vmem>>, vector<1x32x8xbf16>
    %102 = vector.shape_cast %101 : vector<1x32x8xbf16> to vector<32x8xbf16>
    %cst_71 = arith.constant dense<0.000000e+00> : vector<12x8xf32>
    %103 = tpu.matmul %2, %102, %cst_71 {dimension_numbers = #tpu.dot_dimension_numbers<[1], [0], [0], [1], [0, 0, 1, 1], [], []>} : vector<12x32xbf16>, vector<32x8xbf16>, vector<12x8xf32> -> vector<12x8xf32>
    %c2_72 = arith.constant 2 : index
    %c0_73 = arith.constant 0 : index
    %c0_74 = arith.constant 0 : index
    %104 = vector.load %arg8[%c2_72, %c0_73, %c0_74] : memref<4x1x8xf32, #tpu.memory_space<vmem>>, vector<1x1x8xf32>
    %105 = vector.shape_cast %104 : vector<1x1x8xf32> to vector<1x8xf32>
    %106 = vector.broadcast %105 : vector<1x8xf32> to vector<12x8xf32>
    %107 = arith.addf %103, %106 : vector<12x8xf32>
    %c2_75 = arith.constant 2 : index
    %c0_76 = arith.constant 0 : index
    %c0_77 = arith.constant 0 : index
    %108 = vector.load %arg6[%c2_75, %c0_76, %c0_77] : memref<4x32x8xbf16, #tpu.memory_space<vmem>>, vector<1x32x8xbf16>
    %109 = vector.shape_cast %108 : vector<1x32x8xbf16> to vector<32x8xbf16>
    %cst_78 = arith.constant dense<0.000000e+00> : vector<12x8xf32>
    %110 = tpu.matmul %2, %109, %cst_78 {dimension_numbers = #tpu.dot_dimension_numbers<[1], [0], [0], [1], [0, 0, 1, 1], [], []>} : vector<12x32xbf16>, vector<32x8xbf16>, vector<12x8xf32> -> vector<12x8xf32>
    %c2_79 = arith.constant 2 : index
    %c0_80 = arith.constant 0 : index
    %c0_81 = arith.constant 0 : index
    %111 = vector.load %arg9[%c2_79, %c0_80, %c0_81] : memref<4x1x8xf32, #tpu.memory_space<vmem>>, vector<1x1x8xf32>
    %112 = vector.shape_cast %111 : vector<1x1x8xf32> to vector<1x8xf32>
    %113 = vector.broadcast %112 : vector<1x8xf32> to vector<12x8xf32>
    %114 = arith.addf %110, %113 : vector<12x8xf32>
    %115 = arith.truncf %100 : vector<12x8xf32> to vector<12x8xbf16>
    %116 = arith.truncf %107 : vector<12x8xf32> to vector<12x8xbf16>
    %cst_82 = arith.constant dense<0.000000e+00> : vector<12x12xf32>
    %117 = tpu.matmul %115, %116, %cst_82 {dimension_numbers = #tpu.dot_dimension_numbers<[1], [1], [0], [0], [0, 0, 1, 0], [], []>} : vector<12x8xbf16>, vector<12x8xbf16>, vector<12x12xf32> -> vector<12x12xf32>
    %cst_83 = arith.constant 0.353553385 : f32
    %118 = vector.broadcast %cst_83 : f32 to vector<12x12xf32>
    %119 = arith.mulf %117, %118 : vector<12x12xf32>
    %cst_84 = arith.constant dense<0xFF800000> : vector<12xf32>
    %120 = vector.multi_reduction <maximumf>, %119, %cst_84 [1] : vector<12x12xf32> to vector<12xf32>
    %121 = vector.shape_cast %120 : vector<12xf32> to vector<12x1xf32>
    %122 = vector.broadcast %121 : vector<12x1xf32> to vector<12x12xf32>
    %123 = arith.subf %119, %122 : vector<12x12xf32>
    %124 = math.exp %123 : vector<12x12xf32>
    %cst_85 = arith.constant dense<0.000000e+00> : vector<12xf32>
    %125 = vector.multi_reduction <add>, %124, %cst_85 [1] : vector<12x12xf32> to vector<12xf32>
    %126 = vector.shape_cast %125 : vector<12xf32> to vector<12x1xf32>
    %127 = tpu.reciprocal %126 {approx = true} : vector<12x1xf32> -> vector<12x1xf32>
    %128 = vector.broadcast %127 : vector<12x1xf32> to vector<12x12xf32>
    %129 = arith.mulf %124, %128 : vector<12x12xf32>
    %130 = arith.truncf %129 : vector<12x12xf32> to vector<12x12xbf16>
    %131 = arith.truncf %114 : vector<12x8xf32> to vector<12x8xbf16>
    %cst_86 = arith.constant dense<0.000000e+00> : vector<12x8xf32>
    %132 = tpu.matmul %130, %131, %cst_86 {dimension_numbers = #tpu.dot_dimension_numbers<[1], [0], [0], [1], [0, 0, 1, 1], [], []>} : vector<12x12xbf16>, vector<12x8xbf16>, vector<12x8xf32> -> vector<12x8xf32>
    %133 = arith.truncf %132 : vector<12x8xf32> to vector<12x8xbf16>
    %c2_87 = arith.constant 2 : index
    %c0_88 = arith.constant 0 : index
    %c0_89 = arith.constant 0 : index
    %134 = vector.load %arg10[%c2_87, %c0_88, %c0_89] : memref<4x8x32xbf16, #tpu.memory_space<vmem>>, vector<1x8x32xbf16>
    %135 = vector.shape_cast %134 : vector<1x8x32xbf16> to vector<8x32xbf16>
    %cst_90 = arith.constant dense<0.000000e+00> : vector<12x32xf32>
    %136 = tpu.matmul %133, %135, %cst_90 {dimension_numbers = #tpu.dot_dimension_numbers<[1], [0], [0], [1], [0, 0, 1, 1], [], []>} : vector<12x8xbf16>, vector<8x32xbf16>, vector<12x32xf32> -> vector<12x32xf32>
    %137 = arith.addf %93, %136 : vector<12x32xf32>
    %c3 = arith.constant 3 : index
    %c0_91 = arith.constant 0 : index
    %c0_92 = arith.constant 0 : index
    %138 = vector.load %arg4[%c3, %c0_91, %c0_92] : memref<4x32x8xbf16, #tpu.memory_space<vmem>>, vector<1x32x8xbf16>
    %139 = vector.shape_cast %138 : vector<1x32x8xbf16> to vector<32x8xbf16>
    %cst_93 = arith.constant dense<0.000000e+00> : vector<12x8xf32>
    %140 = tpu.matmul %2, %139, %cst_93 {dimension_numbers = #tpu.dot_dimension_numbers<[1], [0], [0], [1], [0, 0, 1, 1], [], []>} : vector<12x32xbf16>, vector<32x8xbf16>, vector<12x8xf32> -> vector<12x8xf32>
    %c3_94 = arith.constant 3 : index
    %c0_95 = arith.constant 0 : index
    %c0_96 = arith.constant 0 : index
    %141 = vector.load %arg7[%c3_94, %c0_95, %c0_96] : memref<4x1x8xf32, #tpu.memory_space<vmem>>, vector<1x1x8xf32>
    %142 = vector.shape_cast %141 : vector<1x1x8xf32> to vector<1x8xf32>
    %143 = vector.broadcast %142 : vector<1x8xf32> to vector<12x8xf32>
    %144 = arith.addf %140, %143 : vector<12x8xf32>
    %c3_97 = arith.constant 3 : index
    %c0_98 = arith.constant 0 : index
    %c0_99 = arith.constant 0 : index
    %145 = vector.load %arg5[%c3_97, %c0_98, %c0_99] : memref<4x32x8xbf16, #tpu.memory_space<vmem>>, vector<1x32x8xbf16>
    %146 = vector.shape_cast %145 : vector<1x32x8xbf16> to vector<32x8xbf16>
    %cst_100 = arith.constant dense<0.000000e+00> : vector<12x8xf32>
    %147 = tpu.matmul %2, %146, %cst_100 {dimension_numbers = #tpu.dot_dimension_numbers<[1], [0], [0], [1], [0, 0, 1, 1], [], []>} : vector<12x32xbf16>, vector<32x8xbf16>, vector<12x8xf32> -> vector<12x8xf32>
    %c3_101 = arith.constant 3 : index
    %c0_102 = arith.constant 0 : index
    %c0_103 = arith.constant 0 : index
    %148 = vector.load %arg8[%c3_101, %c0_102, %c0_103] : memref<4x1x8xf32, #tpu.memory_space<vmem>>, vector<1x1x8xf32>
    %149 = vector.shape_cast %148 : vector<1x1x8xf32> to vector<1x8xf32>
    %150 = vector.broadcast %149 : vector<1x8xf32> to vector<12x8xf32>
    %151 = arith.addf %147, %150 : vector<12x8xf32>
    %c3_104 = arith.constant 3 : index
    %c0_105 = arith.constant 0 : index
    %c0_106 = arith.constant 0 : index
    %152 = vector.load %arg6[%c3_104, %c0_105, %c0_106] : memref<4x32x8xbf16, #tpu.memory_space<vmem>>, vector<1x32x8xbf16>
    %153 = vector.shape_cast %152 : vector<1x32x8xbf16> to vector<32x8xbf16>
    %cst_107 = arith.constant dense<0.000000e+00> : vector<12x8xf32>
    %154 = tpu.matmul %2, %153, %cst_107 {dimension_numbers = #tpu.dot_dimension_numbers<[1], [0], [0], [1], [0, 0, 1, 1], [], []>} : vector<12x32xbf16>, vector<32x8xbf16>, vector<12x8xf32> -> vector<12x8xf32>
    %c3_108 = arith.constant 3 : index
    %c0_109 = arith.constant 0 : index
    %c0_110 = arith.constant 0 : index
    %155 = vector.load %arg9[%c3_108, %c0_109, %c0_110] : memref<4x1x8xf32, #tpu.memory_space<vmem>>, vector<1x1x8xf32>
    %156 = vector.shape_cast %155 : vector<1x1x8xf32> to vector<1x8xf32>
    %157 = vector.broadcast %156 : vector<1x8xf32> to vector<12x8xf32>
    %158 = arith.addf %154, %157 : vector<12x8xf32>
    %159 = arith.truncf %144 : vector<12x8xf32> to vector<12x8xbf16>
    %160 = arith.truncf %151 : vector<12x8xf32> to vector<12x8xbf16>
    %cst_111 = arith.constant dense<0.000000e+00> : vector<12x12xf32>
    %161 = tpu.matmul %159, %160, %cst_111 {dimension_numbers = #tpu.dot_dimension_numbers<[1], [1], [0], [0], [0, 0, 1, 0], [], []>} : vector<12x8xbf16>, vector<12x8xbf16>, vector<12x12xf32> -> vector<12x12xf32>
    %cst_112 = arith.constant 0.353553385 : f32
    %162 = vector.broadcast %cst_112 : f32 to vector<12x12xf32>
    %163 = arith.mulf %161, %162 : vector<12x12xf32>
    %cst_113 = arith.constant dense<0xFF800000> : vector<12xf32>
    %164 = vector.multi_reduction <maximumf>, %163, %cst_113 [1] : vector<12x12xf32> to vector<12xf32>
    %165 = vector.shape_cast %164 : vector<12xf32> to vector<12x1xf32>
    %166 = vector.broadcast %165 : vector<12x1xf32> to vector<12x12xf32>
    %167 = arith.subf %163, %166 : vector<12x12xf32>
    %168 = math.exp %167 : vector<12x12xf32>
    %cst_114 = arith.constant dense<0.000000e+00> : vector<12xf32>
    %169 = vector.multi_reduction <add>, %168, %cst_114 [1] : vector<12x12xf32> to vector<12xf32>
    %170 = vector.shape_cast %169 : vector<12xf32> to vector<12x1xf32>
    %171 = tpu.reciprocal %170 {approx = true} : vector<12x1xf32> -> vector<12x1xf32>
    %172 = vector.broadcast %171 : vector<12x1xf32> to vector<12x12xf32>
    %173 = arith.mulf %168, %172 : vector<12x12xf32>
    %174 = arith.truncf %173 : vector<12x12xf32> to vector<12x12xbf16>
    %175 = arith.truncf %158 : vector<12x8xf32> to vector<12x8xbf16>
    %cst_115 = arith.constant dense<0.000000e+00> : vector<12x8xf32>
    %176 = tpu.matmul %174, %175, %cst_115 {dimension_numbers = #tpu.dot_dimension_numbers<[1], [0], [0], [1], [0, 0, 1, 1], [], []>} : vector<12x12xbf16>, vector<12x8xbf16>, vector<12x8xf32> -> vector<12x8xf32>
    %177 = arith.truncf %176 : vector<12x8xf32> to vector<12x8xbf16>
    %c3_116 = arith.constant 3 : index
    %c0_117 = arith.constant 0 : index
    %c0_118 = arith.constant 0 : index
    %178 = vector.load %arg10[%c3_116, %c0_117, %c0_118] : memref<4x8x32xbf16, #tpu.memory_space<vmem>>, vector<1x8x32xbf16>
    %179 = vector.shape_cast %178 : vector<1x8x32xbf16> to vector<8x32xbf16>
    %cst_119 = arith.constant dense<0.000000e+00> : vector<12x32xf32>
    %180 = tpu.matmul %177, %179, %cst_119 {dimension_numbers = #tpu.dot_dimension_numbers<[1], [0], [0], [1], [0, 0, 1, 1], [], []>} : vector<12x8xbf16>, vector<8x32xbf16>, vector<12x32xf32> -> vector<12x32xf32>
    %181 = arith.addf %137, %180 : vector<12x32xf32>
    %c0_120 = arith.constant 0 : index
    %c0_121 = arith.constant 0 : index
    %c0_122 = arith.constant 0 : index
    %182 = vector.load %arg12[%c0_120, %c0_121, %c0_122] : memref<1x12x32xf32, #tpu.memory_space<vmem>>, vector<1x12x32xf32>
    %183 = vector.shape_cast %182 : vector<1x12x32xf32> to vector<12x32xf32>
    %184 = vector.shape_cast %181 : vector<12x32xf32> to vector<1x12x32xf32>
    tpu.vector_store %arg12[%c0_120, %c0_121, %c0_122], %184 {strides = array<i32>} : memref<1x12x32xf32, #tpu.memory_space<vmem>>, vector<1x12x32xf32>,
    return
  }
  func.func @transform_0(%arg0: i32) -> (i32, i32, i32) {
    %c0_i32 = arith.constant 0 : i32
    %c0_i32_0 = arith.constant 0 : i32
    %c0_i32_1 = arith.constant 0 : i32
    return %arg0, %c0_i32, %c0_i32_0 : i32, i32, i32
  }
  func.func @transform_1(%arg0: i32) -> (i32, i32) {
    %c0_i32 = arith.constant 0 : i32
    %c0_i32_0 = arith.constant 0 : i32
    %c0_i32_1 = arith.constant 0 : i32
    return %c0_i32, %c0_i32_0 : i32, i32
  }
  func.func @transform_2(%arg0: i32) -> (i32, i32) {
    %c0_i32 = arith.constant 0 : i32
    %c0_i32_0 = arith.constant 0 : i32
    %c0_i32_1 = arith.constant 0 : i32
    return %c0_i32, %c0_i32_0 : i32, i32
  }
  func.func @transform_3(%arg0: i32) -> (i32, i32, i32) {
    %c0_i32 = arith.constant 0 : i32
    %c0_i32_0 = arith.constant 0 : i32
    %c0_i32_1 = arith.constant 0 : i32
    %c0_i32_2 = arith.constant 0 : i32
    return %c0_i32, %c0_i32_0, %c0_i32_1 : i32, i32, i32
  }
  func.func @transform_4(%arg0: i32) -> (i32, i32, i32) {
    %c0_i32 = arith.constant 0 : i32
    %c0_i32_0 = arith.constant 0 : i32
    %c0_i32_1 = arith.constant 0 : i32
    %c0_i32_2 = arith.constant 0 : i32
    return %c0_i32, %c0_i32_0, %c0_i32_1 : i32, i32, i32
  }
  func.func @transform_5(%arg0: i32) -> (i32, i32, i32) {
    %c0_i32 = arith.constant 0 : i32
    %c0_i32_0 = arith.constant 0 : i32
    %c0_i32_1 = arith.constant 0 : i32
    %c0_i32_2 = arith.constant 0 : i32
    return %c0_i32, %c0_i32_0, %c0_i32_1 : i32, i32, i32
  }
  func.func @transform_6(%arg0: i32) -> (i32, i32, i32) {
    %c0_i32 = arith.constant 0 : i32
    %c0_i32_0 = arith.constant 0 : i32
    %c0_i32_1 = arith.constant 0 : i32
    %c0_i32_2 = arith.constant 0 : i32
    return %c0_i32, %c0_i32_0, %c0_i32_1 : i32, i32, i32
  }
  func.func @transform_7(%arg0: i32) -> (i32, i32, i32) {
    %c0_i32 = arith.constant 0 : i32
    %c0_i32_0 = arith.constant 0 : i32
    %c0_i32_1 = arith.constant 0 : i32
    %c0_i32_2 = arith.constant 0 : i32
    return %c0_i32, %c0_i32_0, %c0_i32_1 : i32, i32, i32
  }
  func.func @transform_8(%arg0: i32) -> (i32, i32, i32) {
    %c0_i32 = arith.constant 0 : i32
    %c0_i32_0 = arith.constant 0 : i32
    %c0_i32_1 = arith.constant 0 : i32
    %c0_i32_2 = arith.constant 0 : i32
    return %c0_i32, %c0_i32_0, %c0_i32_1 : i32, i32, i32
  }
  func.func @transform_9(%arg0: i32) -> (i32, i32, i32) {
    %c0_i32 = arith.constant 0 : i32
    %c0_i32_0 = arith.constant 0 : i32
    %c0_i32_1 = arith.constant 0 : i32
    %c0_i32_2 = arith.constant 0 : i32
    return %c0_i32, %c0_i32_0, %c0_i32_1 : i32, i32, i32
  }
  func.func @transform_10(%arg0: i32) -> (i32, i32) {
    %c0_i32 = arith.constant 0 : i32
    %c0_i32_0 = arith.constant 0 : i32
    %c0_i32_1 = arith.constant 0 : i32
    return %c0_i32, %c0_i32_0 : i32, i32
  }
  func.func @transform_11(%arg0: i32) -> (i32, i32, i32) {
    %c0_i32 = arith.constant 0 : i32
    %c0_i32_0 = arith.constant 0 : i32
    %c0_i32_1 = arith.constant 0 : i32
    return %arg0, %c0_i32, %c0_i32_0 : i32, i32, i32
  }
}

module attributes {stable_mosaic.version = 11 : i64} {
  func.func @_layernorm_kernel(%arg0: i32, %arg1: memref<16x32xf32, #tpu.memory_space<vmem>>, %arg2: memref<1x32xf32, #tpu.memory_space<vmem>>, %arg3: memref<1x32xf32, #tpu.memory_space<vmem>>, %arg4: memref<16x32xf32, #tpu.memory_space<vmem>>) attributes {dimension_semantics = [#tpu.dimension_semantics<parallel>], iteration_bounds = array<i64: 1>, scalar_prefetch = 0 : i64, scratch_operands = 0 : i64, tpu.core_type = #tpu.core_type<tc>, window_params = [{transform_indices = @transform_0, window_bounds = array<i64: 16, 32>}, {pipeline_mode = #tpu.pipeline_mode<synchronous>, transform_indices = @transform_1, window_bounds = array<i64: 1, 32>}, {pipeline_mode = #tpu.pipeline_mode<synchronous>, transform_indices = @transform_2, window_bounds = array<i64: 1, 32>}, {transform_indices = @transform_3, window_bounds = array<i64: 16, 32>}]} {
    %c0 = arith.constant 0 : index
    %c0_0 = arith.constant 0 : index
    %0 = vector.load %arg1[%c0, %c0_0] : memref<16x32xf32, #tpu.memory_space<vmem>>, vector<16x32xf32>
    %c0_1 = arith.constant 0 : index
    %c0_2 = arith.constant 0 : index
    %1 = vector.load %arg2[%c0_1, %c0_2] : memref<1x32xf32, #tpu.memory_space<vmem>>, vector<1x32xf32>
    %c0_3 = arith.constant 0 : index
    %c0_4 = arith.constant 0 : index
    %2 = vector.load %arg3[%c0_3, %c0_4] : memref<1x32xf32, #tpu.memory_space<vmem>>, vector<1x32xf32>
    %cst = arith.constant dense<0.000000e+00> : vector<16xf32>
    %3 = vector.multi_reduction <add>, %0, %cst [1] : vector<16x32xf32> to vector<16xf32>
    %4 = vector.shape_cast %3 : vector<16xf32> to vector<16x1xf32>
    %cst_5 = arith.constant 3.200000e+01 : f32
    %5 = vector.broadcast %cst_5 : f32 to vector<16x1xf32>
    %6 = arith.divf %4, %5 : vector<16x1xf32>
    %7 = vector.broadcast %6 : vector<16x1xf32> to vector<16x32xf32>
    %8 = arith.subf %0, %7 : vector<16x32xf32>
    %9 = arith.mulf %8, %8 : vector<16x32xf32>
    %cst_6 = arith.constant dense<0.000000e+00> : vector<16xf32>
    %10 = vector.multi_reduction <add>, %9, %cst_6 [1] : vector<16x32xf32> to vector<16xf32>
    %11 = vector.shape_cast %10 : vector<16xf32> to vector<16x1xf32>
    %cst_7 = arith.constant 3.200000e+01 : f32
    %12 = vector.broadcast %cst_7 : f32 to vector<16x1xf32>
    %13 = arith.divf %11, %12 : vector<16x1xf32>
    %14 = vector.broadcast %6 : vector<16x1xf32> to vector<16x32xf32>
    %15 = arith.subf %0, %14 : vector<16x32xf32>
    %cst_8 = arith.constant 9.99999974E-6 : f32
    %16 = vector.broadcast %cst_8 : f32 to vector<16x1xf32>
    %17 = arith.addf %13, %16 : vector<16x1xf32>
    %18 = math.rsqrt %17 : vector<16x1xf32>
    %19 = vector.broadcast %18 : vector<16x1xf32> to vector<16x32xf32>
    %20 = arith.mulf %15, %19 : vector<16x32xf32>
    %21 = vector.broadcast %1 : vector<1x32xf32> to vector<16x32xf32>
    %22 = arith.mulf %20, %21 : vector<16x32xf32>
    %23 = vector.broadcast %2 : vector<1x32xf32> to vector<16x32xf32>
    %24 = arith.addf %22, %23 : vector<16x32xf32>
    %c0_9 = arith.constant 0 : index
    %c0_10 = arith.constant 0 : index
    %25 = vector.load %arg4[%c0_9, %c0_10] : memref<16x32xf32, #tpu.memory_space<vmem>>, vector<16x32xf32>
    tpu.vector_store %arg4[%c0_9, %c0_10], %24 {strides = array<i32>} : memref<16x32xf32, #tpu.memory_space<vmem>>, vector<16x32xf32>,
    return
  }
  func.func @transform_0(%arg0: i32) -> (i32, i32) {
    %c0_i32 = arith.constant 0 : i32
    %c0_i32_0 = arith.constant 0 : i32
    return %arg0, %c0_i32 : i32, i32
  }
  func.func @transform_1(%arg0: i32) -> (i32, i32) {
    %c0_i32 = arith.constant 0 : i32
    %c0_i32_0 = arith.constant 0 : i32
    %c0_i32_1 = arith.constant 0 : i32
    return %c0_i32, %c0_i32_0 : i32, i32
  }
  func.func @transform_2(%arg0: i32) -> (i32, i32) {
    %c0_i32 = arith.constant 0 : i32
    %c0_i32_0 = arith.constant 0 : i32
    %c0_i32_1 = arith.constant 0 : i32
    return %c0_i32, %c0_i32_0 : i32, i32
  }
  func.func @transform_3(%arg0: i32) -> (i32, i32) {
    %c0_i32 = arith.constant 0 : i32
    %c0_i32_0 = arith.constant 0 : i32
    return %arg0, %c0_i32 : i32, i32
  }
}

module attributes {stable_mosaic.version = 11 : i64} {
  func.func @_fused_mlp_kernel(%arg0: i32, %arg1: i32, %arg2: memref<16x32xf32, #tpu.memory_space<vmem>>, %arg3: memref<1x32xf32, #tpu.memory_space<vmem>>, %arg4: memref<1x32xf32, #tpu.memory_space<vmem>>, %arg5: memref<32x64xbf16, #tpu.memory_space<vmem>>, %arg6: memref<1x64xf32, #tpu.memory_space<vmem>>, %arg7: memref<64x32xbf16, #tpu.memory_space<vmem>>, %arg8: memref<1x32xf32, #tpu.memory_space<vmem>>, %arg9: memref<16x32xf32, #tpu.memory_space<vmem>>, %arg10: memref<16x32xf32, #tpu.memory_space<vmem>>, %arg11: memref<16x32xbf16, #tpu.memory_space<vmem>>) attributes {dimension_semantics = [#tpu.dimension_semantics<parallel>, #tpu.dimension_semantics<arbitrary>], iteration_bounds = array<i64: 1, 1>, scalar_prefetch = 0 : i64, scratch_operands = 2 : i64, tpu.core_type = #tpu.core_type<tc>, window_params = [{transform_indices = @transform_0, window_bounds = array<i64: 16, 32>}, {pipeline_mode = #tpu.pipeline_mode<synchronous>, transform_indices = @transform_1, window_bounds = array<i64: 1, 32>}, {pipeline_mode = #tpu.pipeline_mode<synchronous>, transform_indices = @transform_2, window_bounds = array<i64: 1, 32>}, {transform_indices = @transform_3, window_bounds = array<i64: 32, 64>}, {transform_indices = @transform_4, window_bounds = array<i64: 1, 64>}, {transform_indices = @transform_5, window_bounds = array<i64: 64, 32>}, {pipeline_mode = #tpu.pipeline_mode<synchronous>, transform_indices = @transform_6, window_bounds = array<i64: 1, 32>}, {transform_indices = @transform_7, window_bounds = array<i64: 16, 32>}]} {
    %c0_i32 = arith.constant 0 : i32
    %0 = arith.cmpi eq, %arg1, %c0_i32 : i32
    %1 = arith.extui %0 : i1 to i32
    %c0_i32_0 = arith.constant 0 : i32
    %2 = arith.cmpi ne, %1, %c0_i32_0 : i32
    scf.if %2 {
      %c0_19 = arith.constant 0 : index
      %c0_20 = arith.constant 0 : index
      %31 = vector.load %arg2[%c0_19, %c0_20] : memref<16x32xf32, #tpu.memory_space<vmem>>, vector<16x32xf32>
      %32 = arith.truncf %31 : vector<16x32xf32> to vector<16x32xbf16>
      %c0_21 = arith.constant 0 : index
      %c0_22 = arith.constant 0 : index
      %33 = vector.load %arg11[%c0_21, %c0_22] : memref<16x32xbf16, #tpu.memory_space<vmem>>, vector<16x32xbf16>
      tpu.vector_store %arg11[%c0_21, %c0_22], %32 {strides = array<i32>} : memref<16x32xbf16, #tpu.memory_space<vmem>>, vector<16x32xbf16>,
      %c0_23 = arith.constant 0 : index
      %c0_24 = arith.constant 0 : index
      %34 = vector.load %arg8[%c0_23, %c0_24] : memref<1x32xf32, #tpu.memory_space<vmem>>, vector<1x32xf32>
      %35 = vector.broadcast %34 : vector<1x32xf32> to vector<16x32xf32>
      %36 = arith.addf %31, %35 : vector<16x32xf32>
      %c0_25 = arith.constant 0 : index
      %c0_26 = arith.constant 0 : index
      %37 = vector.load %arg10[%c0_25, %c0_26] : memref<16x32xf32, #tpu.memory_space<vmem>>, vector<16x32xf32>
      tpu.vector_store %arg10[%c0_25, %c0_26], %36 {strides = array<i32>} : memref<16x32xf32, #tpu.memory_space<vmem>>, vector<16x32xf32>,
    } else {
    }
    %c0 = arith.constant 0 : index
    %c0_1 = arith.constant 0 : index
    %3 = vector.load %arg11[%c0, %c0_1] : memref<16x32xbf16, #tpu.memory_space<vmem>>, vector<16x32xbf16>
    %c0_2 = arith.constant 0 : index
    %c0_3 = arith.constant 0 : index
    %4 = vector.load %arg5[%c0_2, %c0_3] : memref<32x64xbf16, #tpu.memory_space<vmem>>, vector<32x64xbf16>
    %cst = arith.constant dense<0.000000e+00> : vector<16x64xf32>
    %5 = tpu.matmul %3, %4, %cst {dimension_numbers = #tpu.dot_dimension_numbers<[1], [0], [0], [1], [0, 0, 1, 1], [], []>} : vector<16x32xbf16>, vector<32x64xbf16>, vector<16x64xf32> -> vector<16x64xf32>
    %c0_4 = arith.constant 0 : index
    %c0_5 = arith.constant 0 : index
    %6 = vector.load %arg6[%c0_4, %c0_5] : memref<1x64xf32, #tpu.memory_space<vmem>>, vector<1x64xf32>
    %7 = vector.broadcast %6 : vector<1x64xf32> to vector<16x64xf32>
    %8 = arith.addf %5, %7 : vector<16x64xf32>
    %9 = arith.mulf %8, %8 : vector<16x64xf32>
    %10 = arith.mulf %8, %9 : vector<16x64xf32>
    %cst_6 = arith.constant 4.471500e-02 : f32
    %11 = vector.broadcast %cst_6 : f32 to vector<16x64xf32>
    %12 = arith.mulf %11, %10 : vector<16x64xf32>
    %13 = arith.addf %8, %12 : vector<16x64xf32>
    %cst_7 = arith.constant 0.797884583 : f32
    %14 = vector.broadcast %cst_7 : f32 to vector<16x64xf32>
    %15 = arith.mulf %14, %13 : vector<16x64xf32>
    %16 = math.tanh %15 : vector<16x64xf32>
    %cst_8 = arith.constant 1.000000e+00 : f32
    %17 = vector.broadcast %cst_8 : f32 to vector<16x64xf32>
    %18 = arith.addf %17, %16 : vector<16x64xf32>
    %cst_9 = arith.constant 5.000000e-01 : f32
    %19 = vector.broadcast %cst_9 : f32 to vector<16x64xf32>
    %20 = arith.mulf %19, %18 : vector<16x64xf32>
    %21 = arith.mulf %8, %20 : vector<16x64xf32>
    %22 = arith.truncf %21 : vector<16x64xf32> to vector<16x64xbf16>
    %c0_10 = arith.constant 0 : index
    %c0_11 = arith.constant 0 : index
    %23 = vector.load %arg10[%c0_10, %c0_11] : memref<16x32xf32, #tpu.memory_space<vmem>>, vector<16x32xf32>
    %c0_12 = arith.constant 0 : index
    %c0_13 = arith.constant 0 : index
    %24 = vector.load %arg7[%c0_12, %c0_13] : memref<64x32xbf16, #tpu.memory_space<vmem>>, vector<64x32xbf16>
    %cst_14 = arith.constant dense<0.000000e+00> : vector<16x32xf32>
    %25 = tpu.matmul %22, %24, %cst_14 {dimension_numbers = #tpu.dot_dimension_numbers<[1], [0], [0], [1], [0, 0, 1, 1], [], []>} : vector<16x64xbf16>, vector<64x32xbf16>, vector<16x32xf32> -> vector<16x32xf32>
    %26 = arith.addf %23, %25 : vector<16x32xf32>
    %c0_15 = arith.constant 0 : index
    %c0_16 = arith.constant 0 : index
    %27 = vector.load %arg10[%c0_15, %c0_16] : memref<16x32xf32, #tpu.memory_space<vmem>>, vector<16x32xf32>
    tpu.vector_store %arg10[%c0_15, %c0_16], %26 {strides = array<i32>} : memref<16x32xf32, #tpu.memory_space<vmem>>, vector<16x32xf32>,
    %c0_i32_17 = arith.constant 0 : i32
    %28 = arith.cmpi eq, %arg1, %c0_i32_17 : i32
    %29 = arith.extui %28 : i1 to i32
    %c0_i32_18 = arith.constant 0 : i32
    %30 = arith.cmpi ne, %29, %c0_i32_18 : i32
    scf.if %30 {
      %c0_19 = arith.constant 0 : index
      %c0_20 = arith.constant 0 : index
      %31 = vector.load %arg10[%c0_19, %c0_20] : memref<16x32xf32, #tpu.memory_space<vmem>>, vector<16x32xf32>
      %c0_21 = arith.constant 0 : index
      %c0_22 = arith.constant 0 : index
      %32 = vector.load %arg9[%c0_21, %c0_22] : memref<16x32xf32, #tpu.memory_space<vmem>>, vector<16x32xf32>
      tpu.vector_store %arg9[%c0_21, %c0_22], %31 {strides = array<i32>} : memref<16x32xf32, #tpu.memory_space<vmem>>, vector<16x32xf32>,
    } else {
    }
    return
  }
  func.func @transform_0(%arg0: i32, %arg1: i32) -> (i32, i32) {
    %c0_i32 = arith.constant 0 : i32
    %c0_i32_0 = arith.constant 0 : i32
    return %arg0, %c0_i32 : i32, i32
  }
  func.func @transform_1(%arg0: i32, %arg1: i32) -> (i32, i32) {
    %c0_i32 = arith.constant 0 : i32
    %c0_i32_0 = arith.constant 0 : i32
    %c0_i32_1 = arith.constant 0 : i32
    return %c0_i32, %c0_i32_0 : i32, i32
  }
  func.func @transform_2(%arg0: i32, %arg1: i32) -> (i32, i32) {
    %c0_i32 = arith.constant 0 : i32
    %c0_i32_0 = arith.constant 0 : i32
    %c0_i32_1 = arith.constant 0 : i32
    return %c0_i32, %c0_i32_0 : i32, i32
  }
  func.func @transform_3(%arg0: i32, %arg1: i32) -> (i32, i32) {
    %c0_i32 = arith.constant 0 : i32
    %c0_i32_0 = arith.constant 0 : i32
    return %c0_i32, %arg1 : i32, i32
  }
  func.func @transform_4(%arg0: i32, %arg1: i32) -> (i32, i32) {
    %c0_i32 = arith.constant 0 : i32
    %c0_i32_0 = arith.constant 0 : i32
    return %c0_i32, %arg1 : i32, i32
  }
  func.func @transform_5(%arg0: i32, %arg1: i32) -> (i32, i32) {
    %c0_i32 = arith.constant 0 : i32
    %c0_i32_0 = arith.constant 0 : i32
    return %arg1, %c0_i32 : i32, i32
  }
  func.func @transform_6(%arg0: i32, %arg1: i32) -> (i32, i32) {
    %c0_i32 = arith.constant 0 : i32
    %c0_i32_0 = arith.constant 0 : i32
    %c0_i32_1 = arith.constant 0 : i32
    return %c0_i32, %c0_i32_0 : i32, i32
  }
  func.func @transform_7(%arg0: i32, %arg1: i32) -> (i32, i32) {
    %c0_i32 = arith.constant 0 : i32
    %c0_i32_0 = arith.constant 0 : i32
    return %arg0, %c0_i32 : i32, i32
  }
}

module attributes {stable_mosaic.version = 11 : i64} {
  func.func @_matmul_kernel(%arg0: i32, %arg1: i32, %arg2: i32, %arg3: memref<8x32xbf16, #tpu.memory_space<vmem>>, %arg4: memref<32x512xbf16, #tpu.memory_space<vmem>>, %arg5: memref<1x512xf32, #tpu.memory_space<vmem>>, %arg6: memref<8x512xf32, #tpu.memory_space<vmem>>, %arg7: memref<8x512xf32, #tpu.memory_space<vmem>>) attributes {dimension_semantics = [#tpu.dimension_semantics<parallel>, #tpu.dimension_semantics<parallel>, #tpu.dimension_semantics<arbitrary>], iteration_bounds = array<i64: 1, 1, 1>, scalar_prefetch = 0 : i64, scratch_operands = 1 : i64, tpu.core_type = #tpu.core_type<tc>, window_params = [{transform_indices = @transform_0, window_bounds = array<i64: 8, 32>}, {transform_indices = @transform_1, window_bounds = array<i64: 32, 512>}, {transform_indices = @transform_2, window_bounds = array<i64: 1, 512>}, {transform_indices = @transform_3, window_bounds = array<i64: 8, 512>}]} {
    %c0_i32 = arith.constant 0 : i32
    %0 = arith.cmpi eq, %arg2, %c0_i32 : i32
    %1 = arith.extui %0 : i1 to i32
    %c0_i32_0 = arith.constant 0 : i32
    %2 = arith.cmpi ne, %1, %c0_i32_0 : i32
    scf.if %2 {
      %cst_10 = arith.constant 0.000000e+00 : f32
      %12 = vector.broadcast %cst_10 : f32 to vector<8x512xf32>
      %c0_11 = arith.constant 0 : index
      %c0_12 = arith.constant 0 : index
      %13 = vector.load %arg7[%c0_11, %c0_12] : memref<8x512xf32, #tpu.memory_space<vmem>>, vector<8x512xf32>
      tpu.vector_store %arg7[%c0_11, %c0_12], %12 {strides = array<i32>} : memref<8x512xf32, #tpu.memory_space<vmem>>, vector<8x512xf32>,
    } else {
    }
    %c0 = arith.constant 0 : index
    %c0_1 = arith.constant 0 : index
    %3 = vector.load %arg7[%c0, %c0_1] : memref<8x512xf32, #tpu.memory_space<vmem>>, vector<8x512xf32>
    %c0_2 = arith.constant 0 : index
    %c0_3 = arith.constant 0 : index
    %4 = vector.load %arg3[%c0_2, %c0_3] : memref<8x32xbf16, #tpu.memory_space<vmem>>, vector<8x32xbf16>
    %c0_4 = arith.constant 0 : index
    %c0_5 = arith.constant 0 : index
    %5 = vector.load %arg4[%c0_4, %c0_5] : memref<32x512xbf16, #tpu.memory_space<vmem>>, vector<32x512xbf16>
    %cst = arith.constant dense<0.000000e+00> : vector<8x512xf32>
    %6 = tpu.matmul %4, %5, %cst {dimension_numbers = #tpu.dot_dimension_numbers<[1], [0], [0], [1], [0, 0, 1, 1], [], []>} : vector<8x32xbf16>, vector<32x512xbf16>, vector<8x512xf32> -> vector<8x512xf32>
    %7 = arith.addf %3, %6 : vector<8x512xf32>
    %c0_6 = arith.constant 0 : index
    %c0_7 = arith.constant 0 : index
    %8 = vector.load %arg7[%c0_6, %c0_7] : memref<8x512xf32, #tpu.memory_space<vmem>>, vector<8x512xf32>
    tpu.vector_store %arg7[%c0_6, %c0_7], %7 {strides = array<i32>} : memref<8x512xf32, #tpu.memory_space<vmem>>, vector<8x512xf32>,
    %c0_i32_8 = arith.constant 0 : i32
    %9 = arith.cmpi eq, %arg2, %c0_i32_8 : i32
    %10 = arith.extui %9 : i1 to i32
    %c0_i32_9 = arith.constant 0 : i32
    %11 = arith.cmpi ne, %10, %c0_i32_9 : i32
    scf.if %11 {
      %c0_10 = arith.constant 0 : index
      %c0_11 = arith.constant 0 : index
      %12 = vector.load %arg7[%c0_10, %c0_11] : memref<8x512xf32, #tpu.memory_space<vmem>>, vector<8x512xf32>
      %c0_12 = arith.constant 0 : index
      %c0_13 = arith.constant 0 : index
      %13 = vector.load %arg5[%c0_12, %c0_13] : memref<1x512xf32, #tpu.memory_space<vmem>>, vector<1x512xf32>
      %14 = vector.broadcast %13 : vector<1x512xf32> to vector<8x512xf32>
      %15 = arith.addf %12, %14 : vector<8x512xf32>
      %c0_14 = arith.constant 0 : index
      %c0_15 = arith.constant 0 : index
      %16 = vector.load %arg6[%c0_14, %c0_15] : memref<8x512xf32, #tpu.memory_space<vmem>>, vector<8x512xf32>
      tpu.vector_store %arg6[%c0_14, %c0_15], %15 {strides = array<i32>} : memref<8x512xf32, #tpu.memory_space<vmem>>, vector<8x512xf32>,
    } else {
    }
    return
  }
  func.func @transform_0(%arg0: i32, %arg1: i32, %arg2: i32) -> (i32, i32) {
    %c0_i32 = arith.constant 0 : i32
    return %arg0, %arg2 : i32, i32
  }
  func.func @transform_1(%arg0: i32, %arg1: i32, %arg2: i32) -> (i32, i32) {
    %c0_i32 = arith.constant 0 : i32
    return %arg2, %arg1 : i32, i32
  }
  func.func @transform_2(%arg0: i32, %arg1: i32, %arg2: i32) -> (i32, i32) {
    %c0_i32 = arith.constant 0 : i32
    %c0_i32_0 = arith.constant 0 : i32
    return %c0_i32, %arg1 : i32, i32
  }
  func.func @transform_3(%arg0: i32, %arg1: i32, %arg2: i32) -> (i32, i32) {
    %c0_i32 = arith.constant 0 : i32
    return %arg0, %arg1 : i32, i32
  }
}

module attributes {stable_mosaic.version = 11 : i64} {
  func.func @_matmul_kernel(%arg0: i32, %arg1: i32, %arg2: i32, %arg3: memref<8x32xbf16, #tpu.memory_space<vmem>>, %arg4: memref<32x32xbf16, #tpu.memory_space<vmem>>, %arg5: memref<1x32xf32, #tpu.memory_space<vmem>>, %arg6: memref<8x32xf32, #tpu.memory_space<vmem>>, %arg7: memref<8x32xf32, #tpu.memory_space<vmem>>) attributes {dimension_semantics = [#tpu.dimension_semantics<parallel>, #tpu.dimension_semantics<parallel>, #tpu.dimension_semantics<arbitrary>], iteration_bounds = array<i64: 1, 1, 1>, scalar_prefetch = 0 : i64, scratch_operands = 1 : i64, tpu.core_type = #tpu.core_type<tc>, window_params = [{transform_indices = @transform_0, window_bounds = array<i64: 8, 32>}, {transform_indices = @transform_1, window_bounds = array<i64: 32, 32>}, {transform_indices = @transform_2, window_bounds = array<i64: 1, 32>}, {transform_indices = @transform_3, window_bounds = array<i64: 8, 32>}]} {
    %c0_i32 = arith.constant 0 : i32
    %0 = arith.cmpi eq, %arg2, %c0_i32 : i32
    %1 = arith.extui %0 : i1 to i32
    %c0_i32_0 = arith.constant 0 : i32
    %2 = arith.cmpi ne, %1, %c0_i32_0 : i32
    scf.if %2 {
      %cst_10 = arith.constant 0.000000e+00 : f32
      %12 = vector.broadcast %cst_10 : f32 to vector<8x32xf32>
      %c0_11 = arith.constant 0 : index
      %c0_12 = arith.constant 0 : index
      %13 = vector.load %arg7[%c0_11, %c0_12] : memref<8x32xf32, #tpu.memory_space<vmem>>, vector<8x32xf32>
      tpu.vector_store %arg7[%c0_11, %c0_12], %12 {strides = array<i32>} : memref<8x32xf32, #tpu.memory_space<vmem>>, vector<8x32xf32>,
    } else {
    }
    %c0 = arith.constant 0 : index
    %c0_1 = arith.constant 0 : index
    %3 = vector.load %arg7[%c0, %c0_1] : memref<8x32xf32, #tpu.memory_space<vmem>>, vector<8x32xf32>
    %c0_2 = arith.constant 0 : index
    %c0_3 = arith.constant 0 : index
    %4 = vector.load %arg3[%c0_2, %c0_3] : memref<8x32xbf16, #tpu.memory_space<vmem>>, vector<8x32xbf16>
    %c0_4 = arith.constant 0 : index
    %c0_5 = arith.constant 0 : index
    %5 = vector.load %arg4[%c0_4, %c0_5] : memref<32x32xbf16, #tpu.memory_space<vmem>>, vector<32x32xbf16>
    %cst = arith.constant dense<0.000000e+00> : vector<8x32xf32>
    %6 = tpu.matmul %4, %5, %cst {dimension_numbers = #tpu.dot_dimension_numbers<[1], [0], [0], [1], [0, 0, 1, 1], [], []>} : vector<8x32xbf16>, vector<32x32xbf16>, vector<8x32xf32> -> vector<8x32xf32>
    %7 = arith.addf %3, %6 : vector<8x32xf32>
    %c0_6 = arith.constant 0 : index
    %c0_7 = arith.constant 0 : index
    %8 = vector.load %arg7[%c0_6, %c0_7] : memref<8x32xf32, #tpu.memory_space<vmem>>, vector<8x32xf32>
    tpu.vector_store %arg7[%c0_6, %c0_7], %7 {strides = array<i32>} : memref<8x32xf32, #tpu.memory_space<vmem>>, vector<8x32xf32>,
    %c0_i32_8 = arith.constant 0 : i32
    %9 = arith.cmpi eq, %arg2, %c0_i32_8 : i32
    %10 = arith.extui %9 : i1 to i32
    %c0_i32_9 = arith.constant 0 : i32
    %11 = arith.cmpi ne, %10, %c0_i32_9 : i32
    scf.if %11 {
      %c0_10 = arith.constant 0 : index
      %c0_11 = arith.constant 0 : index
      %12 = vector.load %arg7[%c0_10, %c0_11] : memref<8x32xf32, #tpu.memory_space<vmem>>, vector<8x32xf32>
      %c0_12 = arith.constant 0 : index
      %c0_13 = arith.constant 0 : index
      %13 = vector.load %arg5[%c0_12, %c0_13] : memref<1x32xf32, #tpu.memory_space<vmem>>, vector<1x32xf32>
      %14 = vector.broadcast %13 : vector<1x32xf32> to vector<8x32xf32>
      %15 = arith.addf %12, %14 : vector<8x32xf32>
      %c0_14 = arith.constant 0 : index
      %c0_15 = arith.constant 0 : index
      %16 = vector.load %arg6[%c0_14, %c0_15] : memref<8x32xf32, #tpu.memory_space<vmem>>, vector<8x32xf32>
      tpu.vector_store %arg6[%c0_14, %c0_15], %15 {strides = array<i32>} : memref<8x32xf32, #tpu.memory_space<vmem>>, vector<8x32xf32>,
    } else {
    }
    return
  }
  func.func @transform_0(%arg0: i32, %arg1: i32, %arg2: i32) -> (i32, i32) {
    %c0_i32 = arith.constant 0 : i32
    return %arg0, %arg2 : i32, i32
  }
  func.func @transform_1(%arg0: i32, %arg1: i32, %arg2: i32) -> (i32, i32) {
    %c0_i32 = arith.constant 0 : i32
    return %arg2, %arg1 : i32, i32
  }
  func.func @transform_2(%arg0: i32, %arg1: i32, %arg2: i32) -> (i32, i32) {
    %c0_i32 = arith.constant 0 : i32
    %c0_i32_0 = arith.constant 0 : i32
    return %c0_i32, %arg1 : i32, i32
  }
  func.func @transform_3(%arg0: i32, %arg1: i32, %arg2: i32) -> (i32, i32) {
    %c0_i32 = arith.constant 0 : i32
    return %arg0, %arg1 : i32, i32
  }
}

module attributes {stable_mosaic.version = 11 : i64} {
  func.func @_matmul_kernel(%arg0: i32, %arg1: i32, %arg2: i32, %arg3: memref<32x48xbf16, #tpu.memory_space<vmem>>, %arg4: memref<48x32xbf16, #tpu.memory_space<vmem>>, %arg5: memref<1x32xf32, #tpu.memory_space<vmem>>, %arg6: memref<32x32xf32, #tpu.memory_space<vmem>>, %arg7: memref<32x32xf32, #tpu.memory_space<vmem>>) attributes {dimension_semantics = [#tpu.dimension_semantics<parallel>, #tpu.dimension_semantics<parallel>, #tpu.dimension_semantics<arbitrary>], iteration_bounds = array<i64: 1, 1, 1>, scalar_prefetch = 0 : i64, scratch_operands = 1 : i64, tpu.core_type = #tpu.core_type<tc>, window_params = [{transform_indices = @transform_0, window_bounds = array<i64: 32, 48>}, {transform_indices = @transform_1, window_bounds = array<i64: 48, 32>}, {transform_indices = @transform_2, window_bounds = array<i64: 1, 32>}, {transform_indices = @transform_3, window_bounds = array<i64: 32, 32>}]} {
    %c0_i32 = arith.constant 0 : i32
    %0 = arith.cmpi eq, %arg2, %c0_i32 : i32
    %1 = arith.extui %0 : i1 to i32
    %c0_i32_0 = arith.constant 0 : i32
    %2 = arith.cmpi ne, %1, %c0_i32_0 : i32
    scf.if %2 {
      %cst_10 = arith.constant 0.000000e+00 : f32
      %12 = vector.broadcast %cst_10 : f32 to vector<32x32xf32>
      %c0_11 = arith.constant 0 : index
      %c0_12 = arith.constant 0 : index
      %13 = vector.load %arg7[%c0_11, %c0_12] : memref<32x32xf32, #tpu.memory_space<vmem>>, vector<32x32xf32>
      tpu.vector_store %arg7[%c0_11, %c0_12], %12 {strides = array<i32>} : memref<32x32xf32, #tpu.memory_space<vmem>>, vector<32x32xf32>,
    } else {
    }
    %c0 = arith.constant 0 : index
    %c0_1 = arith.constant 0 : index
    %3 = vector.load %arg7[%c0, %c0_1] : memref<32x32xf32, #tpu.memory_space<vmem>>, vector<32x32xf32>
    %c0_2 = arith.constant 0 : index
    %c0_3 = arith.constant 0 : index
    %4 = vector.load %arg3[%c0_2, %c0_3] : memref<32x48xbf16, #tpu.memory_space<vmem>>, vector<32x48xbf16>
    %c0_4 = arith.constant 0 : index
    %c0_5 = arith.constant 0 : index
    %5 = vector.load %arg4[%c0_4, %c0_5] : memref<48x32xbf16, #tpu.memory_space<vmem>>, vector<48x32xbf16>
    %cst = arith.constant dense<0.000000e+00> : vector<32x32xf32>
    %6 = tpu.matmul %4, %5, %cst {dimension_numbers = #tpu.dot_dimension_numbers<[1], [0], [0], [1], [0, 0, 1, 1], [], []>} : vector<32x48xbf16>, vector<48x32xbf16>, vector<32x32xf32> -> vector<32x32xf32>
    %7 = arith.addf %3, %6 : vector<32x32xf32>
    %c0_6 = arith.constant 0 : index
    %c0_7 = arith.constant 0 : index
    %8 = vector.load %arg7[%c0_6, %c0_7] : memref<32x32xf32, #tpu.memory_space<vmem>>, vector<32x32xf32>
    tpu.vector_store %arg7[%c0_6, %c0_7], %7 {strides = array<i32>} : memref<32x32xf32, #tpu.memory_space<vmem>>, vector<32x32xf32>,
    %c0_i32_8 = arith.constant 0 : i32
    %9 = arith.cmpi eq, %arg2, %c0_i32_8 : i32
    %10 = arith.extui %9 : i1 to i32
    %c0_i32_9 = arith.constant 0 : i32
    %11 = arith.cmpi ne, %10, %c0_i32_9 : i32
    scf.if %11 {
      %c0_10 = arith.constant 0 : index
      %c0_11 = arith.constant 0 : index
      %12 = vector.load %arg7[%c0_10, %c0_11] : memref<32x32xf32, #tpu.memory_space<vmem>>, vector<32x32xf32>
      %c0_12 = arith.constant 0 : index
      %c0_13 = arith.constant 0 : index
      %13 = vector.load %arg5[%c0_12, %c0_13] : memref<1x32xf32, #tpu.memory_space<vmem>>, vector<1x32xf32>
      %14 = vector.broadcast %13 : vector<1x32xf32> to vector<32x32xf32>
      %15 = arith.addf %12, %14 : vector<32x32xf32>
      %c0_14 = arith.constant 0 : index
      %c0_15 = arith.constant 0 : index
      %16 = vector.load %arg6[%c0_14, %c0_15] : memref<32x32xf32, #tpu.memory_space<vmem>>, vector<32x32xf32>
      tpu.vector_store %arg6[%c0_14, %c0_15], %15 {strides = array<i32>} : memref<32x32xf32, #tpu.memory_space<vmem>>, vector<32x32xf32>,
    } else {
    }
    return
  }
  func.func @transform_0(%arg0: i32, %arg1: i32, %arg2: i32) -> (i32, i32) {
    %c0_i32 = arith.constant 0 : i32
    return %arg0, %arg2 : i32, i32
  }
  func.func @transform_1(%arg0: i32, %arg1: i32, %arg2: i32) -> (i32, i32) {
    %c0_i32 = arith.constant 0 : i32
    return %arg2, %arg1 : i32, i32
  }
  func.func @transform_2(%arg0: i32, %arg1: i32, %arg2: i32) -> (i32, i32) {
    %c0_i32 = arith.constant 0 : i32
    %c0_i32_0 = arith.constant 0 : i32
    return %c0_i32, %arg1 : i32, i32
  }
  func.func @transform_3(%arg0: i32, %arg1: i32, %arg2: i32) -> (i32, i32) {
    %c0_i32 = arith.constant 0 : i32
    return %arg0, %arg1 : i32, i32
  }
}

module attributes {stable_mosaic.version = 11 : i64} {
  func.func @_fused_attn_kernel(%arg0: i32, %arg1: memref<1x17x32xf32, #tpu.memory_space<vmem>>, %arg2: memref<1x32xf32, #tpu.memory_space<vmem>>, %arg3: memref<1x32xf32, #tpu.memory_space<vmem>>, %arg4: memref<4x32x8xbf16, #tpu.memory_space<vmem>>, %arg5: memref<4x32x8xbf16, #tpu.memory_space<vmem>>, %arg6: memref<4x32x8xbf16, #tpu.memory_space<vmem>>, %arg7: memref<4x1x8xf32, #tpu.memory_space<vmem>>, %arg8: memref<4x1x8xf32, #tpu.memory_space<vmem>>, %arg9: memref<4x1x8xf32, #tpu.memory_space<vmem>>, %arg10: memref<4x8x32xbf16, #tpu.memory_space<vmem>>, %arg11: memref<1x32xf32, #tpu.memory_space<vmem>>, %arg12: memref<1x17x32xf32, #tpu.memory_space<vmem>>) attributes {dimension_semantics = [#tpu.dimension_semantics<parallel>], iteration_bounds = array<i64: 2>, scalar_prefetch = 0 : i64, scratch_operands = 0 : i64, tpu.core_type = #tpu.core_type<tc>, window_params = [{transform_indices = @transform_0, window_bounds = array<i64: 1, 17, 32>}, {pipeline_mode = #tpu.pipeline_mode<synchronous>, transform_indices = @transform_1, window_bounds = array<i64: 1, 32>}, {pipeline_mode = #tpu.pipeline_mode<synchronous>, transform_indices = @transform_2, window_bounds = array<i64: 1, 32>}, {pipeline_mode = #tpu.pipeline_mode<synchronous>, transform_indices = @transform_3, window_bounds = array<i64: 4, 32, 8>}, {pipeline_mode = #tpu.pipeline_mode<synchronous>, transform_indices = @transform_4, window_bounds = array<i64: 4, 32, 8>}, {pipeline_mode = #tpu.pipeline_mode<synchronous>, transform_indices = @transform_5, window_bounds = array<i64: 4, 32, 8>}, {pipeline_mode = #tpu.pipeline_mode<synchronous>, transform_indices = @transform_6, window_bounds = array<i64: 4, 1, 8>}, {pipeline_mode = #tpu.pipeline_mode<synchronous>, transform_indices = @transform_7, window_bounds = array<i64: 4, 1, 8>}, {pipeline_mode = #tpu.pipeline_mode<synchronous>, transform_indices = @transform_8, window_bounds = array<i64: 4, 1, 8>}, {pipeline_mode = #tpu.pipeline_mode<synchronous>, transform_indices = @transform_9, window_bounds = array<i64: 4, 8, 32>}, {pipeline_mode = #tpu.pipeline_mode<synchronous>, transform_indices = @transform_10, window_bounds = array<i64: 1, 32>}, {transform_indices = @transform_11, window_bounds = array<i64: 1, 17, 32>}]} {
    %c0 = arith.constant 0 : index
    %c0_0 = arith.constant 0 : index
    %c0_1 = arith.constant 0 : index
    %0 = vector.load %arg1[%c0, %c0_0, %c0_1] : memref<1x17x32xf32, #tpu.memory_space<vmem>>, vector<1x17x32xf32>
    %1 = vector.shape_cast %0 : vector<1x17x32xf32> to vector<17x32xf32>
    %c0_2 = arith.constant 0 : index
    %c0_3 = arith.constant 0 : index
    %2 = vector.load %arg2[%c0_2, %c0_3] : memref<1x32xf32, #tpu.memory_space<vmem>>, vector<1x32xf32>
    %c0_4 = arith.constant 0 : index
    %c0_5 = arith.constant 0 : index
    %3 = vector.load %arg3[%c0_4, %c0_5] : memref<1x32xf32, #tpu.memory_space<vmem>>, vector<1x32xf32>
    %cst = arith.constant dense<0.000000e+00> : vector<17xf32>
    %4 = vector.multi_reduction <add>, %1, %cst [1] : vector<17x32xf32> to vector<17xf32>
    %5 = vector.shape_cast %4 : vector<17xf32> to vector<17x1xf32>
    %cst_6 = arith.constant 3.200000e+01 : f32
    %6 = vector.broadcast %cst_6 : f32 to vector<17x1xf32>
    %7 = arith.divf %5, %6 : vector<17x1xf32>
    %8 = vector.broadcast %7 : vector<17x1xf32> to vector<17x32xf32>
    %9 = arith.subf %1, %8 : vector<17x32xf32>
    %10 = arith.mulf %9, %9 : vector<17x32xf32>
    %cst_7 = arith.constant dense<0.000000e+00> : vector<17xf32>
    %11 = vector.multi_reduction <add>, %10, %cst_7 [1] : vector<17x32xf32> to vector<17xf32>
    %12 = vector.shape_cast %11 : vector<17xf32> to vector<17x1xf32>
    %cst_8 = arith.constant 3.200000e+01 : f32
    %13 = vector.broadcast %cst_8 : f32 to vector<17x1xf32>
    %14 = arith.divf %12, %13 : vector<17x1xf32>
    %15 = vector.broadcast %7 : vector<17x1xf32> to vector<17x32xf32>
    %16 = arith.subf %1, %15 : vector<17x32xf32>
    %cst_9 = arith.constant 9.99999974E-6 : f32
    %17 = vector.broadcast %cst_9 : f32 to vector<17x1xf32>
    %18 = arith.addf %14, %17 : vector<17x1xf32>
    %19 = math.rsqrt %18 : vector<17x1xf32>
    %20 = vector.broadcast %19 : vector<17x1xf32> to vector<17x32xf32>
    %21 = arith.mulf %16, %20 : vector<17x32xf32>
    %22 = vector.broadcast %2 : vector<1x32xf32> to vector<17x32xf32>
    %23 = arith.mulf %21, %22 : vector<17x32xf32>
    %24 = vector.broadcast %3 : vector<1x32xf32> to vector<17x32xf32>
    %25 = arith.addf %23, %24 : vector<17x32xf32>
    %26 = arith.truncf %25 : vector<17x32xf32> to vector<17x32xbf16>
    %c0_10 = arith.constant 0 : index
    %c0_11 = arith.constant 0 : index
    %27 = vector.load %arg11[%c0_10, %c0_11] : memref<1x32xf32, #tpu.memory_space<vmem>>, vector<1x32xf32>
    %28 = vector.broadcast %27 : vector<1x32xf32> to vector<17x32xf32>
    %29 = arith.addf %1, %28 : vector<17x32xf32>
    %c0_12 = arith.constant 0 : index
    %c0_13 = arith.constant 0 : index
    %c0_14 = arith.constant 0 : index
    %30 = vector.load %arg4[%c0_12, %c0_13, %c0_14] : memref<4x32x8xbf16, #tpu.memory_space<vmem>>, vector<1x32x8xbf16>
    %31 = vector.shape_cast %30 : vector<1x32x8xbf16> to vector<32x8xbf16>
    %cst_15 = arith.constant dense<0.000000e+00> : vector<17x8xf32>
    %32 = tpu.matmul %26, %31, %cst_15 {dimension_numbers = #tpu.dot_dimension_numbers<[1], [0], [0], [1], [0, 0, 1, 1], [], []>} : vector<17x32xbf16>, vector<32x8xbf16>, vector<17x8xf32> -> vector<17x8xf32>
    %c0_16 = arith.constant 0 : index
    %c0_17 = arith.constant 0 : index
    %c0_18 = arith.constant 0 : index
    %33 = vector.load %arg7[%c0_16, %c0_17, %c0_18] : memref<4x1x8xf32, #tpu.memory_space<vmem>>, vector<1x1x8xf32>
    %34 = vector.shape_cast %33 : vector<1x1x8xf32> to vector<1x8xf32>
    %35 = vector.broadcast %34 : vector<1x8xf32> to vector<17x8xf32>
    %36 = arith.addf %32, %35 : vector<17x8xf32>
    %c0_19 = arith.constant 0 : index
    %c0_20 = arith.constant 0 : index
    %c0_21 = arith.constant 0 : index
    %37 = vector.load %arg5[%c0_19, %c0_20, %c0_21] : memref<4x32x8xbf16, #tpu.memory_space<vmem>>, vector<1x32x8xbf16>
    %38 = vector.shape_cast %37 : vector<1x32x8xbf16> to vector<32x8xbf16>
    %cst_22 = arith.constant dense<0.000000e+00> : vector<17x8xf32>
    %39 = tpu.matmul %26, %38, %cst_22 {dimension_numbers = #tpu.dot_dimension_numbers<[1], [0], [0], [1], [0, 0, 1, 1], [], []>} : vector<17x32xbf16>, vector<32x8xbf16>, vector<17x8xf32> -> vector<17x8xf32>
    %c0_23 = arith.constant 0 : index
    %c0_24 = arith.constant 0 : index
    %c0_25 = arith.constant 0 : index
    %40 = vector.load %arg8[%c0_23, %c0_24, %c0_25] : memref<4x1x8xf32, #tpu.memory_space<vmem>>, vector<1x1x8xf32>
    %41 = vector.shape_cast %40 : vector<1x1x8xf32> to vector<1x8xf32>
    %42 = vector.broadcast %41 : vector<1x8xf32> to vector<17x8xf32>
    %43 = arith.addf %39, %42 : vector<17x8xf32>
    %c0_26 = arith.constant 0 : index
    %c0_27 = arith.constant 0 : index
    %c0_28 = arith.constant 0 : index
    %44 = vector.load %arg6[%c0_26, %c0_27, %c0_28] : memref<4x32x8xbf16, #tpu.memory_space<vmem>>, vector<1x32x8xbf16>
    %45 = vector.shape_cast %44 : vector<1x32x8xbf16> to vector<32x8xbf16>
    %cst_29 = arith.constant dense<0.000000e+00> : vector<17x8xf32>
    %46 = tpu.matmul %26, %45, %cst_29 {dimension_numbers = #tpu.dot_dimension_numbers<[1], [0], [0], [1], [0, 0, 1, 1], [], []>} : vector<17x32xbf16>, vector<32x8xbf16>, vector<17x8xf32> -> vector<17x8xf32>
    %c0_30 = arith.constant 0 : index
    %c0_31 = arith.constant 0 : index
    %c0_32 = arith.constant 0 : index
    %47 = vector.load %arg9[%c0_30, %c0_31, %c0_32] : memref<4x1x8xf32, #tpu.memory_space<vmem>>, vector<1x1x8xf32>
    %48 = vector.shape_cast %47 : vector<1x1x8xf32> to vector<1x8xf32>
    %49 = vector.broadcast %48 : vector<1x8xf32> to vector<17x8xf32>
    %50 = arith.addf %46, %49 : vector<17x8xf32>
    %51 = arith.truncf %36 : vector<17x8xf32> to vector<17x8xbf16>
    %52 = arith.truncf %43 : vector<17x8xf32> to vector<17x8xbf16>
    %cst_33 = arith.constant dense<0.000000e+00> : vector<17x17xf32>
    %53 = tpu.matmul %51, %52, %cst_33 {dimension_numbers = #tpu.dot_dimension_numbers<[1], [1], [0], [0], [0, 0, 1, 0], [], []>} : vector<17x8xbf16>, vector<17x8xbf16>, vector<17x17xf32> -> vector<17x17xf32>
    %cst_34 = arith.constant 0.353553385 : f32
    %54 = vector.broadcast %cst_34 : f32 to vector<17x17xf32>
    %55 = arith.mulf %53, %54 : vector<17x17xf32>
    %cst_35 = arith.constant dense<0xFF800000> : vector<17xf32>
    %56 = vector.multi_reduction <maximumf>, %55, %cst_35 [1] : vector<17x17xf32> to vector<17xf32>
    %57 = vector.shape_cast %56 : vector<17xf32> to vector<17x1xf32>
    %58 = vector.broadcast %57 : vector<17x1xf32> to vector<17x17xf32>
    %59 = arith.subf %55, %58 : vector<17x17xf32>
    %60 = math.exp %59 : vector<17x17xf32>
    %cst_36 = arith.constant dense<0.000000e+00> : vector<17xf32>
    %61 = vector.multi_reduction <add>, %60, %cst_36 [1] : vector<17x17xf32> to vector<17xf32>
    %62 = vector.shape_cast %61 : vector<17xf32> to vector<17x1xf32>
    %63 = tpu.reciprocal %62 {approx = true} : vector<17x1xf32> -> vector<17x1xf32>
    %64 = vector.broadcast %63 : vector<17x1xf32> to vector<17x17xf32>
    %65 = arith.mulf %60, %64 : vector<17x17xf32>
    %66 = arith.truncf %65 : vector<17x17xf32> to vector<17x17xbf16>
    %67 = arith.truncf %50 : vector<17x8xf32> to vector<17x8xbf16>
    %cst_37 = arith.constant dense<0.000000e+00> : vector<17x8xf32>
    %68 = tpu.matmul %66, %67, %cst_37 {dimension_numbers = #tpu.dot_dimension_numbers<[1], [0], [0], [1], [0, 0, 1, 1], [], []>} : vector<17x17xbf16>, vector<17x8xbf16>, vector<17x8xf32> -> vector<17x8xf32>
    %69 = arith.truncf %68 : vector<17x8xf32> to vector<17x8xbf16>
    %c0_38 = arith.constant 0 : index
    %c0_39 = arith.constant 0 : index
    %c0_40 = arith.constant 0 : index
    %70 = vector.load %arg10[%c0_38, %c0_39, %c0_40] : memref<4x8x32xbf16, #tpu.memory_space<vmem>>, vector<1x8x32xbf16>
    %71 = vector.shape_cast %70 : vector<1x8x32xbf16> to vector<8x32xbf16>
    %cst_41 = arith.constant dense<0.000000e+00> : vector<17x32xf32>
    %72 = tpu.matmul %69, %71, %cst_41 {dimension_numbers = #tpu.dot_dimension_numbers<[1], [0], [0], [1], [0, 0, 1, 1], [], []>} : vector<17x8xbf16>, vector<8x32xbf16>, vector<17x32xf32> -> vector<17x32xf32>
    %73 = arith.addf %29, %72 : vector<17x32xf32>
    %c1 = arith.constant 1 : index
    %c0_42 = arith.constant 0 : index
    %c0_43 = arith.constant 0 : index
    %74 = vector.load %arg4[%c1, %c0_42, %c0_43] : memref<4x32x8xbf16, #tpu.memory_space<vmem>>, vector<1x32x8xbf16>
    %75 = vector.shape_cast %74 : vector<1x32x8xbf16> to vector<32x8xbf16>
    %cst_44 = arith.constant dense<0.000000e+00> : vector<17x8xf32>
    %76 = tpu.matmul %26, %75, %cst_44 {dimension_numbers = #tpu.dot_dimension_numbers<[1], [0], [0], [1], [0, 0, 1, 1], [], []>} : vector<17x32xbf16>, vector<32x8xbf16>, vector<17x8xf32> -> vector<17x8xf32>
    %c1_45 = arith.constant 1 : index
    %c0_46 = arith.constant 0 : index
    %c0_47 = arith.constant 0 : index
    %77 = vector.load %arg7[%c1_45, %c0_46, %c0_47] : memref<4x1x8xf32, #tpu.memory_space<vmem>>, vector<1x1x8xf32>
    %78 = vector.shape_cast %77 : vector<1x1x8xf32> to vector<1x8xf32>
    %79 = vector.broadcast %78 : vector<1x8xf32> to vector<17x8xf32>
    %80 = arith.addf %76, %79 : vector<17x8xf32>
    %c1_48 = arith.constant 1 : index
    %c0_49 = arith.constant 0 : index
    %c0_50 = arith.constant 0 : index
    %81 = vector.load %arg5[%c1_48, %c0_49, %c0_50] : memref<4x32x8xbf16, #tpu.memory_space<vmem>>, vector<1x32x8xbf16>
    %82 = vector.shape_cast %81 : vector<1x32x8xbf16> to vector<32x8xbf16>
    %cst_51 = arith.constant dense<0.000000e+00> : vector<17x8xf32>
    %83 = tpu.matmul %26, %82, %cst_51 {dimension_numbers = #tpu.dot_dimension_numbers<[1], [0], [0], [1], [0, 0, 1, 1], [], []>} : vector<17x32xbf16>, vector<32x8xbf16>, vector<17x8xf32> -> vector<17x8xf32>
    %c1_52 = arith.constant 1 : index
    %c0_53 = arith.constant 0 : index
    %c0_54 = arith.constant 0 : index
    %84 = vector.load %arg8[%c1_52, %c0_53, %c0_54] : memref<4x1x8xf32, #tpu.memory_space<vmem>>, vector<1x1x8xf32>
    %85 = vector.shape_cast %84 : vector<1x1x8xf32> to vector<1x8xf32>
    %86 = vector.broadcast %85 : vector<1x8xf32> to vector<17x8xf32>
    %87 = arith.addf %83, %86 : vector<17x8xf32>
    %c1_55 = arith.constant 1 : index
    %c0_56 = arith.constant 0 : index
    %c0_57 = arith.constant 0 : index
    %88 = vector.load %arg6[%c1_55, %c0_56, %c0_57] : memref<4x32x8xbf16, #tpu.memory_space<vmem>>, vector<1x32x8xbf16>
    %89 = vector.shape_cast %88 : vector<1x32x8xbf16> to vector<32x8xbf16>
    %cst_58 = arith.constant dense<0.000000e+00> : vector<17x8xf32>
    %90 = tpu.matmul %26, %89, %cst_58 {dimension_numbers = #tpu.dot_dimension_numbers<[1], [0], [0], [1], [0, 0, 1, 1], [], []>} : vector<17x32xbf16>, vector<32x8xbf16>, vector<17x8xf32> -> vector<17x8xf32>
    %c1_59 = arith.constant 1 : index
    %c0_60 = arith.constant 0 : index
    %c0_61 = arith.constant 0 : index
    %91 = vector.load %arg9[%c1_59, %c0_60, %c0_61] : memref<4x1x8xf32, #tpu.memory_space<vmem>>, vector<1x1x8xf32>
    %92 = vector.shape_cast %91 : vector<1x1x8xf32> to vector<1x8xf32>
    %93 = vector.broadcast %92 : vector<1x8xf32> to vector<17x8xf32>
    %94 = arith.addf %90, %93 : vector<17x8xf32>
    %95 = arith.truncf %80 : vector<17x8xf32> to vector<17x8xbf16>
    %96 = arith.truncf %87 : vector<17x8xf32> to vector<17x8xbf16>
    %cst_62 = arith.constant dense<0.000000e+00> : vector<17x17xf32>
    %97 = tpu.matmul %95, %96, %cst_62 {dimension_numbers = #tpu.dot_dimension_numbers<[1], [1], [0], [0], [0, 0, 1, 0], [], []>} : vector<17x8xbf16>, vector<17x8xbf16>, vector<17x17xf32> -> vector<17x17xf32>
    %cst_63 = arith.constant 0.353553385 : f32
    %98 = vector.broadcast %cst_63 : f32 to vector<17x17xf32>
    %99 = arith.mulf %97, %98 : vector<17x17xf32>
    %cst_64 = arith.constant dense<0xFF800000> : vector<17xf32>
    %100 = vector.multi_reduction <maximumf>, %99, %cst_64 [1] : vector<17x17xf32> to vector<17xf32>
    %101 = vector.shape_cast %100 : vector<17xf32> to vector<17x1xf32>
    %102 = vector.broadcast %101 : vector<17x1xf32> to vector<17x17xf32>
    %103 = arith.subf %99, %102 : vector<17x17xf32>
    %104 = math.exp %103 : vector<17x17xf32>
    %cst_65 = arith.constant dense<0.000000e+00> : vector<17xf32>
    %105 = vector.multi_reduction <add>, %104, %cst_65 [1] : vector<17x17xf32> to vector<17xf32>
    %106 = vector.shape_cast %105 : vector<17xf32> to vector<17x1xf32>
    %107 = tpu.reciprocal %106 {approx = true} : vector<17x1xf32> -> vector<17x1xf32>
    %108 = vector.broadcast %107 : vector<17x1xf32> to vector<17x17xf32>
    %109 = arith.mulf %104, %108 : vector<17x17xf32>
    %110 = arith.truncf %109 : vector<17x17xf32> to vector<17x17xbf16>
    %111 = arith.truncf %94 : vector<17x8xf32> to vector<17x8xbf16>
    %cst_66 = arith.constant dense<0.000000e+00> : vector<17x8xf32>
    %112 = tpu.matmul %110, %111, %cst_66 {dimension_numbers = #tpu.dot_dimension_numbers<[1], [0], [0], [1], [0, 0, 1, 1], [], []>} : vector<17x17xbf16>, vector<17x8xbf16>, vector<17x8xf32> -> vector<17x8xf32>
    %113 = arith.truncf %112 : vector<17x8xf32> to vector<17x8xbf16>
    %c1_67 = arith.constant 1 : index
    %c0_68 = arith.constant 0 : index
    %c0_69 = arith.constant 0 : index
    %114 = vector.load %arg10[%c1_67, %c0_68, %c0_69] : memref<4x8x32xbf16, #tpu.memory_space<vmem>>, vector<1x8x32xbf16>
    %115 = vector.shape_cast %114 : vector<1x8x32xbf16> to vector<8x32xbf16>
    %cst_70 = arith.constant dense<0.000000e+00> : vector<17x32xf32>
    %116 = tpu.matmul %113, %115, %cst_70 {dimension_numbers = #tpu.dot_dimension_numbers<[1], [0], [0], [1], [0, 0, 1, 1], [], []>} : vector<17x8xbf16>, vector<8x32xbf16>, vector<17x32xf32> -> vector<17x32xf32>
    %117 = arith.addf %73, %116 : vector<17x32xf32>
    %c2 = arith.constant 2 : index
    %c0_71 = arith.constant 0 : index
    %c0_72 = arith.constant 0 : index
    %118 = vector.load %arg4[%c2, %c0_71, %c0_72] : memref<4x32x8xbf16, #tpu.memory_space<vmem>>, vector<1x32x8xbf16>
    %119 = vector.shape_cast %118 : vector<1x32x8xbf16> to vector<32x8xbf16>
    %cst_73 = arith.constant dense<0.000000e+00> : vector<17x8xf32>
    %120 = tpu.matmul %26, %119, %cst_73 {dimension_numbers = #tpu.dot_dimension_numbers<[1], [0], [0], [1], [0, 0, 1, 1], [], []>} : vector<17x32xbf16>, vector<32x8xbf16>, vector<17x8xf32> -> vector<17x8xf32>
    %c2_74 = arith.constant 2 : index
    %c0_75 = arith.constant 0 : index
    %c0_76 = arith.constant 0 : index
    %121 = vector.load %arg7[%c2_74, %c0_75, %c0_76] : memref<4x1x8xf32, #tpu.memory_space<vmem>>, vector<1x1x8xf32>
    %122 = vector.shape_cast %121 : vector<1x1x8xf32> to vector<1x8xf32>
    %123 = vector.broadcast %122 : vector<1x8xf32> to vector<17x8xf32>
    %124 = arith.addf %120, %123 : vector<17x8xf32>
    %c2_77 = arith.constant 2 : index
    %c0_78 = arith.constant 0 : index
    %c0_79 = arith.constant 0 : index
    %125 = vector.load %arg5[%c2_77, %c0_78, %c0_79] : memref<4x32x8xbf16, #tpu.memory_space<vmem>>, vector<1x32x8xbf16>
    %126 = vector.shape_cast %125 : vector<1x32x8xbf16> to vector<32x8xbf16>
    %cst_80 = arith.constant dense<0.000000e+00> : vector<17x8xf32>
    %127 = tpu.matmul %26, %126, %cst_80 {dimension_numbers = #tpu.dot_dimension_numbers<[1], [0], [0], [1], [0, 0, 1, 1], [], []>} : vector<17x32xbf16>, vector<32x8xbf16>, vector<17x8xf32> -> vector<17x8xf32>
    %c2_81 = arith.constant 2 : index
    %c0_82 = arith.constant 0 : index
    %c0_83 = arith.constant 0 : index
    %128 = vector.load %arg8[%c2_81, %c0_82, %c0_83] : memref<4x1x8xf32, #tpu.memory_space<vmem>>, vector<1x1x8xf32>
    %129 = vector.shape_cast %128 : vector<1x1x8xf32> to vector<1x8xf32>
    %130 = vector.broadcast %129 : vector<1x8xf32> to vector<17x8xf32>
    %131 = arith.addf %127, %130 : vector<17x8xf32>
    %c2_84 = arith.constant 2 : index
    %c0_85 = arith.constant 0 : index
    %c0_86 = arith.constant 0 : index
    %132 = vector.load %arg6[%c2_84, %c0_85, %c0_86] : memref<4x32x8xbf16, #tpu.memory_space<vmem>>, vector<1x32x8xbf16>
    %133 = vector.shape_cast %132 : vector<1x32x8xbf16> to vector<32x8xbf16>
    %cst_87 = arith.constant dense<0.000000e+00> : vector<17x8xf32>
    %134 = tpu.matmul %26, %133, %cst_87 {dimension_numbers = #tpu.dot_dimension_numbers<[1], [0], [0], [1], [0, 0, 1, 1], [], []>} : vector<17x32xbf16>, vector<32x8xbf16>, vector<17x8xf32> -> vector<17x8xf32>
    %c2_88 = arith.constant 2 : index
    %c0_89 = arith.constant 0 : index
    %c0_90 = arith.constant 0 : index
    %135 = vector.load %arg9[%c2_88, %c0_89, %c0_90] : memref<4x1x8xf32, #tpu.memory_space<vmem>>, vector<1x1x8xf32>
    %136 = vector.shape_cast %135 : vector<1x1x8xf32> to vector<1x8xf32>
    %137 = vector.broadcast %136 : vector<1x8xf32> to vector<17x8xf32>
    %138 = arith.addf %134, %137 : vector<17x8xf32>
    %139 = arith.truncf %124 : vector<17x8xf32> to vector<17x8xbf16>
    %140 = arith.truncf %131 : vector<17x8xf32> to vector<17x8xbf16>
    %cst_91 = arith.constant dense<0.000000e+00> : vector<17x17xf32>
    %141 = tpu.matmul %139, %140, %cst_91 {dimension_numbers = #tpu.dot_dimension_numbers<[1], [1], [0], [0], [0, 0, 1, 0], [], []>} : vector<17x8xbf16>, vector<17x8xbf16>, vector<17x17xf32> -> vector<17x17xf32>
    %cst_92 = arith.constant 0.353553385 : f32
    %142 = vector.broadcast %cst_92 : f32 to vector<17x17xf32>
    %143 = arith.mulf %141, %142 : vector<17x17xf32>
    %cst_93 = arith.constant dense<0xFF800000> : vector<17xf32>
    %144 = vector.multi_reduction <maximumf>, %143, %cst_93 [1] : vector<17x17xf32> to vector<17xf32>
    %145 = vector.shape_cast %144 : vector<17xf32> to vector<17x1xf32>
    %146 = vector.broadcast %145 : vector<17x1xf32> to vector<17x17xf32>
    %147 = arith.subf %143, %146 : vector<17x17xf32>
    %148 = math.exp %147 : vector<17x17xf32>
    %cst_94 = arith.constant dense<0.000000e+00> : vector<17xf32>
    %149 = vector.multi_reduction <add>, %148, %cst_94 [1] : vector<17x17xf32> to vector<17xf32>
    %150 = vector.shape_cast %149 : vector<17xf32> to vector<17x1xf32>
    %151 = tpu.reciprocal %150 {approx = true} : vector<17x1xf32> -> vector<17x1xf32>
    %152 = vector.broadcast %151 : vector<17x1xf32> to vector<17x17xf32>
    %153 = arith.mulf %148, %152 : vector<17x17xf32>
    %154 = arith.truncf %153 : vector<17x17xf32> to vector<17x17xbf16>
    %155 = arith.truncf %138 : vector<17x8xf32> to vector<17x8xbf16>
    %cst_95 = arith.constant dense<0.000000e+00> : vector<17x8xf32>
    %156 = tpu.matmul %154, %155, %cst_95 {dimension_numbers = #tpu.dot_dimension_numbers<[1], [0], [0], [1], [0, 0, 1, 1], [], []>} : vector<17x17xbf16>, vector<17x8xbf16>, vector<17x8xf32> -> vector<17x8xf32>
    %157 = arith.truncf %156 : vector<17x8xf32> to vector<17x8xbf16>
    %c2_96 = arith.constant 2 : index
    %c0_97 = arith.constant 0 : index
    %c0_98 = arith.constant 0 : index
    %158 = vector.load %arg10[%c2_96, %c0_97, %c0_98] : memref<4x8x32xbf16, #tpu.memory_space<vmem>>, vector<1x8x32xbf16>
    %159 = vector.shape_cast %158 : vector<1x8x32xbf16> to vector<8x32xbf16>
    %cst_99 = arith.constant dense<0.000000e+00> : vector<17x32xf32>
    %160 = tpu.matmul %157, %159, %cst_99 {dimension_numbers = #tpu.dot_dimension_numbers<[1], [0], [0], [1], [0, 0, 1, 1], [], []>} : vector<17x8xbf16>, vector<8x32xbf16>, vector<17x32xf32> -> vector<17x32xf32>
    %161 = arith.addf %117, %160 : vector<17x32xf32>
    %c3 = arith.constant 3 : index
    %c0_100 = arith.constant 0 : index
    %c0_101 = arith.constant 0 : index
    %162 = vector.load %arg4[%c3, %c0_100, %c0_101] : memref<4x32x8xbf16, #tpu.memory_space<vmem>>, vector<1x32x8xbf16>
    %163 = vector.shape_cast %162 : vector<1x32x8xbf16> to vector<32x8xbf16>
    %cst_102 = arith.constant dense<0.000000e+00> : vector<17x8xf32>
    %164 = tpu.matmul %26, %163, %cst_102 {dimension_numbers = #tpu.dot_dimension_numbers<[1], [0], [0], [1], [0, 0, 1, 1], [], []>} : vector<17x32xbf16>, vector<32x8xbf16>, vector<17x8xf32> -> vector<17x8xf32>
    %c3_103 = arith.constant 3 : index
    %c0_104 = arith.constant 0 : index
    %c0_105 = arith.constant 0 : index
    %165 = vector.load %arg7[%c3_103, %c0_104, %c0_105] : memref<4x1x8xf32, #tpu.memory_space<vmem>>, vector<1x1x8xf32>
    %166 = vector.shape_cast %165 : vector<1x1x8xf32> to vector<1x8xf32>
    %167 = vector.broadcast %166 : vector<1x8xf32> to vector<17x8xf32>
    %168 = arith.addf %164, %167 : vector<17x8xf32>
    %c3_106 = arith.constant 3 : index
    %c0_107 = arith.constant 0 : index
    %c0_108 = arith.constant 0 : index
    %169 = vector.load %arg5[%c3_106, %c0_107, %c0_108] : memref<4x32x8xbf16, #tpu.memory_space<vmem>>, vector<1x32x8xbf16>
    %170 = vector.shape_cast %169 : vector<1x32x8xbf16> to vector<32x8xbf16>
    %cst_109 = arith.constant dense<0.000000e+00> : vector<17x8xf32>
    %171 = tpu.matmul %26, %170, %cst_109 {dimension_numbers = #tpu.dot_dimension_numbers<[1], [0], [0], [1], [0, 0, 1, 1], [], []>} : vector<17x32xbf16>, vector<32x8xbf16>, vector<17x8xf32> -> vector<17x8xf32>
    %c3_110 = arith.constant 3 : index
    %c0_111 = arith.constant 0 : index
    %c0_112 = arith.constant 0 : index
    %172 = vector.load %arg8[%c3_110, %c0_111, %c0_112] : memref<4x1x8xf32, #tpu.memory_space<vmem>>, vector<1x1x8xf32>
    %173 = vector.shape_cast %172 : vector<1x1x8xf32> to vector<1x8xf32>
    %174 = vector.broadcast %173 : vector<1x8xf32> to vector<17x8xf32>
    %175 = arith.addf %171, %174 : vector<17x8xf32>
    %c3_113 = arith.constant 3 : index
    %c0_114 = arith.constant 0 : index
    %c0_115 = arith.constant 0 : index
    %176 = vector.load %arg6[%c3_113, %c0_114, %c0_115] : memref<4x32x8xbf16, #tpu.memory_space<vmem>>, vector<1x32x8xbf16>
    %177 = vector.shape_cast %176 : vector<1x32x8xbf16> to vector<32x8xbf16>
    %cst_116 = arith.constant dense<0.000000e+00> : vector<17x8xf32>
    %178 = tpu.matmul %26, %177, %cst_116 {dimension_numbers = #tpu.dot_dimension_numbers<[1], [0], [0], [1], [0, 0, 1, 1], [], []>} : vector<17x32xbf16>, vector<32x8xbf16>, vector<17x8xf32> -> vector<17x8xf32>
    %c3_117 = arith.constant 3 : index
    %c0_118 = arith.constant 0 : index
    %c0_119 = arith.constant 0 : index
    %179 = vector.load %arg9[%c3_117, %c0_118, %c0_119] : memref<4x1x8xf32, #tpu.memory_space<vmem>>, vector<1x1x8xf32>
    %180 = vector.shape_cast %179 : vector<1x1x8xf32> to vector<1x8xf32>
    %181 = vector.broadcast %180 : vector<1x8xf32> to vector<17x8xf32>
    %182 = arith.addf %178, %181 : vector<17x8xf32>
    %183 = arith.truncf %168 : vector<17x8xf32> to vector<17x8xbf16>
    %184 = arith.truncf %175 : vector<17x8xf32> to vector<17x8xbf16>
    %cst_120 = arith.constant dense<0.000000e+00> : vector<17x17xf32>
    %185 = tpu.matmul %183, %184, %cst_120 {dimension_numbers = #tpu.dot_dimension_numbers<[1], [1], [0], [0], [0, 0, 1, 0], [], []>} : vector<17x8xbf16>, vector<17x8xbf16>, vector<17x17xf32> -> vector<17x17xf32>
    %cst_121 = arith.constant 0.353553385 : f32
    %186 = vector.broadcast %cst_121 : f32 to vector<17x17xf32>
    %187 = arith.mulf %185, %186 : vector<17x17xf32>
    %cst_122 = arith.constant dense<0xFF800000> : vector<17xf32>
    %188 = vector.multi_reduction <maximumf>, %187, %cst_122 [1] : vector<17x17xf32> to vector<17xf32>
    %189 = vector.shape_cast %188 : vector<17xf32> to vector<17x1xf32>
    %190 = vector.broadcast %189 : vector<17x1xf32> to vector<17x17xf32>
    %191 = arith.subf %187, %190 : vector<17x17xf32>
    %192 = math.exp %191 : vector<17x17xf32>
    %cst_123 = arith.constant dense<0.000000e+00> : vector<17xf32>
    %193 = vector.multi_reduction <add>, %192, %cst_123 [1] : vector<17x17xf32> to vector<17xf32>
    %194 = vector.shape_cast %193 : vector<17xf32> to vector<17x1xf32>
    %195 = tpu.reciprocal %194 {approx = true} : vector<17x1xf32> -> vector<17x1xf32>
    %196 = vector.broadcast %195 : vector<17x1xf32> to vector<17x17xf32>
    %197 = arith.mulf %192, %196 : vector<17x17xf32>
    %198 = arith.truncf %197 : vector<17x17xf32> to vector<17x17xbf16>
    %199 = arith.truncf %182 : vector<17x8xf32> to vector<17x8xbf16>
    %cst_124 = arith.constant dense<0.000000e+00> : vector<17x8xf32>
    %200 = tpu.matmul %198, %199, %cst_124 {dimension_numbers = #tpu.dot_dimension_numbers<[1], [0], [0], [1], [0, 0, 1, 1], [], []>} : vector<17x17xbf16>, vector<17x8xbf16>, vector<17x8xf32> -> vector<17x8xf32>
    %201 = arith.truncf %200 : vector<17x8xf32> to vector<17x8xbf16>
    %c3_125 = arith.constant 3 : index
    %c0_126 = arith.constant 0 : index
    %c0_127 = arith.constant 0 : index
    %202 = vector.load %arg10[%c3_125, %c0_126, %c0_127] : memref<4x8x32xbf16, #tpu.memory_space<vmem>>, vector<1x8x32xbf16>
    %203 = vector.shape_cast %202 : vector<1x8x32xbf16> to vector<8x32xbf16>
    %cst_128 = arith.constant dense<0.000000e+00> : vector<17x32xf32>
    %204 = tpu.matmul %201, %203, %cst_128 {dimension_numbers = #tpu.dot_dimension_numbers<[1], [0], [0], [1], [0, 0, 1, 1], [], []>} : vector<17x8xbf16>, vector<8x32xbf16>, vector<17x32xf32> -> vector<17x32xf32>
    %205 = arith.addf %161, %204 : vector<17x32xf32>
    %c0_129 = arith.constant 0 : index
    %c0_130 = arith.constant 0 : index
    %c0_131 = arith.constant 0 : index
    %206 = vector.load %arg12[%c0_129, %c0_130, %c0_131] : memref<1x17x32xf32, #tpu.memory_space<vmem>>, vector<1x17x32xf32>
    %207 = vector.shape_cast %206 : vector<1x17x32xf32> to vector<17x32xf32>
    %208 = vector.shape_cast %205 : vector<17x32xf32> to vector<1x17x32xf32>
    tpu.vector_store %arg12[%c0_129, %c0_130, %c0_131], %208 {strides = array<i32>} : memref<1x17x32xf32, #tpu.memory_space<vmem>>, vector<1x17x32xf32>,
    return
  }
  func.func @transform_0(%arg0: i32) -> (i32, i32, i32) {
    %c0_i32 = arith.constant 0 : i32
    %c0_i32_0 = arith.constant 0 : i32
    %c0_i32_1 = arith.constant 0 : i32
    return %arg0, %c0_i32, %c0_i32_0 : i32, i32, i32
  }
  func.func @transform_1(%arg0: i32) -> (i32, i32) {
    %c0_i32 = arith.constant 0 : i32
    %c0_i32_0 = arith.constant 0 : i32
    %c0_i32_1 = arith.constant 0 : i32
    return %c0_i32, %c0_i32_0 : i32, i32
  }
  func.func @transform_2(%arg0: i32) -> (i32, i32) {
    %c0_i32 = arith.constant 0 : i32
    %c0_i32_0 = arith.constant 0 : i32
    %c0_i32_1 = arith.constant 0 : i32
    return %c0_i32, %c0_i32_0 : i32, i32
  }
  func.func @transform_3(%arg0: i32) -> (i32, i32, i32) {
    %c0_i32 = arith.constant 0 : i32
    %c0_i32_0 = arith.constant 0 : i32
    %c0_i32_1 = arith.constant 0 : i32
    %c0_i32_2 = arith.constant 0 : i32
    return %c0_i32, %c0_i32_0, %c0_i32_1 : i32, i32, i32
  }
  func.func @transform_4(%arg0: i32) -> (i32, i32, i32) {
    %c0_i32 = arith.constant 0 : i32
    %c0_i32_0 = arith.constant 0 : i32
    %c0_i32_1 = arith.constant 0 : i32
    %c0_i32_2 = arith.constant 0 : i32
    return %c0_i32, %c0_i32_0, %c0_i32_1 : i32, i32, i32
  }
  func.func @transform_5(%arg0: i32) -> (i32, i32, i32) {
    %c0_i32 = arith.constant 0 : i32
    %c0_i32_0 = arith.constant 0 : i32
    %c0_i32_1 = arith.constant 0 : i32
    %c0_i32_2 = arith.constant 0 : i32
    return %c0_i32, %c0_i32_0, %c0_i32_1 : i32, i32, i32
  }
  func.func @transform_6(%arg0: i32) -> (i32, i32, i32) {
    %c0_i32 = arith.constant 0 : i32
    %c0_i32_0 = arith.constant 0 : i32
    %c0_i32_1 = arith.constant 0 : i32
    %c0_i32_2 = arith.constant 0 : i32
    return %c0_i32, %c0_i32_0, %c0_i32_1 : i32, i32, i32
  }
  func.func @transform_7(%arg0: i32) -> (i32, i32, i32) {
    %c0_i32 = arith.constant 0 : i32
    %c0_i32_0 = arith.constant 0 : i32
    %c0_i32_1 = arith.constant 0 : i32
    %c0_i32_2 = arith.constant 0 : i32
    return %c0_i32, %c0_i32_0, %c0_i32_1 : i32, i32, i32
  }
  func.func @transform_8(%arg0: i32) -> (i32, i32, i32) {
    %c0_i32 = arith.constant 0 : i32
    %c0_i32_0 = arith.constant 0 : i32
    %c0_i32_1 = arith.constant 0 : i32
    %c0_i32_2 = arith.constant 0 : i32
    return %c0_i32, %c0_i32_0, %c0_i32_1 : i32, i32, i32
  }
  func.func @transform_9(%arg0: i32) -> (i32, i32, i32) {
    %c0_i32 = arith.constant 0 : i32
    %c0_i32_0 = arith.constant 0 : i32
    %c0_i32_1 = arith.constant 0 : i32
    %c0_i32_2 = arith.constant 0 : i32
    return %c0_i32, %c0_i32_0, %c0_i32_1 : i32, i32, i32
  }
  func.func @transform_10(%arg0: i32) -> (i32, i32) {
    %c0_i32 = arith.constant 0 : i32
    %c0_i32_0 = arith.constant 0 : i32
    %c0_i32_1 = arith.constant 0 : i32
    return %c0_i32, %c0_i32_0 : i32, i32
  }
  func.func @transform_11(%arg0: i32) -> (i32, i32, i32) {
    %c0_i32 = arith.constant 0 : i32
    %c0_i32_0 = arith.constant 0 : i32
    %c0_i32_1 = arith.constant 0 : i32
    return %arg0, %c0_i32, %c0_i32_0 : i32, i32, i32
  }
}

module attributes {stable_mosaic.version = 11 : i64} {
  func.func @_fused_mlp_kernel(%arg0: i32, %arg1: i32, %arg2: memref<40x32xf32, #tpu.memory_space<vmem>>, %arg3: memref<1x32xf32, #tpu.memory_space<vmem>>, %arg4: memref<1x32xf32, #tpu.memory_space<vmem>>, %arg5: memref<32x128xbf16, #tpu.memory_space<vmem>>, %arg6: memref<1x128xf32, #tpu.memory_space<vmem>>, %arg7: memref<128x32xbf16, #tpu.memory_space<vmem>>, %arg8: memref<1x32xf32, #tpu.memory_space<vmem>>, %arg9: memref<40x32xf32, #tpu.memory_space<vmem>>, %arg10: memref<40x32xf32, #tpu.memory_space<vmem>>, %arg11: memref<40x32xbf16, #tpu.memory_space<vmem>>) attributes {dimension_semantics = [#tpu.dimension_semantics<parallel>, #tpu.dimension_semantics<arbitrary>], iteration_bounds = array<i64: 1, 1>, scalar_prefetch = 0 : i64, scratch_operands = 2 : i64, tpu.core_type = #tpu.core_type<tc>, window_params = [{transform_indices = @transform_0, window_bounds = array<i64: 40, 32>}, {pipeline_mode = #tpu.pipeline_mode<synchronous>, transform_indices = @transform_1, window_bounds = array<i64: 1, 32>}, {pipeline_mode = #tpu.pipeline_mode<synchronous>, transform_indices = @transform_2, window_bounds = array<i64: 1, 32>}, {transform_indices = @transform_3, window_bounds = array<i64: 32, 128>}, {transform_indices = @transform_4, window_bounds = array<i64: 1, 128>}, {transform_indices = @transform_5, window_bounds = array<i64: 128, 32>}, {pipeline_mode = #tpu.pipeline_mode<synchronous>, transform_indices = @transform_6, window_bounds = array<i64: 1, 32>}, {transform_indices = @transform_7, window_bounds = array<i64: 40, 32>}]} {
    %c0_i32 = arith.constant 0 : i32
    %0 = arith.cmpi eq, %arg1, %c0_i32 : i32
    %1 = arith.extui %0 : i1 to i32
    %c0_i32_0 = arith.constant 0 : i32
    %2 = arith.cmpi ne, %1, %c0_i32_0 : i32
    scf.if %2 {
      %c0_19 = arith.constant 0 : index
      %c0_20 = arith.constant 0 : index
      %31 = vector.load %arg2[%c0_19, %c0_20] : memref<40x32xf32, #tpu.memory_space<vmem>>, vector<40x32xf32>
      %c0_21 = arith.constant 0 : index
      %c0_22 = arith.constant 0 : index
      %32 = vector.load %arg3[%c0_21, %c0_22] : memref<1x32xf32, #tpu.memory_space<vmem>>, vector<1x32xf32>
      %c0_23 = arith.constant 0 : index
      %c0_24 = arith.constant 0 : index
      %33 = vector.load %arg4[%c0_23, %c0_24] : memref<1x32xf32, #tpu.memory_space<vmem>>, vector<1x32xf32>
      %cst_25 = arith.constant dense<0.000000e+00> : vector<40xf32>
      %34 = vector.multi_reduction <add>, %31, %cst_25 [1] : vector<40x32xf32> to vector<40xf32>
      %35 = vector.shape_cast %34 : vector<40xf32> to vector<40x1xf32>
      %cst_26 = arith.constant 3.200000e+01 : f32
      %36 = vector.broadcast %cst_26 : f32 to vector<40x1xf32>
      %37 = arith.divf %35, %36 : vector<40x1xf32>
      %38 = vector.broadcast %37 : vector<40x1xf32> to vector<40x32xf32>
      %39 = arith.subf %31, %38 : vector<40x32xf32>
      %40 = arith.mulf %39, %39 : vector<40x32xf32>
      %cst_27 = arith.constant dense<0.000000e+00> : vector<40xf32>
      %41 = vector.multi_reduction <add>, %40, %cst_27 [1] : vector<40x32xf32> to vector<40xf32>
      %42 = vector.shape_cast %41 : vector<40xf32> to vector<40x1xf32>
      %cst_28 = arith.constant 3.200000e+01 : f32
      %43 = vector.broadcast %cst_28 : f32 to vector<40x1xf32>
      %44 = arith.divf %42, %43 : vector<40x1xf32>
      %45 = vector.broadcast %37 : vector<40x1xf32> to vector<40x32xf32>
      %46 = arith.subf %31, %45 : vector<40x32xf32>
      %cst_29 = arith.constant 9.99999974E-6 : f32
      %47 = vector.broadcast %cst_29 : f32 to vector<40x1xf32>
      %48 = arith.addf %44, %47 : vector<40x1xf32>
      %49 = math.rsqrt %48 : vector<40x1xf32>
      %50 = vector.broadcast %49 : vector<40x1xf32> to vector<40x32xf32>
      %51 = arith.mulf %46, %50 : vector<40x32xf32>
      %52 = vector.broadcast %32 : vector<1x32xf32> to vector<40x32xf32>
      %53 = arith.mulf %51, %52 : vector<40x32xf32>
      %54 = vector.broadcast %33 : vector<1x32xf32> to vector<40x32xf32>
      %55 = arith.addf %53, %54 : vector<40x32xf32>
      %56 = arith.truncf %55 : vector<40x32xf32> to vector<40x32xbf16>
      %c0_30 = arith.constant 0 : index
      %c0_31 = arith.constant 0 : index
      %57 = vector.load %arg11[%c0_30, %c0_31] : memref<40x32xbf16, #tpu.memory_space<vmem>>, vector<40x32xbf16>
      tpu.vector_store %arg11[%c0_30, %c0_31], %56 {strides = array<i32>} : memref<40x32xbf16, #tpu.memory_space<vmem>>, vector<40x32xbf16>,
      %c0_32 = arith.constant 0 : index
      %c0_33 = arith.constant 0 : index
      %58 = vector.load %arg8[%c0_32, %c0_33] : memref<1x32xf32, #tpu.memory_space<vmem>>, vector<1x32xf32>
      %59 = vector.broadcast %58 : vector<1x32xf32> to vector<40x32xf32>
      %60 = arith.addf %31, %59 : vector<40x32xf32>
      %c0_34 = arith.constant 0 : index
      %c0_35 = arith.constant 0 : index
      %61 = vector.load %arg10[%c0_34, %c0_35] : memref<40x32xf32, #tpu.memory_space<vmem>>, vector<40x32xf32>
      tpu.vector_store %arg10[%c0_34, %c0_35], %60 {strides = array<i32>} : memref<40x32xf32, #tpu.memory_space<vmem>>, vector<40x32xf32>,
    } else {
    }
    %c0 = arith.constant 0 : index
    %c0_1 = arith.constant 0 : index
    %3 = vector.load %arg11[%c0, %c0_1] : memref<40x32xbf16, #tpu.memory_space<vmem>>, vector<40x32xbf16>
    %c0_2 = arith.constant 0 : index
    %c0_3 = arith.constant 0 : index
    %4 = vector.load %arg5[%c0_2, %c0_3] : memref<32x128xbf16, #tpu.memory_space<vmem>>, vector<32x128xbf16>
    %cst = arith.constant dense<0.000000e+00> : vector<40x128xf32>
    %5 = tpu.matmul %3, %4, %cst {dimension_numbers = #tpu.dot_dimension_numbers<[1], [0], [0], [1], [0, 0, 1, 1], [], []>} : vector<40x32xbf16>, vector<32x128xbf16>, vector<40x128xf32> -> vector<40x128xf32>
    %c0_4 = arith.constant 0 : index
    %c0_5 = arith.constant 0 : index
    %6 = vector.load %arg6[%c0_4, %c0_5] : memref<1x128xf32, #tpu.memory_space<vmem>>, vector<1x128xf32>
    %7 = vector.broadcast %6 : vector<1x128xf32> to vector<40x128xf32>
    %8 = arith.addf %5, %7 : vector<40x128xf32>
    %9 = arith.mulf %8, %8 : vector<40x128xf32>
    %10 = arith.mulf %8, %9 : vector<40x128xf32>
    %cst_6 = arith.constant 4.471500e-02 : f32
    %11 = vector.broadcast %cst_6 : f32 to vector<40x128xf32>
    %12 = arith.mulf %11, %10 : vector<40x128xf32>
    %13 = arith.addf %8, %12 : vector<40x128xf32>
    %cst_7 = arith.constant 0.797884583 : f32
    %14 = vector.broadcast %cst_7 : f32 to vector<40x128xf32>
    %15 = arith.mulf %14, %13 : vector<40x128xf32>
    %16 = math.tanh %15 : vector<40x128xf32>
    %cst_8 = arith.constant 1.000000e+00 : f32
    %17 = vector.broadcast %cst_8 : f32 to vector<40x128xf32>
    %18 = arith.addf %17, %16 : vector<40x128xf32>
    %cst_9 = arith.constant 5.000000e-01 : f32
    %19 = vector.broadcast %cst_9 : f32 to vector<40x128xf32>
    %20 = arith.mulf %19, %18 : vector<40x128xf32>
    %21 = arith.mulf %8, %20 : vector<40x128xf32>
    %22 = arith.truncf %21 : vector<40x128xf32> to vector<40x128xbf16>
    %c0_10 = arith.constant 0 : index
    %c0_11 = arith.constant 0 : index
    %23 = vector.load %arg10[%c0_10, %c0_11] : memref<40x32xf32, #tpu.memory_space<vmem>>, vector<40x32xf32>
    %c0_12 = arith.constant 0 : index
    %c0_13 = arith.constant 0 : index
    %24 = vector.load %arg7[%c0_12, %c0_13] : memref<128x32xbf16, #tpu.memory_space<vmem>>, vector<128x32xbf16>
    %cst_14 = arith.constant dense<0.000000e+00> : vector<40x32xf32>
    %25 = tpu.matmul %22, %24, %cst_14 {dimension_numbers = #tpu.dot_dimension_numbers<[1], [0], [0], [1], [0, 0, 1, 1], [], []>} : vector<40x128xbf16>, vector<128x32xbf16>, vector<40x32xf32> -> vector<40x32xf32>
    %26 = arith.addf %23, %25 : vector<40x32xf32>
    %c0_15 = arith.constant 0 : index
    %c0_16 = arith.constant 0 : index
    %27 = vector.load %arg10[%c0_15, %c0_16] : memref<40x32xf32, #tpu.memory_space<vmem>>, vector<40x32xf32>
    tpu.vector_store %arg10[%c0_15, %c0_16], %26 {strides = array<i32>} : memref<40x32xf32, #tpu.memory_space<vmem>>, vector<40x32xf32>,
    %c0_i32_17 = arith.constant 0 : i32
    %28 = arith.cmpi eq, %arg1, %c0_i32_17 : i32
    %29 = arith.extui %28 : i1 to i32
    %c0_i32_18 = arith.constant 0 : i32
    %30 = arith.cmpi ne, %29, %c0_i32_18 : i32
    scf.if %30 {
      %c0_19 = arith.constant 0 : index
      %c0_20 = arith.constant 0 : index
      %31 = vector.load %arg10[%c0_19, %c0_20] : memref<40x32xf32, #tpu.memory_space<vmem>>, vector<40x32xf32>
      %c0_21 = arith.constant 0 : index
      %c0_22 = arith.constant 0 : index
      %32 = vector.load %arg9[%c0_21, %c0_22] : memref<40x32xf32, #tpu.memory_space<vmem>>, vector<40x32xf32>
      tpu.vector_store %arg9[%c0_21, %c0_22], %31 {strides = array<i32>} : memref<40x32xf32, #tpu.memory_space<vmem>>, vector<40x32xf32>,
    } else {
    }
    return
  }
  func.func @transform_0(%arg0: i32, %arg1: i32) -> (i32, i32) {
    %c0_i32 = arith.constant 0 : i32
    %c0_i32_0 = arith.constant 0 : i32
    return %arg0, %c0_i32 : i32, i32
  }
  func.func @transform_1(%arg0: i32, %arg1: i32) -> (i32, i32) {
    %c0_i32 = arith.constant 0 : i32
    %c0_i32_0 = arith.constant 0 : i32
    %c0_i32_1 = arith.constant 0 : i32
    return %c0_i32, %c0_i32_0 : i32, i32
  }
  func.func @transform_2(%arg0: i32, %arg1: i32) -> (i32, i32) {
    %c0_i32 = arith.constant 0 : i32
    %c0_i32_0 = arith.constant 0 : i32
    %c0_i32_1 = arith.constant 0 : i32
    return %c0_i32, %c0_i32_0 : i32, i32
  }
  func.func @transform_3(%arg0: i32, %arg1: i32) -> (i32, i32) {
    %c0_i32 = arith.constant 0 : i32
    %c0_i32_0 = arith.constant 0 : i32
    return %c0_i32, %arg1 : i32, i32
  }
  func.func @transform_4(%arg0: i32, %arg1: i32) -> (i32, i32) {
    %c0_i32 = arith.constant 0 : i32
    %c0_i32_0 = arith.constant 0 : i32
    return %c0_i32, %arg1 : i32, i32
  }
  func.func @transform_5(%arg0: i32, %arg1: i32) -> (i32, i32) {
    %c0_i32 = arith.constant 0 : i32
    %c0_i32_0 = arith.constant 0 : i32
    return %arg1, %c0_i32 : i32, i32
  }
  func.func @transform_6(%arg0: i32, %arg1: i32) -> (i32, i32) {
    %c0_i32 = arith.constant 0 : i32
    %c0_i32_0 = arith.constant 0 : i32
    %c0_i32_1 = arith.constant 0 : i32
    return %c0_i32, %c0_i32_0 : i32, i32
  }
  func.func @transform_7(%arg0: i32, %arg1: i32) -> (i32, i32) {
    %c0_i32 = arith.constant 0 : i32
    %c0_i32_0 = arith.constant 0 : i32
    return %arg0, %c0_i32 : i32, i32
  }
}

module attributes {stable_mosaic.version = 11 : i64} {
  func.func @_matmul_kernel(%arg0: i32, %arg1: i32, %arg2: i32, %arg3: memref<32x32xbf16, #tpu.memory_space<vmem>>, %arg4: memref<32x6xbf16, #tpu.memory_space<vmem>>, %arg5: memref<1x6xf32, #tpu.memory_space<vmem>>, %arg6: memref<32x6xf32, #tpu.memory_space<vmem>>, %arg7: memref<32x6xf32, #tpu.memory_space<vmem>>) attributes {dimension_semantics = [#tpu.dimension_semantics<parallel>, #tpu.dimension_semantics<parallel>, #tpu.dimension_semantics<arbitrary>], iteration_bounds = array<i64: 1, 1, 1>, scalar_prefetch = 0 : i64, scratch_operands = 1 : i64, tpu.core_type = #tpu.core_type<tc>, window_params = [{transform_indices = @transform_0, window_bounds = array<i64: 32, 32>}, {transform_indices = @transform_1, window_bounds = array<i64: 32, 6>}, {transform_indices = @transform_2, window_bounds = array<i64: 1, 6>}, {transform_indices = @transform_3, window_bounds = array<i64: 32, 6>}]} {
    %c0_i32 = arith.constant 0 : i32
    %0 = arith.cmpi eq, %arg2, %c0_i32 : i32
    %1 = arith.extui %0 : i1 to i32
    %c0_i32_0 = arith.constant 0 : i32
    %2 = arith.cmpi ne, %1, %c0_i32_0 : i32
    scf.if %2 {
      %cst_10 = arith.constant 0.000000e+00 : f32
      %12 = vector.broadcast %cst_10 : f32 to vector<32x6xf32>
      %c0_11 = arith.constant 0 : index
      %c0_12 = arith.constant 0 : index
      %13 = vector.load %arg7[%c0_11, %c0_12] : memref<32x6xf32, #tpu.memory_space<vmem>>, vector<32x6xf32>
      tpu.vector_store %arg7[%c0_11, %c0_12], %12 {strides = array<i32>} : memref<32x6xf32, #tpu.memory_space<vmem>>, vector<32x6xf32>,
    } else {
    }
    %c0 = arith.constant 0 : index
    %c0_1 = arith.constant 0 : index
    %3 = vector.load %arg7[%c0, %c0_1] : memref<32x6xf32, #tpu.memory_space<vmem>>, vector<32x6xf32>
    %c0_2 = arith.constant 0 : index
    %c0_3 = arith.constant 0 : index
    %4 = vector.load %arg3[%c0_2, %c0_3] : memref<32x32xbf16, #tpu.memory_space<vmem>>, vector<32x32xbf16>
    %c0_4 = arith.constant 0 : index
    %c0_5 = arith.constant 0 : index
    %5 = vector.load %arg4[%c0_4, %c0_5] : memref<32x6xbf16, #tpu.memory_space<vmem>>, vector<32x6xbf16>
    %cst = arith.constant dense<0.000000e+00> : vector<32x6xf32>
    %6 = tpu.matmul %4, %5, %cst {dimension_numbers = #tpu.dot_dimension_numbers<[1], [0], [0], [1], [0, 0, 1, 1], [], []>} : vector<32x32xbf16>, vector<32x6xbf16>, vector<32x6xf32> -> vector<32x6xf32>
    %7 = arith.addf %3, %6 : vector<32x6xf32>
    %c0_6 = arith.constant 0 : index
    %c0_7 = arith.constant 0 : index
    %8 = vector.load %arg7[%c0_6, %c0_7] : memref<32x6xf32, #tpu.memory_space<vmem>>, vector<32x6xf32>
    tpu.vector_store %arg7[%c0_6, %c0_7], %7 {strides = array<i32>} : memref<32x6xf32, #tpu.memory_space<vmem>>, vector<32x6xf32>,
    %c0_i32_8 = arith.constant 0 : i32
    %9 = arith.cmpi eq, %arg2, %c0_i32_8 : i32
    %10 = arith.extui %9 : i1 to i32
    %c0_i32_9 = arith.constant 0 : i32
    %11 = arith.cmpi ne, %10, %c0_i32_9 : i32
    scf.if %11 {
      %c0_10 = arith.constant 0 : index
      %c0_11 = arith.constant 0 : index
      %12 = vector.load %arg7[%c0_10, %c0_11] : memref<32x6xf32, #tpu.memory_space<vmem>>, vector<32x6xf32>
      %c0_12 = arith.constant 0 : index
      %c0_13 = arith.constant 0 : index
      %13 = vector.load %arg5[%c0_12, %c0_13] : memref<1x6xf32, #tpu.memory_space<vmem>>, vector<1x6xf32>
      %14 = vector.broadcast %13 : vector<1x6xf32> to vector<32x6xf32>
      %15 = arith.addf %12, %14 : vector<32x6xf32>
      %c0_14 = arith.constant 0 : index
      %c0_15 = arith.constant 0 : index
      %16 = vector.load %arg6[%c0_14, %c0_15] : memref<32x6xf32, #tpu.memory_space<vmem>>, vector<32x6xf32>
      tpu.vector_store %arg6[%c0_14, %c0_15], %15 {strides = array<i32>} : memref<32x6xf32, #tpu.memory_space<vmem>>, vector<32x6xf32>,
    } else {
    }
    return
  }
  func.func @transform_0(%arg0: i32, %arg1: i32, %arg2: i32) -> (i32, i32) {
    %c0_i32 = arith.constant 0 : i32
    return %arg0, %arg2 : i32, i32
  }
  func.func @transform_1(%arg0: i32, %arg1: i32, %arg2: i32) -> (i32, i32) {
    %c0_i32 = arith.constant 0 : i32
    return %arg2, %arg1 : i32, i32
  }
  func.func @transform_2(%arg0: i32, %arg1: i32, %arg2: i32) -> (i32, i32) {
    %c0_i32 = arith.constant 0 : i32
    %c0_i32_0 = arith.constant 0 : i32
    return %c0_i32, %arg1 : i32, i32
  }
  func.func @transform_3(%arg0: i32, %arg1: i32, %arg2: i32) -> (i32, i32) {
    %c0_i32 = arith.constant 0 : i32
    return %arg0, %arg1 : i32, i32
  }
}

module attributes {stable_mosaic.version = 11 : i64} {
  func.func @_matmul_kernel(%arg0: i32, %arg1: i32, %arg2: i32, %arg3: memref<8x32xbf16, #tpu.memory_space<vmem>>, %arg4: memref<32x45xbf16, #tpu.memory_space<vmem>>, %arg5: memref<1x45xf32, #tpu.memory_space<vmem>>, %arg6: memref<8x45xf32, #tpu.memory_space<vmem>>, %arg7: memref<8x45xf32, #tpu.memory_space<vmem>>) attributes {dimension_semantics = [#tpu.dimension_semantics<parallel>, #tpu.dimension_semantics<parallel>, #tpu.dimension_semantics<arbitrary>], iteration_bounds = array<i64: 1, 1, 1>, scalar_prefetch = 0 : i64, scratch_operands = 1 : i64, tpu.core_type = #tpu.core_type<tc>, window_params = [{transform_indices = @transform_0, window_bounds = array<i64: 8, 32>}, {transform_indices = @transform_1, window_bounds = array<i64: 32, 45>}, {transform_indices = @transform_2, window_bounds = array<i64: 1, 45>}, {transform_indices = @transform_3, window_bounds = array<i64: 8, 45>}]} {
    %c0_i32 = arith.constant 0 : i32
    %0 = arith.cmpi eq, %arg2, %c0_i32 : i32
    %1 = arith.extui %0 : i1 to i32
    %c0_i32_0 = arith.constant 0 : i32
    %2 = arith.cmpi ne, %1, %c0_i32_0 : i32
    scf.if %2 {
      %cst_10 = arith.constant 0.000000e+00 : f32
      %12 = vector.broadcast %cst_10 : f32 to vector<8x45xf32>
      %c0_11 = arith.constant 0 : index
      %c0_12 = arith.constant 0 : index
      %13 = vector.load %arg7[%c0_11, %c0_12] : memref<8x45xf32, #tpu.memory_space<vmem>>, vector<8x45xf32>
      tpu.vector_store %arg7[%c0_11, %c0_12], %12 {strides = array<i32>} : memref<8x45xf32, #tpu.memory_space<vmem>>, vector<8x45xf32>,
    } else {
    }
    %c0 = arith.constant 0 : index
    %c0_1 = arith.constant 0 : index
    %3 = vector.load %arg7[%c0, %c0_1] : memref<8x45xf32, #tpu.memory_space<vmem>>, vector<8x45xf32>
    %c0_2 = arith.constant 0 : index
    %c0_3 = arith.constant 0 : index
    %4 = vector.load %arg3[%c0_2, %c0_3] : memref<8x32xbf16, #tpu.memory_space<vmem>>, vector<8x32xbf16>
    %c0_4 = arith.constant 0 : index
    %c0_5 = arith.constant 0 : index
    %5 = vector.load %arg4[%c0_4, %c0_5] : memref<32x45xbf16, #tpu.memory_space<vmem>>, vector<32x45xbf16>
    %cst = arith.constant dense<0.000000e+00> : vector<8x45xf32>
    %6 = tpu.matmul %4, %5, %cst {dimension_numbers = #tpu.dot_dimension_numbers<[1], [0], [0], [1], [0, 0, 1, 1], [], []>} : vector<8x32xbf16>, vector<32x45xbf16>, vector<8x45xf32> -> vector<8x45xf32>
    %7 = arith.addf %3, %6 : vector<8x45xf32>
    %c0_6 = arith.constant 0 : index
    %c0_7 = arith.constant 0 : index
    %8 = vector.load %arg7[%c0_6, %c0_7] : memref<8x45xf32, #tpu.memory_space<vmem>>, vector<8x45xf32>
    tpu.vector_store %arg7[%c0_6, %c0_7], %7 {strides = array<i32>} : memref<8x45xf32, #tpu.memory_space<vmem>>, vector<8x45xf32>,
    %c0_i32_8 = arith.constant 0 : i32
    %9 = arith.cmpi eq, %arg2, %c0_i32_8 : i32
    %10 = arith.extui %9 : i1 to i32
    %c0_i32_9 = arith.constant 0 : i32
    %11 = arith.cmpi ne, %10, %c0_i32_9 : i32
    scf.if %11 {
      %c0_10 = arith.constant 0 : index
      %c0_11 = arith.constant 0 : index
      %12 = vector.load %arg7[%c0_10, %c0_11] : memref<8x45xf32, #tpu.memory_space<vmem>>, vector<8x45xf32>
      %c0_12 = arith.constant 0 : index
      %c0_13 = arith.constant 0 : index
      %13 = vector.load %arg5[%c0_12, %c0_13] : memref<1x45xf32, #tpu.memory_space<vmem>>, vector<1x45xf32>
      %14 = vector.broadcast %13 : vector<1x45xf32> to vector<8x45xf32>
      %15 = arith.addf %12, %14 : vector<8x45xf32>
      %c0_14 = arith.constant 0 : index
      %c0_15 = arith.constant 0 : index
      %16 = vector.load %arg6[%c0_14, %c0_15] : memref<8x45xf32, #tpu.memory_space<vmem>>, vector<8x45xf32>
      tpu.vector_store %arg6[%c0_14, %c0_15], %15 {strides = array<i32>} : memref<8x45xf32, #tpu.memory_space<vmem>>, vector<8x45xf32>,
    } else {
    }
    return
  }
  func.func @transform_0(%arg0: i32, %arg1: i32, %arg2: i32) -> (i32, i32) {
    %c0_i32 = arith.constant 0 : i32
    return %arg0, %arg2 : i32, i32
  }
  func.func @transform_1(%arg0: i32, %arg1: i32, %arg2: i32) -> (i32, i32) {
    %c0_i32 = arith.constant 0 : i32
    return %arg2, %arg1 : i32, i32
  }
  func.func @transform_2(%arg0: i32, %arg1: i32, %arg2: i32) -> (i32, i32) {
    %c0_i32 = arith.constant 0 : i32
    %c0_i32_0 = arith.constant 0 : i32
    return %c0_i32, %arg1 : i32, i32
  }
  func.func @transform_3(%arg0: i32, %arg1: i32, %arg2: i32) -> (i32, i32) {
    %c0_i32 = arith.constant 0 : i32
    return %arg0, %arg1 : i32, i32
  }
}

</mosaic_0001>

<llo_original>
// kernel: _lambda_.36
$region0: #{_lambda_.36}
  #allocation0 [shape = 'u32[]', space=smem, size = 0x4, offset = 0x4, fixed_abs, tag = 'smem constant byte address 0x4 - core index']
  #allocation1 [shape = 'u32[144,128]{1,0:T(1,128)}', space=vmem, size = 0x12000, scoped, tag = 'internal scratch']
  #allocation2 [shape = 'f32[8,32]{1,0:T(8,128)}', space=vmem, size = 0x1000, scoped, tag = 'scratch operand']
  %s0 = inlined_call_operand.vmem [shape: bf16[8,32], index: 0, kind: input, shape index: {}]
  %s1 = inlined_call_operand.vmem [shape: bf16[32,32], index: 1, kind: input, shape index: {}]
  %s2 = inlined_call_operand.vmem [shape: f32[1,32], index: 2, kind: input, shape index: {}]
  %s3 = inlined_call_operand.vmem [shape: f32[8,32], index: 3, kind: output, shape index: {}]
  %s4 = sld [smem:[#allocation0]]
  $region30: #{_lambda_.36} parent=0
    _
  %s6 = ssub.s32 1, %s4
  %s7 = scalar_select 0, %s6, %s4
  // Predicated region
  $region2: #{_lambda_.36} parent=0 // pred_check
    _
  $region3: #{_lambda_.36} parent=0 // pred_check_branch
    %9 = sbr.rel (0) target = $region5
  $region4: #{_lambda_.36} parent=0 // pred_region
    _
  $region5: #{_lambda_.36} parent=0 // pred_fallthru
    _
  // Predicated region
  $region6: #{_lambda_.36} parent=0 // pred_check
    _
  $region7: #{_lambda_.36} parent=0 // pred_check_branch
    %11 = sbr.rel (0) target = $region9
  $region8: #{_lambda_.36} parent=0 // pred_region
    _
  $region9: #{_lambda_.36} parent=0 // pred_fallthru
    _
  // Predicated region
  $region10: #{_lambda_.36} parent=0 // pred_check
    _
  $region11: #{_lambda_.36} parent=0 // pred_check_branch
    %13 = sbr.rel (0) target = $region13
  $region12: #{_lambda_.36} parent=0 // pred_region
    _
  $region13: #{_lambda_.36} parent=0 // pred_fallthru
    _
  %p15 = scmp.eq.s32.totalorder 0, 0
  // Predicated region
  $region14: #{_lambda_.36} parent=0 // pred_check
    %p16 = pneg %p15
  $region15: #{_lambda_.36} parent=0 // pred_check_branch
    %18 = sbr.rel (%p16) target = $region17
  $region16: #{_lambda_.36} parent=0 // pred_region
    %vm19 = vcmask 261120
    %20 = vst.msk [vmem:[#allocation2] sm:$0xff] %vm19, 0.0
  $region17: #{_lambda_.36} parent=0 // pred_fallthru
    _
  %v21 = vld [vmem:[#allocation2] sm:$0xff]
  %v22 = vld [vmem:[%s0] sm:$0xf]
  %v23 = vld [vmem:[%s1] sm:$0xf]
  %v24 = vld [vmem:[%s1 + $0x4] sm:$0xf]
  %v25 = vld [vmem:[%s1 + $0x8] sm:$0xf]
  %v26 = vld [vmem:[%s1 + $0xc] sm:$0xf]
  %v31 = vunpack.c.l.b16 %v23
  %v32 = vunpack.c.l.b16 %v24
  %v33 = vunpack.c.l.b16 %v25
  %v34 = vunpack.c.l.b16 %v26
  %v35 = vpack.c.b16 %v32, %v31
  %v36 = vpack.c.b16 %v34, %v33
  %vm39 = vcmask 261120
  %v41 = vsel %vm39, %v22, 0
  %43 = vmatprep.subr.bf16.mxu0 0
  %44 = vmatpush1.bf16.msra.mxu0 %v35
  %45 = vmatprep.subr.bf16.mxu0 0
  %46 = vmatpush1.bf16.msra.mxu0 %v36
  %47 = vmatprep.subr.bf16.mxu0 0
  %48 = vmatpush1.bf16.msra.mxu0 0
  %49 = vmatprep.subr.bf16.mxu0 0
  %50 = vmatpush1.bf16.msra.mxu0 0
  %51 = vmatprep.subr.bf16.mxu0 0
  %52 = vmatpush1.bf16.msra.mxu0 0
  %53 = vmatprep.subr.bf16.mxu0 0
  %54 = vmatpush1.bf16.msra.mxu0 0
  %55 = vmatprep.subr.bf16.mxu0 0
  %56 = vmatpush1.bf16.msra.mxu0 0
  %57 = vmatprep.subr.bf16.mxu0 0
  %58 = vmatpush1.bf16.msra.mxu0 0
  %59 = vmatprep.subr.bf16.mxu0 0
  %60 = vmatpush1.bf16.msra.mxu0 0
  %61 = vmatprep.subr.bf16.mxu0 0
  %62 = vmatpush1.bf16.msra.mxu0 0
  %63 = vmatprep.subr.bf16.mxu0 0
  %64 = vmatpush1.bf16.msra.mxu0 0
  %65 = vmatprep.subr.bf16.mxu0 0
  %66 = vmatpush1.bf16.msra.mxu0 0
  %67 = vmatprep.subr.bf16.mxu0 0
  %68 = vmatpush1.bf16.msra.mxu0 0
  %69 = vmatprep.subr.bf16.mxu0 0
  %70 = vmatpush1.bf16.msra.mxu0 0
  %71 = vmatprep.subr.bf16.mxu0 0
  %72 = vmatpush1.bf16.msra.mxu0 0
  %73 = vmatprep.subr.bf16.mxu0 0
  %74 = vmatpush1.bf16.msra.mxu0 0
  %75 = vmatprep.mubr.bf16.mxu0 0
  %76 = vmatmul.mubr.bf16.gmra.mrb[0].mxu0 %v41
  %v77 = vpop.f32.mrb[0].mxu0
  %v78 = vadd.f32 0.0, %v77
  %v79 = vpop.f32.mrb[0].mxu0
  %v80 = vpop.f32.mrb[0].mxu0
  %v81 = vpop.f32.mrb[0].mxu0
  %82 = vdwg.mxu0
  %v83 = vadd.f32 %v21, %v78
  %84 = vst.msk [vmem:[#allocation2] sm:$0xff] %vm39, %v83
  // Predicated region
  $region18: #{_lambda_.36} parent=0 // pred_check
    %p85 = pneg %p15
  $region19: #{_lambda_.36} parent=0 // pred_check_branch
    %87 = sbr.rel (%p85) target = $region21
  $region20: #{_lambda_.36} parent=0 // pred_region
    %v88 = vld [vmem:[#allocation2] sm:$0xff]
    %v89 = vld [vmem:[%s2] sm:$0x1]
    %v91 = vlaneseq
    %v92 = vshrl.u32 %v91, 7
    %v93 = vsub.s32 0, %v92
    %v94 = vrot.slane %v89, %v93
    %v96 = vadd.f32 %v88, %v94
    %v97 = vmax.f32 %v96, 0.0
    %98 = vst.msk [vmem:[%s3] sm:$0xff] %vm39, %v97
  $region21: #{_lambda_.36} parent=0 // pred_fallthru
    _
  // Predicated region
  $region22: #{_lambda_.36} parent=0 // pred_check
    _
  $region23: #{_lambda_.36} parent=0 // pred_check_branch
    %100 = sbr.rel (0) target = $region25
  $region24: #{_lambda_.36} parent=0 // pred_region
    _
  $region25: #{_lambda_.36} parent=0 // pred_fallthru
    _
  // Predicated region
  $region26: #{_lambda_.36} parent=0 // pred_check
    _
  $region27: #{_lambda_.36} parent=0 // pred_check_branch
    %102 = sbr.rel (0) target = $region29
  $region28: #{_lambda_.36} parent=0 // pred_region
    _
  $region29: #{_lambda_.36} parent=0 // pred_fallthru
    _

// kernel: _lambda_.37
$region0: #{_lambda_.37}
  #allocation0 [shape = 'u32[]', space=smem, size = 0x4, offset = 0x4, fixed_abs, tag = 'smem constant byte address 0x4 - core index']
  #allocation1 [shape = 'u32[144,128]{1,0:T(1,128)}', space=vmem, size = 0x12000, scoped, tag = 'internal scratch']
  #allocation2 [shape = 'f32[8,32]{1,0:T(8,128)}', space=vmem, size = 0x1000, scoped, tag = 'scratch operand']
  %s0 = inlined_call_operand.vmem [shape: bf16[8,32], index: 0, kind: input, shape index: {}]
  %s1 = inlined_call_operand.vmem [shape: bf16[32,32], index: 1, kind: input, shape index: {}]
  %s2 = inlined_call_operand.vmem [shape: f32[1,32], index: 2, kind: input, shape index: {}]
  %s3 = inlined_call_operand.vmem [shape: f32[8,32], index: 3, kind: input, shape index: {}]
  %s4 = inlined_call_operand.vmem [shape: f32[8,32], index: 4, kind: output, shape index: {}]
  %s5 = sld [smem:[#allocation0]]
  $region34: #{_lambda_.37} parent=0
    _
  %s7 = ssub.s32 1, %s5
  %s8 = scalar_select 0, %s7, %s5
  // Predicated region
  $region2: #{_lambda_.37} parent=0 // pred_check
    _
  $region3: #{_lambda_.37} parent=0 // pred_check_branch
    %10 = sbr.rel (0) target = $region5
  $region4: #{_lambda_.37} parent=0 // pred_region
    _
  $region5: #{_lambda_.37} parent=0 // pred_fallthru
    _
  // Predicated region
  $region6: #{_lambda_.37} parent=0 // pred_check
    _
  $region7: #{_lambda_.37} parent=0 // pred_check_branch
    %12 = sbr.rel (0) target = $region9
  $region8: #{_lambda_.37} parent=0 // pred_region
    _
  $region9: #{_lambda_.37} parent=0 // pred_fallthru
    _
  // Predicated region
  $region10: #{_lambda_.37} parent=0 // pred_check
    _
  $region11: #{_lambda_.37} parent=0 // pred_check_branch
    %14 = sbr.rel (0) target = $region13
  $region12: #{_lambda_.37} parent=0 // pred_region
    _
  $region13: #{_lambda_.37} parent=0 // pred_fallthru
    _
  // Predicated region
  $region14: #{_lambda_.37} parent=0 // pred_check
    _
  $region15: #{_lambda_.37} parent=0 // pred_check_branch
    %16 = sbr.rel (0) target = $region17
  $region16: #{_lambda_.37} parent=0 // pred_region
    _
  $region17: #{_lambda_.37} parent=0 // pred_fallthru
    _
  %p18 = scmp.eq.s32.totalorder 0, 0
  // Predicated region
  $region18: #{_lambda_.37} parent=0 // pred_check
    %p19 = pneg %p18
  $region19: #{_lambda_.37} parent=0 // pred_check_branch
    %21 = sbr.rel (%p19) target = $region21
  $region20: #{_lambda_.37} parent=0 // pred_region
    %vm22 = vcmask 261120
    %23 = vst.msk [vmem:[#allocation2] sm:$0xff] %vm22, 0.0
  $region21: #{_lambda_.37} parent=0 // pred_fallthru
    _
  %v24 = vld [vmem:[#allocation2] sm:$0xff]
  %v25 = vld [vmem:[%s0] sm:$0xf]
  %v26 = vld [vmem:[%s1] sm:$0xf]
  %v27 = vld [vmem:[%s1 + $0x4] sm:$0xf]
  %v28 = vld [vmem:[%s1 + $0x8] sm:$0xf]
  %v29 = vld [vmem:[%s1 + $0xc] sm:$0xf]
  %v34 = vunpack.c.l.b16 %v26
  %v35 = vunpack.c.l.b16 %v27
  %v36 = vunpack.c.l.b16 %v28
  %v37 = vunpack.c.l.b16 %v29
  %v38 = vpack.c.b16 %v35, %v34
  %v39 = vpack.c.b16 %v37, %v36
  %vm42 = vcmask 261120
  %v44 = vsel %vm42, %v25, 0
  %46 = vmatprep.subr.bf16.mxu0 0
  %47 = vmatpush1.bf16.msra.mxu0 %v38
  %48 = vmatprep.subr.bf16.mxu0 0
  %49 = vmatpush1.bf16.msra.mxu0 %v39
  %50 = vmatprep.subr.bf16.mxu0 0
  %51 = vmatpush1.bf16.msra.mxu0 0
  %52 = vmatprep.subr.bf16.mxu0 0
  %53 = vmatpush1.bf16.msra.mxu0 0
  %54 = vmatprep.subr.bf16.mxu0 0
  %55 = vmatpush1.bf16.msra.mxu0 0
  %56 = vmatprep.subr.bf16.mxu0 0
  %57 = vmatpush1.bf16.msra.mxu0 0
  %58 = vmatprep.subr.bf16.mxu0 0
  %59 = vmatpush1.bf16.msra.mxu0 0
  %60 = vmatprep.subr.bf16.mxu0 0
  %61 = vmatpush1.bf16.msra.mxu0 0
  %62 = vmatprep.subr.bf16.mxu0 0
  %63 = vmatpush1.bf16.msra.mxu0 0
  %64 = vmatprep.subr.bf16.mxu0 0
  %65 = vmatpush1.bf16.msra.mxu0 0
  %66 = vmatprep.subr.bf16.mxu0 0
  %67 = vmatpush1.bf16.msra.mxu0 0
  %68 = vmatprep.subr.bf16.mxu0 0
  %69 = vmatpush1.bf16.msra.mxu0 0
  %70 = vmatprep.subr.bf16.mxu0 0
  %71 = vmatpush1.bf16.msra.mxu0 0
  %72 = vmatprep.subr.bf16.mxu0 0
  %73 = vmatpush1.bf16.msra.mxu0 0
  %74 = vmatprep.subr.bf16.mxu0 0
  %75 = vmatpush1.bf16.msra.mxu0 0
  %76 = vmatprep.subr.bf16.mxu0 0
  %77 = vmatpush1.bf16.msra.mxu0 0
  %78 = vmatprep.mubr.bf16.mxu0 0
  %79 = vmatmul.mubr.bf16.gmra.mrb[0].mxu0 %v44
  %v80 = vpop.f32.mrb[0].mxu0
  %v81 = vadd.f32 0.0, %v80
  %v82 = vpop.f32.mrb[0].mxu0
  %v83 = vpop.f32.mrb[0].mxu0
  %v84 = vpop.f32.mrb[0].mxu0
  %85 = vdwg.mxu0
  %v86 = vadd.f32 %v24, %v81
  %87 = vst.msk [vmem:[#allocation2] sm:$0xff] %vm42, %v86
  // Predicated region
  $region22: #{_lambda_.37} parent=0 // pred_check
    %p88 = pneg %p18
  $region23: #{_lambda_.37} parent=0 // pred_check_branch
    %90 = sbr.rel (%p88) target = $region25
  $region24: #{_lambda_.37} parent=0 // pred_region
    %v91 = vld [vmem:[#allocation2] sm:$0xff]
    %v92 = vld [vmem:[%s2] sm:$0x1]
    %v94 = vlaneseq
    %v95 = vshrl.u32 %v94, 7
    %v96 = vsub.s32 0, %v95
    %v97 = vrot.slane %v92, %v96
    %v99 = vadd.f32 %v91, %v97
    %v100 = vmax.f32 %v99, 0.0
    %v101 = vld [vmem:[%s3] sm:$0xff]
    %v102 = vadd.f32 %v100, %v101
    %103 = vst.msk [vmem:[%s4] sm:$0xff] %vm42, %v102
  $region25: #{_lambda_.37} parent=0 // pred_fallthru
    _
  // Predicated region
  $region26: #{_lambda_.37} parent=0 // pred_check
    _
  $region27: #{_lambda_.37} parent=0 // pred_check_branch
    %105 = sbr.rel (0) target = $region29
  $region28: #{_lambda_.37} parent=0 // pred_region
    _
  $region29: #{_lambda_.37} parent=0 // pred_fallthru
    _
  // Predicated region
  $region30: #{_lambda_.37} parent=0 // pred_check
    _
  $region31: #{_lambda_.37} parent=0 // pred_check_branch
    %107 = sbr.rel (0) target = $region33
  $region32: #{_lambda_.37} parent=0 // pred_region
    _
  $region33: #{_lambda_.37} parent=0 // pred_fallthru
    _

// kernel: _lambda_.39
$region0: #{_lambda_.39}
  #allocation0 [shape = 'u32[]', space=smem, size = 0x4, offset = 0x4, fixed_abs, tag = 'smem constant byte address 0x4 - core index']
  #allocation1 [shape = 'u32[144,128]{1,0:T(1,128)}', space=vmem, size = 0x12000, scoped, tag = 'internal scratch']
  %s0 = inlined_call_operand.vmem [shape: f32[16,32], index: 0, kind: input, shape index: {}]
  %s1 = inlined_call_operand.vmem [shape: f32[1,32], index: 1, kind: input, shape index: {}]
  %s2 = inlined_call_operand.vmem [shape: f32[1,32], index: 2, kind: input, shape index: {}]
  %s3 = inlined_call_operand.vmem [shape: f32[16,32], index: 3, kind: output, shape index: {}]
  %s4 = sld [smem:[#allocation0]]
  $region22: #{_lambda_.39} parent=0
    _
  %s6 = ssub.s32 1, %s4
  %s7 = scalar_select 0, %s6, %s4
  // Predicated region
  $region2: #{_lambda_.39} parent=0 // pred_check
    _
  $region3: #{_lambda_.39} parent=0 // pred_check_branch
    %9 = sbr.rel (0) target = $region5
  $region4: #{_lambda_.39} parent=0 // pred_region
    _
  $region5: #{_lambda_.39} parent=0 // pred_fallthru
    _
  // Predicated region
  $region6: #{_lambda_.39} parent=0 // pred_check
    _
  $region7: #{_lambda_.39} parent=0 // pred_check_branch
    %11 = sbr.rel (0) target = $region9
  $region8: #{_lambda_.39} parent=0 // pred_region
    _
  $region9: #{_lambda_.39} parent=0 // pred_fallthru
    _
  // Predicated region
  $region10: #{_lambda_.39} parent=0 // pred_check
    _
  $region11: #{_lambda_.39} parent=0 // pred_check_branch
    %13 = sbr.rel (0) target = $region13
  $region12: #{_lambda_.39} parent=0 // pred_region
    _
  $region13: #{_lambda_.39} parent=0 // pred_fallthru
    _
  %v14 = vld [vmem:[%s0] sm:$0xff]
  %v15 = vld [vmem:[%s0 + $0x8] sm:$0xff]
  %v16 = vld [vmem:[%s1] sm:$0x1]
  %v17 = vld [vmem:[%s2] sm:$0x1]
  %vm18 = vcmask 261120
  %v19 = vsel %vm18, %v14, 0.0
  %20 = vadd.xlane.f32.xlu0 %v19
  %v21 = vpop.xlane.xlu0 %20
  %v22 = vsel %vm18, %v15, 0.0
  %23 = vadd.xlane.f32.xlu0 %v22
  %v24 = vpop.xlane.xlu0 %23
  %v25 = vrcp.pop 32.0
  %v26 = vmul.f32 %v21, %v25
  %v27 = vmul.f32 %v24, %v25
  %v28 = vsub.f32 %v14, %v26
  %v29 = vsub.f32 %v15, %v27
  %v30 = vmul.f32 %v28, %v28
  %v31 = vmul.f32 %v29, %v29
  %v32 = vsel %vm18, %v30, 0.0
  %33 = vadd.xlane.f32.xlu0 %v32
  %v34 = vpop.xlane.xlu0 %33
  %v35 = vsel %vm18, %v31, 0.0
  %36 = vadd.xlane.f32.xlu0 %v35
  %v37 = vpop.xlane.xlu0 %36
  %v38 = vmul.f32 %v34, %v25
  %v39 = vmul.f32 %v37, %v25
  %v40 = vadd.f32 %v38, 1e-05
  %v41 = vadd.f32 %v39, 1e-05
  %v42 = vrsqrt.pop %v40
  %v43 = vrsqrt.pop %v41
  %v44 = vmul.f32 %v28, %v42
  %v45 = vmul.f32 %v29, %v43
  %v47 = vlaneseq
  %v48 = vshrl.u32 %v47, 7
  %v49 = vsub.s32 0, %v48
  %v50 = vrot.slane %v16, %v49
  %v52 = vmul.f32 %v44, %v50
  %v53 = vmul.f32 %v45, %v50
  %v55 = vlaneseq
  %v56 = vshrl.u32 %v55, 7
  %v57 = vsub.s32 0, %v56
  %v58 = vrot.slane %v17, %v57
  %v60 = vadd.f32 %v52, %v58
  %v61 = vadd.f32 %v53, %v58
  %62 = vst.msk [vmem:[%s3] sm:$0xff] %vm18, %v60
  %63 = vst.msk [vmem:[%s3 + $0x8] sm:$0xff] %vm18, %v61
  // Predicated region
  $region14: #{_lambda_.39} parent=0 // pred_check
    _
  $region15: #{_lambda_.39} parent=0 // pred_check_branch
    %65 = sbr.rel (0) target = $region17
  $region16: #{_lambda_.39} parent=0 // pred_region
    _
  $region17: #{_lambda_.39} parent=0 // pred_fallthru
    _
  // Predicated region
  $region18: #{_lambda_.39} parent=0 // pred_check
    _
  $region19: #{_lambda_.39} parent=0 // pred_check_branch
    %67 = sbr.rel (0) target = $region21
  $region20: #{_lambda_.39} parent=0 // pred_region
    _
  $region21: #{_lambda_.39} parent=0 // pred_fallthru
    _

// kernel: _lambda_.38
$region0: #{_lambda_.38}
  #allocation0 [shape = 'u32[]', space=smem, size = 0x4, offset = 0x4, fixed_abs, tag = 'smem constant byte address 0x4 - core index']
  #allocation1 [shape = 'u32[144,128]{1,0:T(1,128)}', space=vmem, size = 0x12000, scoped, tag = 'internal scratch']
  %s0 = inlined_call_operand.vmem [shape: f32[1,12,32], index: 0, kind: input, shape index: {}]
  %s1 = inlined_call_operand.vmem [shape: f32[1,32], index: 1, kind: input, shape index: {}]
  %s2 = inlined_call_operand.vmem [shape: f32[1,32], index: 2, kind: input, shape index: {}]
  %s3 = inlined_call_operand.vmem [shape: bf16[4,32,8], index: 3, kind: input, shape index: {}]
  %s4 = inlined_call_operand.vmem [shape: bf16[4,32,8], index: 4, kind: input, shape index: {}]
  %s5 = inlined_call_operand.vmem [shape: bf16[4,32,8], index: 5, kind: input, shape index: {}]
  %s6 = inlined_call_operand.vmem [shape: f32[4,1,8], index: 6, kind: input, shape index: {}]
  %s7 = inlined_call_operand.vmem [shape: f32[4,1,8], index: 7, kind: input, shape index: {}]
  %s8 = inlined_call_operand.vmem [shape: f32[4,1,8], index: 8, kind: input, shape index: {}]
  %s9 = inlined_call_operand.vmem [shape: bf16[4,8,32], index: 9, kind: input, shape index: {}]
  %s10 = inlined_call_operand.vmem [shape: f32[1,32], index: 10, kind: input, shape index: {}]
  %s11 = inlined_call_operand.vmem [shape: f32[1,12,32], index: 11, kind: output, shape index: {}]
  %s12 = sld [smem:[#allocation0]]
  $region54: #{_lambda_.38} parent=0
    _
  %s14 = ssub.s32 1, %s12
  %s15 = scalar_select 0, %s14, %s12
  // Predicated region
  $region2: #{_lambda_.38} parent=0 // pred_check
    _
  $region3: #{_lambda_.38} parent=0 // pred_check_branch
    %17 = sbr.rel (0) target = $region5
  $region4: #{_lambda_.38} parent=0 // pred_region
    _
  $region5: #{_lambda_.38} parent=0 // pred_fallthru
    _
  // Predicated region
  $region6: #{_lambda_.38} parent=0 // pred_check
    _
  $region7: #{_lambda_.38} parent=0 // pred_check_branch
    %19 = sbr.rel (0) target = $region9
  $region8: #{_lambda_.38} parent=0 // pred_region
    _
  $region9: #{_lambda_.38} parent=0 // pred_fallthru
    _
  // Predicated region
  $region10: #{_lambda_.38} parent=0 // pred_check
    _
  $region11: #{_lambda_.38} parent=0 // pred_check_branch
    %21 = sbr.rel (0) target = $region13
  $region12: #{_lambda_.38} parent=0 // pred_region
    _
  $region13: #{_lambda_.38} parent=0 // pred_fallthru
    _
  // Predicated region
  $region14: #{_lambda_.38} parent=0 // pred_check
    _
  $region15: #{_lambda_.38} parent=0 // pred_check_branch
    %23 = sbr.rel (0) target = $region17
  $region16: #{_lambda_.38} parent=0 // pred_region
    _
  $region17: #{_lambda_.38} parent=0 // pred_fallthru
    _
  // Predicated region
  $region18: #{_lambda_.38} parent=0 // pred_check
    _
  $region19: #{_lambda_.38} parent=0 // pred_check_branch
    %25 = sbr.rel (0) target = $region21
  $region20: #{_lambda_.38} parent=0 // pred_region
    _
  $region21: #{_lambda_.38} parent=0 // pred_fallthru
    _
  // Predicated region
  $region22: #{_lambda_.38} parent=0 // pred_check
    _
  $region23: #{_lambda_.38} parent=0 // pred_check_branch
    %27 = sbr.rel (0) target = $region25
  $region24: #{_lambda_.38} parent=0 // pred_region
    _
  $region25: #{_lambda_.38} parent=0 // pred_fallthru
    _
  // Predicated region
  $region26: #{_lambda_.38} parent=0 // pred_check
    _
  $region27: #{_lambda_.38} parent=0 // pred_check_branch
    %29 = sbr.rel (0) target = $region29
  $region28: #{_lambda_.38} parent=0 // pred_region
    _
  $region29: #{_lambda_.38} parent=0 // pred_fallthru
    _
  // Predicated region
  $region30: #{_lambda_.38} parent=0 // pred_check
    _
  $region31: #{_lambda_.38} parent=0 // pred_check_branch
    %31 = sbr.rel (0) target = $region33
  $region32: #{_lambda_.38} parent=0 // pred_region
    _
  $region33: #{_lambda_.38} parent=0 // pred_fallthru
    _
  // Predicated region
  $region34: #{_lambda_.38} parent=0 // pred_check
    _
  $region35: #{_lambda_.38} parent=0 // pred_check_branch
    %33 = sbr.rel (0) target = $region37
  $region36: #{_lambda_.38} parent=0 // pred_region
    _
  $region37: #{_lambda_.38} parent=0 // pred_fallthru
    _
  // Predicated region
  $region38: #{_lambda_.38} parent=0 // pred_check
    _
  $region39: #{_lambda_.38} parent=0 // pred_check_branch
    %35 = sbr.rel (0) target = $region41
  $region40: #{_lambda_.38} parent=0 // pred_region
    _
  $region41: #{_lambda_.38} parent=0 // pred_fallthru
    _
  // Predicated region
  $region42: #{_lambda_.38} parent=0 // pred_check
    _
  $region43: #{_lambda_.38} parent=0 // pred_check_branch
    %37 = sbr.rel (0) target = $region45
  $region44: #{_lambda_.38} parent=0 // pred_region
    _
  $region45: #{_lambda_.38} parent=0 // pred_fallthru
    _
  %v39 = vld [vmem:[%s0] sm:$0xff]
  %v40 = vld [vmem:[%s0 + $0x8] sm:$0xf]
  %v41 = vpack.c.bf16 %v40, %v39
  %v42 = vld [vmem:[%s10] sm:$0x1]
  %v44 = vlaneseq
  %v45 = vshrl.u32 %v44, 7
  %v46 = vsub.s32 0, %v45
  %v47 = vrot.slane %v42, %v46
  %v49 = vadd.f32 %v39, %v47
  %v50 = vadd.f32 %v40, %v47
  %v51 = vld [vmem:[%s3] sm:$0xf]
  %v52 = vld [vmem:[%s3 + $0x4] sm:$0xf]
  %v53 = vld [vmem:[%s3 + $0x8] sm:$0xf]
  %v54 = vld [vmem:[%s3 + $0xc] sm:$0xf]
  %v55 = vld [vmem:[%s6] sm:$0x1]
  %v57 = vlaneseq
  %v58 = vshrl.u32 %v57, 7
  %v59 = vsub.s32 0, %v58
  %v60 = vrot.slane %v55, %v59
  %v66 = vunpack.c.l.b16 %v51
  %v67 = vunpack.c.l.b16 %v52
  %v68 = vunpack.c.l.b16 %v53
  %v69 = vunpack.c.l.b16 %v54
  %v70 = vpack.c.b16 %v67, %v66
  %v71 = vpack.c.b16 %v69, %v68
  %vm74 = vcmask 261120
  %v76 = vsel %vm74, %v41, 0
  %78 = vmatprep.subr.bf16.mxu0 0
  %79 = vmatpush1.bf16.msra.mxu0 %v70
  %80 = vmatprep.subr.bf16.mxu0 0
  %81 = vmatpush1.bf16.msra.mxu0 %v71
  %82 = vmatprep.subr.bf16.mxu0 0
  %83 = vmatpush1.bf16.msra.mxu0 0
  %84 = vmatprep.subr.bf16.mxu0 0
  %85 = vmatpush1.bf16.msra.mxu0 0
  %86 = vmatprep.subr.bf16.mxu0 0
  %87 = vmatpush1.bf16.msra.mxu0 0
  %88 = vmatprep.subr.bf16.mxu0 0
  %89 = vmatpush1.bf16.msra.mxu0 0
  %90 = vmatprep.subr.bf16.mxu0 0
  %91 = vmatpush1.bf16.msra.mxu0 0
  %92 = vmatprep.subr.bf16.mxu0 0
  %93 = vmatpush1.bf16.msra.mxu0 0
  %94 = vmatprep.subr.bf16.mxu0 0
  %95 = vmatpush1.bf16.msra.mxu0 0
  %96 = vmatprep.subr.bf16.mxu0 0
  %97 = vmatpush1.bf16.msra.mxu0 0
  %98 = vmatprep.subr.bf16.mxu0 0
  %99 = vmatpush1.bf16.msra.mxu0 0
  %100 = vmatprep.subr.bf16.mxu0 0
  %101 = vmatpush1.bf16.msra.mxu0 0
  %102 = vmatprep.subr.bf16.mxu0 0
  %103 = vmatpush1.bf16.msra.mxu0 0
  %104 = vmatprep.subr.bf16.mxu0 0
  %105 = vmatpush1.bf16.msra.mxu0 0
  %106 = vmatprep.subr.bf16.mxu0 0
  %107 = vmatpush1.bf16.msra.mxu0 0
  %108 = vmatprep.subr.bf16.mxu0 0
  %109 = vmatpush1.bf16.msra.mxu0 0
  %110 = vmatprep.mubr.bf16.mxu0 0
  %111 = vmatmul.mubr.bf16.gmra.mrb[0].mxu0 %v76
  %v112 = vpop.f32.mrb[0].mxu0
  %v113 = vadd.f32 %v60, %v112
  %v114 = vpop.f32.mrb[0].mxu0
  %v115 = vpop.f32.mrb[0].mxu0
  %v116 = vadd.f32 %v60, %v115
  %v117 = vpop.f32.mrb[0].mxu0
  %118 = vdwg.mxu0
  %v119 = vld [vmem:[%s4] sm:$0xf]
  %v120 = vld [vmem:[%s4 + $0x4] sm:$0xf]
  %v121 = vld [vmem:[%s4 + $0x8] sm:$0xf]
  %v122 = vld [vmem:[%s4 + $0xc] sm:$0xf]
  %v123 = vld [vmem:[%s7] sm:$0x1]
  %v125 = vlaneseq
  %v126 = vshrl.u32 %v125, 7
  %v127 = vsub.s32 0, %v126
  %v128 = vrot.slane %v123, %v127
  %v134 = vunpack.c.l.b16 %v119
  %v135 = vunpack.c.l.b16 %v120
  %v136 = vunpack.c.l.b16 %v121
  %v137 = vunpack.c.l.b16 %v122
  %v138 = vpack.c.b16 %v135, %v134
  %v139 = vpack.c.b16 %v137, %v136
  %142 = vmatprep.subr.bf16.mxu0 0
  %143 = vmatpush1.bf16.msra.mxu0 %v138
  %144 = vmatprep.subr.bf16.mxu0 0
  %145 = vmatpush1.bf16.msra.mxu0 %v139
  %146 = vmatprep.subr.bf16.mxu0 0
  %147 = vmatpush1.bf16.msra.mxu0 0
  %148 = vmatprep.subr.bf16.mxu0 0
  %149 = vmatpush1.bf16.msra.mxu0 0
  %150 = vmatprep.subr.bf16.mxu0 0
  %151 = vmatpush1.bf16.msra.mxu0 0
  %152 = vmatprep.subr.bf16.mxu0 0
  %153 = vmatpush1.bf16.msra.mxu0 0
  %154 = vmatprep.subr.bf16.mxu0 0
  %155 = vmatpush1.bf16.msra.mxu0 0
  %156 = vmatprep.subr.bf16.mxu0 0
  %157 = vmatpush1.bf16.msra.mxu0 0
  %158 = vmatprep.subr.bf16.mxu0 0
  %159 = vmatpush1.bf16.msra.mxu0 0
  %160 = vmatprep.subr.bf16.mxu0 0
  %161 = vmatpush1.bf16.msra.mxu0 0
  %162 = vmatprep.subr.bf16.mxu0 0
  %163 = vmatpush1.bf16.msra.mxu0 0
  %164 = vmatprep.subr.bf16.mxu0 0
  %165 = vmatpush1.bf16.msra.mxu0 0
  %166 = vmatprep.subr.bf16.mxu0 0
  %167 = vmatpush1.bf16.msra.mxu0 0
  %168 = vmatprep.subr.bf16.mxu0 0
  %169 = vmatpush1.bf16.msra.mxu0 0
  %170 = vmatprep.subr.bf16.mxu0 0
  %171 = vmatpush1.bf16.msra.mxu0 0
  %172 = vmatprep.subr.bf16.mxu0 0
  %173 = vmatpush1.bf16.msra.mxu0 0
  %174 = vmatprep.mubr.bf16.mxu0 0
  %175 = vmatmul.mubr.bf16.gmra.mrb[0].mxu0 %v76
  %v176 = vpop.f32.mrb[0].mxu0
  %v177 = vadd.f32 %v128, %v176
  %v178 = vpop.f32.mrb[0].mxu0
  %v179 = vpop.f32.mrb[0].mxu0
  %v180 = vadd.f32 %v128, %v179
  %v181 = vpop.f32.mrb[0].mxu0
  %182 = vdwg.mxu0
  %v183 = vld [vmem:[%s5] sm:$0xf]
  %v184 = vld [vmem:[%s5 + $0x4] sm:$0xf]
  %v185 = vld [vmem:[%s5 + $0x8] sm:$0xf]
  %v186 = vld [vmem:[%s5 + $0xc] sm:$0xf]
  %v187 = vld [vmem:[%s8] sm:$0x1]
  %v189 = vlaneseq
  %v190 = vshrl.u32 %v189, 7
  %v191 = vsub.s32 0, %v190
  %v192 = vrot.slane %v187, %v191
  %v198 = vunpack.c.l.b16 %v183
  %v199 = vunpack.c.l.b16 %v184
  %v200 = vunpack.c.l.b16 %v185
  %v201 = vunpack.c.l.b16 %v186
  %v202 = vpack.c.b16 %v199, %v198
  %v203 = vpack.c.b16 %v201, %v200
  %206 = vmatprep.subr.bf16.mxu0 0
  %207 = vmatpush1.bf16.msra.mxu0 %v202
  %208 = vmatprep.subr.bf16.mxu0 0
  %209 = vmatpush1.bf16.msra.mxu0 %v203
  %210 = vmatprep.subr.bf16.mxu0 0
  %211 = vmatpush1.bf16.msra.mxu0 0
  %212 = vmatprep.subr.bf16.mxu0 0
  %213 = vmatpush1.bf16.msra.mxu0 0
  %214 = vmatprep.subr.bf16.mxu0 0
  %215 = vmatpush1.bf16.msra.mxu0 0
  %216 = vmatprep.subr.bf16.mxu0 0
  %217 = vmatpush1.bf16.msra.mxu0 0
  %218 = vmatprep.subr.bf16.mxu0 0
  %219 = vmatpush1.bf16.msra.mxu0 0
  %220 = vmatprep.subr.bf16.mxu0 0
  %221 = vmatpush1.bf16.msra.mxu0 0
  %222 = vmatprep.subr.bf16.mxu0 0
  %223 = vmatpush1.bf16.msra.mxu0 0
  %224 = vmatprep.subr.bf16.mxu0 0
  %225 = vmatpush1.bf16.msra.mxu0 0
  %226 = vmatprep.subr.bf16.mxu0 0
  %227 = vmatpush1.bf16.msra.mxu0 0
  %228 = vmatprep.subr.bf16.mxu0 0
  %229 = vmatpush1.bf16.msra.mxu0 0
  %230 = vmatprep.subr.bf16.mxu0 0
  %231 = vmatpush1.bf16.msra.mxu0 0
  %232 = vmatprep.subr.bf16.mxu0 0
  %233 = vmatpush1.bf16.msra.mxu0 0
  %234 = vmatprep.subr.bf16.mxu0 0
  %235 = vmatpush1.bf16.msra.mxu0 0
  %236 = vmatprep.subr.bf16.mxu0 0
  %237 = vmatpush1.bf16.msra.mxu0 0
  %238 = vmatprep.mubr.bf16.mxu0 0
  %239 = vmatmul.mubr.bf16.gmra.mrb[0].mxu0 %v76
  %v240 = vpop.f32.mrb[0].mxu0
  %v241 = vadd.f32 %v192, %v240
  %v242 = vpop.f32.mrb[0].mxu0
  %v243 = vpop.f32.mrb[0].mxu0
  %v244 = vadd.f32 %v192, %v243
  %v245 = vpop.f32.mrb[0].mxu0
  %246 = vdwg.mxu0
  %v247 = vpack.c.bf16 %v116, %v113
  %v248 = vpack.c.bf16 %v180, %v177
  %vm249 = vcmask 64512
  %v251 = vsel %vm249, %v247, 0
  %v254 = vsel %vm249, %v248, 0
  %256 = vmatprep.subr.bf16.mxu0 0
  %257 = vmatpush1.bf16.xpose.msra.mxu0 %v254
  %258 = vmatprep.subr.bf16.mxu0 0
  %259 = vmatpush1.bf16.xpose.msra.mxu0 0
  %260 = vmatprep.subr.bf16.mxu0 0
  %261 = vmatpush1.bf16.xpose.msra.mxu0 0
  %262 = vmatprep.subr.bf16.mxu0 0
  %263 = vmatpush1.bf16.xpose.msra.mxu0 0
  %264 = vmatprep.subr.bf16.mxu0 0
  %265 = vmatpush1.bf16.xpose.msra.mxu0 0
  %266 = vmatprep.subr.bf16.mxu0 0
  %267 = vmatpush1.bf16.xpose.msra.mxu0 0
  %268 = vmatprep.subr.bf16.mxu0 0
  %269 = vmatpush1.bf16.xpose.msra.mxu0 0
  %270 = vmatprep.subr.bf16.mxu0 0
  %271 = vmatpush1.bf16.xpose.msra.mxu0 0
  %272 = vmatprep.subr.bf16.mxu0 0
  %273 = vmatpush1.bf16.xpose.msra.mxu0 0
  %274 = vmatprep.subr.bf16.mxu0 0
  %275 = vmatpush1.bf16.xpose.msra.mxu0 0
  %276 = vmatprep.subr.bf16.mxu0 0
  %277 = vmatpush1.bf16.xpose.msra.mxu0 0
  %278 = vmatprep.subr.bf16.mxu0 0
  %279 = vmatpush1.bf16.xpose.msra.mxu0 0
  %280 = vmatprep.subr.bf16.mxu0 0
  %281 = vmatpush1.bf16.xpose.msra.mxu0 0
  %282 = vmatprep.subr.bf16.mxu0 0
  %283 = vmatpush1.bf16.xpose.msra.mxu0 0
  %284 = vmatprep.subr.bf16.mxu0 0
  %285 = vmatpush1.bf16.xpose.msra.mxu0 0
  %286 = vmatprep.subr.bf16.mxu0 0
  %287 = vmatpush1.bf16.xpose.msra.mxu0 0
  %288 = vmatprep.mubr.bf16.mxu0 0
  %289 = vmatmul.mubr.bf16.gmra.mrb[0].mxu0 %v251
  %v290 = vpop.f32.mrb[0].mxu0
  %v291 = vadd.f32 0.0, %v290
  %v292 = vpop.f32.mrb[0].mxu0
  %v293 = vpop.f32.mrb[0].mxu0
  %v294 = vadd.f32 0.0, %v293
  %v295 = vpop.f32.mrb[0].mxu0
  %296 = vdwg.mxu0
  %v297 = vmul.f32 %v291, 0.35355338
  %v298 = vmul.f32 %v294, 0.35355338
  %vm299 = vcmask 97280
  %v300 = vsel %vm299, %v297, -inf
  %301 = vmax.xlane.f32.xlu0 %v300
  %v302 = vpop.xlane.xlu0 %301
  %vm303 = vcmask 93184
  %v304 = vsel %vm303, %v298, -inf
  %305 = vmax.xlane.f32.xlu0 %v304
  %v306 = vpop.xlane.xlu0 %305
  %v307 = vsub.f32 %v297, %v302
  %v308 = vsub.f32 %v298, %v306
  %v309 = vmul.f32 %v307, 1.442695
  %v310 = vpow.pop %v309
  %v311 = vmul.f32 %v308, 1.442695
  %v312 = vpow.pop %v311
  %v313 = vsel %vm299, %v310, 0.0
  %314 = vadd.xlane.f32.xlu0 %v313
  %v315 = vpop.xlane.xlu0 %314
  %v316 = vsel %vm303, %v312, 0.0
  %317 = vadd.xlane.f32.xlu0 %v316
  %v318 = vpop.xlane.xlu0 %317
  %v319 = vrcp.pop %v315
  %v320 = vrcp.pop %v318
  %v321 = vmul.f32 %v310, %v319
  %v322 = vmul.f32 %v312, %v320
  %v323 = vpack.c.bf16 %v322, %v321
  %v324 = vpack.c.bf16 %v244, %v241
  %v326 = vsel %vm299, %v323, 0
  %vm328 = vcmask 1045504
  %v330 = vsel %vm328, %v324, 0
  %332 = vmatprep.subr.bf16.mxu0 0
  %333 = vmatpush1.bf16.msra.mxu0 %v330
  %334 = vmatprep.subr.bf16.mxu0 0
  %335 = vmatpush1.bf16.msra.mxu0 0
  %336 = vmatprep.subr.bf16.mxu0 0
  %337 = vmatpush1.bf16.msra.mxu0 0
  %338 = vmatprep.subr.bf16.mxu0 0
  %339 = vmatpush1.bf16.msra.mxu0 0
  %340 = vmatprep.subr.bf16.mxu0 0
  %341 = vmatpush1.bf16.msra.mxu0 0
  %342 = vmatprep.subr.bf16.mxu0 0
  %343 = vmatpush1.bf16.msra.mxu0 0
  %344 = vmatprep.subr.bf16.mxu0 0
  %345 = vmatpush1.bf16.msra.mxu0 0
  %346 = vmatprep.subr.bf16.mxu0 0
  %347 = vmatpush1.bf16.msra.mxu0 0
  %348 = vmatprep.subr.bf16.mxu0 0
  %349 = vmatpush1.bf16.msra.mxu0 0
  %350 = vmatprep.subr.bf16.mxu0 0
  %351 = vmatpush1.bf16.msra.mxu0 0
  %352 = vmatprep.subr.bf16.mxu0 0
  %353 = vmatpush1.bf16.msra.mxu0 0
  %354 = vmatprep.subr.bf16.mxu0 0
  %355 = vmatpush1.bf16.msra.mxu0 0
  %356 = vmatprep.subr.bf16.mxu0 0
  %357 = vmatpush1.bf16.msra.mxu0 0
  %358 = vmatprep.subr.bf16.mxu0 0
  %359 = vmatpush1.bf16.msra.mxu0 0
  %360 = vmatprep.subr.bf16.mxu0 0
  %361 = vmatpush1.bf16.msra.mxu0 0
  %362 = vmatprep.subr.bf16.mxu0 0
  %363 = vmatpush1.bf16.msra.mxu0 0
  %364 = vmatprep.mubr.bf16.mxu0 0
  %365 = vmatmul.mubr.bf16.gmra.mrb[0].mxu0 %v326
  %v366 = vpop.f32.mrb[0].mxu0
  %v367 = vadd.f32 0.0, %v366
  %v368 = vpop.f32.mrb[0].mxu0
  %v369 = vpop.f32.mrb[0].mxu0
  %v370 = vadd.f32 0.0, %v369
  %v371 = vpop.f32.mrb[0].mxu0
  %372 = vdwg.mxu0
  %v373 = vpack.c.bf16 %v370, %v367
  %v374 = vld [vmem:[%s9] sm:$0xf]
  %v376 = vsel %vm249, %v373, 0
  %vm378 = vcmask 1043456
  %v380 = vsel %vm378, %v374, 0
  %382 = vmatprep.subr.bf16.mxu0 0
  %383 = vmatpush1.bf16.msra.mxu0 %v380
  %384 = vmatprep.subr.bf16.mxu0 0
  %385 = vmatpush1.bf16.msra.mxu0 0
  %386 = vmatprep.subr.bf16.mxu0 0
  %387 = vmatpush1.bf16.msra.mxu0 0
  %388 = vmatprep.subr.bf16.mxu0 0
  %389 = vmatpush1.bf16.msra.mxu0 0
  %390 = vmatprep.subr.bf16.mxu0 0
  %391 = vmatpush1.bf16.msra.mxu0 0
  %392 = vmatprep.subr.bf16.mxu0 0
  %393 = vmatpush1.bf16.msra.mxu0 0
  %394 = vmatprep.subr.bf16.mxu0 0
  %395 = vmatpush1.bf16.msra.mxu0 0
  %396 = vmatprep.subr.bf16.mxu0 0
  %397 = vmatpush1.bf16.msra.mxu0 0
  %398 = vmatprep.subr.bf16.mxu0 0
  %399 = vmatpush1.bf16.msra.mxu0 0
  %400 = vmatprep.subr.bf16.mxu0 0
  %401 = vmatpush1.bf16.msra.mxu0 0
  %402 = vmatprep.subr.bf16.mxu0 0
  %403 = vmatpush1.bf16.msra.mxu0 0
  %404 = vmatprep.subr.bf16.mxu0 0
  %405 = vmatpush1.bf16.msra.mxu0 0
  %406 = vmatprep.subr.bf16.mxu0 0
  %407 = vmatpush1.bf16.msra.mxu0 0
  %408 = vmatprep.subr.bf16.mxu0 0
  %409 = vmatpush1.bf16.msra.mxu0 0
  %410 = vmatprep.subr.bf16.mxu0 0
  %411 = vmatpush1.bf16.msra.mxu0 0
  %412 = vmatprep.subr.bf16.mxu0 0
  %413 = vmatpush1.bf16.msra.mxu0 0
  %414 = vmatprep.mubr.bf16.mxu0 0
  %415 = vmatmul.mubr.bf16.gmra.mrb[0].mxu0 %v376
  %v416 = vpop.f32.mrb[0].mxu0
  %v417 = vadd.f32 0.0, %v416
  %v418 = vpop.f32.mrb[0].mxu0
  %v419 = vpop.f32.mrb[0].mxu0
  %v420 = vadd.f32 0.0, %v419
  %v421 = vpop.f32.mrb[0].mxu0
  %422 = vdwg.mxu0
  %v423 = vadd.f32 %v49, %v417
  %v424 = vadd.f32 %v50, %v420
  %s425 = scalar_lea.vmem %s3, 16
  %v426 = vld [vmem:[%s425] sm:$0xf]
  %v427 = vld [vmem:[%s425 + $0x4] sm:$0xf]
  %v428 = vld [vmem:[%s425 + $0x8] sm:$0xf]
  %v429 = vld [vmem:[%s425 + $0xc] sm:$0xf]
  %s430 = scalar_lea.vmem %s6, 1
  %v431 = vld [vmem:[%s430] sm:$0x1]
  %v433 = vlaneseq
  %v434 = vshrl.u32 %v433, 7
  %v435 = vsub.s32 0, %v434
  %v436 = vrot.slane %v431, %v435
  %v442 = vunpack.c.l.b16 %v426
  %v443 = vunpack.c.l.b16 %v427
  %v444 = vunpack.c.l.b16 %v428
  %v445 = vunpack.c.l.b16 %v429
  %v446 = vpack.c.b16 %v443, %v442
  %v447 = vpack.c.b16 %v445, %v444
  %450 = vmatprep.subr.bf16.mxu0 0
  %451 = vmatpush1.bf16.msra.mxu0 %v446
  %452 = vmatprep.subr.bf16.mxu0 0
  %453 = vmatpush1.bf16.msra.mxu0 %v447
  %454 = vmatprep.subr.bf16.mxu0 0
  %455 = vmatpush1.bf16.msra.mxu0 0
  %456 = vmatprep.subr.bf16.mxu0 0
  %457 = vmatpush1.bf16.msra.mxu0 0
  %458 = vmatprep.subr.bf16.mxu0 0
  %459 = vmatpush1.bf16.msra.mxu0 0
  %460 = vmatprep.subr.bf16.mxu0 0
  %461 = vmatpush1.bf16.msra.mxu0 0
  %462 = vmatprep.subr.bf16.mxu0 0
  %463 = vmatpush1.bf16.msra.mxu0 0
  %464 = vmatprep.subr.bf16.mxu0 0
  %465 = vmatpush1.bf16.msra.mxu0 0
  %466 = vmatprep.subr.bf16.mxu0 0
  %467 = vmatpush1.bf16.msra.mxu0 0
  %468 = vmatprep.subr.bf16.mxu0 0
  %469 = vmatpush1.bf16.msra.mxu0 0
  %470 = vmatprep.subr.bf16.mxu0 0
  %471 = vmatpush1.bf16.msra.mxu0 0
  %472 = vmatprep.subr.bf16.mxu0 0
  %473 = vmatpush1.bf16.msra.mxu0 0
  %474 = vmatprep.subr.bf16.mxu0 0
  %475 = vmatpush1.bf16.msra.mxu0 0
  %476 = vmatprep.subr.bf16.mxu0 0
  %477 = vmatpush1.bf16.msra.mxu0 0
  %478 = vmatprep.subr.bf16.mxu0 0
  %479 = vmatpush1.bf16.msra.mxu0 0
  %480 = vmatprep.subr.bf16.mxu0 0
  %481 = vmatpush1.bf16.msra.mxu0 0
  %482 = vmatprep.mubr.bf16.mxu0 0
  %483 = vmatmul.mubr.bf16.gmra.mrb[0].mxu0 %v76
  %v484 = vpop.f32.mrb[0].mxu0
  %v485 = vadd.f32 %v436, %v484
  %v486 = vpop.f32.mrb[0].mxu0
  %v487 = vpop.f32.mrb[0].mxu0
  %v488 = vadd.f32 %v436, %v487
  %v489 = vpop.f32.mrb[0].mxu0
  %490 = vdwg.mxu0
  %s491 = scalar_lea.vmem %s4, 16
  %v492 = vld [vmem:[%s491] sm:$0xf]
  %v493 = vld [vmem:[%s491 + $0x4] sm:$0xf]
  %v494 = vld [vmem:[%s491 + $0x8] sm:$0xf]
  %v495 = vld [vmem:[%s491 + $0xc] sm:$0xf]
  %s496 = scalar_lea.vmem %s7, 1
  %v497 = vld [vmem:[%s496] sm:$0x1]
  %v499 = vlaneseq
  %v500 = vshrl.u32 %v499, 7
  %v501 = vsub.s32 0, %v500
  %v502 = vrot.slane %v497, %v501
  %v508 = vunpack.c.l.b16 %v492
  %v509 = vunpack.c.l.b16 %v493
  %v510 = vunpack.c.l.b16 %v494
  %v511 = vunpack.c.l.b16 %v495
  %v512 = vpack.c.b16 %v509, %v508
  %v513 = vpack.c.b16 %v511, %v510
  %516 = vmatprep.subr.bf16.mxu0 0
  %517 = vmatpush1.bf16.msra.mxu0 %v512
  %518 = vmatprep.subr.bf16.mxu0 0
  %519 = vmatpush1.bf16.msra.mxu0 %v513
  %520 = vmatprep.subr.bf16.mxu0 0
  %521 = vmatpush1.bf16.msra.mxu0 0
  %522 = vmatprep.subr.bf16.mxu0 0
  %523 = vmatpush1.bf16.msra.mxu0 0
  %524 = vmatprep.subr.bf16.mxu0 0
  %525 = vmatpush1.bf16.msra.mxu0 0
  %526 = vmatprep.subr.bf16.mxu0 0
  %527 = vmatpush1.bf16.msra.mxu0 0
  %528 = vmatprep.subr.bf16.mxu0 0
  %529 = vmatpush1.bf16.msra.mxu0 0
  %530 = vmatprep.subr.bf16.mxu0 0
  %531 = vmatpush1.bf16.msra.mxu0 0
  %532 = vmatprep.subr.bf16.mxu0 0
  %533 = vmatpush1.bf16.msra.mxu0 0
  %534 = vmatprep.subr.bf16.mxu0 0
  %535 = vmatpush1.bf16.msra.mxu0 0
  %536 = vmatprep.subr.bf16.mxu0 0
  %537 = vmatpush1.bf16.msra.mxu0 0
  %538 = vmatprep.subr.bf16.mxu0 0
  %539 = vmatpush1.bf16.msra.mxu0 0
  %540 = vmatprep.subr.bf16.mxu0 0
  %541 = vmatpush1.bf16.msra.mxu0 0
  %542 = vmatprep.subr.bf16.mxu0 0
  %543 = vmatpush1.bf16.msra.mxu0 0
  %544 = vmatprep.subr.bf16.mxu0 0
  %545 = vmatpush1.bf16.msra.mxu0 0
  %546 = vmatprep.subr.bf16.mxu0 0
  %547 = vmatpush1.bf16.msra.mxu0 0
  %548 = vmatprep.mubr.bf16.mxu0 0
  %549 = vmatmul.mubr.bf16.gmra.mrb[0].mxu0 %v76
  %v550 = vpop.f32.mrb[0].mxu0
  %v551 = vadd.f32 %v502, %v550
  %v552 = vpop.f32.mrb[0].mxu0
  %v553 = vpop.f32.mrb[0].mxu0
  %v554 = vadd.f32 %v502, %v553
  %v555 = vpop.f32.mrb[0].mxu0
  %556 = vdwg.mxu0
  %s557 = scalar_lea.vmem %s5, 16
  %v558 = vld [vmem:[%s557] sm:$0xf]
  %v559 = vld [vmem:[%s557 + $0x4] sm:$0xf]
  %v560 = vld [vmem:[%s557 + $0x8] sm:$0xf]
  %v561 = vld [vmem:[%s557 + $0xc] sm:$0xf]
  %s562 = scalar_lea.vmem %s8, 1
  %v563 = vld [vmem:[%s562] sm:$0x1]
  %v565 = vlaneseq
  %v566 = vshrl.u32 %v565, 7
  %v567 = vsub.s32 0, %v566
  %v568 = vrot.slane %v563, %v567
  %v574 = vunpack.c.l.b16 %v558
  %v575 = vunpack.c.l.b16 %v559
  %v576 = vunpack.c.l.b16 %v560
  %v577 = vunpack.c.l.b16 %v561
  %v578 = vpack.c.b16 %v575, %v574
  %v579 = vpack.c.b16 %v577, %v576
  %582 = vmatprep.subr.bf16.mxu0 0
  %583 = vmatpush1.bf16.msra.mxu0 %v578
  %584 = vmatprep.subr.bf16.mxu0 0
  %585 = vmatpush1.bf16.msra.mxu0 %v579
  %586 = vmatprep.subr.bf16.mxu0 0
  %587 = vmatpush1.bf16.msra.mxu0 0
  %588 = vmatprep.subr.bf16.mxu0 0
  %589 = vmatpush1.bf16.msra.mxu0 0
  %590 = vmatprep.subr.bf16.mxu0 0
  %591 = vmatpush1.bf16.msra.mxu0 0
  %592 = vmatprep.subr.bf16.mxu0 0
  %593 = vmatpush1.bf16.msra.mxu0 0
  %594 = vmatprep.subr.bf16.mxu0 0
  %595 = vmatpush1.bf16.msra.mxu0 0
  %596 = vmatprep.subr.bf16.mxu0 0
  %597 = vmatpush1.bf16.msra.mxu0 0
  %598 = vmatprep.subr.bf16.mxu0 0
  %599 = vmatpush1.bf16.msra.mxu0 0
  %600 = vmatprep.subr.bf16.mxu0 0
  %601 = vmatpush1.bf16.msra.mxu0 0
  %602 = vmatprep.subr.bf16.mxu0 0
  %603 = vmatpush1.bf16.msra.mxu0 0
  %604 = vmatprep.subr.bf16.mxu0 0
  %605 = vmatpush1.bf16.msra.mxu0 0
  %606 = vmatprep.subr.bf16.mxu0 0
  %607 = vmatpush1.bf16.msra.mxu0 0
  %608 = vmatprep.subr.bf16.mxu0 0
  %609 = vmatpush1.bf16.msra.mxu0 0
  %610 = vmatprep.subr.bf16.mxu0 0
  %611 = vmatpush1.bf16.msra.mxu0 0
  %612 = vmatprep.subr.bf16.mxu0 0
  %613 = vmatpush1.bf16.msra.mxu0 0
  %614 = vmatprep.mubr.bf16.mxu0 0
  %615 = vmatmul.mubr.bf16.gmra.mrb[0].mxu0 %v76
  %v616 = vpop.f32.mrb[0].mxu0
  %v617 = vadd.f32 %v568, %v616
  %v618 = vpop.f32.mrb[0].mxu0
  %v619 = vpop.f32.mrb[0].mxu0
  %v620 = vadd.f32 %v568, %v619
  %v621 = vpop.f32.mrb[0].mxu0
  %622 = vdwg.mxu0
  %v623 = vpack.c.bf16 %v488, %v485
  %v624 = vpack.c.bf16 %v554, %v551
  %v626 = vsel %vm249, %v623, 0
  %v629 = vsel %vm249, %v624, 0
  %631 = vmatprep.subr.bf16.mxu0 0
  %632 = vmatpush1.bf16.xpose.msra.mxu0 %v629
  %633 = vmatprep.subr.bf16.mxu0 0
  %634 = vmatpush1.bf16.xpose.msra.mxu0 0
  %635 = vmatprep.subr.bf16.mxu0 0
  %636 = vmatpush1.bf16.xpose.msra.mxu0 0
  %637 = vmatprep.subr.bf16.mxu0 0
  %638 = vmatpush1.bf16.xpose.msra.mxu0 0
  %639 = vmatprep.subr.bf16.mxu0 0
  %640 = vmatpush1.bf16.xpose.msra.mxu0 0
  %641 = vmatprep.subr.bf16.mxu0 0
  %642 = vmatpush1.bf16.xpose.msra.mxu0 0
  %643 = vmatprep.subr.bf16.mxu0 0
  %644 = vmatpush1.bf16.xpose.msra.mxu0 0
  %645 = vmatprep.subr.bf16.mxu0 0
  %646 = vmatpush1.bf16.xpose.msra.mxu0 0
  %647 = vmatprep.subr.bf16.mxu0 0
  %648 = vmatpush1.bf16.xpose.msra.mxu0 0
  %649 = vmatprep.subr.bf16.mxu0 0
  %650 = vmatpush1.bf16.xpose.msra.mxu0 0
  %651 = vmatprep.subr.bf16.mxu0 0
  %652 = vmatpush1.bf16.xpose.msra.mxu0 0
  %653 = vmatprep.subr.bf16.mxu0 0
  %654 = vmatpush1.bf16.xpose.msra.mxu0 0
  %655 = vmatprep.subr.bf16.mxu0 0
  %656 = vmatpush1.bf16.xpose.msra.mxu0 0
  %657 = vmatprep.subr.bf16.mxu0 0
  %658 = vmatpush1.bf16.xpose.msra.mxu0 0
  %659 = vmatprep.subr.bf16.mxu0 0
  %660 = vmatpush1.bf16.xpose.msra.mxu0 0
  %661 = vmatprep.subr.bf16.mxu0 0
  %662 = vmatpush1.bf16.xpose.msra.mxu0 0
  %663 = vmatprep.mubr.bf16.mxu0 0
  %664 = vmatmul.mubr.bf16.gmra.mrb[0].mxu0 %v626
  %v665 = vpop.f32.mrb[0].mxu0
  %v666 = vadd.f32 0.0, %v665
  %v667 = vpop.f32.mrb[0].mxu0
  %v668 = vpop.f32.mrb[0].mxu0
  %v669 = vadd.f32 0.0, %v668
  %v670 = vpop.f32.mrb[0].mxu0
  %671 = vdwg.mxu0
  %v672 = vmul.f32 %v666, 0.35355338
  %v673 = vmul.f32 %v669, 0.35355338
  %v674 = vsel %vm299, %v672, -inf
  %675 = vmax.xlane.f32.xlu0 %v674
  %v676 = vpop.xlane.xlu0 %675
  %v677 = vsel %vm303, %v673, -inf
  %678 = vmax.xlane.f32.xlu0 %v677
  %v679 = vpop.xlane.xlu0 %678
  %v680 = vsub.f32 %v672, %v676
  %v681 = vsub.f32 %v673, %v679
  %v682 = vmul.f32 %v680, 1.442695
  %v683 = vpow.pop %v682
  %v684 = vmul.f32 %v681, 1.442695
  %v685 = vpow.pop %v684
  %v686 = vsel %vm299, %v683, 0.0
  %687 = vadd.xlane.f32.xlu0 %v686
  %v688 = vpop.xlane.xlu0 %687
  %v689 = vsel %vm303, %v685, 0.0
  %690 = vadd.xlane.f32.xlu0 %v689
  %v691 = vpop.xlane.xlu0 %690
  %v692 = vrcp.pop %v688
  %v693 = vrcp.pop %v691
  %v694 = vmul.f32 %v683, %v692
  %v695 = vmul.f32 %v685, %v693
  %v696 = vpack.c.bf16 %v695, %v694
  %v697 = vpack.c.bf16 %v620, %v617
  %v699 = vsel %vm299, %v696, 0
  %v702 = vsel %vm328, %v697, 0
  %704 = vmatprep.subr.bf16.mxu0 0
  %705 = vmatpush1.bf16.msra.mxu0 %v702
  %706 = vmatprep.subr.bf16.mxu0 0
  %707 = vmatpush1.bf16.msra.mxu0 0
  %708 = vmatprep.subr.bf16.mxu0 0
  %709 = vmatpush1.bf16.msra.mxu0 0
  %710 = vmatprep.subr.bf16.mxu0 0
  %711 = vmatpush1.bf16.msra.mxu0 0
  %712 = vmatprep.subr.bf16.mxu0 0
  %713 = vmatpush1.bf16.msra.mxu0 0
  %714 = vmatprep.subr.bf16.mxu0 0
  %715 = vmatpush1.bf16.msra.mxu0 0
  %716 = vmatprep.subr.bf16.mxu0 0
  %717 = vmatpush1.bf16.msra.mxu0 0
  %718 = vmatprep.subr.bf16.mxu0 0
  %719 = vmatpush1.bf16.msra.mxu0 0
  %720 = vmatprep.subr.bf16.mxu0 0
  %721 = vmatpush1.bf16.msra.mxu0 0
  %722 = vmatprep.subr.bf16.mxu0 0
  %723 = vmatpush1.bf16.msra.mxu0 0
  %724 = vmatprep.subr.bf16.mxu0 0
  %725 = vmatpush1.bf16.msra.mxu0 0
  %726 = vmatprep.subr.bf16.mxu0 0
  %727 = vmatpush1.bf16.msra.mxu0 0
  %728 = vmatprep.subr.bf16.mxu0 0
  %729 = vmatpush1.bf16.msra.mxu0 0
  %730 = vmatprep.subr.bf16.mxu0 0
  %731 = vmatpush1.bf16.msra.mxu0 0
  %732 = vmatprep.subr.bf16.mxu0 0
  %733 = vmatpush1.bf16.msra.mxu0 0
  %734 = vmatprep.subr.bf16.mxu0 0
  %735 = vmatpush1.bf16.msra.mxu0 0
  %736 = vmatprep.mubr.bf16.mxu0 0
  %737 = vmatmul.mubr.bf16.gmra.mrb[0].mxu0 %v699
  %v738 = vpop.f32.mrb[0].mxu0
  %v739 = vadd.f32 0.0, %v738
  %v740 = vpop.f32.mrb[0].mxu0
  %v741 = vpop.f32.mrb[0].mxu0
  %v742 = vadd.f32 0.0, %v741
  %v743 = vpop.f32.mrb[0].mxu0
  %744 = vdwg.mxu0
  %v745 = vpack.c.bf16 %v742, %v739
  %s746 = scalar_lea.vmem %s9, 4
  %v747 = vld [vmem:[%s746] sm:$0xf]
  %v749 = vsel %vm249, %v745, 0
  %v752 = vsel %vm378, %v747, 0
  %754 = vmatprep.subr.bf16.mxu0 0
  %755 = vmatpush1.bf16.msra.mxu0 %v752
  %756 = vmatprep.subr.bf16.mxu0 0
  %757 = vmatpush1.bf16.msra.mxu0 0
  %758 = vmatprep.subr.bf16.mxu0 0
  %759 = vmatpush1.bf16.msra.mxu0 0
  %760 = vmatprep.subr.bf16.mxu0 0
  %761 = vmatpush1.bf16.msra.mxu0 0
  %762 = vmatprep.subr.bf16.mxu0 0
  %763 = vmatpush1.bf16.msra.mxu0 0
  %764 = vmatprep.subr.bf16.mxu0 0
  %765 = vmatpush1.bf16.msra.mxu0 0
  %766 = vmatprep.subr.bf16.mxu0 0
  %767 = vmatpush1.bf16.msra.mxu0 0
  %768 = vmatprep.subr.bf16.mxu0 0
  %769 = vmatpush1.bf16.msra.mxu0 0
  %770 = vmatprep.subr.bf16.mxu0 0
  %771 = vmatpush1.bf16.msra.mxu0 0
  %772 = vmatprep.subr.bf16.mxu0 0
  %773 = vmatpush1.bf16.msra.mxu0 0
  %774 = vmatprep.subr.bf16.mxu0 0
  %775 = vmatpush1.bf16.msra.mxu0 0
  %776 = vmatprep.subr.bf16.mxu0 0
  %777 = vmatpush1.bf16.msra.mxu0 0
  %778 = vmatprep.subr.bf16.mxu0 0
  %779 = vmatpush1.bf16.msra.mxu0 0
  %780 = vmatprep.subr.bf16.mxu0 0
  %781 = vmatpush1.bf16.msra.mxu0 0
  %782 = vmatprep.subr.bf16.mxu0 0
  %783 = vmatpush1.bf16.msra.mxu0 0
  %784 = vmatprep.subr.bf16.mxu0 0
  %785 = vmatpush1.bf16.msra.mxu0 0
  %786 = vmatprep.mubr.bf16.mxu0 0
  %787 = vmatmul.mubr.bf16.gmra.mrb[0].mxu0 %v749
  %v788 = vpop.f32.mrb[0].mxu0
  %v789 = vadd.f32 0.0, %v788
  %v790 = vpop.f32.mrb[0].mxu0
  %v791 = vpop.f32.mrb[0].mxu0
  %v792 = vadd.f32 0.0, %v791
  %v793 = vpop.f32.mrb[0].mxu0
  %794 = vdwg.mxu0
  %v795 = vadd.f32 %v423, %v789
  %v796 = vadd.f32 %v424, %v792
  %s797 = scalar_lea.vmem %s3, 32
  %v798 = vld [vmem:[%s797] sm:$0xf]
  %v799 = vld [vmem:[%s797 + $0x4] sm:$0xf]
  %v800 = vld [vmem:[%s797 + $0x8] sm:$0xf]
  %v801 = vld [vmem:[%s797 + $0xc] sm:$0xf]
  %s802 = scalar_lea.vmem %s6, 2
  %v803 = vld [vmem:[%s802] sm:$0x1]
  %v805 = vlaneseq
  %v806 = vshrl.u32 %v805, 7
  %v807 = vsub.s32 0, %v806
  %v808 = vrot.slane %v803, %v807
  %v814 = vunpack.c.l.b16 %v798
  %v815 = vunpack.c.l.b16 %v799
  %v816 = vunpack.c.l.b16 %v800
  %v817 = vunpack.c.l.b16 %v801
  %v818 = vpack.c.b16 %v815, %v814
  %v819 = vpack.c.b16 %v817, %v816
  %822 = vmatprep.subr.bf16.mxu0 0
  %823 = vmatpush1.bf16.msra.mxu0 %v818
  %824 = vmatprep.subr.bf16.mxu0 0
  %825 = vmatpush1.bf16.msra.mxu0 %v819
  %826 = vmatprep.subr.bf16.mxu0 0
  %827 = vmatpush1.bf16.msra.mxu0 0
  %828 = vmatprep.subr.bf16.mxu0 0
  %829 = vmatpush1.bf16.msra.mxu0 0
  %830 = vmatprep.subr.bf16.mxu0 0
  %831 = vmatpush1.bf16.msra.mxu0 0
  %832 = vmatprep.subr.bf16.mxu0 0
  %833 = vmatpush1.bf16.msra.mxu0 0
  %834 = vmatprep.subr.bf16.mxu0 0
  %835 = vmatpush1.bf16.msra.mxu0 0
  %836 = vmatprep.subr.bf16.mxu0 0
  %837 = vmatpush1.bf16.msra.mxu0 0
  %838 = vmatprep.subr.bf16.mxu0 0
  %839 = vmatpush1.bf16.msra.mxu0 0
  %840 = vmatprep.subr.bf16.mxu0 0
  %841 = vmatpush1.bf16.msra.mxu0 0
  %842 = vmatprep.subr.bf16.mxu0 0
  %843 = vmatpush1.bf16.msra.mxu0 0
  %844 = vmatprep.subr.bf16.mxu0 0
  %845 = vmatpush1.bf16.msra.mxu0 0
  %846 = vmatprep.subr.bf16.mxu0 0
  %847 = vmatpush1.bf16.msra.mxu0 0
  %848 = vmatprep.subr.bf16.mxu0 0
  %849 = vmatpush1.bf16.msra.mxu0 0
  %850 = vmatprep.subr.bf16.mxu0 0
  %851 = vmatpush1.bf16.msra.mxu0 0
  %852 = vmatprep.subr.bf16.mxu0 0
  %853 = vmatpush1.bf16.msra.mxu0 0
  %854 = vmatprep.mubr.bf16.mxu0 0
  %855 = vmatmul.mubr.bf16.gmra.mrb[0].mxu0 %v76
  %v856 = vpop.f32.mrb[0].mxu0
  %v857 = vadd.f32 %v808, %v856
  %v858 = vpop.f32.mrb[0].mxu0
  %v859 = vpop.f32.mrb[0].mxu0
  %v860 = vadd.f32 %v808, %v859
  %v861 = vpop.f32.mrb[0].mxu0
  %862 = vdwg.mxu0
  %s863 = scalar_lea.vmem %s4, 32
  %v864 = vld [vmem:[%s863] sm:$0xf]
  %v865 = vld [vmem:[%s863 + $0x4] sm:$0xf]
  %v866 = vld [vmem:[%s863 + $0x8] sm:$0xf]
  %v867 = vld [vmem:[%s863 + $0xc] sm:$0xf]
  %s868 = scalar_lea.vmem %s7, 2
  %v869 = vld [vmem:[%s868] sm:$0x1]
  %v871 = vlaneseq
  %v872 = vshrl.u32 %v871, 7
  %v873 = vsub.s32 0, %v872
  %v874 = vrot.slane %v869, %v873
  %v880 = vunpack.c.l.b16 %v864
  %v881 = vunpack.c.l.b16 %v865
  %v882 = vunpack.c.l.b16 %v866
  %v883 = vunpack.c.l.b16 %v867
  %v884 = vpack.c.b16 %v881, %v880
  %v885 = vpack.c.b16 %v883, %v882
  %888 = vmatprep.subr.bf16.mxu0 0
  %889 = vmatpush1.bf16.msra.mxu0 %v884
  %890 = vmatprep.subr.bf16.mxu0 0
  %891 = vmatpush1.bf16.msra.mxu0 %v885
  %892 = vmatprep.subr.bf16.mxu0 0
  %893 = vmatpush1.bf16.msra.mxu0 0
  %894 = vmatprep.subr.bf16.mxu0 0
  %895 = vmatpush1.bf16.msra.mxu0 0
  %896 = vmatprep.subr.bf16.mxu0 0
  %897 = vmatpush1.bf16.msra.mxu0 0
  %898 = vmatprep.subr.bf16.mxu0 0
  %899 = vmatpush1.bf16.msra.mxu0 0
  %900 = vmatprep.subr.bf16.mxu0 0
  %901 = vmatpush1.bf16.msra.mxu0 0
  %902 = vmatprep.subr.bf16.mxu0 0
  %903 = vmatpush1.bf16.msra.mxu0 0
  %904 = vmatprep.subr.bf16.mxu0 0
  %905 = vmatpush1.bf16.msra.mxu0 0
  %906 = vmatprep.subr.bf16.mxu0 0
  %907 = vmatpush1.bf16.msra.mxu0 0
  %908 = vmatprep.subr.bf16.mxu0 0
  %909 = vmatpush1.bf16.msra.mxu0 0
  %910 = vmatprep.subr.bf16.mxu0 0
  %911 = vmatpush1.bf16.msra.mxu0 0
  %912 = vmatprep.subr.bf16.mxu0 0
  %913 = vmatpush1.bf16.msra.mxu0 0
  %914 = vmatprep.subr.bf16.mxu0 0
  %915 = vmatpush1.bf16.msra.mxu0 0
  %916 = vmatprep.subr.bf16.mxu0 0
  %917 = vmatpush1.bf16.msra.mxu0 0
  %918 = vmatprep.subr.bf16.mxu0 0
  %919 = vmatpush1.bf16.msra.mxu0 0
  %920 = vmatprep.mubr.bf16.mxu0 0
  %921 = vmatmul.mubr.bf16.gmra.mrb[0].mxu0 %v76
  %v922 = vpop.f32.mrb[0].mxu0
  %v923 = vadd.f32 %v874, %v922
  %v924 = vpop.f32.mrb[0].mxu0
  %v925 = vpop.f32.mrb[0].mxu0
  %v926 = vadd.f32 %v874, %v925
  %v927 = vpop.f32.mrb[0].mxu0
  %928 = vdwg.mxu0
  %s929 = scalar_lea.vmem %s5, 32
  %v930 = vld [vmem:[%s929] sm:$0xf]
  %v931 = vld [vmem:[%s929 + $0x4] sm:$0xf]
  %v932 = vld [vmem:[%s929 + $0x8] sm:$0xf]
  %v933 = vld [vmem:[%s929 + $0xc] sm:$0xf]
  %s934 = scalar_lea.vmem %s8, 2
  %v935 = vld [vmem:[%s934] sm:$0x1]
  %v937 = vlaneseq
  %v938 = vshrl.u32 %v937, 7
  %v939 = vsub.s32 0, %v938
  %v940 = vrot.slane %v935, %v939
  %v946 = vunpack.c.l.b16 %v930
  %v947 = vunpack.c.l.b16 %v931
  %v948 = vunpack.c.l.b16 %v932
  %v949 = vunpack.c.l.b16 %v933
  %v950 = vpack.c.b16 %v947, %v946
  %v951 = vpack.c.b16 %v949, %v948
  %954 = vmatprep.subr.bf16.mxu0 0
  %955 = vmatpush1.bf16.msra.mxu0 %v950
  %956 = vmatprep.subr.bf16.mxu0 0
  %957 = vmatpush1.bf16.msra.mxu0 %v951
  %958 = vmatprep.subr.bf16.mxu0 0
  %959 = vmatpush1.bf16.msra.mxu0 0
  %960 = vmatprep.subr.bf16.mxu0 0
  %961 = vmatpush1.bf16.msra.mxu0 0
  %962 = vmatprep.subr.bf16.mxu0 0
  %963 = vmatpush1.bf16.msra.mxu0 0
  %964 = vmatprep.subr.bf16.mxu0 0
  %965 = vmatpush1.bf16.msra.mxu0 0
  %966 = vmatprep.subr.bf16.mxu0 0
  %967 = vmatpush1.bf16.msra.mxu0 0
  %968 = vmatprep.subr.bf16.mxu0 0
  %969 = vmatpush1.bf16.msra.mxu0 0
  %970 = vmatprep.subr.bf16.mxu0 0
  %971 = vmatpush1.bf16.msra.mxu0 0
  %972 = vmatprep.subr.bf16.mxu0 0
  %973 = vmatpush1.bf16.msra.mxu0 0
  %974 = vmatprep.subr.bf16.mxu0 0
  %975 = vmatpush1.bf16.msra.mxu0 0
  %976 = vmatprep.subr.bf16.mxu0 0
  %977 = vmatpush1.bf16.msra.mxu0 0
  %978 = vmatprep.subr.bf16.mxu0 0
  %979 = vmatpush1.bf16.msra.mxu0 0
  %980 = vmatprep.subr.bf16.mxu0 0
  %981 = vmatpush1.bf16.msra.mxu0 0
  %982 = vmatprep.subr.bf16.mxu0 0
  %983 = vmatpush1.bf16.msra.mxu0 0
  %984 = vmatprep.subr.bf16.mxu0 0
  %985 = vmatpush1.bf16.msra.mxu0 0
  %986 = vmatprep.mubr.bf16.mxu0 0
  %987 = vmatmul.mubr.bf16.gmra.mrb[0].mxu0 %v76
  %v988 = vpop.f32.mrb[0].mxu0
  %v989 = vadd.f32 %v940, %v988
  %v990 = vpop.f32.mrb[0].mxu0
  %v991 = vpop.f32.mrb[0].mxu0
  %v992 = vadd.f32 %v940, %v991
  %v993 = vpop.f32.mrb[0].mxu0
  %994 = vdwg.mxu0
  %v995 = vpack.c.bf16 %v860, %v857
  %v996 = vpack.c.bf16 %v926, %v923
  %v998 = vsel %vm249, %v995, 0
  %v1001 = vsel %vm249, %v996, 0
  %1003 = vmatprep.subr.bf16.mxu0 0
  %1004 = vmatpush1.bf16.xpose.msra.mxu0 %v1001
  %1005 = vmatprep.subr.bf16.mxu0 0
  %1006 = vmatpush1.bf16.xpose.msra.mxu0 0
  %1007 = vmatprep.subr.bf16.mxu0 0
  %1008 = vmatpush1.bf16.xpose.msra.mxu0 0
  %1009 = vmatprep.subr.bf16.mxu0 0
  %1010 = vmatpush1.bf16.xpose.msra.mxu0 0
  %1011 = vmatprep.subr.bf16.mxu0 0
  %1012 = vmatpush1.bf16.xpose.msra.mxu0 0
  %1013 = vmatprep.subr.bf16.mxu0 0
  %1014 = vmatpush1.bf16.xpose.msra.mxu0 0
  %1015 = vmatprep.subr.bf16.mxu0 0
  %1016 = vmatpush1.bf16.xpose.msra.mxu0 0
  %1017 = vmatprep.subr.bf16.mxu0 0
  %1018 = vmatpush1.bf16.xpose.msra.mxu0 0
  %1019 = vmatprep.subr.bf16.mxu0 0
  %1020 = vmatpush1.bf16.xpose.msra.mxu0 0
  %1021 = vmatprep.subr.bf16.mxu0 0
  %1022 = vmatpush1.bf16.xpose.msra.mxu0 0
  %1023 = vmatprep.subr.bf16.mxu0 0
  %1024 = vmatpush1.bf16.xpose.msra.mxu0 0
  %1025 = vmatprep.subr.bf16.mxu0 0
  %1026 = vmatpush1.bf16.xpose.msra.mxu0 0
  %1027 = vmatprep.subr.bf16.mxu0 0
  %1028 = vmatpush1.bf16.xpose.msra.mxu0 0
  %1029 = vmatprep.subr.bf16.mxu0 0
  %1030 = vmatpush1.bf16.xpose.msra.mxu0 0
  %1031 = vmatprep.subr.bf16.mxu0 0
  %1032 = vmatpush1.bf16.xpose.msra.mxu0 0
  %1033 = vmatprep.subr.bf16.mxu0 0
  %1034 = vmatpush1.bf16.xpose.msra.mxu0 0
  %1035 = vmatprep.mubr.bf16.mxu0 0
  %1036 = vmatmul.mubr.bf16.gmra.mrb[0].mxu0 %v998
  %v1037 = vpop.f32.mrb[0].mxu0
  %v1038 = vadd.f32 0.0, %v1037
  %v1039 = vpop.f32.mrb[0].mxu0
  %v1040 = vpop.f32.mrb[0].mxu0
  %v1041 = vadd.f32 0.0, %v1040
  %v1042 = vpop.f32.mrb[0].mxu0
  %1043 = vdwg.mxu0
  %v1044 = vmul.f32 %v1038, 0.35355338
  %v1045 = vmul.f32 %v1041, 0.35355338
  %v1046 = vsel %vm299, %v1044, -inf
  %1047 = vmax.xlane.f32.xlu0 %v1046
  %v1048 = vpop.xlane.xlu0 %1047
  %v1049 = vsel %vm303, %v1045, -inf
  %1050 = vmax.xlane.f32.xlu0 %v1049
  %v1051 = vpop.xlane.xlu0 %1050
  %v1052 = vsub.f32 %v1044, %v1048
  %v1053 = vsub.f32 %v1045, %v1051
  %v1054 = vmul.f32 %v1052, 1.442695
  %v1055 = vpow.pop %v1054
  %v1056 = vmul.f32 %v1053, 1.442695
  %v1057 = vpow.pop %v1056
  %v1058 = vsel %vm299, %v1055, 0.0
  %1059 = vadd.xlane.f32.xlu0 %v1058
  %v1060 = vpop.xlane.xlu0 %1059
  %v1061 = vsel %vm303, %v1057, 0.0
  %1062 = vadd.xlane.f32.xlu0 %v1061
  %v1063 = vpop.xlane.xlu0 %1062
  %v1064 = vrcp.pop %v1060
  %v1065 = vrcp.pop %v1063
  %v1066 = vmul.f32 %v1055, %v1064
  %v1067 = vmul.f32 %v1057, %v1065
  %v1068 = vpack.c.bf16 %v1067, %v1066
  %v1069 = vpack.c.bf16 %v992, %v989
  %v1071 = vsel %vm299, %v1068, 0
  %v1074 = vsel %vm328, %v1069, 0
  %1076 = vmatprep.subr.bf16.mxu0 0
  %1077 = vmatpush1.bf16.msra.mxu0 %v1074
  %1078 = vmatprep.subr.bf16.mxu0 0
  %1079 = vmatpush1.bf16.msra.mxu0 0
  %1080 = vmatprep.subr.bf16.mxu0 0
  %1081 = vmatpush1.bf16.msra.mxu0 0
  %1082 = vmatprep.subr.bf16.mxu0 0
  %1083 = vmatpush1.bf16.msra.mxu0 0
  %1084 = vmatprep.subr.bf16.mxu0 0
  %1085 = vmatpush1.bf16.msra.mxu0 0
  %1086 = vmatprep.subr.bf16.mxu0 0
  %1087 = vmatpush1.bf16.msra.mxu0 0
  %1088 = vmatprep.subr.bf16.mxu0 0
  %1089 = vmatpush1.bf16.msra.mxu0 0
  %1090 = vmatprep.subr.bf16.mxu0 0
  %1091 = vmatpush1.bf16.msra.mxu0 0
  %1092 = vmatprep.subr.bf16.mxu0 0
  %1093 = vmatpush1.bf16.msra.mxu0 0
  %1094 = vmatprep.subr.bf16.mxu0 0
  %1095 = vmatpush1.bf16.msra.mxu0 0
  %1096 = vmatprep.subr.bf16.mxu0 0
  %1097 = vmatpush1.bf16.msra.mxu0 0
  %1098 = vmatprep.subr.bf16.mxu0 0
  %1099 = vmatpush1.bf16.msra.mxu0 0
  %1100 = vmatprep.subr.bf16.mxu0 0
  %1101 = vmatpush1.bf16.msra.mxu0 0
  %1102 = vmatprep.subr.bf16.mxu0 0
  %1103 = vmatpush1.bf16.msra.mxu0 0
  %1104 = vmatprep.subr.bf16.mxu0 0
  %1105 = vmatpush1.bf16.msra.mxu0 0
  %1106 = vmatprep.subr.bf16.mxu0 0
  %1107 = vmatpush1.bf16.msra.mxu0 0
  %1108 = vmatprep.mubr.bf16.mxu0 0
  %1109 = vmatmul.mubr.bf16.gmra.mrb[0].mxu0 %v1071
  %v1110 = vpop.f32.mrb[0].mxu0
  %v1111 = vadd.f32 0.0, %v1110
  %v1112 = vpop.f32.mrb[0].mxu0
  %v1113 = vpop.f32.mrb[0].mxu0
  %v1114 = vadd.f32 0.0, %v1113
  %v1115 = vpop.f32.mrb[0].mxu0
  %1116 = vdwg.mxu0
  %v1117 = vpack.c.bf16 %v1114, %v1111
  %s1118 = scalar_lea.vmem %s9, 8
  %v1119 = vld [vmem:[%s1118] sm:$0xf]
  %v1121 = vsel %vm249, %v1117, 0
  %v1124 = vsel %vm378, %v1119, 0
  %1126 = vmatprep.subr.bf16.mxu0 0
  %1127 = vmatpush1.bf16.msra.mxu0 %v1124
  %1128 = vmatprep.subr.bf16.mxu0 0
  %1129 = vmatpush1.bf16.msra.mxu0 0
  %1130 = vmatprep.subr.bf16.mxu0 0
  %1131 = vmatpush1.bf16.msra.mxu0 0
  %1132 = vmatprep.subr.bf16.mxu0 0
  %1133 = vmatpush1.bf16.msra.mxu0 0
  %1134 = vmatprep.subr.bf16.mxu0 0
  %1135 = vmatpush1.bf16.msra.mxu0 0
  %1136 = vmatprep.subr.bf16.mxu0 0
  %1137 = vmatpush1.bf16.msra.mxu0 0
  %1138 = vmatprep.subr.bf16.mxu0 0
  %1139 = vmatpush1.bf16.msra.mxu0 0
  %1140 = vmatprep.subr.bf16.mxu0 0
  %1141 = vmatpush1.bf16.msra.mxu0 0
  %1142 = vmatprep.subr.bf16.mxu0 0
  %1143 = vmatpush1.bf16.msra.mxu0 0
  %1144 = vmatprep.subr.bf16.mxu0 0
  %1145 = vmatpush1.bf16.msra.mxu0 0
  %1146 = vmatprep.subr.bf16.mxu0 0
  %1147 = vmatpush1.bf16.msra.mxu0 0
  %1148 = vmatprep.subr.bf16.mxu0 0
  %1149 = vmatpush1.bf16.msra.mxu0 0
  %1150 = vmatprep.subr.bf16.mxu0 0
  %1151 = vmatpush1.bf16.msra.mxu0 0
  %1152 = vmatprep.subr.bf16.mxu0 0
  %1153 = vmatpush1.bf16.msra.mxu0 0
  %1154 = vmatprep.subr.bf16.mxu0 0
  %1155 = vmatpush1.bf16.msra.mxu0 0
  %1156 = vmatprep.subr.bf16.mxu0 0
  %1157 = vmatpush1.bf16.msra.mxu0 0
  %1158 = vmatprep.mubr.bf16.mxu0 0
  %1159 = vmatmul.mubr.bf16.gmra.mrb[0].mxu0 %v1121
  %v1160 = vpop.f32.mrb[0].mxu0
  %v1161 = vadd.f32 0.0, %v1160
  %v1162 = vpop.f32.mrb[0].mxu0
  %v1163 = vpop.f32.mrb[0].mxu0
  %v1164 = vadd.f32 0.0, %v1163
  %v1165 = vpop.f32.mrb[0].mxu0
  %1166 = vdwg.mxu0
  %v1167 = vadd.f32 %v795, %v1161
  %v1168 = vadd.f32 %v796, %v1164
  %s1169 = scalar_lea.vmem %s3, 48
  %v1170 = vld [vmem:[%s1169] sm:$0xf]
  %v1171 = vld [vmem:[%s1169 + $0x4] sm:$0xf]
  %v1172 = vld [vmem:[%s1169 + $0x8] sm:$0xf]
  %v1173 = vld [vmem:[%s1169 + $0xc] sm:$0xf]
  %s1174 = scalar_lea.vmem %s6, 3
  %v1175 = vld [vmem:[%s1174] sm:$0x1]
  %v1177 = vlaneseq
  %v1178 = vshrl.u32 %v1177, 7
  %v1179 = vsub.s32 0, %v1178
  %v1180 = vrot.slane %v1175, %v1179
  %v1186 = vunpack.c.l.b16 %v1170
  %v1187 = vunpack.c.l.b16 %v1171
  %v1188 = vunpack.c.l.b16 %v1172
  %v1189 = vunpack.c.l.b16 %v1173
  %v1190 = vpack.c.b16 %v1187, %v1186
  %v1191 = vpack.c.b16 %v1189, %v1188
  %1194 = vmatprep.subr.bf16.mxu0 0
  %1195 = vmatpush1.bf16.msra.mxu0 %v1190
  %1196 = vmatprep.subr.bf16.mxu0 0
  %1197 = vmatpush1.bf16.msra.mxu0 %v1191
  %1198 = vmatprep.subr.bf16.mxu0 0
  %1199 = vmatpush1.bf16.msra.mxu0 0
  %1200 = vmatprep.subr.bf16.mxu0 0
  %1201 = vmatpush1.bf16.msra.mxu0 0
  %1202 = vmatprep.subr.bf16.mxu0 0
  %1203 = vmatpush1.bf16.msra.mxu0 0
  %1204 = vmatprep.subr.bf16.mxu0 0
  %1205 = vmatpush1.bf16.msra.mxu0 0
  %1206 = vmatprep.subr.bf16.mxu0 0
  %1207 = vmatpush1.bf16.msra.mxu0 0
  %1208 = vmatprep.subr.bf16.mxu0 0
  %1209 = vmatpush1.bf16.msra.mxu0 0
  %1210 = vmatprep.subr.bf16.mxu0 0
  %1211 = vmatpush1.bf16.msra.mxu0 0
  %1212 = vmatprep.subr.bf16.mxu0 0
  %1213 = vmatpush1.bf16.msra.mxu0 0
  %1214 = vmatprep.subr.bf16.mxu0 0
  %1215 = vmatpush1.bf16.msra.mxu0 0
  %1216 = vmatprep.subr.bf16.mxu0 0
  %1217 = vmatpush1.bf16.msra.mxu0 0
  %1218 = vmatprep.subr.bf16.mxu0 0
  %1219 = vmatpush1.bf16.msra.mxu0 0
  %1220 = vmatprep.subr.bf16.mxu0 0
  %1221 = vmatpush1.bf16.msra.mxu0 0
  %1222 = vmatprep.subr.bf16.mxu0 0
  %1223 = vmatpush1.bf16.msra.mxu0 0
  %1224 = vmatprep.subr.bf16.mxu0 0
  %1225 = vmatpush1.bf16.msra.mxu0 0
  %1226 = vmatprep.mubr.bf16.mxu0 0
  %1227 = vmatmul.mubr.bf16.gmra.mrb[0].mxu0 %v76
  %v1228 = vpop.f32.mrb[0].mxu0
  %v1229 = vadd.f32 %v1180, %v1228
  %v1230 = vpop.f32.mrb[0].mxu0
  %v1231 = vpop.f32.mrb[0].mxu0
  %v1232 = vadd.f32 %v1180, %v1231
  %v1233 = vpop.f32.mrb[0].mxu0
  %1234 = vdwg.mxu0
  %s1235 = scalar_lea.vmem %s4, 48
  %v1236 = vld [vmem:[%s1235] sm:$0xf]
  %v1237 = vld [vmem:[%s1235 + $0x4] sm:$0xf]
  %v1238 = vld [vmem:[%s1235 + $0x8] sm:$0xf]
  %v1239 = vld [vmem:[%s1235 + $0xc] sm:$0xf]
  %s1240 = scalar_lea.vmem %s7, 3
  %v1241 = vld [vmem:[%s1240] sm:$0x1]
  %v1243 = vlaneseq
  %v1244 = vshrl.u32 %v1243, 7
  %v1245 = vsub.s32 0, %v1244
  %v1246 = vrot.slane %v1241, %v1245
  %v1252 = vunpack.c.l.b16 %v1236
  %v1253 = vunpack.c.l.b16 %v1237
  %v1254 = vunpack.c.l.b16 %v1238
  %v1255 = vunpack.c.l.b16 %v1239
  %v1256 = vpack.c.b16 %v1253, %v1252
  %v1257 = vpack.c.b16 %v1255, %v1254
  %1260 = vmatprep.subr.bf16.mxu0 0
  %1261 = vmatpush1.bf16.msra.mxu0 %v1256
  %1262 = vmatprep.subr.bf16.mxu0 0
  %1263 = vmatpush1.bf16.msra.mxu0 %v1257
  %1264 = vmatprep.subr.bf16.mxu0 0
  %1265 = vmatpush1.bf16.msra.mxu0 0
  %1266 = vmatprep.subr.bf16.mxu0 0
  %1267 = vmatpush1.bf16.msra.mxu0 0
  %1268 = vmatprep.subr.bf16.mxu0 0
  %1269 = vmatpush1.bf16.msra.mxu0 0
  %1270 = vmatprep.subr.bf16.mxu0 0
  %1271 = vmatpush1.bf16.msra.mxu0 0
  %1272 = vmatprep.subr.bf16.mxu0 0
  %1273 = vmatpush1.bf16.msra.mxu0 0
  %1274 = vmatprep.subr.bf16.mxu0 0
  %1275 = vmatpush1.bf16.msra.mxu0 0
  %1276 = vmatprep.subr.bf16.mxu0 0
  %1277 = vmatpush1.bf16.msra.mxu0 0
  %1278 = vmatprep.subr.bf16.mxu0 0
  %1279 = vmatpush1.bf16.msra.mxu0 0
  %1280 = vmatprep.subr.bf16.mxu0 0
  %1281 = vmatpush1.bf16.msra.mxu0 0
  %1282 = vmatprep.subr.bf16.mxu0 0
  %1283 = vmatpush1.bf16.msra.mxu0 0
  %1284 = vmatprep.subr.bf16.mxu0 0
  %1285 = vmatpush1.bf16.msra.mxu0 0
  %1286 = vmatprep.subr.bf16.mxu0 0
  %1287 = vmatpush1.bf16.msra.mxu0 0
  %1288 = vmatprep.subr.bf16.mxu0 0
  %1289 = vmatpush1.bf16.msra.mxu0 0
  %1290 = vmatprep.subr.bf16.mxu0 0
  %1291 = vmatpush1.bf16.msra.mxu0 0
  %1292 = vmatprep.mubr.bf16.mxu0 0
  %1293 = vmatmul.mubr.bf16.gmra.mrb[0].mxu0 %v76
  %v1294 = vpop.f32.mrb[0].mxu0
  %v1295 = vadd.f32 %v1246, %v1294
  %v1296 = vpop.f32.mrb[0].mxu0
  %v1297 = vpop.f32.mrb[0].mxu0
  %v1298 = vadd.f32 %v1246, %v1297
  %v1299 = vpop.f32.mrb[0].mxu0
  %1300 = vdwg.mxu0
  %s1301 = scalar_lea.vmem %s5, 48
  %v1302 = vld [vmem:[%s1301] sm:$0xf]
  %v1303 = vld [vmem:[%s1301 + $0x4] sm:$0xf]
  %v1304 = vld [vmem:[%s1301 + $0x8] sm:$0xf]
  %v1305 = vld [vmem:[%s1301 + $0xc] sm:$0xf]
  %s1306 = scalar_lea.vmem %s8, 3
  %v1307 = vld [vmem:[%s1306] sm:$0x1]
  %v1309 = vlaneseq
  %v1310 = vshrl.u32 %v1309, 7
  %v1311 = vsub.s32 0, %v1310
  %v1312 = vrot.slane %v1307, %v1311
  %v1318 = vunpack.c.l.b16 %v1302
  %v1319 = vunpack.c.l.b16 %v1303
  %v1320 = vunpack.c.l.b16 %v1304
  %v1321 = vunpack.c.l.b16 %v1305
  %v1322 = vpack.c.b16 %v1319, %v1318
  %v1323 = vpack.c.b16 %v1321, %v1320
  %1326 = vmatprep.subr.bf16.mxu0 0
  %1327 = vmatpush1.bf16.msra.mxu0 %v1322
  %1328 = vmatprep.subr.bf16.mxu0 0
  %1329 = vmatpush1.bf16.msra.mxu0 %v1323
  %1330 = vmatprep.subr.bf16.mxu0 0
  %1331 = vmatpush1.bf16.msra.mxu0 0
  %1332 = vmatprep.subr.bf16.mxu0 0
  %1333 = vmatpush1.bf16.msra.mxu0 0
  %1334 = vmatprep.subr.bf16.mxu0 0
  %1335 = vmatpush1.bf16.msra.mxu0 0
  %1336 = vmatprep.subr.bf16.mxu0 0
  %1337 = vmatpush1.bf16.msra.mxu0 0
  %1338 = vmatprep.subr.bf16.mxu0 0
  %1339 = vmatpush1.bf16.msra.mxu0 0
  %1340 = vmatprep.subr.bf16.mxu0 0
  %1341 = vmatpush1.bf16.msra.mxu0 0
  %1342 = vmatprep.subr.bf16.mxu0 0
  %1343 = vmatpush1.bf16.msra.mxu0 0
  %1344 = vmatprep.subr.bf16.mxu0 0
  %1345 = vmatpush1.bf16.msra.mxu0 0
  %1346 = vmatprep.subr.bf16.mxu0 0
  %1347 = vmatpush1.bf16.msra.mxu0 0
  %1348 = vmatprep.subr.bf16.mxu0 0
  %1349 = vmatpush1.bf16.msra.mxu0 0
  %1350 = vmatprep.subr.bf16.mxu0 0
  %1351 = vmatpush1.bf16.msra.mxu0 0
  %1352 = vmatprep.subr.bf16.mxu0 0
  %1353 = vmatpush1.bf16.msra.mxu0 0
  %1354 = vmatprep.subr.bf16.mxu0 0
  %1355 = vmatpush1.bf16.msra.mxu0 0
  %1356 = vmatprep.subr.bf16.mxu0 0
  %1357 = vmatpush1.bf16.msra.mxu0 0
  %1358 = vmatprep.mubr.bf16.mxu0 0
  %1359 = vmatmul.mubr.bf16.gmra.mrb[0].mxu0 %v76
  %v1360 = vpop.f32.mrb[0].mxu0
  %v1361 = vadd.f32 %v1312, %v1360
  %v1362 = vpop.f32.mrb[0].mxu0
  %v1363 = vpop.f32.mrb[0].mxu0
  %v1364 = vadd.f32 %v1312, %v1363
  %v1365 = vpop.f32.mrb[0].mxu0
  %1366 = vdwg.mxu0
  %v1367 = vpack.c.bf16 %v1232, %v1229
  %v1368 = vpack.c.bf16 %v1298, %v1295
  %v1370 = vsel %vm249, %v1367, 0
  %v1373 = vsel %vm249, %v1368, 0
  %1375 = vmatprep.subr.bf16.mxu0 0
  %1376 = vmatpush1.bf16.xpose.msra.mxu0 %v1373
  %1377 = vmatprep.subr.bf16.mxu0 0
  %1378 = vmatpush1.bf16.xpose.msra.mxu0 0
  %1379 = vmatprep.subr.bf16.mxu0 0
  %1380 = vmatpush1.bf16.xpose.msra.mxu0 0
  %1381 = vmatprep.subr.bf16.mxu0 0
  %1382 = vmatpush1.bf16.xpose.msra.mxu0 0
  %1383 = vmatprep.subr.bf16.mxu0 0
  %1384 = vmatpush1.bf16.xpose.msra.mxu0 0
  %1385 = vmatprep.subr.bf16.mxu0 0
  %1386 = vmatpush1.bf16.xpose.msra.mxu0 0
  %1387 = vmatprep.subr.bf16.mxu0 0
  %1388 = vmatpush1.bf16.xpose.msra.mxu0 0
  %1389 = vmatprep.subr.bf16.mxu0 0
  %1390 = vmatpush1.bf16.xpose.msra.mxu0 0
  %1391 = vmatprep.subr.bf16.mxu0 0
  %1392 = vmatpush1.bf16.xpose.msra.mxu0 0
  %1393 = vmatprep.subr.bf16.mxu0 0
  %1394 = vmatpush1.bf16.xpose.msra.mxu0 0
  %1395 = vmatprep.subr.bf16.mxu0 0
  %1396 = vmatpush1.bf16.xpose.msra.mxu0 0
  %1397 = vmatprep.subr.bf16.mxu0 0
  %1398 = vmatpush1.bf16.xpose.msra.mxu0 0
  %1399 = vmatprep.subr.bf16.mxu0 0
  %1400 = vmatpush1.bf16.xpose.msra.mxu0 0
  %1401 = vmatprep.subr.bf16.mxu0 0
  %1402 = vmatpush1.bf16.xpose.msra.mxu0 0
  %1403 = vmatprep.subr.bf16.mxu0 0
  %1404 = vmatpush1.bf16.xpose.msra.mxu0 0
  %1405 = vmatprep.subr.bf16.mxu0 0
  %1406 = vmatpush1.bf16.xpose.msra.mxu0 0
  %1407 = vmatprep.mubr.bf16.mxu0 0
  %1408 = vmatmul.mubr.bf16.gmra.mrb[0].mxu0 %v1370
  %v1409 = vpop.f32.mrb[0].mxu0
  %v1410 = vadd.f32 0.0, %v1409
  %v1411 = vpop.f32.mrb[0].mxu0
  %v1412 = vpop.f32.mrb[0].mxu0
  %v1413 = vadd.f32 0.0, %v1412
  %v1414 = vpop.f32.mrb[0].mxu0
  %1415 = vdwg.mxu0
  %v1416 = vmul.f32 %v1410, 0.35355338
  %v1417 = vmul.f32 %v1413, 0.35355338
  %v1418 = vsel %vm299, %v1416, -inf
  %1419 = vmax.xlane.f32.xlu0 %v1418
  %v1420 = vpop.xlane.xlu0 %1419
  %v1421 = vsel %vm303, %v1417, -inf
  %1422 = vmax.xlane.f32.xlu0 %v1421
  %v1423 = vpop.xlane.xlu0 %1422
  %v1424 = vsub.f32 %v1416, %v1420
  %v1425 = vsub.f32 %v1417, %v1423
  %v1426 = vmul.f32 %v1424, 1.442695
  %v1427 = vpow.pop %v1426
  %v1428 = vmul.f32 %v1425, 1.442695
  %v1429 = vpow.pop %v1428
  %v1430 = vsel %vm299, %v1427, 0.0
  %1431 = vadd.xlane.f32.xlu0 %v1430
  %v1432 = vpop.xlane.xlu0 %1431
  %v1433 = vsel %vm303, %v1429, 0.0
  %1434 = vadd.xlane.f32.xlu0 %v1433
  %v1435 = vpop.xlane.xlu0 %1434
  %v1436 = vrcp.pop %v1432
  %v1437 = vrcp.pop %v1435
  %v1438 = vmul.f32 %v1427, %v1436
  %v1439 = vmul.f32 %v1429, %v1437
  %v1440 = vpack.c.bf16 %v1439, %v1438
  %v1441 = vpack.c.bf16 %v1364, %v1361
  %v1443 = vsel %vm299, %v1440, 0
  %v1446 = vsel %vm328, %v1441, 0
  %1448 = vmatprep.subr.bf16.mxu0 0
  %1449 = vmatpush1.bf16.msra.mxu0 %v1446
  %1450 = vmatprep.subr.bf16.mxu0 0
  %1451 = vmatpush1.bf16.msra.mxu0 0
  %1452 = vmatprep.subr.bf16.mxu0 0
  %1453 = vmatpush1.bf16.msra.mxu0 0
  %1454 = vmatprep.subr.bf16.mxu0 0
  %1455 = vmatpush1.bf16.msra.mxu0 0
  %1456 = vmatprep.subr.bf16.mxu0 0
  %1457 = vmatpush1.bf16.msra.mxu0 0
  %1458 = vmatprep.subr.bf16.mxu0 0
  %1459 = vmatpush1.bf16.msra.mxu0 0
  %1460 = vmatprep.subr.bf16.mxu0 0
  %1461 = vmatpush1.bf16.msra.mxu0 0
  %1462 = vmatprep.subr.bf16.mxu0 0
  %1463 = vmatpush1.bf16.msra.mxu0 0
  %1464 = vmatprep.subr.bf16.mxu0 0
  %1465 = vmatpush1.bf16.msra.mxu0 0
  %1466 = vmatprep.subr.bf16.mxu0 0
  %1467 = vmatpush1.bf16.msra.mxu0 0
  %1468 = vmatprep.subr.bf16.mxu0 0
  %1469 = vmatpush1.bf16.msra.mxu0 0
  %1470 = vmatprep.subr.bf16.mxu0 0
  %1471 = vmatpush1.bf16.msra.mxu0 0
  %1472 = vmatprep.subr.bf16.mxu0 0
  %1473 = vmatpush1.bf16.msra.mxu0 0
  %1474 = vmatprep.subr.bf16.mxu0 0
  %1475 = vmatpush1.bf16.msra.mxu0 0
  %1476 = vmatprep.subr.bf16.mxu0 0
  %1477 = vmatpush1.bf16.msra.mxu0 0
  %1478 = vmatprep.subr.bf16.mxu0 0
  %1479 = vmatpush1.bf16.msra.mxu0 0
  %1480 = vmatprep.mubr.bf16.mxu0 0
  %1481 = vmatmul.mubr.bf16.gmra.mrb[0].mxu0 %v1443
  %v1482 = vpop.f32.mrb[0].mxu0
  %v1483 = vadd.f32 0.0, %v1482
  %v1484 = vpop.f32.mrb[0].mxu0
  %v1485 = vpop.f32.mrb[0].mxu0
  %v1486 = vadd.f32 0.0, %v1485
  %v1487 = vpop.f32.mrb[0].mxu0
  %1488 = vdwg.mxu0
  %v1489 = vpack.c.bf16 %v1486, %v1483
  %s1490 = scalar_lea.vmem %s9, 12
  %v1491 = vld [vmem:[%s1490] sm:$0xf]
  %v1493 = vsel %vm249, %v1489, 0
  %v1496 = vsel %vm378, %v1491, 0
  %1498 = vmatprep.subr.bf16.mxu0 0
  %1499 = vmatpush1.bf16.msra.mxu0 %v1496
  %1500 = vmatprep.subr.bf16.mxu0 0
  %1501 = vmatpush1.bf16.msra.mxu0 0
  %1502 = vmatprep.subr.bf16.mxu0 0
  %1503 = vmatpush1.bf16.msra.mxu0 0
  %1504 = vmatprep.subr.bf16.mxu0 0
  %1505 = vmatpush1.bf16.msra.mxu0 0
  %1506 = vmatprep.subr.bf16.mxu0 0
  %1507 = vmatpush1.bf16.msra.mxu0 0
  %1508 = vmatprep.subr.bf16.mxu0 0
  %1509 = vmatpush1.bf16.msra.mxu0 0
  %1510 = vmatprep.subr.bf16.mxu0 0
  %1511 = vmatpush1.bf16.msra.mxu0 0
  %1512 = vmatprep.subr.bf16.mxu0 0
  %1513 = vmatpush1.bf16.msra.mxu0 0
  %1514 = vmatprep.subr.bf16.mxu0 0
  %1515 = vmatpush1.bf16.msra.mxu0 0
  %1516 = vmatprep.subr.bf16.mxu0 0
  %1517 = vmatpush1.bf16.msra.mxu0 0
  %1518 = vmatprep.subr.bf16.mxu0 0
  %1519 = vmatpush1.bf16.msra.mxu0 0
  %1520 = vmatprep.subr.bf16.mxu0 0
  %1521 = vmatpush1.bf16.msra.mxu0 0
  %1522 = vmatprep.subr.bf16.mxu0 0
  %1523 = vmatpush1.bf16.msra.mxu0 0
  %1524 = vmatprep.subr.bf16.mxu0 0
  %1525 = vmatpush1.bf16.msra.mxu0 0
  %1526 = vmatprep.subr.bf16.mxu0 0
  %1527 = vmatpush1.bf16.msra.mxu0 0
  %1528 = vmatprep.subr.bf16.mxu0 0
  %1529 = vmatpush1.bf16.msra.mxu0 0
  %1530 = vmatprep.mubr.bf16.mxu0 0
  %1531 = vmatmul.mubr.bf16.gmra.mrb[0].mxu0 %v1493
  %v1532 = vpop.f32.mrb[0].mxu0
  %v1533 = vadd.f32 0.0, %v1532
  %v1534 = vpop.f32.mrb[0].mxu0
  %v1535 = vpop.f32.mrb[0].mxu0
  %v1536 = vadd.f32 0.0, %v1535
  %v1537 = vpop.f32.mrb[0].mxu0
  %1538 = vdwg.mxu0
  %v1539 = vadd.f32 %v1167, %v1533
  %v1540 = vadd.f32 %v1168, %v1536
  %1541 = vst.msk [vmem:[%s11] sm:$0xff] %vm74, %v1539
  %vm1542 = vcmask 257024
  %1543 = vst.msk [vmem:[%s11 + $0x8] sm:$0xf] %vm1542, %v1540
  // Predicated region
  $region46: #{_lambda_.38} parent=0 // pred_check
    _
  $region47: #{_lambda_.38} parent=0 // pred_check_branch
    %1545 = sbr.rel (0) target = $region49
  $region48: #{_lambda_.38} parent=0 // pred_region
    _
  $region49: #{_lambda_.38} parent=0 // pred_fallthru
    _
  // Predicated region
  $region50: #{_lambda_.38} parent=0 // pred_check
    _
  $region51: #{_lambda_.38} parent=0 // pred_check_branch
    %1547 = sbr.rel (0) target = $region53
  $region52: #{_lambda_.38} parent=0 // pred_region
    _
  $region53: #{_lambda_.38} parent=0 // pred_fallthru
    _

// kernel: _lambda_.40
$region0: #{_lambda_.40}
  #allocation0 [shape = 'u32[]', space=smem, size = 0x4, offset = 0x4, fixed_abs, tag = 'smem constant byte address 0x4 - core index']
  #allocation1 [shape = 'u32[144,128]{1,0:T(1,128)}', space=vmem, size = 0x12000, scoped, tag = 'internal scratch']
  #allocation2 [shape = 'f32[16,32]{1,0:T(8,128)}', space=vmem, size = 0x2000, scoped, tag = 'scratch operand']
  #allocation3 [shape = 'bf16[16,32]{1,0:T(16,128)(2,1)}', space=vmem, size = 0x1000, scoped, tag = 'scratch operand']
  %s0 = inlined_call_operand.vmem [shape: f32[16,32], index: 0, kind: input, shape index: {}]
  %s1 = inlined_call_operand.vmem [shape: f32[1,32], index: 1, kind: input, shape index: {}]
  %s2 = inlined_call_operand.vmem [shape: f32[1,32], index: 2, kind: input, shape index: {}]
  %s3 = inlined_call_operand.vmem [shape: bf16[32,64], index: 3, kind: input, shape index: {}]
  %s4 = inlined_call_operand.vmem [shape: f32[1,64], index: 4, kind: input, shape index: {}]
  %s5 = inlined_call_operand.vmem [shape: bf16[64,32], index: 5, kind: input, shape index: {}]
  %s6 = inlined_call_operand.vmem [shape: f32[1,32], index: 6, kind: input, shape index: {}]
  %s7 = inlined_call_operand.vmem [shape: f32[16,32], index: 7, kind: output, shape index: {}]
  %s8 = sld [smem:[#allocation0]]
  $region46: #{_lambda_.40} parent=0
    _
  %s10 = ssub.s32 1, %s8
  %s11 = scalar_select 0, %s10, %s8
  // Predicated region
  $region2: #{_lambda_.40} parent=0 // pred_check
    _
  $region3: #{_lambda_.40} parent=0 // pred_check_branch
    %13 = sbr.rel (0) target = $region5
  $region4: #{_lambda_.40} parent=0 // pred_region
    _
  $region5: #{_lambda_.40} parent=0 // pred_fallthru
    _
  // Predicated region
  $region6: #{_lambda_.40} parent=0 // pred_check
    _
  $region7: #{_lambda_.40} parent=0 // pred_check_branch
    %15 = sbr.rel (0) target = $region9
  $region8: #{_lambda_.40} parent=0 // pred_region
    _
  $region9: #{_lambda_.40} parent=0 // pred_fallthru
    _
  // Predicated region
  $region10: #{_lambda_.40} parent=0 // pred_check
    _
  $region11: #{_lambda_.40} parent=0 // pred_check_branch
    %17 = sbr.rel (0) target = $region13
  $region12: #{_lambda_.40} parent=0 // pred_region
    _
  $region13: #{_lambda_.40} parent=0 // pred_fallthru
    _
  // Predicated region
  $region14: #{_lambda_.40} parent=0 // pred_check
    _
  $region15: #{_lambda_.40} parent=0 // pred_check_branch
    %19 = sbr.rel (0) target = $region17
  $region16: #{_lambda_.40} parent=0 // pred_region
    _
  $region17: #{_lambda_.40} parent=0 // pred_fallthru
    _
  // Predicated region
  $region18: #{_lambda_.40} parent=0 // pred_check
    _
  $region19: #{_lambda_.40} parent=0 // pred_check_branch
    %21 = sbr.rel (0) target = $region21
  $region20: #{_lambda_.40} parent=0 // pred_region
    _
  $region21: #{_lambda_.40} parent=0 // pred_fallthru
    _
  // Predicated region
  $region22: #{_lambda_.40} parent=0 // pred_check
    _
  $region23: #{_lambda_.40} parent=0 // pred_check_branch
    %23 = sbr.rel (0) target = $region25
  $region24: #{_lambda_.40} parent=0 // pred_region
    _
  $region25: #{_lambda_.40} parent=0 // pred_fallthru
    _
  // Predicated region
  $region26: #{_lambda_.40} parent=0 // pred_check
    _
  $region27: #{_lambda_.40} parent=0 // pred_check_branch
    %25 = sbr.rel (0) target = $region29
  $region28: #{_lambda_.40} parent=0 // pred_region
    _
  $region29: #{_lambda_.40} parent=0 // pred_fallthru
    _
  %p27 = scmp.eq.s32.totalorder 0, 0
  // Predicated region
  $region30: #{_lambda_.40} parent=0 // pred_check
    %p28 = pneg %p27
  $region31: #{_lambda_.40} parent=0 // pred_check_branch
    %30 = sbr.rel (%p28) target = $region33
  $region32: #{_lambda_.40} parent=0 // pred_region
    %v31 = vld [vmem:[%s0] sm:$0xff]
    %v32 = vld [vmem:[%s0 + $0x8] sm:$0xff]
    %v33 = vpack.c.bf16 %v32, %v31
    %vm34 = vcmask 261120
    %35 = vst.msk [vmem:[#allocation3] sm:$0xff] %vm34, %v33
    %v36 = vld [vmem:[%s6] sm:$0x1]
    %v38 = vlaneseq
    %v39 = vshrl.u32 %v38, 7
    %v40 = vsub.s32 0, %v39
    %v41 = vrot.slane %v36, %v40
    %v43 = vadd.f32 %v31, %v41
    %v44 = vadd.f32 %v32, %v41
    %45 = vst.msk [vmem:[#allocation2] sm:$0xff] %vm34, %v43
    %46 = vst.msk [vmem:[#allocation2 + $0x8] sm:$0xff] %vm34, %v44
  $region33: #{_lambda_.40} parent=0 // pred_fallthru
    _
  %v47 = vld [vmem:[#allocation3] sm:$0xff]
  %v48 = vld [vmem:[%s3] sm:$0xf]
  %v49 = vld [vmem:[%s3 + $0x4] sm:$0xf]
  %v50 = vld [vmem:[%s3 + $0x8] sm:$0xf]
  %v51 = vld [vmem:[%s3 + $0xc] sm:$0xf]
  %v52 = vld [vmem:[%s4] sm:$0x1]
  %v54 = vlaneseq
  %v55 = vshrl.u32 %v54, 7
  %v56 = vsub.s32 0, %v55
  %v57 = vrot.slane %v52, %v56
  %v63 = vunpack.c.l.b16 %v48
  %v64 = vunpack.c.l.b16 %v49
  %v65 = vunpack.c.l.b16 %v50
  %v66 = vunpack.c.l.b16 %v51
  %v67 = vpack.c.b16 %v64, %v63
  %v68 = vpack.c.b16 %v66, %v65
  %vm71 = vcmask 261120
  %v73 = vsel %vm71, %v47, 0
  %75 = vmatprep.subr.bf16.mxu0 0
  %76 = vmatpush1.bf16.msra.mxu0 %v67
  %77 = vmatprep.subr.bf16.mxu0 0
  %78 = vmatpush1.bf16.msra.mxu0 %v68
  %79 = vmatprep.subr.bf16.mxu0 0
  %80 = vmatpush1.bf16.msra.mxu0 0
  %81 = vmatprep.subr.bf16.mxu0 0
  %82 = vmatpush1.bf16.msra.mxu0 0
  %83 = vmatprep.subr.bf16.mxu0 0
  %84 = vmatpush1.bf16.msra.mxu0 0
  %85 = vmatprep.subr.bf16.mxu0 0
  %86 = vmatpush1.bf16.msra.mxu0 0
  %87 = vmatprep.subr.bf16.mxu0 0
  %88 = vmatpush1.bf16.msra.mxu0 0
  %89 = vmatprep.subr.bf16.mxu0 0
  %90 = vmatpush1.bf16.msra.mxu0 0
  %91 = vmatprep.subr.bf16.mxu0 0
  %92 = vmatpush1.bf16.msra.mxu0 0
  %93 = vmatprep.subr.bf16.mxu0 0
  %94 = vmatpush1.bf16.msra.mxu0 0
  %95 = vmatprep.subr.bf16.mxu0 0
  %96 = vmatpush1.bf16.msra.mxu0 0
  %97 = vmatprep.subr.bf16.mxu0 0
  %98 = vmatpush1.bf16.msra.mxu0 0
  %99 = vmatprep.subr.bf16.mxu0 0
  %100 = vmatpush1.bf16.msra.mxu0 0
  %101 = vmatprep.subr.bf16.mxu0 0
  %102 = vmatpush1.bf16.msra.mxu0 0
  %103 = vmatprep.subr.bf16.mxu0 0
  %104 = vmatpush1.bf16.msra.mxu0 0
  %105 = vmatprep.subr.bf16.mxu0 0
  %106 = vmatpush1.bf16.msra.mxu0 0
  %107 = vmatprep.mubr.bf16.mxu0 0
  %108 = vmatmul.mubr.bf16.gmra.mrb[0].mxu0 %v73
  %v109 = vpop.f32.mrb[0].mxu0
  %v110 = vadd.f32 %v57, %v109
  %v111 = vpop.f32.mrb[0].mxu0
  %v112 = vpop.f32.mrb[0].mxu0
  %v113 = vadd.f32 %v57, %v112
  %v114 = vpop.f32.mrb[0].mxu0
  %115 = vdwg.mxu0
  %v116 = vmul.f32 %v110, %v110
  %v117 = vmul.f32 %v113, %v113
  %v118 = vmul.f32 %v110, %v116
  %v119 = vmul.f32 %v113, %v117
  %v120 = vmul.f32 %v118, 0.044715
  %v121 = vmul.f32 %v119, 0.044715
  %v122 = vadd.f32 %v110, %v120
  %v123 = vadd.f32 %v113, %v121
  %v124 = vmul.f32 %v122, 0.7978846
  %v125 = vmul.f32 %v123, 0.7978846
  %v126 = vtanh.pop %v124
  %v127 = vtanh.pop %v125
  %v128 = vadd.f32 %v126, 1.0
  %v129 = vadd.f32 %v127, 1.0
  %v130 = vmul.f32 %v128, 0.5
  %v131 = vmul.f32 %v129, 0.5
  %v132 = vmul.f32 %v110, %v130
  %v133 = vmul.f32 %v113, %v131
  %v134 = vpack.c.bf16 %v133, %v132
  %v135 = vld [vmem:[#allocation2] sm:$0xff]
  %v136 = vld [vmem:[#allocation2 + $0x8] sm:$0xff]
  %v137 = vld [vmem:[%s5] sm:$0xf]
  %v138 = vld [vmem:[%s5 + $0x4] sm:$0xf]
  %v139 = vld [vmem:[%s5 + $0x8] sm:$0xf]
  %v140 = vld [vmem:[%s5 + $0xc] sm:$0xf]
  %v141 = vld [vmem:[%s5 + $0x10] sm:$0xf]
  %v142 = vld [vmem:[%s5 + $0x14] sm:$0xf]
  %v143 = vld [vmem:[%s5 + $0x18] sm:$0xf]
  %v144 = vld [vmem:[%s5 + $0x1c] sm:$0xf]
  %v153 = vunpack.c.l.b16 %v137
  %v154 = vunpack.c.l.b16 %v138
  %v155 = vunpack.c.l.b16 %v139
  %v156 = vunpack.c.l.b16 %v140
  %v157 = vunpack.c.l.b16 %v141
  %v158 = vunpack.c.l.b16 %v142
  %v159 = vunpack.c.l.b16 %v143
  %v160 = vunpack.c.l.b16 %v144
  %v161 = vpack.c.b16 %v154, %v153
  %v162 = vpack.c.b16 %v156, %v155
  %v163 = vpack.c.b16 %v158, %v157
  %v164 = vpack.c.b16 %v160, %v159
  %vm169 = vcmask 523264
  %v171 = vsel %vm169, %v134, 0
  %173 = vmatprep.subr.bf16.mxu0 0
  %174 = vmatpush1.bf16.msra.mxu0 %v161
  %175 = vmatprep.subr.bf16.mxu0 0
  %176 = vmatpush1.bf16.msra.mxu0 %v162
  %177 = vmatprep.subr.bf16.mxu0 0
  %178 = vmatpush1.bf16.msra.mxu0 %v163
  %179 = vmatprep.subr.bf16.mxu0 0
  %180 = vmatpush1.bf16.msra.mxu0 %v164
  %181 = vmatprep.subr.bf16.mxu0 0
  %182 = vmatpush1.bf16.msra.mxu0 0
  %183 = vmatprep.subr.bf16.mxu0 0
  %184 = vmatpush1.bf16.msra.mxu0 0
  %185 = vmatprep.subr.bf16.mxu0 0
  %186 = vmatpush1.bf16.msra.mxu0 0
  %187 = vmatprep.subr.bf16.mxu0 0
  %188 = vmatpush1.bf16.msra.mxu0 0
  %189 = vmatprep.subr.bf16.mxu0 0
  %190 = vmatpush1.bf16.msra.mxu0 0
  %191 = vmatprep.subr.bf16.mxu0 0
  %192 = vmatpush1.bf16.msra.mxu0 0
  %193 = vmatprep.subr.bf16.mxu0 0
  %194 = vmatpush1.bf16.msra.mxu0 0
  %195 = vmatprep.subr.bf16.mxu0 0
  %196 = vmatpush1.bf16.msra.mxu0 0
  %197 = vmatprep.subr.bf16.mxu0 0
  %198 = vmatpush1.bf16.msra.mxu0 0
  %199 = vmatprep.subr.bf16.mxu0 0
  %200 = vmatpush1.bf16.msra.mxu0 0
  %201 = vmatprep.subr.bf16.mxu0 0
  %202 = vmatpush1.bf16.msra.mxu0 0
  %203 = vmatprep.subr.bf16.mxu0 0
  %204 = vmatpush1.bf16.msra.mxu0 0
  %205 = vmatprep.mubr.bf16.mxu0 0
  %206 = vmatmul.mubr.bf16.gmra.mrb[0].mxu0 %v171
  %v207 = vpop.f32.mrb[0].mxu0
  %v208 = vadd.f32 0.0, %v207
  %v209 = vpop.f32.mrb[0].mxu0
  %v210 = vpop.f32.mrb[0].mxu0
  %v211 = vadd.f32 0.0, %v210
  %v212 = vpop.f32.mrb[0].mxu0
  %213 = vdwg.mxu0
  %v214 = vadd.f32 %v135, %v208
  %v215 = vadd.f32 %v136, %v211
  %216 = vst.msk [vmem:[#allocation2] sm:$0xff] %vm71, %v214
  %217 = vst.msk [vmem:[#allocation2 + $0x8] sm:$0xff] %vm71, %v215
  // Predicated region
  $region34: #{_lambda_.40} parent=0 // pred_check
    %p218 = pneg %p27
  $region35: #{_lambda_.40} parent=0 // pred_check_branch
    %220 = sbr.rel (%p218) target = $region37
  $region36: #{_lambda_.40} parent=0 // pred_region
    %v221 = vld [vmem:[#allocation2] sm:$0xff]
    %v222 = vld [vmem:[#allocation2 + $0x8] sm:$0xff]
    %223 = vst.msk [vmem:[%s7] sm:$0xff] %vm71, %v221
    %224 = vst.msk [vmem:[%s7 + $0x8] sm:$0xff] %vm71, %v222
  $region37: #{_lambda_.40} parent=0 // pred_fallthru
    _
  // Predicated region
  $region38: #{_lambda_.40} parent=0 // pred_check
    _
  $region39: #{_lambda_.40} parent=0 // pred_check_branch
    %226 = sbr.rel (0) target = $region41
  $region40: #{_lambda_.40} parent=0 // pred_region
    _
  $region41: #{_lambda_.40} parent=0 // pred_fallthru
    _
  // Predicated region
  $region42: #{_lambda_.40} parent=0 // pred_check
    _
  $region43: #{_lambda_.40} parent=0 // pred_check_branch
    %228 = sbr.rel (0) target = $region45
  $region44: #{_lambda_.40} parent=0 // pred_region
    _
  $region45: #{_lambda_.40} parent=0 // pred_fallthru
    _

// kernel: _lambda_.42
$region0: #{_lambda_.42}
  #allocation0 [shape = 'u32[]', space=smem, size = 0x4, offset = 0x4, fixed_abs, tag = 'smem constant byte address 0x4 - core index']
  #allocation1 [shape = 'u32[144,128]{1,0:T(1,128)}', space=vmem, size = 0x12000, scoped, tag = 'internal scratch']
  #allocation2 [shape = 'f32[8,512]{1,0:T(8,128)}', space=vmem, size = 0x4000, scoped, tag = 'scratch operand']
  %s0 = inlined_call_operand.vmem [shape: bf16[8,32], index: 0, kind: input, shape index: {}]
  %s1 = inlined_call_operand.vmem [shape: bf16[32,512], index: 1, kind: input, shape index: {}]
  %s2 = inlined_call_operand.vmem [shape: f32[1,512], index: 2, kind: input, shape index: {}]
  %s3 = inlined_call_operand.vmem [shape: f32[8,512], index: 3, kind: output, shape index: {}]
  %s4 = sld [smem:[#allocation0]]
  $region30: #{_lambda_.42} parent=0
    _
  %s6 = ssub.s32 1, %s4
  %s7 = scalar_select 0, %s6, %s4
  // Predicated region
  $region2: #{_lambda_.42} parent=0 // pred_check
    _
  $region3: #{_lambda_.42} parent=0 // pred_check_branch
    %9 = sbr.rel (0) target = $region5
  $region4: #{_lambda_.42} parent=0 // pred_region
    _
  $region5: #{_lambda_.42} parent=0 // pred_fallthru
    _
  // Predicated region
  $region6: #{_lambda_.42} parent=0 // pred_check
    _
  $region7: #{_lambda_.42} parent=0 // pred_check_branch
    %11 = sbr.rel (0) target = $region9
  $region8: #{_lambda_.42} parent=0 // pred_region
    _
  $region9: #{_lambda_.42} parent=0 // pred_fallthru
    _
  // Predicated region
  $region10: #{_lambda_.42} parent=0 // pred_check
    _
  $region11: #{_lambda_.42} parent=0 // pred_check_branch
    %13 = sbr.rel (0) target = $region13
  $region12: #{_lambda_.42} parent=0 // pred_region
    _
  $region13: #{_lambda_.42} parent=0 // pred_fallthru
    _
  %p15 = scmp.eq.s32.totalorder 0, 0
  // Predicated region
  $region14: #{_lambda_.42} parent=0 // pred_check
    %p16 = pneg %p15
  $region15: #{_lambda_.42} parent=0 // pred_check_branch
    %18 = sbr.rel (%p16) target = $region17
  $region16: #{_lambda_.42} parent=0 // pred_region
    %19 = vst [vmem:[#allocation2] sm:$0xff] 0.0
    %20 = vst [vmem:[#allocation2 + $0x8] sm:$0xff] 0.0
    %21 = vst [vmem:[#allocation2 + $0x10] sm:$0xff] 0.0
    %22 = vst [vmem:[#allocation2 + $0x18] sm:$0xff] 0.0
  $region17: #{_lambda_.42} parent=0 // pred_fallthru
    _
  %v23 = vld [vmem:[#allocation2] sm:$0xff]
  %v24 = vld [vmem:[#allocation2 + $0x8] sm:$0xff]
  %v25 = vld [vmem:[#allocation2 + $0x10] sm:$0xff]
  %v26 = vld [vmem:[#allocation2 + $0x18] sm:$0xff]
  %v27 = vld [vmem:[%s0] sm:$0xf]
  %v28 = vld [vmem:[%s1] sm:$0xff]
  %v29 = vld [vmem:[%s1 + $0x8] sm:$0xff]
  %v30 = vld [vmem:[%s1 + $0x10] sm:$0xff]
  %v31 = vld [vmem:[%s1 + $0x18] sm:$0xff]
  %v32 = vld [vmem:[%s1 + $0x20] sm:$0xff]
  %v33 = vld [vmem:[%s1 + $0x28] sm:$0xff]
  %v34 = vld [vmem:[%s1 + $0x30] sm:$0xff]
  %v35 = vld [vmem:[%s1 + $0x38] sm:$0xff]
  %v44 = vunpack.c.l.b16 %v28
  %v45 = vunpack.c.h.b16 %v28
  %v46 = vunpack.c.l.b16 %v29
  %v47 = vunpack.c.h.b16 %v29
  %v48 = vunpack.c.l.b16 %v30
  %v49 = vunpack.c.h.b16 %v30
  %v50 = vunpack.c.l.b16 %v31
  %v51 = vunpack.c.h.b16 %v31
  %v52 = vunpack.c.l.b16 %v32
  %v53 = vunpack.c.h.b16 %v32
  %v54 = vunpack.c.l.b16 %v33
  %v55 = vunpack.c.h.b16 %v33
  %v56 = vunpack.c.l.b16 %v34
  %v57 = vunpack.c.h.b16 %v34
  %v58 = vunpack.c.l.b16 %v35
  %v59 = vunpack.c.h.b16 %v35
  %v60 = vpack.c.b16 %v48, %v44
  %v61 = vpack.c.b16 %v49, %v45
  %v62 = vpack.c.b16 %v50, %v46
  %v63 = vpack.c.b16 %v51, %v47
  %v64 = vpack.c.b16 %v56, %v52
  %v65 = vpack.c.b16 %v57, %v53
  %v66 = vpack.c.b16 %v58, %v54
  %v67 = vpack.c.b16 %v59, %v55
  %vm76 = vcmask 261120
  %v78 = vsel %vm76, %v27, 0
  %80 = vmatprep.subr.bf16.mxu0 %v61
  %81 = vmatpush1.bf16.msra.mxu0 %v60
  %82 = vmatprep.subr.bf16.mxu0 %v65
  %83 = vmatpush1.bf16.msra.mxu0 %v64
  %84 = vmatprep.subr.bf16.mxu0 0
  %85 = vmatpush1.bf16.msra.mxu0 0
  %86 = vmatprep.subr.bf16.mxu0 0
  %87 = vmatpush1.bf16.msra.mxu0 0
  %88 = vmatprep.subr.bf16.mxu0 0
  %89 = vmatpush1.bf16.msra.mxu0 0
  %90 = vmatprep.subr.bf16.mxu0 0
  %91 = vmatpush1.bf16.msra.mxu0 0
  %92 = vmatprep.subr.bf16.mxu0 0
  %93 = vmatpush1.bf16.msra.mxu0 0
  %94 = vmatprep.subr.bf16.mxu0 0
  %95 = vmatpush1.bf16.msra.mxu0 0
  %96 = vmatprep.subr.bf16.mxu0 0
  %97 = vmatpush1.bf16.msra.mxu0 0
  %98 = vmatprep.subr.bf16.mxu0 0
  %99 = vmatpush1.bf16.msra.mxu0 0
  %100 = vmatprep.subr.bf16.mxu0 0
  %101 = vmatpush1.bf16.msra.mxu0 0
  %102 = vmatprep.subr.bf16.mxu0 0
  %103 = vmatpush1.bf16.msra.mxu0 0
  %104 = vmatprep.subr.bf16.mxu0 0
  %105 = vmatpush1.bf16.msra.mxu0 0
  %106 = vmatprep.subr.bf16.mxu0 0
  %107 = vmatpush1.bf16.msra.mxu0 0
  %108 = vmatprep.subr.bf16.mxu0 0
  %109 = vmatpush1.bf16.msra.mxu0 0
  %110 = vmatprep.subr.bf16.mxu0 0
  %111 = vmatpush1.bf16.msra.mxu0 0
  %112 = vmatprep.mubr.bf16.mxu0 0
  %113 = vmatmul.mubr.bf16.gmra.mrb[0].mxu0 %v78
  %v114 = vpop.f32.mrb[0].mxu0
  %v115 = vadd.f32 0.0, %v114
  %v116 = vpop.f32.mrb[0].mxu0
  %v117 = vadd.f32 0.0, %v116
  %v118 = vpop.f32.mrb[0].mxu0
  %v119 = vpop.f32.mrb[0].mxu0
  %120 = vdwg.mxu0
  %121 = vmatprep.subr.bf16.mxu0 %v63
  %122 = vmatpush1.bf16.msra.mxu0 %v62
  %123 = vmatprep.subr.bf16.mxu0 %v67
  %124 = vmatpush1.bf16.msra.mxu0 %v66
  %125 = vmatprep.subr.bf16.mxu0 0
  %126 = vmatpush1.bf16.msra.mxu0 0
  %127 = vmatprep.subr.bf16.mxu0 0
  %128 = vmatpush1.bf16.msra.mxu0 0
  %129 = vmatprep.subr.bf16.mxu0 0
  %130 = vmatpush1.bf16.msra.mxu0 0
  %131 = vmatprep.subr.bf16.mxu0 0
  %132 = vmatpush1.bf16.msra.mxu0 0
  %133 = vmatprep.subr.bf16.mxu0 0
  %134 = vmatpush1.bf16.msra.mxu0 0
  %135 = vmatprep.subr.bf16.mxu0 0
  %136 = vmatpush1.bf16.msra.mxu0 0
  %137 = vmatprep.subr.bf16.mxu0 0
  %138 = vmatpush1.bf16.msra.mxu0 0
  %139 = vmatprep.subr.bf16.mxu0 0
  %140 = vmatpush1.bf16.msra.mxu0 0
  %141 = vmatprep.subr.bf16.mxu0 0
  %142 = vmatpush1.bf16.msra.mxu0 0
  %143 = vmatprep.subr.bf16.mxu0 0
  %144 = vmatpush1.bf16.msra.mxu0 0
  %145 = vmatprep.subr.bf16.mxu0 0
  %146 = vmatpush1.bf16.msra.mxu0 0
  %147 = vmatprep.subr.bf16.mxu0 0
  %148 = vmatpush1.bf16.msra.mxu0 0
  %149 = vmatprep.subr.bf16.mxu0 0
  %150 = vmatpush1.bf16.msra.mxu0 0
  %151 = vmatprep.subr.bf16.mxu0 0
  %152 = vmatpush1.bf16.msra.mxu0 0
  %153 = vmatprep.mubr.bf16.mxu0 0
  %154 = vmatmul.mubr.bf16.gmra.mrb[0].mxu0 %v78
  %v155 = vpop.f32.mrb[0].mxu0
  %v156 = vadd.f32 0.0, %v155
  %v157 = vpop.f32.mrb[0].mxu0
  %v158 = vadd.f32 0.0, %v157
  %v159 = vpop.f32.mrb[0].mxu0
  %v160 = vpop.f32.mrb[0].mxu0
  %161 = vdwg.mxu0
  %v162 = vadd.f32 %v23, %v115
  %v163 = vadd.f32 %v24, %v117
  %v164 = vadd.f32 %v25, %v156
  %v165 = vadd.f32 %v26, %v158
  %166 = vst [vmem:[#allocation2] sm:$0xff] %v162
  %167 = vst [vmem:[#allocation2 + $0x8] sm:$0xff] %v163
  %168 = vst [vmem:[#allocation2 + $0x10] sm:$0xff] %v164
  %169 = vst [vmem:[#allocation2 + $0x18] sm:$0xff] %v165
  // Predicated region
  $region18: #{_lambda_.42} parent=0 // pred_check
    %p170 = pneg %p15
  $region19: #{_lambda_.42} parent=0 // pred_check_branch
    %172 = sbr.rel (%p170) target = $region21
  $region20: #{_lambda_.42} parent=0 // pred_region
    %v173 = vld [vmem:[#allocation2] sm:$0xff]
    %v174 = vld [vmem:[#allocation2 + $0x8] sm:$0xff]
    %v175 = vld [vmem:[#allocation2 + $0x10] sm:$0xff]
    %v176 = vld [vmem:[#allocation2 + $0x18] sm:$0xff]
    %v177 = vld [vmem:[%s2] sm:$0xf]
    %v179 = vlaneseq
    %v180 = vshrl.u32 %v179, 7
    %v181 = vsub.s32 0, %v180
    %v182 = vrot.slane %v177, %v181
    %v183 = vlaneseq
    %v184 = vshrl.u32 %v183, 7
    %v185 = vsub.s32 1, %v184
    %v186 = vrot.slane %v177, %v185
    %v187 = vlaneseq
    %v188 = vshrl.u32 %v187, 7
    %v189 = vsub.s32 2, %v188
    %v190 = vrot.slane %v177, %v189
    %v191 = vlaneseq
    %v192 = vshrl.u32 %v191, 7
    %v193 = vsub.s32 3, %v192
    %v194 = vrot.slane %v177, %v193
    %v199 = vadd.f32 %v173, %v182
    %v200 = vadd.f32 %v174, %v186
    %v201 = vadd.f32 %v175, %v190
    %v202 = vadd.f32 %v176, %v194
    %203 = vst [vmem:[%s3] sm:$0xff] %v199
    %204 = vst [vmem:[%s3 + $0x8] sm:$0xff] %v200
    %205 = vst [vmem:[%s3 + $0x10] sm:$0xff] %v201
    %206 = vst [vmem:[%s3 + $0x18] sm:$0xff] %v202
  $region21: #{_lambda_.42} parent=0 // pred_fallthru
    _
  // Predicated region
  $region22: #{_lambda_.42} parent=0 // pred_check
    _
  $region23: #{_lambda_.42} parent=0 // pred_check_branch
    %208 = sbr.rel (0) target = $region25
  $region24: #{_lambda_.42} parent=0 // pred_region
    _
  $region25: #{_lambda_.42} parent=0 // pred_fallthru
    _
  // Predicated region
  $region26: #{_lambda_.42} parent=0 // pred_check
    _
  $region27: #{_lambda_.42} parent=0 // pred_check_branch
    %210 = sbr.rel (0) target = $region29
  $region28: #{_lambda_.42} parent=0 // pred_region
    _
  $region29: #{_lambda_.42} parent=0 // pred_fallthru
    _

// kernel: _lambda_.43
$region0: #{_lambda_.43}
  #allocation0 [shape = 'u32[]', space=smem, size = 0x4, offset = 0x4, fixed_abs, tag = 'smem constant byte address 0x4 - core index']
  #allocation1 [shape = 'u32[144,128]{1,0:T(1,128)}', space=vmem, size = 0x12000, scoped, tag = 'internal scratch']
  #allocation2 [shape = 'f32[8,32]{1,0:T(8,128)}', space=vmem, size = 0x1000, scoped, tag = 'scratch operand']
  %s0 = inlined_call_operand.vmem [shape: bf16[8,32], index: 0, kind: input, shape index: {}]
  %s1 = inlined_call_operand.vmem [shape: bf16[32,32], index: 1, kind: input, shape index: {}]
  %s2 = inlined_call_operand.vmem [shape: f32[1,32], index: 2, kind: input, shape index: {}]
  %s3 = inlined_call_operand.vmem [shape: f32[8,32], index: 3, kind: output, shape index: {}]
  %s4 = sld [smem:[#allocation0]]
  $region30: #{_lambda_.43} parent=0
    _
  %s6 = ssub.s32 1, %s4
  %s7 = scalar_select 0, %s6, %s4
  // Predicated region
  $region2: #{_lambda_.43} parent=0 // pred_check
    _
  $region3: #{_lambda_.43} parent=0 // pred_check_branch
    %9 = sbr.rel (0) target = $region5
  $region4: #{_lambda_.43} parent=0 // pred_region
    _
  $region5: #{_lambda_.43} parent=0 // pred_fallthru
    _
  // Predicated region
  $region6: #{_lambda_.43} parent=0 // pred_check
    _
  $region7: #{_lambda_.43} parent=0 // pred_check_branch
    %11 = sbr.rel (0) target = $region9
  $region8: #{_lambda_.43} parent=0 // pred_region
    _
  $region9: #{_lambda_.43} parent=0 // pred_fallthru
    _
  // Predicated region
  $region10: #{_lambda_.43} parent=0 // pred_check
    _
  $region11: #{_lambda_.43} parent=0 // pred_check_branch
    %13 = sbr.rel (0) target = $region13
  $region12: #{_lambda_.43} parent=0 // pred_region
    _
  $region13: #{_lambda_.43} parent=0 // pred_fallthru
    _
  %p15 = scmp.eq.s32.totalorder 0, 0
  // Predicated region
  $region14: #{_lambda_.43} parent=0 // pred_check
    %p16 = pneg %p15
  $region15: #{_lambda_.43} parent=0 // pred_check_branch
    %18 = sbr.rel (%p16) target = $region17
  $region16: #{_lambda_.43} parent=0 // pred_region
    %vm19 = vcmask 261120
    %20 = vst.msk [vmem:[#allocation2] sm:$0xff] %vm19, 0.0
  $region17: #{_lambda_.43} parent=0 // pred_fallthru
    _
  %v21 = vld [vmem:[#allocation2] sm:$0xff]
  %v22 = vld [vmem:[%s0] sm:$0xf]
  %v23 = vld [vmem:[%s1] sm:$0xf]
  %v24 = vld [vmem:[%s1 + $0x4] sm:$0xf]
  %v25 = vld [vmem:[%s1 + $0x8] sm:$0xf]
  %v26 = vld [vmem:[%s1 + $0xc] sm:$0xf]
  %v31 = vunpack.c.l.b16 %v23
  %v32 = vunpack.c.l.b16 %v24
  %v33 = vunpack.c.l.b16 %v25
  %v34 = vunpack.c.l.b16 %v26
  %v35 = vpack.c.b16 %v32, %v31
  %v36 = vpack.c.b16 %v34, %v33
  %vm39 = vcmask 261120
  %v41 = vsel %vm39, %v22, 0
  %43 = vmatprep.subr.bf16.mxu0 0
  %44 = vmatpush1.bf16.msra.mxu0 %v35
  %45 = vmatprep.subr.bf16.mxu0 0
  %46 = vmatpush1.bf16.msra.mxu0 %v36
  %47 = vmatprep.subr.bf16.mxu0 0
  %48 = vmatpush1.bf16.msra.mxu0 0
  %49 = vmatprep.subr.bf16.mxu0 0
  %50 = vmatpush1.bf16.msra.mxu0 0
  %51 = vmatprep.subr.bf16.mxu0 0
  %52 = vmatpush1.bf16.msra.mxu0 0
  %53 = vmatprep.subr.bf16.mxu0 0
  %54 = vmatpush1.bf16.msra.mxu0 0
  %55 = vmatprep.subr.bf16.mxu0 0
  %56 = vmatpush1.bf16.msra.mxu0 0
  %57 = vmatprep.subr.bf16.mxu0 0
  %58 = vmatpush1.bf16.msra.mxu0 0
  %59 = vmatprep.subr.bf16.mxu0 0
  %60 = vmatpush1.bf16.msra.mxu0 0
  %61 = vmatprep.subr.bf16.mxu0 0
  %62 = vmatpush1.bf16.msra.mxu0 0
  %63 = vmatprep.subr.bf16.mxu0 0
  %64 = vmatpush1.bf16.msra.mxu0 0
  %65 = vmatprep.subr.bf16.mxu0 0
  %66 = vmatpush1.bf16.msra.mxu0 0
  %67 = vmatprep.subr.bf16.mxu0 0
  %68 = vmatpush1.bf16.msra.mxu0 0
  %69 = vmatprep.subr.bf16.mxu0 0
  %70 = vmatpush1.bf16.msra.mxu0 0
  %71 = vmatprep.subr.bf16.mxu0 0
  %72 = vmatpush1.bf16.msra.mxu0 0
  %73 = vmatprep.subr.bf16.mxu0 0
  %74 = vmatpush1.bf16.msra.mxu0 0
  %75 = vmatprep.mubr.bf16.mxu0 0
  %76 = vmatmul.mubr.bf16.gmra.mrb[0].mxu0 %v41
  %v77 = vpop.f32.mrb[0].mxu0
  %v78 = vadd.f32 0.0, %v77
  %v79 = vpop.f32.mrb[0].mxu0
  %v80 = vpop.f32.mrb[0].mxu0
  %v81 = vpop.f32.mrb[0].mxu0
  %82 = vdwg.mxu0
  %v83 = vadd.f32 %v21, %v78
  %84 = vst.msk [vmem:[#allocation2] sm:$0xff] %vm39, %v83
  // Predicated region
  $region18: #{_lambda_.43} parent=0 // pred_check
    %p85 = pneg %p15
  $region19: #{_lambda_.43} parent=0 // pred_check_branch
    %87 = sbr.rel (%p85) target = $region21
  $region20: #{_lambda_.43} parent=0 // pred_region
    %v88 = vld [vmem:[#allocation2] sm:$0xff]
    %v89 = vld [vmem:[%s2] sm:$0x1]
    %v91 = vlaneseq
    %v92 = vshrl.u32 %v91, 7
    %v93 = vsub.s32 0, %v92
    %v94 = vrot.slane %v89, %v93
    %v96 = vadd.f32 %v88, %v94
    %97 = vst.msk [vmem:[%s3] sm:$0xff] %vm39, %v96
  $region21: #{_lambda_.43} parent=0 // pred_fallthru
    _
  // Predicated region
  $region22: #{_lambda_.43} parent=0 // pred_check
    _
  $region23: #{_lambda_.43} parent=0 // pred_check_branch
    %99 = sbr.rel (0) target = $region25
  $region24: #{_lambda_.43} parent=0 // pred_region
    _
  $region25: #{_lambda_.43} parent=0 // pred_fallthru
    _
  // Predicated region
  $region26: #{_lambda_.43} parent=0 // pred_check
    _
  $region27: #{_lambda_.43} parent=0 // pred_check_branch
    %101 = sbr.rel (0) target = $region29
  $region28: #{_lambda_.43} parent=0 // pred_region
    _
  $region29: #{_lambda_.43} parent=0 // pred_fallthru
    _

// kernel: _lambda_.44
$region0: #{_lambda_.44}
  #allocation0 [shape = 'u32[]', space=smem, size = 0x4, offset = 0x4, fixed_abs, tag = 'smem constant byte address 0x4 - core index']
  #allocation1 [shape = 'u32[144,128]{1,0:T(1,128)}', space=vmem, size = 0x12000, scoped, tag = 'internal scratch']
  #allocation2 [shape = 'f32[32,32]{1,0:T(8,128)}', space=vmem, size = 0x4000, scoped, tag = 'scratch operand']
  %s0 = inlined_call_operand.vmem [shape: bf16[32,48], index: 0, kind: input, shape index: {}]
  %s1 = inlined_call_operand.vmem [shape: bf16[48,32], index: 1, kind: input, shape index: {}]
  %s2 = inlined_call_operand.vmem [shape: f32[1,32], index: 2, kind: input, shape index: {}]
  %s3 = inlined_call_operand.vmem [shape: f32[32,32], index: 3, kind: output, shape index: {}]
  %s4 = sld [smem:[#allocation0]]
  $region30: #{_lambda_.44} parent=0
    _
  %s6 = ssub.s32 1, %s4
  %s7 = scalar_select 0, %s6, %s4
  // Predicated region
  $region2: #{_lambda_.44} parent=0 // pred_check
    _
  $region3: #{_lambda_.44} parent=0 // pred_check_branch
    %9 = sbr.rel (0) target = $region5
  $region4: #{_lambda_.44} parent=0 // pred_region
    _
  $region5: #{_lambda_.44} parent=0 // pred_fallthru
    _
  // Predicated region
  $region6: #{_lambda_.44} parent=0 // pred_check
    _
  $region7: #{_lambda_.44} parent=0 // pred_check_branch
    %11 = sbr.rel (0) target = $region9
  $region8: #{_lambda_.44} parent=0 // pred_region
    _
  $region9: #{_lambda_.44} parent=0 // pred_fallthru
    _
  // Predicated region
  $region10: #{_lambda_.44} parent=0 // pred_check
    _
  $region11: #{_lambda_.44} parent=0 // pred_check_branch
    %13 = sbr.rel (0) target = $region13
  $region12: #{_lambda_.44} parent=0 // pred_region
    _
  $region13: #{_lambda_.44} parent=0 // pred_fallthru
    _
  %p15 = scmp.eq.s32.totalorder 0, 0
  // Predicated region
  $region14: #{_lambda_.44} parent=0 // pred_check
    %p16 = pneg %p15
  $region15: #{_lambda_.44} parent=0 // pred_check_branch
    %18 = sbr.rel (%p16) target = $region17
  $region16: #{_lambda_.44} parent=0 // pred_region
    %vm19 = vcmask 261120
    %20 = vst.msk [vmem:[#allocation2] sm:$0xff] %vm19, 0.0
    %21 = vst.msk [vmem:[#allocation2 + $0x8] sm:$0xff] %vm19, 0.0
    %22 = vst.msk [vmem:[#allocation2 + $0x10] sm:$0xff] %vm19, 0.0
    %23 = vst.msk [vmem:[#allocation2 + $0x18] sm:$0xff] %vm19, 0.0
  $region17: #{_lambda_.44} parent=0 // pred_fallthru
    _
  %v24 = vld [vmem:[#allocation2] sm:$0xff]
  %v25 = vld [vmem:[#allocation2 + $0x8] sm:$0xff]
  %v26 = vld [vmem:[#allocation2 + $0x10] sm:$0xff]
  %v27 = vld [vmem:[#allocation2 + $0x18] sm:$0xff]
  %v28 = vld [vmem:[%s0] sm:$0xf]
  %v29 = vld [vmem:[%s0 + $0x4] sm:$0xf]
  %v30 = vld [vmem:[%s0 + $0x8] sm:$0xf]
  %v31 = vld [vmem:[%s0 + $0xc] sm:$0xf]
  %v32 = vld [vmem:[%s1] sm:$0xf]
  %v33 = vld [vmem:[%s1 + $0x4] sm:$0xf]
  %v34 = vld [vmem:[%s1 + $0x8] sm:$0xf]
  %v35 = vld [vmem:[%s1 + $0xc] sm:$0xf]
  %v36 = vld [vmem:[%s1 + $0x10] sm:$0xf]
  %v37 = vld [vmem:[%s1 + $0x14] sm:$0xf]
  %v42 = vunpack.c.l.b16 %v28
  %v43 = vunpack.c.l.b16 %v29
  %v44 = vunpack.c.l.b16 %v30
  %v45 = vunpack.c.l.b16 %v31
  %v46 = vpack.c.b16 %v43, %v42
  %v47 = vpack.c.b16 %v45, %v44
  %v54 = vunpack.c.l.b16 %v32
  %v55 = vunpack.c.l.b16 %v33
  %v56 = vunpack.c.l.b16 %v34
  %v57 = vunpack.c.l.b16 %v35
  %v58 = vunpack.c.l.b16 %v36
  %v59 = vunpack.c.l.b16 %v37
  %v60 = vpack.c.b16 %v55, %v54
  %v61 = vpack.c.b16 %v57, %v56
  %v62 = vpack.c.b16 %v59, %v58
  %vm66 = vcmask 392192
  %v68 = vsel %vm66, %v46, 0
  %v71 = vsel %vm66, %v47, 0
  %73 = vmatprep.subr.bf16.mxu0 0
  %74 = vmatpush1.bf16.msra.mxu0 %v60
  %75 = vmatprep.subr.bf16.mxu0 0
  %76 = vmatpush1.bf16.msra.mxu0 %v61
  %77 = vmatprep.subr.bf16.mxu0 0
  %78 = vmatpush1.bf16.msra.mxu0 %v62
  %79 = vmatprep.subr.bf16.mxu0 0
  %80 = vmatpush1.bf16.msra.mxu0 0
  %81 = vmatprep.subr.bf16.mxu0 0
  %82 = vmatpush1.bf16.msra.mxu0 0
  %83 = vmatprep.subr.bf16.mxu0 0
  %84 = vmatpush1.bf16.msra.mxu0 0
  %85 = vmatprep.subr.bf16.mxu0 0
  %86 = vmatpush1.bf16.msra.mxu0 0
  %87 = vmatprep.subr.bf16.mxu0 0
  %88 = vmatpush1.bf16.msra.mxu0 0
  %89 = vmatprep.subr.bf16.mxu0 0
  %90 = vmatpush1.bf16.msra.mxu0 0
  %91 = vmatprep.subr.bf16.mxu0 0
  %92 = vmatpush1.bf16.msra.mxu0 0
  %93 = vmatprep.subr.bf16.mxu0 0
  %94 = vmatpush1.bf16.msra.mxu0 0
  %95 = vmatprep.subr.bf16.mxu0 0
  %96 = vmatpush1.bf16.msra.mxu0 0
  %97 = vmatprep.subr.bf16.mxu0 0
  %98 = vmatpush1.bf16.msra.mxu0 0
  %99 = vmatprep.subr.bf16.mxu0 0
  %100 = vmatpush1.bf16.msra.mxu0 0
  %101 = vmatprep.subr.bf16.mxu0 0
  %102 = vmatpush1.bf16.msra.mxu0 0
  %103 = vmatprep.subr.bf16.mxu0 0
  %104 = vmatpush1.bf16.msra.mxu0 0
  %105 = vmatprep.mubr.bf16.mxu0 0
  %106 = vmatmul.mubr.bf16.gmra.mrb[0].mxu0 %v68
  %v107 = vpop.f32.mrb[0].mxu0
  %v108 = vadd.f32 0.0, %v107
  %v109 = vpop.f32.mrb[0].mxu0
  %v110 = vpop.f32.mrb[0].mxu0
  %v111 = vadd.f32 0.0, %v110
  %v112 = vpop.f32.mrb[0].mxu0
  %113 = vmatprep.mubr.bf16.mxu0 0
  %114 = vmatmul.mubr.bf16.gmra.mrb[0].mxu0 %v71
  %v115 = vpop.f32.mrb[0].mxu0
  %v116 = vadd.f32 0.0, %v115
  %v117 = vpop.f32.mrb[0].mxu0
  %v118 = vpop.f32.mrb[0].mxu0
  %v119 = vadd.f32 0.0, %v118
  %v120 = vpop.f32.mrb[0].mxu0
  %121 = vdwg.mxu0
  %v122 = vadd.f32 %v24, %v108
  %v123 = vadd.f32 %v25, %v111
  %v124 = vadd.f32 %v26, %v116
  %v125 = vadd.f32 %v27, %v119
  %vm126 = vcmask 261120
  %127 = vst.msk [vmem:[#allocation2] sm:$0xff] %vm126, %v122
  %128 = vst.msk [vmem:[#allocation2 + $0x8] sm:$0xff] %vm126, %v123
  %129 = vst.msk [vmem:[#allocation2 + $0x10] sm:$0xff] %vm126, %v124
  %130 = vst.msk [vmem:[#allocation2 + $0x18] sm:$0xff] %vm126, %v125
  // Predicated region
  $region18: #{_lambda_.44} parent=0 // pred_check
    %p131 = pneg %p15
  $region19: #{_lambda_.44} parent=0 // pred_check_branch
    %133 = sbr.rel (%p131) target = $region21
  $region20: #{_lambda_.44} parent=0 // pred_region
    %v134 = vld [vmem:[#allocation2] sm:$0xff]
    %v135 = vld [vmem:[#allocation2 + $0x8] sm:$0xff]
    %v136 = vld [vmem:[#allocation2 + $0x10] sm:$0xff]
    %v137 = vld [vmem:[#allocation2 + $0x18] sm:$0xff]
    %v138 = vld [vmem:[%s2] sm:$0x1]
    %v140 = vlaneseq
    %v141 = vshrl.u32 %v140, 7
    %v142 = vsub.s32 0, %v141
    %v143 = vrot.slane %v138, %v142
    %v145 = vadd.f32 %v134, %v143
    %v146 = vadd.f32 %v135, %v143
    %v147 = vadd.f32 %v136, %v143
    %v148 = vadd.f32 %v137, %v143
    %149 = vst.msk [vmem:[%s3] sm:$0xff] %vm126, %v145
    %150 = vst.msk [vmem:[%s3 + $0x8] sm:$0xff] %vm126, %v146
    %151 = vst.msk [vmem:[%s3 + $0x10] sm:$0xff] %vm126, %v147
    %152 = vst.msk [vmem:[%s3 + $0x18] sm:$0xff] %vm126, %v148
  $region21: #{_lambda_.44} parent=0 // pred_fallthru
    _
  // Predicated region
  $region22: #{_lambda_.44} parent=0 // pred_check
    _
  $region23: #{_lambda_.44} parent=0 // pred_check_branch
    %154 = sbr.rel (0) target = $region25
  $region24: #{_lambda_.44} parent=0 // pred_region
    _
  $region25: #{_lambda_.44} parent=0 // pred_fallthru
    _
  // Predicated region
  $region26: #{_lambda_.44} parent=0 // pred_check
    _
  $region27: #{_lambda_.44} parent=0 // pred_check_branch
    %156 = sbr.rel (0) target = $region29
  $region28: #{_lambda_.44} parent=0 // pred_region
    _
  $region29: #{_lambda_.44} parent=0 // pred_fallthru
    _

// kernel: _lambda_.70
$region0: #{_lambda_.70}
  #allocation0 [shape = 'u32[]', space=smem, size = 0x4, offset = 0x4, fixed_abs, tag = 'smem constant byte address 0x4 - core index']
  #allocation1 [shape = 'u32[144,128]{1,0:T(1,128)}', space=vmem, size = 0x12000, scoped, tag = 'internal scratch']
  #allocation2 [shape = 'f32[32,6]{1,0:T(8,128)}', space=vmem, size = 0x4000, scoped, tag = 'scratch operand']
  %s0 = inlined_call_operand.vmem [shape: bf16[32,32], index: 0, kind: input, shape index: {}]
  %s1 = inlined_call_operand.vmem [shape: bf16[32,6], index: 1, kind: input, shape index: {}]
  %s2 = inlined_call_operand.vmem [shape: f32[1,6], index: 2, kind: input, shape index: {}]
  %s3 = inlined_call_operand.vmem [shape: f32[32,6], index: 3, kind: output, shape index: {}]
  %s4 = sld [smem:[#allocation0]]
  $region30: #{_lambda_.70} parent=0
    _
  %s6 = ssub.s32 1, %s4
  %s7 = scalar_select 0, %s6, %s4
  // Predicated region
  $region2: #{_lambda_.70} parent=0 // pred_check
    _
  $region3: #{_lambda_.70} parent=0 // pred_check_branch
    %9 = sbr.rel (0) target = $region5
  $region4: #{_lambda_.70} parent=0 // pred_region
    _
  $region5: #{_lambda_.70} parent=0 // pred_fallthru
    _
  // Predicated region
  $region6: #{_lambda_.70} parent=0 // pred_check
    _
  $region7: #{_lambda_.70} parent=0 // pred_check_branch
    %11 = sbr.rel (0) target = $region9
  $region8: #{_lambda_.70} parent=0 // pred_region
    _
  $region9: #{_lambda_.70} parent=0 // pred_fallthru
    _
  // Predicated region
  $region10: #{_lambda_.70} parent=0 // pred_check
    _
  $region11: #{_lambda_.70} parent=0 // pred_check_branch
    %13 = sbr.rel (0) target = $region13
  $region12: #{_lambda_.70} parent=0 // pred_region
    _
  $region13: #{_lambda_.70} parent=0 // pred_fallthru
    _
  %p15 = scmp.eq.s32.totalorder 0, 0
  // Predicated region
  $region14: #{_lambda_.70} parent=0 // pred_check
    %p16 = pneg %p15
  $region15: #{_lambda_.70} parent=0 // pred_check_branch
    %18 = sbr.rel (%p16) target = $region17
  $region16: #{_lambda_.70} parent=0 // pred_region
    %vm19 = vcmask 48128
    %20 = vst.msk [vmem:[#allocation2] sm:$0xff] %vm19, 0.0
    %21 = vst.msk [vmem:[#allocation2 + $0x8] sm:$0xff] %vm19, 0.0
    %22 = vst.msk [vmem:[#allocation2 + $0x10] sm:$0xff] %vm19, 0.0
    %23 = vst.msk [vmem:[#allocation2 + $0x18] sm:$0xff] %vm19, 0.0
  $region17: #{_lambda_.70} parent=0 // pred_fallthru
    _
  %v24 = vld [vmem:[#allocation2] sm:$0xff]
  %v25 = vld [vmem:[#allocation2 + $0x8] sm:$0xff]
  %v26 = vld [vmem:[#allocation2 + $0x10] sm:$0xff]
  %v27 = vld [vmem:[#allocation2 + $0x18] sm:$0xff]
  %v28 = vld [vmem:[%s0] sm:$0xf]
  %v29 = vld [vmem:[%s0 + $0x4] sm:$0xf]
  %v30 = vld [vmem:[%s0 + $0x8] sm:$0xf]
  %v31 = vld [vmem:[%s0 + $0xc] sm:$0xf]
  %v32 = vld [vmem:[%s1] sm:$0xf]
  %v33 = vld [vmem:[%s1 + $0x4] sm:$0xf]
  %v34 = vld [vmem:[%s1 + $0x8] sm:$0xf]
  %v35 = vld [vmem:[%s1 + $0xc] sm:$0xf]
  %v40 = vunpack.c.l.b16 %v28
  %v41 = vunpack.c.l.b16 %v29
  %v42 = vunpack.c.l.b16 %v30
  %v43 = vunpack.c.l.b16 %v31
  %v44 = vpack.c.b16 %v41, %v40
  %v45 = vpack.c.b16 %v43, %v42
  %v50 = vunpack.c.l.b16 %v32
  %v51 = vunpack.c.l.b16 %v33
  %v52 = vunpack.c.l.b16 %v34
  %v53 = vunpack.c.l.b16 %v35
  %v54 = vpack.c.b16 %v51, %v50
  %v55 = vpack.c.b16 %v53, %v52
  %vm58 = vcmask 261120
  %v60 = vsel %vm58, %v44, 0
  %v63 = vsel %vm58, %v45, 0
  %65 = vmatprep.subr.bf16.mxu0 0
  %66 = vmatpush1.bf16.msra.mxu0 %v54
  %67 = vmatprep.subr.bf16.mxu0 0
  %68 = vmatpush1.bf16.msra.mxu0 %v55
  %69 = vmatprep.subr.bf16.mxu0 0
  %70 = vmatpush1.bf16.msra.mxu0 0
  %71 = vmatprep.subr.bf16.mxu0 0
  %72 = vmatpush1.bf16.msra.mxu0 0
  %73 = vmatprep.subr.bf16.mxu0 0
  %74 = vmatpush1.bf16.msra.mxu0 0
  %75 = vmatprep.subr.bf16.mxu0 0
  %76 = vmatpush1.bf16.msra.mxu0 0
  %77 = vmatprep.subr.bf16.mxu0 0
  %78 = vmatpush1.bf16.msra.mxu0 0
  %79 = vmatprep.subr.bf16.mxu0 0
  %80 = vmatpush1.bf16.msra.mxu0 0
  %81 = vmatprep.subr.bf16.mxu0 0
  %82 = vmatpush1.bf16.msra.mxu0 0
  %83 = vmatprep.subr.bf16.mxu0 0
  %84 = vmatpush1.bf16.msra.mxu0 0
  %85 = vmatprep.subr.bf16.mxu0 0
  %86 = vmatpush1.bf16.msra.mxu0 0
  %87 = vmatprep.subr.bf16.mxu0 0
  %88 = vmatpush1.bf16.msra.mxu0 0
  %89 = vmatprep.subr.bf16.mxu0 0
  %90 = vmatpush1.bf16.msra.mxu0 0
  %91 = vmatprep.subr.bf16.mxu0 0
  %92 = vmatpush1.bf16.msra.mxu0 0
  %93 = vmatprep.subr.bf16.mxu0 0
  %94 = vmatpush1.bf16.msra.mxu0 0
  %95 = vmatprep.subr.bf16.mxu0 0
  %96 = vmatpush1.bf16.msra.mxu0 0
  %97 = vmatprep.mubr.bf16.mxu0 0
  %98 = vmatmul.mubr.bf16.gmra.mrb[0].mxu0 %v60
  %v99 = vpop.f32.mrb[0].mxu0
  %v100 = vadd.f32 0.0, %v99
  %v101 = vpop.f32.mrb[0].mxu0
  %v102 = vpop.f32.mrb[0].mxu0
  %v103 = vadd.f32 0.0, %v102
  %v104 = vpop.f32.mrb[0].mxu0
  %105 = vmatprep.mubr.bf16.mxu0 0
  %106 = vmatmul.mubr.bf16.gmra.mrb[0].mxu0 %v63
  %v107 = vpop.f32.mrb[0].mxu0
  %v108 = vadd.f32 0.0, %v107
  %v109 = vpop.f32.mrb[0].mxu0
  %v110 = vpop.f32.mrb[0].mxu0
  %v111 = vadd.f32 0.0, %v110
  %v112 = vpop.f32.mrb[0].mxu0
  %113 = vdwg.mxu0
  %v114 = vadd.f32 %v24, %v100
  %v115 = vadd.f32 %v25, %v103
  %v116 = vadd.f32 %v26, %v108
  %v117 = vadd.f32 %v27, %v111
  %vm118 = vcmask 48128
  %119 = vst.msk [vmem:[#allocation2] sm:$0xff] %vm118, %v114
  %120 = vst.msk [vmem:[#allocation2 + $0x8] sm:$0xff] %vm118, %v115
  %121 = vst.msk [vmem:[#allocation2 + $0x10] sm:$0xff] %vm118, %v116
  %122 = vst.msk [vmem:[#allocation2 + $0x18] sm:$0xff] %vm118, %v117
  // Predicated region
  $region18: #{_lambda_.70} parent=0 // pred_check
    %p123 = pneg %p15
  $region19: #{_lambda_.70} parent=0 // pred_check_branch
    %125 = sbr.rel (%p123) target = $region21
  $region20: #{_lambda_.70} parent=0 // pred_region
    %v126 = vld [vmem:[#allocation2] sm:$0xff]
    %v127 = vld [vmem:[#allocation2 + $0x8] sm:$0xff]
    %v128 = vld [vmem:[#allocation2 + $0x10] sm:$0xff]
    %v129 = vld [vmem:[#allocation2 + $0x18] sm:$0xff]
    %v130 = vld [vmem:[%s2] sm:$0x1]
    %v132 = vlaneseq
    %v133 = vshrl.u32 %v132, 7
    %v134 = vsub.s32 0, %v133
    %v135 = vrot.slane %v130, %v134
    %v137 = vadd.f32 %v126, %v135
    %v138 = vadd.f32 %v127, %v135
    %v139 = vadd.f32 %v128, %v135
    %v140 = vadd.f32 %v129, %v135
    %141 = vst.msk [vmem:[%s3] sm:$0xff] %vm118, %v137
    %142 = vst.msk [vmem:[%s3 + $0x8] sm:$0xff] %vm118, %v138
    %143 = vst.msk [vmem:[%s3 + $0x10] sm:$0xff] %vm118, %v139
    %144 = vst.msk [vmem:[%s3 + $0x18] sm:$0xff] %vm118, %v140
  $region21: #{_lambda_.70} parent=0 // pred_fallthru
    _
  // Predicated region
  $region22: #{_lambda_.70} parent=0 // pred_check
    _
  $region23: #{_lambda_.70} parent=0 // pred_check_branch
    %146 = sbr.rel (0) target = $region25
  $region24: #{_lambda_.70} parent=0 // pred_region
    _
  $region25: #{_lambda_.70} parent=0 // pred_fallthru
    _
  // Predicated region
  $region26: #{_lambda_.70} parent=0 // pred_check
    _
  $region27: #{_lambda_.70} parent=0 // pred_check_branch
    %148 = sbr.rel (0) target = $region29
  $region28: #{_lambda_.70} parent=0 // pred_region
    _
  $region29: #{_lambda_.70} parent=0 // pred_fallthru
    _

// kernel: _lambda_.46
$region0: #{_lambda_.46}
  #allocation0 [shape = 'u32[]', space=smem, size = 0x4, offset = 0x4, fixed_abs, tag = 'smem constant byte address 0x4 - core index']
  #allocation1 [shape = 'u32[144,128]{1,0:T(1,128)}', space=vmem, size = 0x12000, scoped, tag = 'internal scratch']
  #allocation2 [shape = 'f32[40,32]{1,0:T(8,128)}', space=vmem, size = 0x5000, scoped, tag = 'scratch operand']
  #allocation3 [shape = 'bf16[40,32]{1,0:T(8,128)(2,1)}', space=vmem, size = 0x2800, scoped, tag = 'scratch operand']
  %s0 = inlined_call_operand.vmem [shape: f32[40,32], index: 0, kind: input, shape index: {}]
  %s1 = inlined_call_operand.vmem [shape: f32[1,32], index: 1, kind: input, shape index: {}]
  %s2 = inlined_call_operand.vmem [shape: f32[1,32], index: 2, kind: input, shape index: {}]
  %s3 = inlined_call_operand.vmem [shape: bf16[32,128], index: 3, kind: input, shape index: {}]
  %s4 = inlined_call_operand.vmem [shape: f32[1,128], index: 4, kind: input, shape index: {}]
  %s5 = inlined_call_operand.vmem [shape: bf16[128,32], index: 5, kind: input, shape index: {}]
  %s6 = inlined_call_operand.vmem [shape: f32[1,32], index: 6, kind: input, shape index: {}]
  %s7 = inlined_call_operand.vmem [shape: f32[40,32], index: 7, kind: output, shape index: {}]
  %s8 = sld [smem:[#allocation0]]
  $region46: #{_lambda_.46} parent=0
    _
  %s10 = ssub.s32 1, %s8
  %s11 = scalar_select 0, %s10, %s8
  // Predicated region
  $region2: #{_lambda_.46} parent=0 // pred_check
    _
  $region3: #{_lambda_.46} parent=0 // pred_check_branch
    %13 = sbr.rel (0) target = $region5
  $region4: #{_lambda_.46} parent=0 // pred_region
    _
  $region5: #{_lambda_.46} parent=0 // pred_fallthru
    _
  // Predicated region
  $region6: #{_lambda_.46} parent=0 // pred_check
    _
  $region7: #{_lambda_.46} parent=0 // pred_check_branch
    %15 = sbr.rel (0) target = $region9
  $region8: #{_lambda_.46} parent=0 // pred_region
    _
  $region9: #{_lambda_.46} parent=0 // pred_fallthru
    _
  // Predicated region
  $region10: #{_lambda_.46} parent=0 // pred_check
    _
  $region11: #{_lambda_.46} parent=0 // pred_check_branch
    %17 = sbr.rel (0) target = $region13
  $region12: #{_lambda_.46} parent=0 // pred_region
    _
  $region13: #{_lambda_.46} parent=0 // pred_fallthru
    _
  // Predicated region
  $region14: #{_lambda_.46} parent=0 // pred_check
    _
  $region15: #{_lambda_.46} parent=0 // pred_check_branch
    %19 = sbr.rel (0) target = $region17
  $region16: #{_lambda_.46} parent=0 // pred_region
    _
  $region17: #{_lambda_.46} parent=0 // pred_fallthru
    _
  // Predicated region
  $region18: #{_lambda_.46} parent=0 // pred_check
    _
  $region19: #{_lambda_.46} parent=0 // pred_check_branch
    %21 = sbr.rel (0) target = $region21
  $region20: #{_lambda_.46} parent=0 // pred_region
    _
  $region21: #{_lambda_.46} parent=0 // pred_fallthru
    _
  // Predicated region
  $region22: #{_lambda_.46} parent=0 // pred_check
    _
  $region23: #{_lambda_.46} parent=0 // pred_check_branch
    %23 = sbr.rel (0) target = $region25
  $region24: #{_lambda_.46} parent=0 // pred_region
    _
  $region25: #{_lambda_.46} parent=0 // pred_fallthru
    _
  // Predicated region
  $region26: #{_lambda_.46} parent=0 // pred_check
    _
  $region27: #{_lambda_.46} parent=0 // pred_check_branch
    %25 = sbr.rel (0) target = $region29
  $region28: #{_lambda_.46} parent=0 // pred_region
    _
  $region29: #{_lambda_.46} parent=0 // pred_fallthru
    _
  %p27 = scmp.eq.s32.totalorder 0, 0
  // Predicated region
  $region30: #{_lambda_.46} parent=0 // pred_check
    %p28 = pneg %p27
  $region31: #{_lambda_.46} parent=0 // pred_check_branch
    %30 = sbr.rel (%p28) target = $region33
  $region32: #{_lambda_.46} parent=0 // pred_region
    %v31 = vld [vmem:[%s0] sm:$0xff]
    %v32 = vld [vmem:[%s0 + $0x8] sm:$0xff]
    %v33 = vld [vmem:[%s0 + $0x10] sm:$0xff]
    %v34 = vld [vmem:[%s0 + $0x18] sm:$0xff]
    %v35 = vld [vmem:[%s0 + $0x20] sm:$0xff]
    %v36 = vld [vmem:[%s1] sm:$0x1]
    %v37 = vld [vmem:[%s2] sm:$0x1]
    %vm38 = vcmask 261120
    %v39 = vsel %vm38, %v31, 0.0
    %40 = vadd.xlane.f32.xlu0 %v39
    %v41 = vpop.xlane.xlu0 %40
    %v42 = vsel %vm38, %v32, 0.0
    %43 = vadd.xlane.f32.xlu0 %v42
    %v44 = vpop.xlane.xlu0 %43
    %v45 = vsel %vm38, %v33, 0.0
    %46 = vadd.xlane.f32.xlu0 %v45
    %v47 = vpop.xlane.xlu0 %46
    %v48 = vsel %vm38, %v34, 0.0
    %49 = vadd.xlane.f32.xlu0 %v48
    %v50 = vpop.xlane.xlu0 %49
    %v51 = vsel %vm38, %v35, 0.0
    %52 = vadd.xlane.f32.xlu0 %v51
    %v53 = vpop.xlane.xlu0 %52
    %v54 = vrcp.pop 32.0
    %v55 = vmul.f32 %v41, %v54
    %v56 = vmul.f32 %v44, %v54
    %v57 = vmul.f32 %v47, %v54
    %v58 = vmul.f32 %v50, %v54
    %v59 = vmul.f32 %v53, %v54
    %v60 = vsub.f32 %v31, %v55
    %v61 = vsub.f32 %v32, %v56
    %v62 = vsub.f32 %v33, %v57
    %v63 = vsub.f32 %v34, %v58
    %v64 = vsub.f32 %v35, %v59
    %v65 = vmul.f32 %v60, %v60
    %v66 = vmul.f32 %v61, %v61
    %v67 = vmul.f32 %v62, %v62
    %v68 = vmul.f32 %v63, %v63
    %v69 = vmul.f32 %v64, %v64
    %v70 = vsel %vm38, %v65, 0.0
    %71 = vadd.xlane.f32.xlu0 %v70
    %v72 = vpop.xlane.xlu0 %71
    %v73 = vsel %vm38, %v66, 0.0
    %74 = vadd.xlane.f32.xlu0 %v73
    %v75 = vpop.xlane.xlu0 %74
    %v76 = vsel %vm38, %v67, 0.0
    %77 = vadd.xlane.f32.xlu0 %v76
    %v78 = vpop.xlane.xlu0 %77
    %v79 = vsel %vm38, %v68, 0.0
    %80 = vadd.xlane.f32.xlu0 %v79
    %v81 = vpop.xlane.xlu0 %80
    %v82 = vsel %vm38, %v69, 0.0
    %83 = vadd.xlane.f32.xlu0 %v82
    %v84 = vpop.xlane.xlu0 %83
    %v85 = vmul.f32 %v72, %v54
    %v86 = vmul.f32 %v75, %v54
    %v87 = vmul.f32 %v78, %v54
    %v88 = vmul.f32 %v81, %v54
    %v89 = vmul.f32 %v84, %v54
    %v90 = vadd.f32 %v85, 1e-05
    %v91 = vadd.f32 %v86, 1e-05
    %v92 = vadd.f32 %v87, 1e-05
    %v93 = vadd.f32 %v88, 1e-05
    %v94 = vadd.f32 %v89, 1e-05
    %v95 = vrsqrt.pop %v90
    %v96 = vrsqrt.pop %v91
    %v97 = vrsqrt.pop %v92
    %v98 = vrsqrt.pop %v93
    %v99 = vrsqrt.pop %v94
    %v100 = vmul.f32 %v60, %v95
    %v101 = vmul.f32 %v61, %v96
    %v102 = vmul.f32 %v62, %v97
    %v103 = vmul.f32 %v63, %v98
    %v104 = vmul.f32 %v64, %v99
    %v106 = vlaneseq
    %v107 = vshrl.u32 %v106, 7
    %v108 = vsub.s32 0, %v107
    %v109 = vrot.slane %v36, %v108
    %v111 = vmul.f32 %v100, %v109
    %v112 = vmul.f32 %v101, %v109
    %v113 = vmul.f32 %v102, %v109
    %v114 = vmul.f32 %v103, %v109
    %v115 = vmul.f32 %v104, %v109
    %v117 = vlaneseq
    %v118 = vshrl.u32 %v117, 7
    %v119 = vsub.s32 0, %v118
    %v120 = vrot.slane %v37, %v119
    %v122 = vadd.f32 %v111, %v120
    %v123 = vadd.f32 %v112, %v120
    %v124 = vadd.f32 %v113, %v120
    %v125 = vadd.f32 %v114, %v120
    %v126 = vadd.f32 %v115, %v120
    %v127 = vpack.c.bf16 %v123, %v122
    %v128 = vpack.c.bf16 %v125, %v124
    %v129 = vpack.c.bf16 %v126, %v126
    %v133 = vunpack.c.l.b16 %v127
    %v134 = vunpack.c.h.b16 %v127
    %v135 = vunpack.c.l.b16 %v128
    %v136 = vunpack.c.h.b16 %v128
    %v137 = vunpack.c.l.b16 %v129
    %v138 = vpack.c.b16 %v133, %v133
    %v139 = vpack.c.b16 %v134, %v134
    %v140 = vpack.c.b16 %v135, %v135
    %v141 = vpack.c.b16 %v136, %v136
    %v142 = vpack.c.b16 %v137, %v137
    %vm148 = vcmask 257024
    %149 = vst.msk [vmem:[#allocation3] sm:$0xf] %vm148, %v138
    %150 = vst.msk [vmem:[#allocation3 + $0x4] sm:$0xf] %vm148, %v139
    %151 = vst.msk [vmem:[#allocation3 + $0x8] sm:$0xf] %vm148, %v140
    %152 = vst.msk [vmem:[#allocation3 + $0xc] sm:$0xf] %vm148, %v141
    %153 = vst.msk [vmem:[#allocation3 + $0x10] sm:$0xf] %vm148, %v142
    %v154 = vld [vmem:[%s6] sm:$0x1]
    %v156 = vlaneseq
    %v157 = vshrl.u32 %v156, 7
    %v158 = vsub.s32 0, %v157
    %v159 = vrot.slane %v154, %v158
    %v161 = vadd.f32 %v31, %v159
    %v162 = vadd.f32 %v32, %v159
    %v163 = vadd.f32 %v33, %v159
    %v164 = vadd.f32 %v34, %v159
    %v165 = vadd.f32 %v35, %v159
    %166 = vst.msk [vmem:[#allocation2] sm:$0xff] %vm38, %v161
    %167 = vst.msk [vmem:[#allocation2 + $0x8] sm:$0xff] %vm38, %v162
    %168 = vst.msk [vmem:[#allocation2 + $0x10] sm:$0xff] %vm38, %v163
    %169 = vst.msk [vmem:[#allocation2 + $0x18] sm:$0xff] %vm38, %v164
    %170 = vst.msk [vmem:[#allocation2 + $0x20] sm:$0xff] %vm38, %v165
  $region33: #{_lambda_.46} parent=0 // pred_fallthru
    _
  %v171 = vld [vmem:[#allocation3] sm:$0xf]
  %v172 = vld [vmem:[#allocation3 + $0x4] sm:$0xf]
  %v173 = vld [vmem:[#allocation3 + $0x8] sm:$0xf]
  %v174 = vld [vmem:[#allocation3 + $0xc] sm:$0xf]
  %v175 = vld [vmem:[#allocation3 + $0x10] sm:$0xf]
  %v176 = vld [vmem:[%s3] sm:$0xf]
  %v177 = vld [vmem:[%s3 + $0x4] sm:$0xf]
  %v178 = vld [vmem:[%s3 + $0x8] sm:$0xf]
  %v179 = vld [vmem:[%s3 + $0xc] sm:$0xf]
  %v180 = vld [vmem:[%s4] sm:$0x1]
  %v182 = vlaneseq
  %v183 = vshrl.u32 %v182, 7
  %v184 = vsub.s32 0, %v183
  %v185 = vrot.slane %v180, %v184
  %v192 = vunpack.c.l.b16 %v171
  %v193 = vunpack.c.l.b16 %v172
  %v194 = vunpack.c.l.b16 %v173
  %v195 = vunpack.c.l.b16 %v174
  %v196 = vunpack.c.l.b16 %v175
  %v197 = vpack.c.b16 %v193, %v192
  %v198 = vpack.c.b16 %v195, %v194
  %v199 = vpack.c.b16 %v196, %v196
  %v204 = vunpack.c.l.b16 %v176
  %v205 = vunpack.c.l.b16 %v177
  %v206 = vunpack.c.l.b16 %v178
  %v207 = vunpack.c.l.b16 %v179
  %v208 = vpack.c.b16 %v205, %v204
  %v209 = vpack.c.b16 %v207, %v206
  %vm212 = vcmask 261120
  %v214 = vsel %vm212, %v197, 0
  %v217 = vsel %vm212, %v198, 0
  %v220 = vsel %vm212, %v199, 0
  %222 = vmatprep.subr.bf16.mxu0 0
  %223 = vmatpush1.bf16.msra.mxu0 %v208
  %224 = vmatprep.subr.bf16.mxu0 0
  %225 = vmatpush1.bf16.msra.mxu0 %v209
  %226 = vmatprep.subr.bf16.mxu0 0
  %227 = vmatpush1.bf16.msra.mxu0 0
  %228 = vmatprep.subr.bf16.mxu0 0
  %229 = vmatpush1.bf16.msra.mxu0 0
  %230 = vmatprep.subr.bf16.mxu0 0
  %231 = vmatpush1.bf16.msra.mxu0 0
  %232 = vmatprep.subr.bf16.mxu0 0
  %233 = vmatpush1.bf16.msra.mxu0 0
  %234 = vmatprep.subr.bf16.mxu0 0
  %235 = vmatpush1.bf16.msra.mxu0 0
  %236 = vmatprep.subr.bf16.mxu0 0
  %237 = vmatpush1.bf16.msra.mxu0 0
  %238 = vmatprep.subr.bf16.mxu0 0
  %239 = vmatpush1.bf16.msra.mxu0 0
  %240 = vmatprep.subr.bf16.mxu0 0
  %241 = vmatpush1.bf16.msra.mxu0 0
  %242 = vmatprep.subr.bf16.mxu0 0
  %243 = vmatpush1.bf16.msra.mxu0 0
  %244 = vmatprep.subr.bf16.mxu0 0
  %245 = vmatpush1.bf16.msra.mxu0 0
  %246 = vmatprep.subr.bf16.mxu0 0
  %247 = vmatpush1.bf16.msra.mxu0 0
  %248 = vmatprep.subr.bf16.mxu0 0
  %249 = vmatpush1.bf16.msra.mxu0 0
  %250 = vmatprep.subr.bf16.mxu0 0
  %251 = vmatpush1.bf16.msra.mxu0 0
  %252 = vmatprep.subr.bf16.mxu0 0
  %253 = vmatpush1.bf16.msra.mxu0 0
  %254 = vmatprep.mubr.bf16.mxu0 0
  %255 = vmatmul.mubr.bf16.gmra.mrb[0].mxu0 %v214
  %v256 = vpop.f32.mrb[0].mxu0
  %v257 = vadd.f32 %v185, %v256
  %v258 = vpop.f32.mrb[0].mxu0
  %v259 = vpop.f32.mrb[0].mxu0
  %v260 = vadd.f32 %v185, %v259
  %v261 = vpop.f32.mrb[0].mxu0
  %262 = vmatprep.mubr.bf16.mxu0 0
  %263 = vmatmul.mubr.bf16.gmra.mrb[0].mxu0 %v217
  %v264 = vpop.f32.mrb[0].mxu0
  %v265 = vadd.f32 %v185, %v264
  %v266 = vpop.f32.mrb[0].mxu0
  %v267 = vpop.f32.mrb[0].mxu0
  %v268 = vadd.f32 %v185, %v267
  %v269 = vpop.f32.mrb[0].mxu0
  %270 = vmatprep.mubr.bf16.mxu0 0
  %271 = vmatmul.mubr.bf16.gmra.mrb[0].mxu0 %v220
  %v272 = vpop.f32.mrb[0].mxu0
  %v273 = vadd.f32 %v185, %v272
  %v274 = vpop.f32.mrb[0].mxu0
  %v275 = vpop.f32.mrb[0].mxu0
  %v276 = vpop.f32.mrb[0].mxu0
  %277 = vdwg.mxu0
  %v278 = vmul.f32 %v257, %v257
  %v279 = vmul.f32 %v260, %v260
  %v280 = vmul.f32 %v265, %v265
  %v281 = vmul.f32 %v268, %v268
  %v282 = vmul.f32 %v273, %v273
  %v283 = vmul.f32 %v257, %v278
  %v284 = vmul.f32 %v260, %v279
  %v285 = vmul.f32 %v265, %v280
  %v286 = vmul.f32 %v268, %v281
  %v287 = vmul.f32 %v273, %v282
  %v288 = vmul.f32 %v283, 0.044715
  %v289 = vmul.f32 %v284, 0.044715
  %v290 = vmul.f32 %v285, 0.044715
  %v291 = vmul.f32 %v286, 0.044715
  %v292 = vmul.f32 %v287, 0.044715
  %v293 = vadd.f32 %v257, %v288
  %v294 = vadd.f32 %v260, %v289
  %v295 = vadd.f32 %v265, %v290
  %v296 = vadd.f32 %v268, %v291
  %v297 = vadd.f32 %v273, %v292
  %v298 = vmul.f32 %v293, 0.7978846
  %v299 = vmul.f32 %v294, 0.7978846
  %v300 = vmul.f32 %v295, 0.7978846
  %v301 = vmul.f32 %v296, 0.7978846
  %v302 = vmul.f32 %v297, 0.7978846
  %v303 = vtanh.pop %v298
  %v304 = vtanh.pop %v299
  %v305 = vtanh.pop %v300
  %v306 = vtanh.pop %v301
  %v307 = vtanh.pop %v302
  %v308 = vadd.f32 %v303, 1.0
  %v309 = vadd.f32 %v304, 1.0
  %v310 = vadd.f32 %v305, 1.0
  %v311 = vadd.f32 %v306, 1.0
  %v312 = vadd.f32 %v307, 1.0
  %v313 = vmul.f32 %v308, 0.5
  %v314 = vmul.f32 %v309, 0.5
  %v315 = vmul.f32 %v310, 0.5
  %v316 = vmul.f32 %v311, 0.5
  %v317 = vmul.f32 %v312, 0.5
  %v318 = vmul.f32 %v257, %v313
  %v319 = vmul.f32 %v260, %v314
  %v320 = vmul.f32 %v265, %v315
  %v321 = vmul.f32 %v268, %v316
  %v322 = vmul.f32 %v273, %v317
  %v323 = vpack.c.bf16 %v319, %v318
  %v324 = vpack.c.bf16 %v321, %v320
  %v325 = vpack.c.bf16 %v322, %v322
  %v326 = vld [vmem:[#allocation2] sm:$0xff]
  %v327 = vld [vmem:[#allocation2 + $0x8] sm:$0xff]
  %v328 = vld [vmem:[#allocation2 + $0x10] sm:$0xff]
  %v329 = vld [vmem:[#allocation2 + $0x18] sm:$0xff]
  %v330 = vld [vmem:[#allocation2 + $0x20] sm:$0xff]
  %v331 = vld [vmem:[%s5] sm:$0xf]
  %v332 = vld [vmem:[%s5 + $0x4] sm:$0xf]
  %v333 = vld [vmem:[%s5 + $0x8] sm:$0xf]
  %v334 = vld [vmem:[%s5 + $0xc] sm:$0xf]
  %v335 = vld [vmem:[%s5 + $0x10] sm:$0xf]
  %v336 = vld [vmem:[%s5 + $0x14] sm:$0xf]
  %v337 = vld [vmem:[%s5 + $0x18] sm:$0xf]
  %v338 = vld [vmem:[%s5 + $0x1c] sm:$0xf]
  %v339 = vld [vmem:[%s5 + $0x20] sm:$0xf]
  %v340 = vld [vmem:[%s5 + $0x24] sm:$0xf]
  %v341 = vld [vmem:[%s5 + $0x28] sm:$0xf]
  %v342 = vld [vmem:[%s5 + $0x2c] sm:$0xf]
  %v343 = vld [vmem:[%s5 + $0x30] sm:$0xf]
  %v344 = vld [vmem:[%s5 + $0x34] sm:$0xf]
  %v345 = vld [vmem:[%s5 + $0x38] sm:$0xf]
  %v346 = vld [vmem:[%s5 + $0x3c] sm:$0xf]
  %v363 = vunpack.c.l.b16 %v331
  %v364 = vunpack.c.l.b16 %v332
  %v365 = vunpack.c.l.b16 %v333
  %v366 = vunpack.c.l.b16 %v334
  %v367 = vunpack.c.l.b16 %v335
  %v368 = vunpack.c.l.b16 %v336
  %v369 = vunpack.c.l.b16 %v337
  %v370 = vunpack.c.l.b16 %v338
  %v371 = vunpack.c.l.b16 %v339
  %v372 = vunpack.c.l.b16 %v340
  %v373 = vunpack.c.l.b16 %v341
  %v374 = vunpack.c.l.b16 %v342
  %v375 = vunpack.c.l.b16 %v343
  %v376 = vunpack.c.l.b16 %v344
  %v377 = vunpack.c.l.b16 %v345
  %v378 = vunpack.c.l.b16 %v346
  %v379 = vpack.c.b16 %v364, %v363
  %v380 = vpack.c.b16 %v366, %v365
  %v381 = vpack.c.b16 %v368, %v367
  %v382 = vpack.c.b16 %v370, %v369
  %v383 = vpack.c.b16 %v372, %v371
  %v384 = vpack.c.b16 %v374, %v373
  %v385 = vpack.c.b16 %v376, %v375
  %v386 = vpack.c.b16 %v378, %v377
  %395 = vmatprep.subr.bf16.mxu0 0
  %396 = vmatpush1.bf16.msra.mxu0 %v379
  %397 = vmatprep.subr.bf16.mxu0 0
  %398 = vmatpush1.bf16.msra.mxu0 %v380
  %399 = vmatprep.subr.bf16.mxu0 0
  %400 = vmatpush1.bf16.msra.mxu0 %v381
  %401 = vmatprep.subr.bf16.mxu0 0
  %402 = vmatpush1.bf16.msra.mxu0 %v382
  %403 = vmatprep.subr.bf16.mxu0 0
  %404 = vmatpush1.bf16.msra.mxu0 %v383
  %405 = vmatprep.subr.bf16.mxu0 0
  %406 = vmatpush1.bf16.msra.mxu0 %v384
  %407 = vmatprep.subr.bf16.mxu0 0
  %408 = vmatpush1.bf16.msra.mxu0 %v385
  %409 = vmatprep.subr.bf16.mxu0 0
  %410 = vmatpush1.bf16.msra.mxu0 %v386
  %411 = vmatprep.subr.bf16.mxu0 0
  %412 = vmatpush1.bf16.msra.mxu0 0
  %413 = vmatprep.subr.bf16.mxu0 0
  %414 = vmatpush1.bf16.msra.mxu0 0
  %415 = vmatprep.subr.bf16.mxu0 0
  %416 = vmatpush1.bf16.msra.mxu0 0
  %417 = vmatprep.subr.bf16.mxu0 0
  %418 = vmatpush1.bf16.msra.mxu0 0
  %419 = vmatprep.subr.bf16.mxu0 0
  %420 = vmatpush1.bf16.msra.mxu0 0
  %421 = vmatprep.subr.bf16.mxu0 0
  %422 = vmatpush1.bf16.msra.mxu0 0
  %423 = vmatprep.subr.bf16.mxu0 0
  %424 = vmatpush1.bf16.msra.mxu0 0
  %425 = vmatprep.subr.bf16.mxu0 0
  %426 = vmatpush1.bf16.msra.mxu0 0
  %427 = vmatprep.mubr.bf16.mxu0 0
  %428 = vmatmul.mubr.bf16.gmra.mrb[0].mxu0 %v323
  %v429 = vpop.f32.mrb[0].mxu0
  %v430 = vadd.f32 0.0, %v429
  %v431 = vpop.f32.mrb[0].mxu0
  %v432 = vpop.f32.mrb[0].mxu0
  %v433 = vadd.f32 0.0, %v432
  %v434 = vpop.f32.mrb[0].mxu0
  %435 = vmatprep.mubr.bf16.mxu0 0
  %436 = vmatmul.mubr.bf16.gmra.mrb[0].mxu0 %v324
  %v437 = vpop.f32.mrb[0].mxu0
  %v438 = vadd.f32 0.0, %v437
  %v439 = vpop.f32.mrb[0].mxu0
  %v440 = vpop.f32.mrb[0].mxu0
  %v441 = vadd.f32 0.0, %v440
  %v442 = vpop.f32.mrb[0].mxu0
  %443 = vmatprep.mubr.bf16.mxu0 0
  %444 = vmatmul.mubr.bf16.gmra.mrb[0].mxu0 %v325
  %v445 = vpop.f32.mrb[0].mxu0
  %v446 = vadd.f32 0.0, %v445
  %v447 = vpop.f32.mrb[0].mxu0
  %v448 = vpop.f32.mrb[0].mxu0
  %v449 = vpop.f32.mrb[0].mxu0
  %450 = vdwg.mxu0
  %v451 = vadd.f32 %v326, %v430
  %v452 = vadd.f32 %v327, %v433
  %v453 = vadd.f32 %v328, %v438
  %v454 = vadd.f32 %v329, %v441
  %v455 = vadd.f32 %v330, %v446
  %456 = vst.msk [vmem:[#allocation2] sm:$0xff] %vm212, %v451
  %457 = vst.msk [vmem:[#allocation2 + $0x8] sm:$0xff] %vm212, %v452
  %458 = vst.msk [vmem:[#allocation2 + $0x10] sm:$0xff] %vm212, %v453
  %459 = vst.msk [vmem:[#allocation2 + $0x18] sm:$0xff] %vm212, %v454
  %460 = vst.msk [vmem:[#allocation2 + $0x20] sm:$0xff] %vm212, %v455
  // Predicated region
  $region34: #{_lambda_.46} parent=0 // pred_check
    %p461 = pneg %p27
  $region35: #{_lambda_.46} parent=0 // pred_check_branch
    %463 = sbr.rel (%p461) target = $region37
  $region36: #{_lambda_.46} parent=0 // pred_region
    %v464 = vld [vmem:[#allocation2] sm:$0xff]
    %v465 = vld [vmem:[#allocation2 + $0x8] sm:$0xff]
    %v466 = vld [vmem:[#allocation2 + $0x10] sm:$0xff]
    %v467 = vld [vmem:[#allocation2 + $0x18] sm:$0xff]
    %v468 = vld [vmem:[#allocation2 + $0x20] sm:$0xff]
    %469 = vst.msk [vmem:[%s7] sm:$0xff] %vm212, %v464
    %470 = vst.msk [vmem:[%s7 + $0x8] sm:$0xff] %vm212, %v465
    %471 = vst.msk [vmem:[%s7 + $0x10] sm:$0xff] %vm212, %v466
    %472 = vst.msk [vmem:[%s7 + $0x18] sm:$0xff] %vm212, %v467
    %473 = vst.msk [vmem:[%s7 + $0x20] sm:$0xff] %vm212, %v468
  $region37: #{_lambda_.46} parent=0 // pred_fallthru
    _
  // Predicated region
  $region38: #{_lambda_.46} parent=0 // pred_check
    _
  $region39: #{_lambda_.46} parent=0 // pred_check_branch
    %475 = sbr.rel (0) target = $region41
  $region40: #{_lambda_.46} parent=0 // pred_region
    _
  $region41: #{_lambda_.46} parent=0 // pred_fallthru
    _
  // Predicated region
  $region42: #{_lambda_.46} parent=0 // pred_check
    _
  $region43: #{_lambda_.46} parent=0 // pred_check_branch
    %477 = sbr.rel (0) target = $region45
  $region44: #{_lambda_.46} parent=0 // pred_region
    _
  $region45: #{_lambda_.46} parent=0 // pred_fallthru
    _

// kernel: _lambda_.69
$region0: #{_lambda_.69}
  #allocation0 [shape = 'u32[]', space=smem, size = 0x4, offset = 0x4, fixed_abs, tag = 'smem constant byte address 0x4 - core index']
  #allocation1 [shape = 'u32[144,128]{1,0:T(1,128)}', space=vmem, size = 0x12000, scoped, tag = 'internal scratch']
  #allocation2 [shape = 'f32[8,45]{1,0:T(8,128)}', space=vmem, size = 0x1000, scoped, tag = 'scratch operand']
  %s0 = inlined_call_operand.vmem [shape: bf16[8,32], index: 0, kind: input, shape index: {}]
  %s1 = inlined_call_operand.vmem [shape: bf16[32,45], index: 1, kind: input, shape index: {}]
  %s2 = inlined_call_operand.vmem [shape: f32[1,45], index: 2, kind: input, shape index: {}]
  %s3 = inlined_call_operand.vmem [shape: f32[8,45], index: 3, kind: output, shape index: {}]
  %s4 = sld [smem:[#allocation0]]
  $region30: #{_lambda_.69} parent=0
    _
  %s6 = ssub.s32 1, %s4
  %s7 = scalar_select 0, %s6, %s4
  // Predicated region
  $region2: #{_lambda_.69} parent=0 // pred_check
    _
  $region3: #{_lambda_.69} parent=0 // pred_check_branch
    %9 = sbr.rel (0) target = $region5
  $region4: #{_lambda_.69} parent=0 // pred_region
    _
  $region5: #{_lambda_.69} parent=0 // pred_fallthru
    _
  // Predicated region
  $region6: #{_lambda_.69} parent=0 // pred_check
    _
  $region7: #{_lambda_.69} parent=0 // pred_check_branch
    %11 = sbr.rel (0) target = $region9
  $region8: #{_lambda_.69} parent=0 // pred_region
    _
  $region9: #{_lambda_.69} parent=0 // pred_fallthru
    _
  // Predicated region
  $region10: #{_lambda_.69} parent=0 // pred_check
    _
  $region11: #{_lambda_.69} parent=0 // pred_check_branch
    %13 = sbr.rel (0) target = $region13
  $region12: #{_lambda_.69} parent=0 // pred_region
    _
  $region13: #{_lambda_.69} parent=0 // pred_fallthru
    _
  %p15 = scmp.eq.s32.totalorder 0, 0
  // Predicated region
  $region14: #{_lambda_.69} parent=0 // pred_check
    %p16 = pneg %p15
  $region15: #{_lambda_.69} parent=0 // pred_check_branch
    %18 = sbr.rel (%p16) target = $region17
  $region16: #{_lambda_.69} parent=0 // pred_region
    %vm19 = vcmask 367616
    %20 = vst.msk [vmem:[#allocation2] sm:$0xff] %vm19, 0.0
  $region17: #{_lambda_.69} parent=0 // pred_fallthru
    _
  %v21 = vld [vmem:[#allocation2] sm:$0xff]
  %v22 = vld [vmem:[%s0] sm:$0xf]
  %v23 = vld [vmem:[%s1] sm:$0xf]
  %v24 = vld [vmem:[%s1 + $0x4] sm:$0xf]
  %v25 = vld [vmem:[%s1 + $0x8] sm:$0xf]
  %v26 = vld [vmem:[%s1 + $0xc] sm:$0xf]
  %v31 = vunpack.c.l.b16 %v23
  %v32 = vunpack.c.l.b16 %v24
  %v33 = vunpack.c.l.b16 %v25
  %v34 = vunpack.c.l.b16 %v26
  %v35 = vpack.c.b16 %v32, %v31
  %v36 = vpack.c.b16 %v34, %v33
  %vm39 = vcmask 261120
  %v41 = vsel %vm39, %v22, 0
  %43 = vmatprep.subr.bf16.mxu0 0
  %44 = vmatpush1.bf16.msra.mxu0 %v35
  %45 = vmatprep.subr.bf16.mxu0 0
  %46 = vmatpush1.bf16.msra.mxu0 %v36
  %47 = vmatprep.subr.bf16.mxu0 0
  %48 = vmatpush1.bf16.msra.mxu0 0
  %49 = vmatprep.subr.bf16.mxu0 0
  %50 = vmatpush1.bf16.msra.mxu0 0
  %51 = vmatprep.subr.bf16.mxu0 0
  %52 = vmatpush1.bf16.msra.mxu0 0
  %53 = vmatprep.subr.bf16.mxu0 0
  %54 = vmatpush1.bf16.msra.mxu0 0
  %55 = vmatprep.subr.bf16.mxu0 0
  %56 = vmatpush1.bf16.msra.mxu0 0
  %57 = vmatprep.subr.bf16.mxu0 0
  %58 = vmatpush1.bf16.msra.mxu0 0
  %59 = vmatprep.subr.bf16.mxu0 0
  %60 = vmatpush1.bf16.msra.mxu0 0
  %61 = vmatprep.subr.bf16.mxu0 0
  %62 = vmatpush1.bf16.msra.mxu0 0
  %63 = vmatprep.subr.bf16.mxu0 0
  %64 = vmatpush1.bf16.msra.mxu0 0
  %65 = vmatprep.subr.bf16.mxu0 0
  %66 = vmatpush1.bf16.msra.mxu0 0
  %67 = vmatprep.subr.bf16.mxu0 0
  %68 = vmatpush1.bf16.msra.mxu0 0
  %69 = vmatprep.subr.bf16.mxu0 0
  %70 = vmatpush1.bf16.msra.mxu0 0
  %71 = vmatprep.subr.bf16.mxu0 0
  %72 = vmatpush1.bf16.msra.mxu0 0
  %73 = vmatprep.subr.bf16.mxu0 0
  %74 = vmatpush1.bf16.msra.mxu0 0
  %75 = vmatprep.mubr.bf16.mxu0 0
  %76 = vmatmul.mubr.bf16.gmra.mrb[0].mxu0 %v41
  %v77 = vpop.f32.mrb[0].mxu0
  %v78 = vadd.f32 0.0, %v77
  %v79 = vpop.f32.mrb[0].mxu0
  %v80 = vpop.f32.mrb[0].mxu0
  %v81 = vpop.f32.mrb[0].mxu0
  %82 = vdwg.mxu0
  %v83 = vadd.f32 %v21, %v78
  %vm84 = vcmask 367616
  %85 = vst.msk [vmem:[#allocation2] sm:$0xff] %vm84, %v83
  // Predicated region
  $region18: #{_lambda_.69} parent=0 // pred_check
    %p86 = pneg %p15
  $region19: #{_lambda_.69} parent=0 // pred_check_branch
    %88 = sbr.rel (%p86) target = $region21
  $region20: #{_lambda_.69} parent=0 // pred_region
    %v89 = vld [vmem:[#allocation2] sm:$0xff]
    %v90 = vld [vmem:[%s2] sm:$0x1]
    %v92 = vlaneseq
    %v93 = vshrl.u32 %v92, 7
    %v94 = vsub.s32 0, %v93
    %v95 = vrot.slane %v90, %v94
    %v97 = vadd.f32 %v89, %v95
    %98 = vst.msk [vmem:[%s3] sm:$0xff] %vm84, %v97
  $region21: #{_lambda_.69} parent=0 // pred_fallthru
    _
  // Predicated region
  $region22: #{_lambda_.69} parent=0 // pred_check
    _
  $region23: #{_lambda_.69} parent=0 // pred_check_branch
    %100 = sbr.rel (0) target = $region25
  $region24: #{_lambda_.69} parent=0 // pred_region
    _
  $region25: #{_lambda_.69} parent=0 // pred_fallthru
    _
  // Predicated region
  $region26: #{_lambda_.69} parent=0 // pred_check
    _
  $region27: #{_lambda_.69} parent=0 // pred_check_branch
    %102 = sbr.rel (0) target = $region29
  $region28: #{_lambda_.69} parent=0 // pred_region
    _
  $region29: #{_lambda_.69} parent=0 // pred_fallthru
    _

// kernel: _lambda_.45
$region0: #{_lambda_.45}
  #allocation0 [shape = 'u32[]', space=smem, size = 0x4, offset = 0x4, fixed_abs, tag = 'smem constant byte address 0x4 - core index']
  #allocation1 [shape = 'u32[144,128]{1,0:T(1,128)}', space=vmem, size = 0x12000, scoped, tag = 'internal scratch']
  %s0 = inlined_call_operand.vmem [shape: f32[2,17,32], index: 0, kind: input, shape index: {}]
  %s1 = inlined_call_operand.vmem [shape: f32[1,32], index: 1, kind: input, shape index: {}]
  %s2 = inlined_call_operand.vmem [shape: f32[1,32], index: 2, kind: input, shape index: {}]
  %s3 = inlined_call_operand.vmem [shape: bf16[4,32,8], index: 3, kind: input, shape index: {}]
  %s4 = inlined_call_operand.vmem [shape: bf16[4,32,8], index: 4, kind: input, shape index: {}]
  %s5 = inlined_call_operand.vmem [shape: bf16[4,32,8], index: 5, kind: input, shape index: {}]
  %s6 = inlined_call_operand.vmem [shape: f32[4,1,8], index: 6, kind: input, shape index: {}]
  %s7 = inlined_call_operand.vmem [shape: f32[4,1,8], index: 7, kind: input, shape index: {}]
  %s8 = inlined_call_operand.vmem [shape: f32[4,1,8], index: 8, kind: input, shape index: {}]
  %s9 = inlined_call_operand.vmem [shape: bf16[4,8,32], index: 9, kind: input, shape index: {}]
  %s10 = inlined_call_operand.vmem [shape: f32[1,32], index: 10, kind: input, shape index: {}]
  %s11 = inlined_call_operand.vmem [shape: f32[2,17,32], index: 11, kind: output, shape index: {}]
  %s12 = sld [smem:[#allocation0]]
  $region77: #{_lambda_.45} parent=0
    _
  %s14 = ssub.s32 1, %s12
  %s15 = scalar_select 0, %s14, %s12
  loop: start=0, step=1, limit=4
  $region2: #{_lambda_.45} parent=0 // loop_pre_header
    _
  $region3: #{_lambda_.45} parent=0 // loop_header
    %s17 = sphi 0, %s21
    %p18 = scmp.ge.s32.totalorder %s17, 4
    %s27 = sphi 0, %s29
    %s30 = sphi 0, %s27
    %s31 = sphi 0, %s30
    %s47 = sphi 0, %s31
    %s51 = sphi 0, %s51
    %s53 = sphi 0, %s51
    %s54 = sphi 0, %s53
    %s68 = sphi 0, %s54
    %s72 = sphi 0, %s72
    %s74 = sphi 0, %s72
    %s75 = sphi 0, %s74
    %s89 = sphi 0, %s75
    %s93 = sphi 0, %s93
    %s95 = sphi 0, %s93
    %s96 = sphi 0, %s95
    %s110 = sphi 0, %s96
    %s114 = sphi 0, %s114
    %s116 = sphi 0, %s114
    %s117 = sphi 0, %s116
    %s131 = sphi 0, %s117
    %s135 = sphi 0, %s135
    %s137 = sphi 0, %s135
    %s138 = sphi 0, %s137
    %s152 = sphi 0, %s138
    %s156 = sphi 0, %s156
    %s158 = sphi 0, %s156
    %s159 = sphi 0, %s158
    %s173 = sphi 0, %s159
    %s177 = sphi 0, %s177
    %s179 = sphi 0, %s177
    %s180 = sphi 0, %s179
    %s194 = sphi 0, %s180
    %s198 = sphi 0, %s198
    %s200 = sphi 0, %s198
    %s201 = sphi 0, %s200
    %s215 = sphi 0, %s201
    %s219 = sphi 0, %s219
    %s221 = sphi 0, %s219
    %s222 = sphi 0, %s221
    %s236 = sphi 0, %s222
    %s240 = sphi 0, %s240
    %s242 = sphi 0, %s240
    %s243 = sphi 0, %s242
    %s257 = sphi 0, %s243
    %s263 = sphi 0, %s265
    %s266 = sphi 0, %s263
    %s267 = sphi 0, %s266
    %s283 = sphi 0, %s267
  $region4: #{_lambda_.45} parent=0 // loop_header_branch
    %20 = sbr.rel (%p18) target = $region8
  $region5: #{_lambda_.45} parent=0 // loop_body
    %s22 = ssub.s32 %s17, 1
    %s23 = ssub.s32 %s17, 2
    %s24 = sadd.s32 %s17, 1
    %s25 = ssub.s32 %s17, %s24
    %p26 = scmp.eq.s32.totalorder %s25, 0
    %s28 = sadd.s32 %s27, 1
    %s29 = scalar_select %p26, %s27, %s28
    %p32 = pneg %p26
    %p33 = scmp.eq.s32.totalorder %s17, 1
    %p34 = por %p32, %p33
    %p35 = scmp.ne.s32.totalorder %s27, %s30
    %p36 = scmp.eq.s32.totalorder %s17, 0
    %p37 = por %p35, %p36
    %p38 = scmp.ne.s32.totalorder %s27, %s30
    %p39 = scmp.eq.s32.totalorder %s22, 1
    %p40 = por %p38, %p39
    %p41 = scmp.ne.s32.totalorder %s30, %s31
    %p42 = scmp.eq.s32.totalorder %s22, 0
    %p43 = por %p41, %p42
    %p44 = scmp.ne.s32.totalorder %s30, %s31
    %p45 = scmp.eq.s32.totalorder %s23, 1
    %p46 = por %p44, %p45
    %p48 = scmp.ne.s32.totalorder %s31, %s47
    %p49 = scmp.eq.s32.totalorder %s23, 0
    %p50 = por %p48, %p49
    %s52 = sadd.s32 %s51, 1
    %p55 = scmp.eq.s32.totalorder %s17, 1
    %p56 = scmp.ne.s32.totalorder %s51, %s53
    %p57 = scmp.eq.s32.totalorder %s17, 0
    %p58 = por %p56, %p57
    %p59 = scmp.ne.s32.totalorder %s51, %s53
    %p60 = scmp.eq.s32.totalorder %s22, 1
    %p61 = por %p59, %p60
    %p62 = scmp.ne.s32.totalorder %s53, %s54
    %p63 = scmp.eq.s32.totalorder %s22, 0
    %p64 = por %p62, %p63
    %p65 = scmp.ne.s32.totalorder %s53, %s54
    %p66 = scmp.eq.s32.totalorder %s23, 1
    %p67 = por %p65, %p66
    %p69 = scmp.ne.s32.totalorder %s54, %s68
    %p70 = scmp.eq.s32.totalorder %s23, 0
    %p71 = por %p69, %p70
    %s73 = sadd.s32 %s72, 1
    %p76 = scmp.eq.s32.totalorder %s17, 1
    %p77 = scmp.ne.s32.totalorder %s72, %s74
    %p78 = scmp.eq.s32.totalorder %s17, 0
    %p79 = por %p77, %p78
    %p80 = scmp.ne.s32.totalorder %s72, %s74
    %p81 = scmp.eq.s32.totalorder %s22, 1
    %p82 = por %p80, %p81
    %p83 = scmp.ne.s32.totalorder %s74, %s75
    %p84 = scmp.eq.s32.totalorder %s22, 0
    %p85 = por %p83, %p84
    %p86 = scmp.ne.s32.totalorder %s74, %s75
    %p87 = scmp.eq.s32.totalorder %s23, 1
    %p88 = por %p86, %p87
    %p90 = scmp.ne.s32.totalorder %s75, %s89
    %p91 = scmp.eq.s32.totalorder %s23, 0
    %p92 = por %p90, %p91
    %s94 = sadd.s32 %s93, 1
    %p97 = scmp.eq.s32.totalorder %s17, 1
    %p98 = scmp.ne.s32.totalorder %s93, %s95
    %p99 = scmp.eq.s32.totalorder %s17, 0
    %p100 = por %p98, %p99
    %p101 = scmp.ne.s32.totalorder %s93, %s95
    %p102 = scmp.eq.s32.totalorder %s22, 1
    %p103 = por %p101, %p102
    %p104 = scmp.ne.s32.totalorder %s95, %s96
    %p105 = scmp.eq.s32.totalorder %s22, 0
    %p106 = por %p104, %p105
    %p107 = scmp.ne.s32.totalorder %s95, %s96
    %p108 = scmp.eq.s32.totalorder %s23, 1
    %p109 = por %p107, %p108
    %p111 = scmp.ne.s32.totalorder %s96, %s110
    %p112 = scmp.eq.s32.totalorder %s23, 0
    %p113 = por %p111, %p112
    %s115 = sadd.s32 %s114, 1
    %p118 = scmp.eq.s32.totalorder %s17, 1
    %p119 = scmp.ne.s32.totalorder %s114, %s116
    %p120 = scmp.eq.s32.totalorder %s17, 0
    %p121 = por %p119, %p120
    %p122 = scmp.ne.s32.totalorder %s114, %s116
    %p123 = scmp.eq.s32.totalorder %s22, 1
    %p124 = por %p122, %p123
    %p125 = scmp.ne.s32.totalorder %s116, %s117
    %p126 = scmp.eq.s32.totalorder %s22, 0
    %p127 = por %p125, %p126
    %p128 = scmp.ne.s32.totalorder %s116, %s117
    %p129 = scmp.eq.s32.totalorder %s23, 1
    %p130 = por %p128, %p129
    %p132 = scmp.ne.s32.totalorder %s117, %s131
    %p133 = scmp.eq.s32.totalorder %s23, 0
    %p134 = por %p132, %p133
    %s136 = sadd.s32 %s135, 1
    %p139 = scmp.eq.s32.totalorder %s17, 1
    %p140 = scmp.ne.s32.totalorder %s135, %s137
    %p141 = scmp.eq.s32.totalorder %s17, 0
    %p142 = por %p140, %p141
    %p143 = scmp.ne.s32.totalorder %s135, %s137
    %p144 = scmp.eq.s32.totalorder %s22, 1
    %p145 = por %p143, %p144
    %p146 = scmp.ne.s32.totalorder %s137, %s138
    %p147 = scmp.eq.s32.totalorder %s22, 0
    %p148 = por %p146, %p147
    %p149 = scmp.ne.s32.totalorder %s137, %s138
    %p150 = scmp.eq.s32.totalorder %s23, 1
    %p151 = por %p149, %p150
    %p153 = scmp.ne.s32.totalorder %s138, %s152
    %p154 = scmp.eq.s32.totalorder %s23, 0
    %p155 = por %p153, %p154
    %s157 = sadd.s32 %s156, 1
    %p160 = scmp.eq.s32.totalorder %s17, 1
    %p161 = scmp.ne.s32.totalorder %s156, %s158
    %p162 = scmp.eq.s32.totalorder %s17, 0
    %p163 = por %p161, %p162
    %p164 = scmp.ne.s32.totalorder %s156, %s158
    %p165 = scmp.eq.s32.totalorder %s22, 1
    %p166 = por %p164, %p165
    %p167 = scmp.ne.s32.totalorder %s158, %s159
    %p168 = scmp.eq.s32.totalorder %s22, 0
    %p169 = por %p167, %p168
    %p170 = scmp.ne.s32.totalorder %s158, %s159
    %p171 = scmp.eq.s32.totalorder %s23, 1
    %p172 = por %p170, %p171
    %p174 = scmp.ne.s32.totalorder %s159, %s173
    %p175 = scmp.eq.s32.totalorder %s23, 0
    %p176 = por %p174, %p175
    %s178 = sadd.s32 %s177, 1
    %p181 = scmp.eq.s32.totalorder %s17, 1
    %p182 = scmp.ne.s32.totalorder %s177, %s179
    %p183 = scmp.eq.s32.totalorder %s17, 0
    %p184 = por %p182, %p183
    %p185 = scmp.ne.s32.totalorder %s177, %s179
    %p186 = scmp.eq.s32.totalorder %s22, 1
    %p187 = por %p185, %p186
    %p188 = scmp.ne.s32.totalorder %s179, %s180
    %p189 = scmp.eq.s32.totalorder %s22, 0
    %p190 = por %p188, %p189
    %p191 = scmp.ne.s32.totalorder %s179, %s180
    %p192 = scmp.eq.s32.totalorder %s23, 1
    %p193 = por %p191, %p192
    %p195 = scmp.ne.s32.totalorder %s180, %s194
    %p196 = scmp.eq.s32.totalorder %s23, 0
    %p197 = por %p195, %p196
    %s199 = sadd.s32 %s198, 1
    %p202 = scmp.eq.s32.totalorder %s17, 1
    %p203 = scmp.ne.s32.totalorder %s198, %s200
    %p204 = scmp.eq.s32.totalorder %s17, 0
    %p205 = por %p203, %p204
    %p206 = scmp.ne.s32.totalorder %s198, %s200
    %p207 = scmp.eq.s32.totalorder %s22, 1
    %p208 = por %p206, %p207
    %p209 = scmp.ne.s32.totalorder %s200, %s201
    %p210 = scmp.eq.s32.totalorder %s22, 0
    %p211 = por %p209, %p210
    %p212 = scmp.ne.s32.totalorder %s200, %s201
    %p213 = scmp.eq.s32.totalorder %s23, 1
    %p214 = por %p212, %p213
    %p216 = scmp.ne.s32.totalorder %s201, %s215
    %p217 = scmp.eq.s32.totalorder %s23, 0
    %p218 = por %p216, %p217
    %s220 = sadd.s32 %s219, 1
    %p223 = scmp.eq.s32.totalorder %s17, 1
    %p224 = scmp.ne.s32.totalorder %s219, %s221
    %p225 = scmp.eq.s32.totalorder %s17, 0
    %p226 = por %p224, %p225
    %p227 = scmp.ne.s32.totalorder %s219, %s221
    %p228 = scmp.eq.s32.totalorder %s22, 1
    %p229 = por %p227, %p228
    %p230 = scmp.ne.s32.totalorder %s221, %s222
    %p231 = scmp.eq.s32.totalorder %s22, 0
    %p232 = por %p230, %p231
    %p233 = scmp.ne.s32.totalorder %s221, %s222
    %p234 = scmp.eq.s32.totalorder %s23, 1
    %p235 = por %p233, %p234
    %p237 = scmp.ne.s32.totalorder %s222, %s236
    %p238 = scmp.eq.s32.totalorder %s23, 0
    %p239 = por %p237, %p238
    %s241 = sadd.s32 %s240, 1
    %p244 = scmp.eq.s32.totalorder %s17, 1
    %p245 = scmp.ne.s32.totalorder %s240, %s242
    %p246 = scmp.eq.s32.totalorder %s17, 0
    %p247 = por %p245, %p246
    %p248 = scmp.ne.s32.totalorder %s240, %s242
    %p249 = scmp.eq.s32.totalorder %s22, 1
    %p250 = por %p248, %p249
    %p251 = scmp.ne.s32.totalorder %s242, %s243
    %p252 = scmp.eq.s32.totalorder %s22, 0
    %p253 = por %p251, %p252
    %p254 = scmp.ne.s32.totalorder %s242, %s243
    %p255 = scmp.eq.s32.totalorder %s23, 1
    %p256 = por %p254, %p255
    %p258 = scmp.ne.s32.totalorder %s243, %s257
    %p259 = scmp.eq.s32.totalorder %s23, 0
    %p260 = por %p258, %p259
    %s261 = ssub.s32 %s17, %s24
    %p262 = scmp.eq.s32.totalorder %s261, 0
    %s264 = sadd.s32 %s263, 1
    %s265 = scalar_select %p262, %s263, %s264
    %p268 = pneg %p262
    %p269 = scmp.eq.s32.totalorder %s17, 1
    %p270 = por %p268, %p269
    %p271 = scmp.ne.s32.totalorder %s263, %s266
    %p272 = scmp.eq.s32.totalorder %s17, 0
    %p273 = por %p271, %p272
    %p274 = scmp.ne.s32.totalorder %s263, %s266
    %p275 = scmp.eq.s32.totalorder %s22, 1
    %p276 = por %p274, %p275
    %p277 = scmp.ne.s32.totalorder %s266, %s267
    %p278 = scmp.eq.s32.totalorder %s22, 0
    %p279 = por %p277, %p278
    %p280 = scmp.ne.s32.totalorder %s266, %s267
    %p281 = scmp.eq.s32.totalorder %s23, 1
    %p282 = por %p280, %p281
    %p284 = scmp.ne.s32.totalorder %s267, %s283
    %p285 = scmp.eq.s32.totalorder %s23, 0
    %p286 = por %p284, %p285
    %p287 = scmp.le.s32.totalorder 1, %s17
    %p288 = scmp.lt.s32.totalorder %s17, 3
    %p289 = pnand %p287, %p288
    %p290 = pneg %p289
    // Predicated region
    $region9: #{_lambda_.45} parent=5 // pred_check
      _
    $region10: #{_lambda_.45} parent=5 // pred_check_branch
      %292 = sbr.rel (%p289) target = $region12
    $region11: #{_lambda_.45} parent=5 // pred_region
      %s293 = ssub.s32 %s17, 1
      // Predicated region
      $region13: #{_lambda_.45} parent=11 // pred_check
        %p294 = pneg %p64
      $region14: #{_lambda_.45} parent=11 // pred_check_branch
        %296 = sbr.rel (%p294) target = $region16
      $region15: #{_lambda_.45} parent=11 // pred_region
        _
      $region16: #{_lambda_.45} parent=11 // pred_fallthru
        _
      // Predicated region
      $region17: #{_lambda_.45} parent=11 // pred_check
        %p297 = pneg %p85
      $region18: #{_lambda_.45} parent=11 // pred_check_branch
        %299 = sbr.rel (%p297) target = $region20
      $region19: #{_lambda_.45} parent=11 // pred_region
        _
      $region20: #{_lambda_.45} parent=11 // pred_fallthru
        _
      // Predicated region
      $region21: #{_lambda_.45} parent=11 // pred_check
        %p300 = pneg %p106
      $region22: #{_lambda_.45} parent=11 // pred_check_branch
        %302 = sbr.rel (%p300) target = $region24
      $region23: #{_lambda_.45} parent=11 // pred_region
        _
      $region24: #{_lambda_.45} parent=11 // pred_fallthru
        _
      // Predicated region
      $region25: #{_lambda_.45} parent=11 // pred_check
        %p303 = pneg %p127
      $region26: #{_lambda_.45} parent=11 // pred_check_branch
        %305 = sbr.rel (%p303) target = $region28
      $region27: #{_lambda_.45} parent=11 // pred_region
        _
      $region28: #{_lambda_.45} parent=11 // pred_fallthru
        _
      // Predicated region
      $region29: #{_lambda_.45} parent=11 // pred_check
        %p306 = pneg %p148
      $region30: #{_lambda_.45} parent=11 // pred_check_branch
        %308 = sbr.rel (%p306) target = $region32
      $region31: #{_lambda_.45} parent=11 // pred_region
        _
      $region32: #{_lambda_.45} parent=11 // pred_fallthru
        _
      // Predicated region
      $region33: #{_lambda_.45} parent=11 // pred_check
        %p309 = pneg %p169
      $region34: #{_lambda_.45} parent=11 // pred_check_branch
        %311 = sbr.rel (%p309) target = $region36
      $region35: #{_lambda_.45} parent=11 // pred_region
        _
      $region36: #{_lambda_.45} parent=11 // pred_fallthru
        _
      // Predicated region
      $region37: #{_lambda_.45} parent=11 // pred_check
        %p312 = pneg %p190
      $region38: #{_lambda_.45} parent=11 // pred_check_branch
        %314 = sbr.rel (%p312) target = $region40
      $region39: #{_lambda_.45} parent=11 // pred_region
        _
      $region40: #{_lambda_.45} parent=11 // pred_fallthru
        _
      // Predicated region
      $region41: #{_lambda_.45} parent=11 // pred_check
        %p315 = pneg %p211
      $region42: #{_lambda_.45} parent=11 // pred_check_branch
        %317 = sbr.rel (%p315) target = $region44
      $region43: #{_lambda_.45} parent=11 // pred_region
        _
      $region44: #{_lambda_.45} parent=11 // pred_fallthru
        _
      // Predicated region
      $region45: #{_lambda_.45} parent=11 // pred_check
        %p318 = pneg %p232
      $region46: #{_lambda_.45} parent=11 // pred_check_branch
        %320 = sbr.rel (%p318) target = $region48
      $region47: #{_lambda_.45} parent=11 // pred_region
        _
      $region48: #{_lambda_.45} parent=11 // pred_fallthru
        _
      // Predicated region
      $region49: #{_lambda_.45} parent=11 // pred_check
        %p321 = pneg %p253
      $region50: #{_lambda_.45} parent=11 // pred_check_branch
        %323 = sbr.rel (%p321) target = $region52
      $region51: #{_lambda_.45} parent=11 // pred_region
        _
      $region52: #{_lambda_.45} parent=11 // pred_fallthru
        _
    $region12: #{_lambda_.45} parent=5 // pred_fallthru
      _
    %p324 = scmp.lt.s32.totalorder %s17, 2
    // Predicated region
    $region53: #{_lambda_.45} parent=5 // pred_check
      %p325 = pneg %p324
    $region54: #{_lambda_.45} parent=5 // pred_check_branch
      %327 = sbr.rel (%p325) target = $region56
    $region55: #{_lambda_.45} parent=5 // pred_region
      // Predicated region
      $region57: #{_lambda_.45} parent=55 // pred_check
        %p328 = pneg %p37
      $region58: #{_lambda_.45} parent=55 // pred_check_branch
        %330 = sbr.rel (%p328) target = $region60
      $region59: #{_lambda_.45} parent=55 // pred_region
        %p331 = scmp.lt.s32.totalorder %s17, 1
        %s332 = scalar_select %p331, %s17, 1
        %s333 = smul.addr %s332, 3
        %s334 = smul.addr %s333, 8
        %s335 = scalar_lea.vmem %s0, %s334
      $region60: #{_lambda_.45} parent=55 // pred_fallthru
        _
    $region56: #{_lambda_.45} parent=5 // pred_fallthru
      _
    %p336 = scmp.le.s32.totalorder 1, %s17
    %p337 = scmp.lt.s32.totalorder %s17, 3
    %p338 = pnand %p336, %p337
    %p339 = pneg %p338
    // Predicated region
    $region61: #{_lambda_.45} parent=5 // pred_check
      _
    $region62: #{_lambda_.45} parent=5 // pred_check_branch
      %341 = sbr.rel (%p338) target = $region64
    $region63: #{_lambda_.45} parent=5 // pred_region
      %s342 = ssub.s32 %s17, 1
      %p343 = scmp.lt.s32.totalorder %s22, 1
      %s344 = scalar_select %p343, %s22, 1
      %s345 = smul.addr %s344, 3
      %s346 = smul.addr %s345, 8
      %s347 = scalar_lea.vmem %s0, %s346
      %p348 = pneg %p43
      %p349 = pneg %p40
      %p350 = pneg %p64
      %p351 = pneg %p61
      %p352 = pneg %p85
      %p353 = pneg %p82
      %p354 = pneg %p106
      %p355 = pneg %p103
      %p356 = pneg %p127
      %p357 = pneg %p124
      %p358 = pneg %p148
      %p359 = pneg %p145
      %p360 = pneg %p169
      %p361 = pneg %p166
      %p362 = pneg %p190
      %p363 = pneg %p187
      %p364 = pneg %p211
      %p365 = pneg %p208
      %p366 = pneg %p232
      %p367 = pneg %p229
      %p368 = pneg %p253
      %p369 = pneg %p250
      %p370 = pneg %p279
      %p371 = pneg %p276
      %p372 = scmp.lt.s32.totalorder %s22, 1
      %s373 = scalar_select %p372, %s22, 1
      %s374 = smul.addr %s373, 3
      %s375 = smul.addr %s374, 8
      %s376 = scalar_lea.vmem %s11, %s375
      %p377 = scmp.lt.s32.totalorder %s22, 1
      %s378 = scalar_select %p377, %s22, 1
      %s379 = smul.addr %s378, 3
      %s380 = smul.addr %s379, 8
      %s381 = scalar_lea.vmem %s0, %s380
      %p382 = scmp.lt.s32.totalorder %s22, 1
      %s383 = scalar_select %p382, %s22, 1
      %s384 = smul.addr %s383, 3
      %s385 = smul.addr %s384, 8
      %s386 = scalar_lea.vmem %s11, %s385
      %v388 = vld [vmem:[%s381] sm:$0xff]
      %v389 = vld [vmem:[%s381 + $0x8] sm:$0xff]
      %v390 = vld [vmem:[%s381 + $0x10] sm:$0x1]
      %v391 = vld [vmem:[%s1] sm:$0x1]
      %v392 = vld [vmem:[%s2] sm:$0x1]
      %vm393 = vcmask 261120
      %v394 = vsel %vm393, %v388, 0.0
      %395 = vadd.xlane.f32.xlu0 %v394
      %v396 = vpop.xlane.xlu0 %395
      %v397 = vsel %vm393, %v389, 0.0
      %398 = vadd.xlane.f32.xlu0 %v397
      %v399 = vpop.xlane.xlu0 %398
      %vm400 = vcmask 253952
      %v401 = vsel %vm400, %v390, 0.0
      %402 = vadd.xlane.f32.xlu0 %v401
      %v403 = vpop.xlane.xlu0 %402
      %v404 = vrcp.pop 32.0
      %v405 = vmul.f32 %v396, %v404
      %v406 = vmul.f32 %v399, %v404
      %v407 = vmul.f32 %v403, %v404
      %v408 = vsub.f32 %v388, %v405
      %v409 = vsub.f32 %v389, %v406
      %v410 = vsub.f32 %v390, %v407
      %v411 = vmul.f32 %v408, %v408
      %v412 = vmul.f32 %v409, %v409
      %v413 = vmul.f32 %v410, %v410
      %v414 = vsel %vm393, %v411, 0.0
      %415 = vadd.xlane.f32.xlu0 %v414
      %v416 = vpop.xlane.xlu0 %415
      %v417 = vsel %vm393, %v412, 0.0
      %418 = vadd.xlane.f32.xlu0 %v417
      %v419 = vpop.xlane.xlu0 %418
      %v420 = vsel %vm400, %v413, 0.0
      %421 = vadd.xlane.f32.xlu0 %v420
      %v422 = vpop.xlane.xlu0 %421
      %v423 = vmul.f32 %v416, %v404
      %v424 = vmul.f32 %v419, %v404
      %v425 = vmul.f32 %v422, %v404
      %v426 = vadd.f32 %v423, 1e-05
      %v427 = vadd.f32 %v424, 1e-05
      %v428 = vadd.f32 %v425, 1e-05
      %v429 = vrsqrt.pop %v426
      %v430 = vrsqrt.pop %v427
      %v431 = vrsqrt.pop %v428
      %v432 = vmul.f32 %v408, %v429
      %v433 = vmul.f32 %v409, %v430
      %v434 = vmul.f32 %v410, %v431
      %v436 = vlaneseq
      %v437 = vshrl.u32 %v436, 7
      %v438 = vsub.s32 0, %v437
      %v439 = vrot.slane %v391, %v438
      %v441 = vmul.f32 %v432, %v439
      %v442 = vmul.f32 %v433, %v439
      %v443 = vmul.f32 %v434, %v439
      %v445 = vlaneseq
      %v446 = vshrl.u32 %v445, 7
      %v447 = vsub.s32 0, %v446
      %v448 = vrot.slane %v392, %v447
      %v450 = vadd.f32 %v441, %v448
      %v451 = vadd.f32 %v442, %v448
      %v452 = vadd.f32 %v443, %v448
      %v453 = vpack.c.bf16 %v451, %v450
      %v454 = vpack.c.bf16 %v452, %v452
      %v455 = vld [vmem:[%s10] sm:$0x1]
      %v457 = vlaneseq
      %v458 = vshrl.u32 %v457, 7
      %v459 = vsub.s32 0, %v458
      %v460 = vrot.slane %v455, %v459
      %v462 = vadd.f32 %v388, %v460
      %v463 = vadd.f32 %v389, %v460
      %v464 = vadd.f32 %v390, %v460
      %v465 = vld [vmem:[%s3] sm:$0xf]
      %v466 = vld [vmem:[%s3 + $0x4] sm:$0xf]
      %v467 = vld [vmem:[%s3 + $0x8] sm:$0xf]
      %v468 = vld [vmem:[%s3 + $0xc] sm:$0xf]
      %v469 = vld [vmem:[%s6] sm:$0x1]
      %v471 = vlaneseq
      %v472 = vshrl.u32 %v471, 7
      %v473 = vsub.s32 0, %v472
      %v474 = vrot.slane %v469, %v473
      %v480 = vunpack.c.l.b16 %v465
      %v481 = vunpack.c.l.b16 %v466
      %v482 = vunpack.c.l.b16 %v467
      %v483 = vunpack.c.l.b16 %v468
      %v484 = vpack.c.b16 %v481, %v480
      %v485 = vpack.c.b16 %v483, %v482
      %v489 = vsel %vm393, %v453, 0
      %v492 = vsel %vm393, %v454, 0
      %494 = vmatprep.subr.bf16.mxu0 0
      %495 = vmatpush1.bf16.msra.mxu0 %v484
      %496 = vmatprep.subr.bf16.mxu0 0
      %497 = vmatpush1.bf16.msra.mxu0 %v485
      %498 = vmatprep.subr.bf16.mxu0 0
      %499 = vmatpush1.bf16.msra.mxu0 0
      %500 = vmatprep.subr.bf16.mxu0 0
      %501 = vmatpush1.bf16.msra.mxu0 0
      %502 = vmatprep.subr.bf16.mxu0 0
      %503 = vmatpush1.bf16.msra.mxu0 0
      %504 = vmatprep.subr.bf16.mxu0 0
      %505 = vmatpush1.bf16.msra.mxu0 0
      %506 = vmatprep.subr.bf16.mxu0 0
      %507 = vmatpush1.bf16.msra.mxu0 0
      %508 = vmatprep.subr.bf16.mxu0 0
      %509 = vmatpush1.bf16.msra.mxu0 0
      %510 = vmatprep.subr.bf16.mxu0 0
      %511 = vmatpush1.bf16.msra.mxu0 0
      %512 = vmatprep.subr.bf16.mxu0 0
      %513 = vmatpush1.bf16.msra.mxu0 0
      %514 = vmatprep.subr.bf16.mxu0 0
      %515 = vmatpush1.bf16.msra.mxu0 0
      %516 = vmatprep.subr.bf16.mxu0 0
      %517 = vmatpush1.bf16.msra.mxu0 0
      %518 = vmatprep.subr.bf16.mxu0 0
      %519 = vmatpush1.bf16.msra.mxu0 0
      %520 = vmatprep.subr.bf16.mxu0 0
      %521 = vmatpush1.bf16.msra.mxu0 0
      %522 = vmatprep.subr.bf16.mxu0 0
      %523 = vmatpush1.bf16.msra.mxu0 0
      %524 = vmatprep.subr.bf16.mxu0 0
      %525 = vmatpush1.bf16.msra.mxu0 0
      %526 = vmatprep.mubr.bf16.mxu0 0
      %527 = vmatmul.mubr.bf16.gmra.mrb[0].mxu0 %v489
      %v528 = vpop.f32.mrb[0].mxu0
      %v529 = vadd.f32 %v474, %v528
      %v530 = vpop.f32.mrb[0].mxu0
      %v531 = vpop.f32.mrb[0].mxu0
      %v532 = vadd.f32 %v474, %v531
      %v533 = vpop.f32.mrb[0].mxu0
      %534 = vmatprep.mubr.bf16.mxu0 0
      %535 = vmatmul.mubr.bf16.gmra.mrb[0].mxu0 %v492
      %v536 = vpop.f32.mrb[0].mxu0
      %v537 = vadd.f32 %v474, %v536
      %v538 = vpop.f32.mrb[0].mxu0
      %v539 = vpop.f32.mrb[0].mxu0
      %v540 = vpop.f32.mrb[0].mxu0
      %541 = vdwg.mxu0
      %v542 = vld [vmem:[%s4] sm:$0xf]
      %v543 = vld [vmem:[%s4 + $0x4] sm:$0xf]
      %v544 = vld [vmem:[%s4 + $0x8] sm:$0xf]
      %v545 = vld [vmem:[%s4 + $0xc] sm:$0xf]
      %v546 = vld [vmem:[%s7] sm:$0x1]
      %v548 = vlaneseq
      %v549 = vshrl.u32 %v548, 7
      %v550 = vsub.s32 0, %v549
      %v551 = vrot.slane %v546, %v550
      %v557 = vunpack.c.l.b16 %v542
      %v558 = vunpack.c.l.b16 %v543
      %v559 = vunpack.c.l.b16 %v544
      %v560 = vunpack.c.l.b16 %v545
      %v561 = vpack.c.b16 %v558, %v557
      %v562 = vpack.c.b16 %v560, %v559
      %565 = vmatprep.subr.bf16.mxu0 0
      %566 = vmatpush1.bf16.msra.mxu0 %v561
      %567 = vmatprep.subr.bf16.mxu0 0
      %568 = vmatpush1.bf16.msra.mxu0 %v562
      %569 = vmatprep.subr.bf16.mxu0 0
      %570 = vmatpush1.bf16.msra.mxu0 0
      %571 = vmatprep.subr.bf16.mxu0 0
      %572 = vmatpush1.bf16.msra.mxu0 0
      %573 = vmatprep.subr.bf16.mxu0 0
      %574 = vmatpush1.bf16.msra.mxu0 0
      %575 = vmatprep.subr.bf16.mxu0 0
      %576 = vmatpush1.bf16.msra.mxu0 0
      %577 = vmatprep.subr.bf16.mxu0 0
      %578 = vmatpush1.bf16.msra.mxu0 0
      %579 = vmatprep.subr.bf16.mxu0 0
      %580 = vmatpush1.bf16.msra.mxu0 0
      %581 = vmatprep.subr.bf16.mxu0 0
      %582 = vmatpush1.bf16.msra.mxu0 0
      %583 = vmatprep.subr.bf16.mxu0 0
      %584 = vmatpush1.bf16.msra.mxu0 0
      %585 = vmatprep.subr.bf16.mxu0 0
      %586 = vmatpush1.bf16.msra.mxu0 0
      %587 = vmatprep.subr.bf16.mxu0 0
      %588 = vmatpush1.bf16.msra.mxu0 0
      %589 = vmatprep.subr.bf16.mxu0 0
      %590 = vmatpush1.bf16.msra.mxu0 0
      %591 = vmatprep.subr.bf16.mxu0 0
      %592 = vmatpush1.bf16.msra.mxu0 0
      %593 = vmatprep.subr.bf16.mxu0 0
      %594 = vmatpush1.bf16.msra.mxu0 0
      %595 = vmatprep.subr.bf16.mxu0 0
      %596 = vmatpush1.bf16.msra.mxu0 0
      %597 = vmatprep.mubr.bf16.mxu0 0
      %598 = vmatmul.mubr.bf16.gmra.mrb[0].mxu0 %v489
      %v599 = vpop.f32.mrb[0].mxu0
      %v600 = vadd.f32 %v551, %v599
      %v601 = vpop.f32.mrb[0].mxu0
      %v602 = vpop.f32.mrb[0].mxu0
      %v603 = vadd.f32 %v551, %v602
      %v604 = vpop.f32.mrb[0].mxu0
      %605 = vmatprep.mubr.bf16.mxu0 0
      %606 = vmatmul.mubr.bf16.gmra.mrb[0].mxu0 %v492
      %v607 = vpop.f32.mrb[0].mxu0
      %v608 = vadd.f32 %v551, %v607
      %v609 = vpop.f32.mrb[0].mxu0
      %v610 = vpop.f32.mrb[0].mxu0
      %v611 = vpop.f32.mrb[0].mxu0
      %612 = vdwg.mxu0
      %v613 = vld [vmem:[%s5] sm:$0xf]
      %v614 = vld [vmem:[%s5 + $0x4] sm:$0xf]
      %v615 = vld [vmem:[%s5 + $0x8] sm:$0xf]
      %v616 = vld [vmem:[%s5 + $0xc] sm:$0xf]
      %v617 = vld [vmem:[%s8] sm:$0x1]
      %v619 = vlaneseq
      %v620 = vshrl.u32 %v619, 7
      %v621 = vsub.s32 0, %v620
      %v622 = vrot.slane %v617, %v621
      %v628 = vunpack.c.l.b16 %v613
      %v629 = vunpack.c.l.b16 %v614
      %v630 = vunpack.c.l.b16 %v615
      %v631 = vunpack.c.l.b16 %v616
      %v632 = vpack.c.b16 %v629, %v628
      %v633 = vpack.c.b16 %v631, %v630
      %636 = vmatprep.subr.bf16.mxu0 0
      %637 = vmatpush1.bf16.msra.mxu0 %v632
      %638 = vmatprep.subr.bf16.mxu0 0
      %639 = vmatpush1.bf16.msra.mxu0 %v633
      %640 = vmatprep.subr.bf16.mxu0 0
      %641 = vmatpush1.bf16.msra.mxu0 0
      %642 = vmatprep.subr.bf16.mxu0 0
      %643 = vmatpush1.bf16.msra.mxu0 0
      %644 = vmatprep.subr.bf16.mxu0 0
      %645 = vmatpush1.bf16.msra.mxu0 0
      %646 = vmatprep.subr.bf16.mxu0 0
      %647 = vmatpush1.bf16.msra.mxu0 0
      %648 = vmatprep.subr.bf16.mxu0 0
      %649 = vmatpush1.bf16.msra.mxu0 0
      %650 = vmatprep.subr.bf16.mxu0 0
      %651 = vmatpush1.bf16.msra.mxu0 0
      %652 = vmatprep.subr.bf16.mxu0 0
      %653 = vmatpush1.bf16.msra.mxu0 0
      %654 = vmatprep.subr.bf16.mxu0 0
      %655 = vmatpush1.bf16.msra.mxu0 0
      %656 = vmatprep.subr.bf16.mxu0 0
      %657 = vmatpush1.bf16.msra.mxu0 0
      %658 = vmatprep.subr.bf16.mxu0 0
      %659 = vmatpush1.bf16.msra.mxu0 0
      %660 = vmatprep.subr.bf16.mxu0 0
      %661 = vmatpush1.bf16.msra.mxu0 0
      %662 = vmatprep.subr.bf16.mxu0 0
      %663 = vmatpush1.bf16.msra.mxu0 0
      %664 = vmatprep.subr.bf16.mxu0 0
      %665 = vmatpush1.bf16.msra.mxu0 0
      %666 = vmatprep.subr.bf16.mxu0 0
      %667 = vmatpush1.bf16.msra.mxu0 0
      %668 = vmatprep.mubr.bf16.mxu0 0
      %669 = vmatmul.mubr.bf16.gmra.mrb[0].mxu0 %v489
      %v670 = vpop.f32.mrb[0].mxu0
      %v671 = vadd.f32 %v622, %v670
      %v672 = vpop.f32.mrb[0].mxu0
      %v673 = vpop.f32.mrb[0].mxu0
      %v674 = vadd.f32 %v622, %v673
      %v675 = vpop.f32.mrb[0].mxu0
      %676 = vmatprep.mubr.bf16.mxu0 0
      %677 = vmatmul.mubr.bf16.gmra.mrb[0].mxu0 %v492
      %v678 = vpop.f32.mrb[0].mxu0
      %v679 = vadd.f32 %v622, %v678
      %v680 = vpop.f32.mrb[0].mxu0
      %v681 = vpop.f32.mrb[0].mxu0
      %v682 = vpop.f32.mrb[0].mxu0
      %683 = vdwg.mxu0
      %v684 = vpack.c.bf16 %v532, %v529
      %v685 = vpack.c.bf16 %v537, %v537
      %v686 = vpack.c.bf16 %v603, %v600
      %v687 = vpack.c.bf16 %v608, %v608
      %vm688 = vcmask 64512
      %v690 = vsel %vm688, %v684, 0
      %v693 = vsel %vm688, %v685, 0
      %v696 = vsel %vm688, %v686, 0
      %v699 = vsel %vm688, %v687, 0
      %701 = vmatprep.subr.bf16.mxu0 0
      %702 = vmatpush1.bf16.xpose.msra.mxu0 %v696
      %703 = vmatprep.subr.bf16.mxu0 0
      %704 = vmatpush1.bf16.xpose.msra.mxu0 %v699
      %705 = vmatprep.subr.bf16.mxu0 0
      %706 = vmatpush1.bf16.xpose.msra.mxu0 0
      %707 = vmatprep.subr.bf16.mxu0 0
      %708 = vmatpush1.bf16.xpose.msra.mxu0 0
      %709 = vmatprep.subr.bf16.mxu0 0
      %710 = vmatpush1.bf16.xpose.msra.mxu0 0
      %711 = vmatprep.subr.bf16.mxu0 0
      %712 = vmatpush1.bf16.xpose.msra.mxu0 0
      %713 = vmatprep.subr.bf16.mxu0 0
      %714 = vmatpush1.bf16.xpose.msra.mxu0 0
      %715 = vmatprep.subr.bf16.mxu0 0
      %716 = vmatpush1.bf16.xpose.msra.mxu0 0
      %717 = vmatprep.subr.bf16.mxu0 0
      %718 = vmatpush1.bf16.xpose.msra.mxu0 0
      %719 = vmatprep.subr.bf16.mxu0 0
      %720 = vmatpush1.bf16.xpose.msra.mxu0 0
      %721 = vmatprep.subr.bf16.mxu0 0
      %722 = vmatpush1.bf16.xpose.msra.mxu0 0
      %723 = vmatprep.subr.bf16.mxu0 0
      %724 = vmatpush1.bf16.xpose.msra.mxu0 0
      %725 = vmatprep.subr.bf16.mxu0 0
      %726 = vmatpush1.bf16.xpose.msra.mxu0 0
      %727 = vmatprep.subr.bf16.mxu0 0
      %728 = vmatpush1.bf16.xpose.msra.mxu0 0
      %729 = vmatprep.subr.bf16.mxu0 0
      %730 = vmatpush1.bf16.xpose.msra.mxu0 0
      %731 = vmatprep.subr.bf16.mxu0 0
      %732 = vmatpush1.bf16.xpose.msra.mxu0 0
      %733 = vmatprep.mubr.bf16.mxu0 0
      %734 = vmatmul.mubr.bf16.gmra.mrb[0].mxu0 %v690
      %v735 = vpop.f32.mrb[0].mxu0
      %v736 = vadd.f32 0.0, %v735
      %v737 = vpop.f32.mrb[0].mxu0
      %v738 = vpop.f32.mrb[0].mxu0
      %v739 = vadd.f32 0.0, %v738
      %v740 = vpop.f32.mrb[0].mxu0
      %741 = vmatprep.mubr.bf16.mxu0 0
      %742 = vmatmul.mubr.bf16.gmra.mrb[0].mxu0 %v693
      %v743 = vpop.f32.mrb[0].mxu0
      %v744 = vadd.f32 0.0, %v743
      %v745 = vpop.f32.mrb[0].mxu0
      %v746 = vpop.f32.mrb[0].mxu0
      %v747 = vpop.f32.mrb[0].mxu0
      %748 = vdwg.mxu0
      %v749 = vmul.f32 %v736, 0.35355338
      %v750 = vmul.f32 %v739, 0.35355338
      %v751 = vmul.f32 %v744, 0.35355338
      %vm752 = vcmask 138240
      %v753 = vsel %vm752, %v749, -inf
      %754 = vmax.xlane.f32.xlu0 %v753
      %v755 = vpop.xlane.xlu0 %754
      %v756 = vsel %vm752, %v750, -inf
      %757 = vmax.xlane.f32.xlu0 %v756
      %v758 = vpop.xlane.xlu0 %757
      %vm759 = vcmask 131072
      %v760 = vsel %vm759, %v751, -inf
      %761 = vmax.xlane.f32.xlu0 %v760
      %v762 = vpop.xlane.xlu0 %761
      %v763 = vsub.f32 %v749, %v755
      %v764 = vsub.f32 %v750, %v758
      %v765 = vsub.f32 %v751, %v762
      %v766 = vmul.f32 %v763, 1.442695
      %v767 = vpow.pop %v766
      %v768 = vmul.f32 %v764, 1.442695
      %v769 = vpow.pop %v768
      %v770 = vmul.f32 %v765, 1.442695
      %v771 = vpow.pop %v770
      %v772 = vsel %vm752, %v767, 0.0
      %773 = vadd.xlane.f32.xlu0 %v772
      %v774 = vpop.xlane.xlu0 %773
      %v775 = vsel %vm752, %v769, 0.0
      %776 = vadd.xlane.f32.xlu0 %v775
      %v777 = vpop.xlane.xlu0 %776
      %v778 = vsel %vm759, %v771, 0.0
      %779 = vadd.xlane.f32.xlu0 %v778
      %v780 = vpop.xlane.xlu0 %779
      %v781 = vrcp.pop %v774
      %v782 = vrcp.pop %v777
      %v783 = vrcp.pop %v780
      %v784 = vmul.f32 %v767, %v781
      %v785 = vmul.f32 %v769, %v782
      %v786 = vmul.f32 %v771, %v783
      %v787 = vpack.c.bf16 %v785, %v784
      %v788 = vpack.c.bf16 %v786, %v786
      %v789 = vpack.c.bf16 %v674, %v671
      %v790 = vpack.c.bf16 %v679, %v679
      %v792 = vsel %vm752, %v787, 0
      %v795 = vsel %vm752, %v788, 0
      %vm797 = vcmask 1040384
      %v798 = vsel 0, 4294967295, 65535
      %v799 = vsel %vm797, %v798, 0
      %v801 = vand.u32 %v790, %v799
      %803 = vmatprep.subr.bf16.mxu0 0
      %804 = vmatpush1.bf16.msra.mxu0 %v789
      %805 = vmatprep.subr.bf16.mxu0 0
      %806 = vmatpush1.bf16.msra.mxu0 %v801
      %807 = vmatprep.subr.bf16.mxu0 0
      %808 = vmatpush1.bf16.msra.mxu0 0
      %809 = vmatprep.subr.bf16.mxu0 0
      %810 = vmatpush1.bf16.msra.mxu0 0
      %811 = vmatprep.subr.bf16.mxu0 0
      %812 = vmatpush1.bf16.msra.mxu0 0
      %813 = vmatprep.subr.bf16.mxu0 0
      %814 = vmatpush1.bf16.msra.mxu0 0
      %815 = vmatprep.subr.bf16.mxu0 0
      %816 = vmatpush1.bf16.msra.mxu0 0
      %817 = vmatprep.subr.bf16.mxu0 0
      %818 = vmatpush1.bf16.msra.mxu0 0
      %819 = vmatprep.subr.bf16.mxu0 0
      %820 = vmatpush1.bf16.msra.mxu0 0
      %821 = vmatprep.subr.bf16.mxu0 0
      %822 = vmatpush1.bf16.msra.mxu0 0
      %823 = vmatprep.subr.bf16.mxu0 0
      %824 = vmatpush1.bf16.msra.mxu0 0
      %825 = vmatprep.subr.bf16.mxu0 0
      %826 = vmatpush1.bf16.msra.mxu0 0
      %827 = vmatprep.subr.bf16.mxu0 0
      %828 = vmatpush1.bf16.msra.mxu0 0
      %829 = vmatprep.subr.bf16.mxu0 0
      %830 = vmatpush1.bf16.msra.mxu0 0
      %831 = vmatprep.subr.bf16.mxu0 0
      %832 = vmatpush1.bf16.msra.mxu0 0
      %833 = vmatprep.subr.bf16.mxu0 0
      %834 = vmatpush1.bf16.msra.mxu0 0
      %835 = vmatprep.mubr.bf16.mxu0 0
      %836 = vmatmul.mubr.bf16.gmra.mrb[0].mxu0 %v792
      %v837 = vpop.f32.mrb[0].mxu0
      %v838 = vadd.f32 0.0, %v837
      %v839 = vpop.f32.mrb[0].mxu0
      %v840 = vpop.f32.mrb[0].mxu0
      %v841 = vadd.f32 0.0, %v840
      %v842 = vpop.f32.mrb[0].mxu0
      %843 = vmatprep.mubr.bf16.mxu0 0
      %844 = vmatmul.mubr.bf16.gmra.mrb[0].mxu0 %v795
      %v845 = vpop.f32.mrb[0].mxu0
      %v846 = vadd.f32 0.0, %v845
      %v847 = vpop.f32.mrb[0].mxu0
      %v848 = vpop.f32.mrb[0].mxu0
      %v849 = vpop.f32.mrb[0].mxu0
      %850 = vdwg.mxu0
      %v851 = vpack.c.bf16 %v841, %v838
      %v852 = vpack.c.bf16 %v846, %v846
      %v853 = vld [vmem:[%s9] sm:$0xf]
      %v855 = vsel %vm688, %v851, 0
      %v858 = vsel %vm688, %v852, 0
      %vm860 = vcmask 1043456
      %v862 = vsel %vm860, %v853, 0
      %864 = vmatprep.subr.bf16.mxu0 0
      %865 = vmatpush1.bf16.msra.mxu0 %v862
      %866 = vmatprep.subr.bf16.mxu0 0
      %867 = vmatpush1.bf16.msra.mxu0 0
      %868 = vmatprep.subr.bf16.mxu0 0
      %869 = vmatpush1.bf16.msra.mxu0 0
      %870 = vmatprep.subr.bf16.mxu0 0
      %871 = vmatpush1.bf16.msra.mxu0 0
      %872 = vmatprep.subr.bf16.mxu0 0
      %873 = vmatpush1.bf16.msra.mxu0 0
      %874 = vmatprep.subr.bf16.mxu0 0
      %875 = vmatpush1.bf16.msra.mxu0 0
      %876 = vmatprep.subr.bf16.mxu0 0
      %877 = vmatpush1.bf16.msra.mxu0 0
      %878 = vmatprep.subr.bf16.mxu0 0
      %879 = vmatpush1.bf16.msra.mxu0 0
      %880 = vmatprep.subr.bf16.mxu0 0
      %881 = vmatpush1.bf16.msra.mxu0 0
      %882 = vmatprep.subr.bf16.mxu0 0
      %883 = vmatpush1.bf16.msra.mxu0 0
      %884 = vmatprep.subr.bf16.mxu0 0
      %885 = vmatpush1.bf16.msra.mxu0 0
      %886 = vmatprep.subr.bf16.mxu0 0
      %887 = vmatpush1.bf16.msra.mxu0 0
      %888 = vmatprep.subr.bf16.mxu0 0
      %889 = vmatpush1.bf16.msra.mxu0 0
      %890 = vmatprep.subr.bf16.mxu0 0
      %891 = vmatpush1.bf16.msra.mxu0 0
      %892 = vmatprep.subr.bf16.mxu0 0
      %893 = vmatpush1.bf16.msra.mxu0 0
      %894 = vmatprep.subr.bf16.mxu0 0
      %895 = vmatpush1.bf16.msra.mxu0 0
      %896 = vmatprep.mubr.bf16.mxu0 0
      %897 = vmatmul.mubr.bf16.gmra.mrb[0].mxu0 %v855
      %v898 = vpop.f32.mrb[0].mxu0
      %v899 = vadd.f32 0.0, %v898
      %v900 = vpop.f32.mrb[0].mxu0
      %v901 = vpop.f32.mrb[0].mxu0
      %v902 = vadd.f32 0.0, %v901
      %v903 = vpop.f32.mrb[0].mxu0
      %904 = vmatprep.mubr.bf16.mxu0 0
      %905 = vmatmul.mubr.bf16.gmra.mrb[0].mxu0 %v858
      %v906 = vpop.f32.mrb[0].mxu0
      %v907 = vadd.f32 0.0, %v906
      %v908 = vpop.f32.mrb[0].mxu0
      %v909 = vpop.f32.mrb[0].mxu0
      %v910 = vpop.f32.mrb[0].mxu0
      %911 = vdwg.mxu0
      %v912 = vadd.f32 %v462, %v899
      %v913 = vadd.f32 %v463, %v902
      %v914 = vadd.f32 %v464, %v907
      %s915 = scalar_lea.vmem %s3, 16
      %v916 = vld [vmem:[%s915] sm:$0xf]
      %v917 = vld [vmem:[%s915 + $0x4] sm:$0xf]
      %v918 = vld [vmem:[%s915 + $0x8] sm:$0xf]
      %v919 = vld [vmem:[%s915 + $0xc] sm:$0xf]
      %s920 = scalar_lea.vmem %s6, 1
      %v921 = vld [vmem:[%s920] sm:$0x1]
      %v923 = vlaneseq
      %v924 = vshrl.u32 %v923, 7
      %v925 = vsub.s32 0, %v924
      %v926 = vrot.slane %v921, %v925
      %v932 = vunpack.c.l.b16 %v916
      %v933 = vunpack.c.l.b16 %v917
      %v934 = vunpack.c.l.b16 %v918
      %v935 = vunpack.c.l.b16 %v919
      %v936 = vpack.c.b16 %v933, %v932
      %v937 = vpack.c.b16 %v935, %v934
      %940 = vmatprep.subr.bf16.mxu0 0
      %941 = vmatpush1.bf16.msra.mxu0 %v936
      %942 = vmatprep.subr.bf16.mxu0 0
      %943 = vmatpush1.bf16.msra.mxu0 %v937
      %944 = vmatprep.subr.bf16.mxu0 0
      %945 = vmatpush1.bf16.msra.mxu0 0
      %946 = vmatprep.subr.bf16.mxu0 0
      %947 = vmatpush1.bf16.msra.mxu0 0
      %948 = vmatprep.subr.bf16.mxu0 0
      %949 = vmatpush1.bf16.msra.mxu0 0
      %950 = vmatprep.subr.bf16.mxu0 0
      %951 = vmatpush1.bf16.msra.mxu0 0
      %952 = vmatprep.subr.bf16.mxu0 0
      %953 = vmatpush1.bf16.msra.mxu0 0
      %954 = vmatprep.subr.bf16.mxu0 0
      %955 = vmatpush1.bf16.msra.mxu0 0
      %956 = vmatprep.subr.bf16.mxu0 0
      %957 = vmatpush1.bf16.msra.mxu0 0
      %958 = vmatprep.subr.bf16.mxu0 0
      %959 = vmatpush1.bf16.msra.mxu0 0
      %960 = vmatprep.subr.bf16.mxu0 0
      %961 = vmatpush1.bf16.msra.mxu0 0
      %962 = vmatprep.subr.bf16.mxu0 0
      %963 = vmatpush1.bf16.msra.mxu0 0
      %964 = vmatprep.subr.bf16.mxu0 0
      %965 = vmatpush1.bf16.msra.mxu0 0
      %966 = vmatprep.subr.bf16.mxu0 0
      %967 = vmatpush1.bf16.msra.mxu0 0
      %968 = vmatprep.subr.bf16.mxu0 0
      %969 = vmatpush1.bf16.msra.mxu0 0
      %970 = vmatprep.subr.bf16.mxu0 0
      %971 = vmatpush1.bf16.msra.mxu0 0
      %972 = vmatprep.mubr.bf16.mxu0 0
      %973 = vmatmul.mubr.bf16.gmra.mrb[0].mxu0 %v489
      %v974 = vpop.f32.mrb[0].mxu0
      %v975 = vadd.f32 %v926, %v974
      %v976 = vpop.f32.mrb[0].mxu0
      %v977 = vpop.f32.mrb[0].mxu0
      %v978 = vadd.f32 %v926, %v977
      %v979 = vpop.f32.mrb[0].mxu0
      %980 = vmatprep.mubr.bf16.mxu0 0
      %981 = vmatmul.mubr.bf16.gmra.mrb[0].mxu0 %v492
      %v982 = vpop.f32.mrb[0].mxu0
      %v983 = vadd.f32 %v926, %v982
      %v984 = vpop.f32.mrb[0].mxu0
      %v985 = vpop.f32.mrb[0].mxu0
      %v986 = vpop.f32.mrb[0].mxu0
      %987 = vdwg.mxu0
      %s988 = scalar_lea.vmem %s4, 16
      %v989 = vld [vmem:[%s988] sm:$0xf]
      %v990 = vld [vmem:[%s988 + $0x4] sm:$0xf]
      %v991 = vld [vmem:[%s988 + $0x8] sm:$0xf]
      %v992 = vld [vmem:[%s988 + $0xc] sm:$0xf]
      %s993 = scalar_lea.vmem %s7, 1
      %v994 = vld [vmem:[%s993] sm:$0x1]
      %v996 = vlaneseq
      %v997 = vshrl.u32 %v996, 7
      %v998 = vsub.s32 0, %v997
      %v999 = vrot.slane %v994, %v998
      %v1005 = vunpack.c.l.b16 %v989
      %v1006 = vunpack.c.l.b16 %v990
      %v1007 = vunpack.c.l.b16 %v991
      %v1008 = vunpack.c.l.b16 %v992
      %v1009 = vpack.c.b16 %v1006, %v1005
      %v1010 = vpack.c.b16 %v1008, %v1007
      %1013 = vmatprep.subr.bf16.mxu0 0
      %1014 = vmatpush1.bf16.msra.mxu0 %v1009
      %1015 = vmatprep.subr.bf16.mxu0 0
      %1016 = vmatpush1.bf16.msra.mxu0 %v1010
      %1017 = vmatprep.subr.bf16.mxu0 0
      %1018 = vmatpush1.bf16.msra.mxu0 0
      %1019 = vmatprep.subr.bf16.mxu0 0
      %1020 = vmatpush1.bf16.msra.mxu0 0
      %1021 = vmatprep.subr.bf16.mxu0 0
      %1022 = vmatpush1.bf16.msra.mxu0 0
      %1023 = vmatprep.subr.bf16.mxu0 0
      %1024 = vmatpush1.bf16.msra.mxu0 0
      %1025 = vmatprep.subr.bf16.mxu0 0
      %1026 = vmatpush1.bf16.msra.mxu0 0
      %1027 = vmatprep.subr.bf16.mxu0 0
      %1028 = vmatpush1.bf16.msra.mxu0 0
      %1029 = vmatprep.subr.bf16.mxu0 0
      %1030 = vmatpush1.bf16.msra.mxu0 0
      %1031 = vmatprep.subr.bf16.mxu0 0
      %1032 = vmatpush1.bf16.msra.mxu0 0
      %1033 = vmatprep.subr.bf16.mxu0 0
      %1034 = vmatpush1.bf16.msra.mxu0 0
      %1035 = vmatprep.subr.bf16.mxu0 0
      %1036 = vmatpush1.bf16.msra.mxu0 0
      %1037 = vmatprep.subr.bf16.mxu0 0
      %1038 = vmatpush1.bf16.msra.mxu0 0
      %1039 = vmatprep.subr.bf16.mxu0 0
      %1040 = vmatpush1.bf16.msra.mxu0 0
      %1041 = vmatprep.subr.bf16.mxu0 0
      %1042 = vmatpush1.bf16.msra.mxu0 0
      %1043 = vmatprep.subr.bf16.mxu0 0
      %1044 = vmatpush1.bf16.msra.mxu0 0
      %1045 = vmatprep.mubr.bf16.mxu0 0
      %1046 = vmatmul.mubr.bf16.gmra.mrb[0].mxu0 %v489
      %v1047 = vpop.f32.mrb[0].mxu0
      %v1048 = vadd.f32 %v999, %v1047
      %v1049 = vpop.f32.mrb[0].mxu0
      %v1050 = vpop.f32.mrb[0].mxu0
      %v1051 = vadd.f32 %v999, %v1050
      %v1052 = vpop.f32.mrb[0].mxu0
      %1053 = vmatprep.mubr.bf16.mxu0 0
      %1054 = vmatmul.mubr.bf16.gmra.mrb[0].mxu0 %v492
      %v1055 = vpop.f32.mrb[0].mxu0
      %v1056 = vadd.f32 %v999, %v1055
      %v1057 = vpop.f32.mrb[0].mxu0
      %v1058 = vpop.f32.mrb[0].mxu0
      %v1059 = vpop.f32.mrb[0].mxu0
      %1060 = vdwg.mxu0
      %s1061 = scalar_lea.vmem %s5, 16
      %v1062 = vld [vmem:[%s1061] sm:$0xf]
      %v1063 = vld [vmem:[%s1061 + $0x4] sm:$0xf]
      %v1064 = vld [vmem:[%s1061 + $0x8] sm:$0xf]
      %v1065 = vld [vmem:[%s1061 + $0xc] sm:$0xf]
      %s1066 = scalar_lea.vmem %s8, 1
      %v1067 = vld [vmem:[%s1066] sm:$0x1]
      %v1069 = vlaneseq
      %v1070 = vshrl.u32 %v1069, 7
      %v1071 = vsub.s32 0, %v1070
      %v1072 = vrot.slane %v1067, %v1071
      %v1078 = vunpack.c.l.b16 %v1062
      %v1079 = vunpack.c.l.b16 %v1063
      %v1080 = vunpack.c.l.b16 %v1064
      %v1081 = vunpack.c.l.b16 %v1065
      %v1082 = vpack.c.b16 %v1079, %v1078
      %v1083 = vpack.c.b16 %v1081, %v1080
      %1086 = vmatprep.subr.bf16.mxu0 0
      %1087 = vmatpush1.bf16.msra.mxu0 %v1082
      %1088 = vmatprep.subr.bf16.mxu0 0
      %1089 = vmatpush1.bf16.msra.mxu0 %v1083
      %1090 = vmatprep.subr.bf16.mxu0 0
      %1091 = vmatpush1.bf16.msra.mxu0 0
      %1092 = vmatprep.subr.bf16.mxu0 0
      %1093 = vmatpush1.bf16.msra.mxu0 0
      %1094 = vmatprep.subr.bf16.mxu0 0
      %1095 = vmatpush1.bf16.msra.mxu0 0
      %1096 = vmatprep.subr.bf16.mxu0 0
      %1097 = vmatpush1.bf16.msra.mxu0 0
      %1098 = vmatprep.subr.bf16.mxu0 0
      %1099 = vmatpush1.bf16.msra.mxu0 0
      %1100 = vmatprep.subr.bf16.mxu0 0
      %1101 = vmatpush1.bf16.msra.mxu0 0
      %1102 = vmatprep.subr.bf16.mxu0 0
      %1103 = vmatpush1.bf16.msra.mxu0 0
      %1104 = vmatprep.subr.bf16.mxu0 0
      %1105 = vmatpush1.bf16.msra.mxu0 0
      %1106 = vmatprep.subr.bf16.mxu0 0
      %1107 = vmatpush1.bf16.msra.mxu0 0
      %1108 = vmatprep.subr.bf16.mxu0 0
      %1109 = vmatpush1.bf16.msra.mxu0 0
      %1110 = vmatprep.subr.bf16.mxu0 0
      %1111 = vmatpush1.bf16.msra.mxu0 0
      %1112 = vmatprep.subr.bf16.mxu0 0
      %1113 = vmatpush1.bf16.msra.mxu0 0
      %1114 = vmatprep.subr.bf16.mxu0 0
      %1115 = vmatpush1.bf16.msra.mxu0 0
      %1116 = vmatprep.subr.bf16.mxu0 0
      %1117 = vmatpush1.bf16.msra.mxu0 0
      %1118 = vmatprep.mubr.bf16.mxu0 0
      %1119 = vmatmul.mubr.bf16.gmra.mrb[0].mxu0 %v489
      %v1120 = vpop.f32.mrb[0].mxu0
      %v1121 = vadd.f32 %v1072, %v1120
      %v1122 = vpop.f32.mrb[0].mxu0
      %v1123 = vpop.f32.mrb[0].mxu0
      %v1124 = vadd.f32 %v1072, %v1123
      %v1125 = vpop.f32.mrb[0].mxu0
      %1126 = vmatprep.mubr.bf16.mxu0 0
      %1127 = vmatmul.mubr.bf16.gmra.mrb[0].mxu0 %v492
      %v1128 = vpop.f32.mrb[0].mxu0
      %v1129 = vadd.f32 %v1072, %v1128
      %v1130 = vpop.f32.mrb[0].mxu0
      %v1131 = vpop.f32.mrb[0].mxu0
      %v1132 = vpop.f32.mrb[0].mxu0
      %1133 = vdwg.mxu0
      %v1134 = vpack.c.bf16 %v978, %v975
      %v1135 = vpack.c.bf16 %v983, %v983
      %v1136 = vpack.c.bf16 %v1051, %v1048
      %v1137 = vpack.c.bf16 %v1056, %v1056
      %v1139 = vsel %vm688, %v1134, 0
      %v1142 = vsel %vm688, %v1135, 0
      %v1145 = vsel %vm688, %v1136, 0
      %v1148 = vsel %vm688, %v1137, 0
      %1150 = vmatprep.subr.bf16.mxu0 0
      %1151 = vmatpush1.bf16.xpose.msra.mxu0 %v1145
      %1152 = vmatprep.subr.bf16.mxu0 0
      %1153 = vmatpush1.bf16.xpose.msra.mxu0 %v1148
      %1154 = vmatprep.subr.bf16.mxu0 0
      %1155 = vmatpush1.bf16.xpose.msra.mxu0 0
      %1156 = vmatprep.subr.bf16.mxu0 0
      %1157 = vmatpush1.bf16.xpose.msra.mxu0 0
      %1158 = vmatprep.subr.bf16.mxu0 0
      %1159 = vmatpush1.bf16.xpose.msra.mxu0 0
      %1160 = vmatprep.subr.bf16.mxu0 0
      %1161 = vmatpush1.bf16.xpose.msra.mxu0 0
      %1162 = vmatprep.subr.bf16.mxu0 0
      %1163 = vmatpush1.bf16.xpose.msra.mxu0 0
      %1164 = vmatprep.subr.bf16.mxu0 0
      %1165 = vmatpush1.bf16.xpose.msra.mxu0 0
      %1166 = vmatprep.subr.bf16.mxu0 0
      %1167 = vmatpush1.bf16.xpose.msra.mxu0 0
      %1168 = vmatprep.subr.bf16.mxu0 0
      %1169 = vmatpush1.bf16.xpose.msra.mxu0 0
      %1170 = vmatprep.subr.bf16.mxu0 0
      %1171 = vmatpush1.bf16.xpose.msra.mxu0 0
      %1172 = vmatprep.subr.bf16.mxu0 0
      %1173 = vmatpush1.bf16.xpose.msra.mxu0 0
      %1174 = vmatprep.subr.bf16.mxu0 0
      %1175 = vmatpush1.bf16.xpose.msra.mxu0 0
      %1176 = vmatprep.subr.bf16.mxu0 0
      %1177 = vmatpush1.bf16.xpose.msra.mxu0 0
      %1178 = vmatprep.subr.bf16.mxu0 0
      %1179 = vmatpush1.bf16.xpose.msra.mxu0 0
      %1180 = vmatprep.subr.bf16.mxu0 0
      %1181 = vmatpush1.bf16.xpose.msra.mxu0 0
      %1182 = vmatprep.mubr.bf16.mxu0 0
      %1183 = vmatmul.mubr.bf16.gmra.mrb[0].mxu0 %v1139
      %v1184 = vpop.f32.mrb[0].mxu0
      %v1185 = vadd.f32 0.0, %v1184
      %v1186 = vpop.f32.mrb[0].mxu0
      %v1187 = vpop.f32.mrb[0].mxu0
      %v1188 = vadd.f32 0.0, %v1187
      %v1189 = vpop.f32.mrb[0].mxu0
      %1190 = vmatprep.mubr.bf16.mxu0 0
      %1191 = vmatmul.mubr.bf16.gmra.mrb[0].mxu0 %v1142
      %v1192 = vpop.f32.mrb[0].mxu0
      %v1193 = vadd.f32 0.0, %v1192
      %v1194 = vpop.f32.mrb[0].mxu0
      %v1195 = vpop.f32.mrb[0].mxu0
      %v1196 = vpop.f32.mrb[0].mxu0
      %1197 = vdwg.mxu0
      %v1198 = vmul.f32 %v1185, 0.35355338
      %v1199 = vmul.f32 %v1188, 0.35355338
      %v1200 = vmul.f32 %v1193, 0.35355338
      %v1201 = vsel %vm752, %v1198, -inf
      %1202 = vmax.xlane.f32.xlu0 %v1201
      %v1203 = vpop.xlane.xlu0 %1202
      %v1204 = vsel %vm752, %v1199, -inf
      %1205 = vmax.xlane.f32.xlu0 %v1204
      %v1206 = vpop.xlane.xlu0 %1205
      %v1207 = vsel %vm759, %v1200, -inf
      %1208 = vmax.xlane.f32.xlu0 %v1207
      %v1209 = vpop.xlane.xlu0 %1208
      %v1210 = vsub.f32 %v1198, %v1203
      %v1211 = vsub.f32 %v1199, %v1206
      %v1212 = vsub.f32 %v1200, %v1209
      %v1213 = vmul.f32 %v1210, 1.442695
      %v1214 = vpow.pop %v1213
      %v1215 = vmul.f32 %v1211, 1.442695
      %v1216 = vpow.pop %v1215
      %v1217 = vmul.f32 %v1212, 1.442695
      %v1218 = vpow.pop %v1217
      %v1219 = vsel %vm752, %v1214, 0.0
      %1220 = vadd.xlane.f32.xlu0 %v1219
      %v1221 = vpop.xlane.xlu0 %1220
      %v1222 = vsel %vm752, %v1216, 0.0
      %1223 = vadd.xlane.f32.xlu0 %v1222
      %v1224 = vpop.xlane.xlu0 %1223
      %v1225 = vsel %vm759, %v1218, 0.0
      %1226 = vadd.xlane.f32.xlu0 %v1225
      %v1227 = vpop.xlane.xlu0 %1226
      %v1228 = vrcp.pop %v1221
      %v1229 = vrcp.pop %v1224
      %v1230 = vrcp.pop %v1227
      %v1231 = vmul.f32 %v1214, %v1228
      %v1232 = vmul.f32 %v1216, %v1229
      %v1233 = vmul.f32 %v1218, %v1230
      %v1234 = vpack.c.bf16 %v1232, %v1231
      %v1235 = vpack.c.bf16 %v1233, %v1233
      %v1236 = vpack.c.bf16 %v1124, %v1121
      %v1237 = vpack.c.bf16 %v1129, %v1129
      %v1239 = vsel %vm752, %v1234, 0
      %v1242 = vsel %vm752, %v1235, 0
      %v1245 = vand.u32 %v1237, %v799
      %1247 = vmatprep.subr.bf16.mxu0 0
      %1248 = vmatpush1.bf16.msra.mxu0 %v1236
      %1249 = vmatprep.subr.bf16.mxu0 0
      %1250 = vmatpush1.bf16.msra.mxu0 %v1245
      %1251 = vmatprep.subr.bf16.mxu0 0
      %1252 = vmatpush1.bf16.msra.mxu0 0
      %1253 = vmatprep.subr.bf16.mxu0 0
      %1254 = vmatpush1.bf16.msra.mxu0 0
      %1255 = vmatprep.subr.bf16.mxu0 0
      %1256 = vmatpush1.bf16.msra.mxu0 0
      %1257 = vmatprep.subr.bf16.mxu0 0
      %1258 = vmatpush1.bf16.msra.mxu0 0
      %1259 = vmatprep.subr.bf16.mxu0 0
      %1260 = vmatpush1.bf16.msra.mxu0 0
      %1261 = vmatprep.subr.bf16.mxu0 0
      %1262 = vmatpush1.bf16.msra.mxu0 0
      %1263 = vmatprep.subr.bf16.mxu0 0
      %1264 = vmatpush1.bf16.msra.mxu0 0
      %1265 = vmatprep.subr.bf16.mxu0 0
      %1266 = vmatpush1.bf16.msra.mxu0 0
      %1267 = vmatprep.subr.bf16.mxu0 0
      %1268 = vmatpush1.bf16.msra.mxu0 0
      %1269 = vmatprep.subr.bf16.mxu0 0
      %1270 = vmatpush1.bf16.msra.mxu0 0
      %1271 = vmatprep.subr.bf16.mxu0 0
      %1272 = vmatpush1.bf16.msra.mxu0 0
      %1273 = vmatprep.subr.bf16.mxu0 0
      %1274 = vmatpush1.bf16.msra.mxu0 0
      %1275 = vmatprep.subr.bf16.mxu0 0
      %1276 = vmatpush1.bf16.msra.mxu0 0
      %1277 = vmatprep.subr.bf16.mxu0 0
      %1278 = vmatpush1.bf16.msra.mxu0 0
      %1279 = vmatprep.mubr.bf16.mxu0 0
      %1280 = vmatmul.mubr.bf16.gmra.mrb[0].mxu0 %v1239
      %v1281 = vpop.f32.mrb[0].mxu0
      %v1282 = vadd.f32 0.0, %v1281
      %v1283 = vpop.f32.mrb[0].mxu0
      %v1284 = vpop.f32.mrb[0].mxu0
      %v1285 = vadd.f32 0.0, %v1284
      %v1286 = vpop.f32.mrb[0].mxu0
      %1287 = vmatprep.mubr.bf16.mxu0 0
      %1288 = vmatmul.mubr.bf16.gmra.mrb[0].mxu0 %v1242
      %v1289 = vpop.f32.mrb[0].mxu0
      %v1290 = vadd.f32 0.0, %v1289
      %v1291 = vpop.f32.mrb[0].mxu0
      %v1292 = vpop.f32.mrb[0].mxu0
      %v1293 = vpop.f32.mrb[0].mxu0
      %1294 = vdwg.mxu0
      %v1295 = vpack.c.bf16 %v1285, %v1282
      %v1296 = vpack.c.bf16 %v1290, %v1290
      %s1297 = scalar_lea.vmem %s9, 4
      %v1298 = vld [vmem:[%s1297] sm:$0xf]
      %v1300 = vsel %vm688, %v1295, 0
      %v1303 = vsel %vm688, %v1296, 0
      %v1306 = vsel %vm860, %v1298, 0
      %1308 = vmatprep.subr.bf16.mxu0 0
      %1309 = vmatpush1.bf16.msra.mxu0 %v1306
      %1310 = vmatprep.subr.bf16.mxu0 0
      %1311 = vmatpush1.bf16.msra.mxu0 0
      %1312 = vmatprep.subr.bf16.mxu0 0
      %1313 = vmatpush1.bf16.msra.mxu0 0
      %1314 = vmatprep.subr.bf16.mxu0 0
      %1315 = vmatpush1.bf16.msra.mxu0 0
      %1316 = vmatprep.subr.bf16.mxu0 0
      %1317 = vmatpush1.bf16.msra.mxu0 0
      %1318 = vmatprep.subr.bf16.mxu0 0
      %1319 = vmatpush1.bf16.msra.mxu0 0
      %1320 = vmatprep.subr.bf16.mxu0 0
      %1321 = vmatpush1.bf16.msra.mxu0 0
      %1322 = vmatprep.subr.bf16.mxu0 0
      %1323 = vmatpush1.bf16.msra.mxu0 0
      %1324 = vmatprep.subr.bf16.mxu0 0
      %1325 = vmatpush1.bf16.msra.mxu0 0
      %1326 = vmatprep.subr.bf16.mxu0 0
      %1327 = vmatpush1.bf16.msra.mxu0 0
      %1328 = vmatprep.subr.bf16.mxu0 0
      %1329 = vmatpush1.bf16.msra.mxu0 0
      %1330 = vmatprep.subr.bf16.mxu0 0
      %1331 = vmatpush1.bf16.msra.mxu0 0
      %1332 = vmatprep.subr.bf16.mxu0 0
      %1333 = vmatpush1.bf16.msra.mxu0 0
      %1334 = vmatprep.subr.bf16.mxu0 0
      %1335 = vmatpush1.bf16.msra.mxu0 0
      %1336 = vmatprep.subr.bf16.mxu0 0
      %1337 = vmatpush1.bf16.msra.mxu0 0
      %1338 = vmatprep.subr.bf16.mxu0 0
      %1339 = vmatpush1.bf16.msra.mxu0 0
      %1340 = vmatprep.mubr.bf16.mxu0 0
      %1341 = vmatmul.mubr.bf16.gmra.mrb[0].mxu0 %v1300
      %v1342 = vpop.f32.mrb[0].mxu0
      %v1343 = vadd.f32 0.0, %v1342
      %v1344 = vpop.f32.mrb[0].mxu0
      %v1345 = vpop.f32.mrb[0].mxu0
      %v1346 = vadd.f32 0.0, %v1345
      %v1347 = vpop.f32.mrb[0].mxu0
      %1348 = vmatprep.mubr.bf16.mxu0 0
      %1349 = vmatmul.mubr.bf16.gmra.mrb[0].mxu0 %v1303
      %v1350 = vpop.f32.mrb[0].mxu0
      %v1351 = vadd.f32 0.0, %v1350
      %v1352 = vpop.f32.mrb[0].mxu0
      %v1353 = vpop.f32.mrb[0].mxu0
      %v1354 = vpop.f32.mrb[0].mxu0
      %1355 = vdwg.mxu0
      %v1356 = vadd.f32 %v912, %v1343
      %v1357 = vadd.f32 %v913, %v1346
      %v1358 = vadd.f32 %v914, %v1351
      %s1359 = scalar_lea.vmem %s3, 32
      %v1360 = vld [vmem:[%s1359] sm:$0xf]
      %v1361 = vld [vmem:[%s1359 + $0x4] sm:$0xf]
      %v1362 = vld [vmem:[%s1359 + $0x8] sm:$0xf]
      %v1363 = vld [vmem:[%s1359 + $0xc] sm:$0xf]
      %s1364 = scalar_lea.vmem %s6, 2
      %v1365 = vld [vmem:[%s1364] sm:$0x1]
      %v1367 = vlaneseq
      %v1368 = vshrl.u32 %v1367, 7
      %v1369 = vsub.s32 0, %v1368
      %v1370 = vrot.slane %v1365, %v1369
      %v1376 = vunpack.c.l.b16 %v1360
      %v1377 = vunpack.c.l.b16 %v1361
      %v1378 = vunpack.c.l.b16 %v1362
      %v1379 = vunpack.c.l.b16 %v1363
      %v1380 = vpack.c.b16 %v1377, %v1376
      %v1381 = vpack.c.b16 %v1379, %v1378
      %1384 = vmatprep.subr.bf16.mxu0 0
      %1385 = vmatpush1.bf16.msra.mxu0 %v1380
      %1386 = vmatprep.subr.bf16.mxu0 0
      %1387 = vmatpush1.bf16.msra.mxu0 %v1381
      %1388 = vmatprep.subr.bf16.mxu0 0
      %1389 = vmatpush1.bf16.msra.mxu0 0
      %1390 = vmatprep.subr.bf16.mxu0 0
      %1391 = vmatpush1.bf16.msra.mxu0 0
      %1392 = vmatprep.subr.bf16.mxu0 0
      %1393 = vmatpush1.bf16.msra.mxu0 0
      %1394 = vmatprep.subr.bf16.mxu0 0
      %1395 = vmatpush1.bf16.msra.mxu0 0
      %1396 = vmatprep.subr.bf16.mxu0 0
      %1397 = vmatpush1.bf16.msra.mxu0 0
      %1398 = vmatprep.subr.bf16.mxu0 0
      %1399 = vmatpush1.bf16.msra.mxu0 0
      %1400 = vmatprep.subr.bf16.mxu0 0
      %1401 = vmatpush1.bf16.msra.mxu0 0
      %1402 = vmatprep.subr.bf16.mxu0 0
      %1403 = vmatpush1.bf16.msra.mxu0 0
      %1404 = vmatprep.subr.bf16.mxu0 0
      %1405 = vmatpush1.bf16.msra.mxu0 0
      %1406 = vmatprep.subr.bf16.mxu0 0
      %1407 = vmatpush1.bf16.msra.mxu0 0
      %1408 = vmatprep.subr.bf16.mxu0 0
      %1409 = vmatpush1.bf16.msra.mxu0 0
      %1410 = vmatprep.subr.bf16.mxu0 0
      %1411 = vmatpush1.bf16.msra.mxu0 0
      %1412 = vmatprep.subr.bf16.mxu0 0
      %1413 = vmatpush1.bf16.msra.mxu0 0
      %1414 = vmatprep.subr.bf16.mxu0 0
      %1415 = vmatpush1.bf16.msra.mxu0 0
      %1416 = vmatprep.mubr.bf16.mxu0 0
      %1417 = vmatmul.mubr.bf16.gmra.mrb[0].mxu0 %v489
      %v1418 = vpop.f32.mrb[0].mxu0
      %v1419 = vadd.f32 %v1370, %v1418
      %v1420 = vpop.f32.mrb[0].mxu0
      %v1421 = vpop.f32.mrb[0].mxu0
      %v1422 = vadd.f32 %v1370, %v1421
      %v1423 = vpop.f32.mrb[0].mxu0
      %1424 = vmatprep.mubr.bf16.mxu0 0
      %1425 = vmatmul.mubr.bf16.gmra.mrb[0].mxu0 %v492
      %v1426 = vpop.f32.mrb[0].mxu0
      %v1427 = vadd.f32 %v1370, %v1426
      %v1428 = vpop.f32.mrb[0].mxu0
      %v1429 = vpop.f32.mrb[0].mxu0
      %v1430 = vpop.f32.mrb[0].mxu0
      %1431 = vdwg.mxu0
      %s1432 = scalar_lea.vmem %s4, 32
      %v1433 = vld [vmem:[%s1432] sm:$0xf]
      %v1434 = vld [vmem:[%s1432 + $0x4] sm:$0xf]
      %v1435 = vld [vmem:[%s1432 + $0x8] sm:$0xf]
      %v1436 = vld [vmem:[%s1432 + $0xc] sm:$0xf]
      %s1437 = scalar_lea.vmem %s7, 2
      %v1438 = vld [vmem:[%s1437] sm:$0x1]
      %v1440 = vlaneseq
      %v1441 = vshrl.u32 %v1440, 7
      %v1442 = vsub.s32 0, %v1441
      %v1443 = vrot.slane %v1438, %v1442
      %v1449 = vunpack.c.l.b16 %v1433
      %v1450 = vunpack.c.l.b16 %v1434
      %v1451 = vunpack.c.l.b16 %v1435
      %v1452 = vunpack.c.l.b16 %v1436
      %v1453 = vpack.c.b16 %v1450, %v1449
      %v1454 = vpack.c.b16 %v1452, %v1451
      %1457 = vmatprep.subr.bf16.mxu0 0
      %1458 = vmatpush1.bf16.msra.mxu0 %v1453
      %1459 = vmatprep.subr.bf16.mxu0 0
      %1460 = vmatpush1.bf16.msra.mxu0 %v1454
      %1461 = vmatprep.subr.bf16.mxu0 0
      %1462 = vmatpush1.bf16.msra.mxu0 0
      %1463 = vmatprep.subr.bf16.mxu0 0
      %1464 = vmatpush1.bf16.msra.mxu0 0
      %1465 = vmatprep.subr.bf16.mxu0 0
      %1466 = vmatpush1.bf16.msra.mxu0 0
      %1467 = vmatprep.subr.bf16.mxu0 0
      %1468 = vmatpush1.bf16.msra.mxu0 0
      %1469 = vmatprep.subr.bf16.mxu0 0
      %1470 = vmatpush1.bf16.msra.mxu0 0
      %1471 = vmatprep.subr.bf16.mxu0 0
      %1472 = vmatpush1.bf16.msra.mxu0 0
      %1473 = vmatprep.subr.bf16.mxu0 0
      %1474 = vmatpush1.bf16.msra.mxu0 0
      %1475 = vmatprep.subr.bf16.mxu0 0
      %1476 = vmatpush1.bf16.msra.mxu0 0
      %1477 = vmatprep.subr.bf16.mxu0 0
      %1478 = vmatpush1.bf16.msra.mxu0 0
      %1479 = vmatprep.subr.bf16.mxu0 0
      %1480 = vmatpush1.bf16.msra.mxu0 0
      %1481 = vmatprep.subr.bf16.mxu0 0
      %1482 = vmatpush1.bf16.msra.mxu0 0
      %1483 = vmatprep.subr.bf16.mxu0 0
      %1484 = vmatpush1.bf16.msra.mxu0 0
      %1485 = vmatprep.subr.bf16.mxu0 0
      %1486 = vmatpush1.bf16.msra.mxu0 0
      %1487 = vmatprep.subr.bf16.mxu0 0
      %1488 = vmatpush1.bf16.msra.mxu0 0
      %1489 = vmatprep.mubr.bf16.mxu0 0
      %1490 = vmatmul.mubr.bf16.gmra.mrb[0].mxu0 %v489
      %v1491 = vpop.f32.mrb[0].mxu0
      %v1492 = vadd.f32 %v1443, %v1491
      %v1493 = vpop.f32.mrb[0].mxu0
      %v1494 = vpop.f32.mrb[0].mxu0
      %v1495 = vadd.f32 %v1443, %v1494
      %v1496 = vpop.f32.mrb[0].mxu0
      %1497 = vmatprep.mubr.bf16.mxu0 0
      %1498 = vmatmul.mubr.bf16.gmra.mrb[0].mxu0 %v492
      %v1499 = vpop.f32.mrb[0].mxu0
      %v1500 = vadd.f32 %v1443, %v1499
      %v1501 = vpop.f32.mrb[0].mxu0
      %v1502 = vpop.f32.mrb[0].mxu0
      %v1503 = vpop.f32.mrb[0].mxu0
      %1504 = vdwg.mxu0
      %s1505 = scalar_lea.vmem %s5, 32
      %v1506 = vld [vmem:[%s1505] sm:$0xf]
      %v1507 = vld [vmem:[%s1505 + $0x4] sm:$0xf]
      %v1508 = vld [vmem:[%s1505 + $0x8] sm:$0xf]
      %v1509 = vld [vmem:[%s1505 + $0xc] sm:$0xf]
      %s1510 = scalar_lea.vmem %s8, 2
      %v1511 = vld [vmem:[%s1510] sm:$0x1]
      %v1513 = vlaneseq
      %v1514 = vshrl.u32 %v1513, 7
      %v1515 = vsub.s32 0, %v1514
      %v1516 = vrot.slane %v1511, %v1515
      %v1522 = vunpack.c.l.b16 %v1506
      %v1523 = vunpack.c.l.b16 %v1507
      %v1524 = vunpack.c.l.b16 %v1508
      %v1525 = vunpack.c.l.b16 %v1509
      %v1526 = vpack.c.b16 %v1523, %v1522
      %v1527 = vpack.c.b16 %v1525, %v1524
      %1530 = vmatprep.subr.bf16.mxu0 0
      %1531 = vmatpush1.bf16.msra.mxu0 %v1526
      %1532 = vmatprep.subr.bf16.mxu0 0
      %1533 = vmatpush1.bf16.msra.mxu0 %v1527
      %1534 = vmatprep.subr.bf16.mxu0 0
      %1535 = vmatpush1.bf16.msra.mxu0 0
      %1536 = vmatprep.subr.bf16.mxu0 0
      %1537 = vmatpush1.bf16.msra.mxu0 0
      %1538 = vmatprep.subr.bf16.mxu0 0
      %1539 = vmatpush1.bf16.msra.mxu0 0
      %1540 = vmatprep.subr.bf16.mxu0 0
      %1541 = vmatpush1.bf16.msra.mxu0 0
      %1542 = vmatprep.subr.bf16.mxu0 0
      %1543 = vmatpush1.bf16.msra.mxu0 0
      %1544 = vmatprep.subr.bf16.mxu0 0
      %1545 = vmatpush1.bf16.msra.mxu0 0
      %1546 = vmatprep.subr.bf16.mxu0 0
      %1547 = vmatpush1.bf16.msra.mxu0 0
      %1548 = vmatprep.subr.bf16.mxu0 0
      %1549 = vmatpush1.bf16.msra.mxu0 0
      %1550 = vmatprep.subr.bf16.mxu0 0
      %1551 = vmatpush1.bf16.msra.mxu0 0
      %1552 = vmatprep.subr.bf16.mxu0 0
      %1553 = vmatpush1.bf16.msra.mxu0 0
      %1554 = vmatprep.subr.bf16.mxu0 0
      %1555 = vmatpush1.bf16.msra.mxu0 0
      %1556 = vmatprep.subr.bf16.mxu0 0
      %1557 = vmatpush1.bf16.msra.mxu0 0
      %1558 = vmatprep.subr.bf16.mxu0 0
      %1559 = vmatpush1.bf16.msra.mxu0 0
      %1560 = vmatprep.subr.bf16.mxu0 0
      %1561 = vmatpush1.bf16.msra.mxu0 0
      %1562 = vmatprep.mubr.bf16.mxu0 0
      %1563 = vmatmul.mubr.bf16.gmra.mrb[0].mxu0 %v489
      %v1564 = vpop.f32.mrb[0].mxu0
      %v1565 = vadd.f32 %v1516, %v1564
      %v1566 = vpop.f32.mrb[0].mxu0
      %v1567 = vpop.f32.mrb[0].mxu0
      %v1568 = vadd.f32 %v1516, %v1567
      %v1569 = vpop.f32.mrb[0].mxu0
      %1570 = vmatprep.mubr.bf16.mxu0 0
      %1571 = vmatmul.mubr.bf16.gmra.mrb[0].mxu0 %v492
      %v1572 = vpop.f32.mrb[0].mxu0
      %v1573 = vadd.f32 %v1516, %v1572
      %v1574 = vpop.f32.mrb[0].mxu0
      %v1575 = vpop.f32.mrb[0].mxu0
      %v1576 = vpop.f32.mrb[0].mxu0
      %1577 = vdwg.mxu0
      %v1578 = vpack.c.bf16 %v1422, %v1419
      %v1579 = vpack.c.bf16 %v1427, %v1427
      %v1580 = vpack.c.bf16 %v1495, %v1492
      %v1581 = vpack.c.bf16 %v1500, %v1500
      %v1583 = vsel %vm688, %v1578, 0
      %v1586 = vsel %vm688, %v1579, 0
      %v1589 = vsel %vm688, %v1580, 0
      %v1592 = vsel %vm688, %v1581, 0
      %1594 = vmatprep.subr.bf16.mxu0 0
      %1595 = vmatpush1.bf16.xpose.msra.mxu0 %v1589
      %1596 = vmatprep.subr.bf16.mxu0 0
      %1597 = vmatpush1.bf16.xpose.msra.mxu0 %v1592
      %1598 = vmatprep.subr.bf16.mxu0 0
      %1599 = vmatpush1.bf16.xpose.msra.mxu0 0
      %1600 = vmatprep.subr.bf16.mxu0 0
      %1601 = vmatpush1.bf16.xpose.msra.mxu0 0
      %1602 = vmatprep.subr.bf16.mxu0 0
      %1603 = vmatpush1.bf16.xpose.msra.mxu0 0
      %1604 = vmatprep.subr.bf16.mxu0 0
      %1605 = vmatpush1.bf16.xpose.msra.mxu0 0
      %1606 = vmatprep.subr.bf16.mxu0 0
      %1607 = vmatpush1.bf16.xpose.msra.mxu0 0
      %1608 = vmatprep.subr.bf16.mxu0 0
      %1609 = vmatpush1.bf16.xpose.msra.mxu0 0
      %1610 = vmatprep.subr.bf16.mxu0 0
      %1611 = vmatpush1.bf16.xpose.msra.mxu0 0
      %1612 = vmatprep.subr.bf16.mxu0 0
      %1613 = vmatpush1.bf16.xpose.msra.mxu0 0
      %1614 = vmatprep.subr.bf16.mxu0 0
      %1615 = vmatpush1.bf16.xpose.msra.mxu0 0
      %1616 = vmatprep.subr.bf16.mxu0 0
      %1617 = vmatpush1.bf16.xpose.msra.mxu0 0
      %1618 = vmatprep.subr.bf16.mxu0 0
      %1619 = vmatpush1.bf16.xpose.msra.mxu0 0
      %1620 = vmatprep.subr.bf16.mxu0 0
      %1621 = vmatpush1.bf16.xpose.msra.mxu0 0
      %1622 = vmatprep.subr.bf16.mxu0 0
      %1623 = vmatpush1.bf16.xpose.msra.mxu0 0
      %1624 = vmatprep.subr.bf16.mxu0 0
      %1625 = vmatpush1.bf16.xpose.msra.mxu0 0
      %1626 = vmatprep.mubr.bf16.mxu0 0
      %1627 = vmatmul.mubr.bf16.gmra.mrb[0].mxu0 %v1583
      %v1628 = vpop.f32.mrb[0].mxu0
      %v1629 = vadd.f32 0.0, %v1628
      %v1630 = vpop.f32.mrb[0].mxu0
      %v1631 = vpop.f32.mrb[0].mxu0
      %v1632 = vadd.f32 0.0, %v1631
      %v1633 = vpop.f32.mrb[0].mxu0
      %1634 = vmatprep.mubr.bf16.mxu0 0
      %1635 = vmatmul.mubr.bf16.gmra.mrb[0].mxu0 %v1586
      %v1636 = vpop.f32.mrb[0].mxu0
      %v1637 = vadd.f32 0.0, %v1636
      %v1638 = vpop.f32.mrb[0].mxu0
      %v1639 = vpop.f32.mrb[0].mxu0
      %v1640 = vpop.f32.mrb[0].mxu0
      %1641 = vdwg.mxu0
      %v1642 = vmul.f32 %v1629, 0.35355338
      %v1643 = vmul.f32 %v1632, 0.35355338
      %v1644 = vmul.f32 %v1637, 0.35355338
      %v1645 = vsel %vm752, %v1642, -inf
      %1646 = vmax.xlane.f32.xlu0 %v1645
      %v1647 = vpop.xlane.xlu0 %1646
      %v1648 = vsel %vm752, %v1643, -inf
      %1649 = vmax.xlane.f32.xlu0 %v1648
      %v1650 = vpop.xlane.xlu0 %1649
      %v1651 = vsel %vm759, %v1644, -inf
      %1652 = vmax.xlane.f32.xlu0 %v1651
      %v1653 = vpop.xlane.xlu0 %1652
      %v1654 = vsub.f32 %v1642, %v1647
      %v1655 = vsub.f32 %v1643, %v1650
      %v1656 = vsub.f32 %v1644, %v1653
      %v1657 = vmul.f32 %v1654, 1.442695
      %v1658 = vpow.pop %v1657
      %v1659 = vmul.f32 %v1655, 1.442695
      %v1660 = vpow.pop %v1659
      %v1661 = vmul.f32 %v1656, 1.442695
      %v1662 = vpow.pop %v1661
      %v1663 = vsel %vm752, %v1658, 0.0
      %1664 = vadd.xlane.f32.xlu0 %v1663
      %v1665 = vpop.xlane.xlu0 %1664
      %v1666 = vsel %vm752, %v1660, 0.0
      %1667 = vadd.xlane.f32.xlu0 %v1666
      %v1668 = vpop.xlane.xlu0 %1667
      %v1669 = vsel %vm759, %v1662, 0.0
      %1670 = vadd.xlane.f32.xlu0 %v1669
      %v1671 = vpop.xlane.xlu0 %1670
      %v1672 = vrcp.pop %v1665
      %v1673 = vrcp.pop %v1668
      %v1674 = vrcp.pop %v1671
      %v1675 = vmul.f32 %v1658, %v1672
      %v1676 = vmul.f32 %v1660, %v1673
      %v1677 = vmul.f32 %v1662, %v1674
      %v1678 = vpack.c.bf16 %v1676, %v1675
      %v1679 = vpack.c.bf16 %v1677, %v1677
      %v1680 = vpack.c.bf16 %v1568, %v1565
      %v1681 = vpack.c.bf16 %v1573, %v1573
      %v1683 = vsel %vm752, %v1678, 0
      %v1686 = vsel %vm752, %v1679, 0
      %v1689 = vand.u32 %v1681, %v799
      %1691 = vmatprep.subr.bf16.mxu0 0
      %1692 = vmatpush1.bf16.msra.mxu0 %v1680
      %1693 = vmatprep.subr.bf16.mxu0 0
      %1694 = vmatpush1.bf16.msra.mxu0 %v1689
      %1695 = vmatprep.subr.bf16.mxu0 0
      %1696 = vmatpush1.bf16.msra.mxu0 0
      %1697 = vmatprep.subr.bf16.mxu0 0
      %1698 = vmatpush1.bf16.msra.mxu0 0
      %1699 = vmatprep.subr.bf16.mxu0 0
      %1700 = vmatpush1.bf16.msra.mxu0 0
      %1701 = vmatprep.subr.bf16.mxu0 0
      %1702 = vmatpush1.bf16.msra.mxu0 0
      %1703 = vmatprep.subr.bf16.mxu0 0
      %1704 = vmatpush1.bf16.msra.mxu0 0
      %1705 = vmatprep.subr.bf16.mxu0 0
      %1706 = vmatpush1.bf16.msra.mxu0 0
      %1707 = vmatprep.subr.bf16.mxu0 0
      %1708 = vmatpush1.bf16.msra.mxu0 0
      %1709 = vmatprep.subr.bf16.mxu0 0
      %1710 = vmatpush1.bf16.msra.mxu0 0
      %1711 = vmatprep.subr.bf16.mxu0 0
      %1712 = vmatpush1.bf16.msra.mxu0 0
      %1713 = vmatprep.subr.bf16.mxu0 0
      %1714 = vmatpush1.bf16.msra.mxu0 0
      %1715 = vmatprep.subr.bf16.mxu0 0
      %1716 = vmatpush1.bf16.msra.mxu0 0
      %1717 = vmatprep.subr.bf16.mxu0 0
      %1718 = vmatpush1.bf16.msra.mxu0 0
      %1719 = vmatprep.subr.bf16.mxu0 0
      %1720 = vmatpush1.bf16.msra.mxu0 0
      %1721 = vmatprep.subr.bf16.mxu0 0
      %1722 = vmatpush1.bf16.msra.mxu0 0
      %1723 = vmatprep.mubr.bf16.mxu0 0
      %1724 = vmatmul.mubr.bf16.gmra.mrb[0].mxu0 %v1683
      %v1725 = vpop.f32.mrb[0].mxu0
      %v1726 = vadd.f32 0.0, %v1725
      %v1727 = vpop.f32.mrb[0].mxu0
      %v1728 = vpop.f32.mrb[0].mxu0
      %v1729 = vadd.f32 0.0, %v1728
      %v1730 = vpop.f32.mrb[0].mxu0
      %1731 = vmatprep.mubr.bf16.mxu0 0
      %1732 = vmatmul.mubr.bf16.gmra.mrb[0].mxu0 %v1686
      %v1733 = vpop.f32.mrb[0].mxu0
      %v1734 = vadd.f32 0.0, %v1733
      %v1735 = vpop.f32.mrb[0].mxu0
      %v1736 = vpop.f32.mrb[0].mxu0
      %v1737 = vpop.f32.mrb[0].mxu0
      %1738 = vdwg.mxu0
      %v1739 = vpack.c.bf16 %v1729, %v1726
      %v1740 = vpack.c.bf16 %v1734, %v1734
      %s1741 = scalar_lea.vmem %s9, 8
      %v1742 = vld [vmem:[%s1741] sm:$0xf]
      %v1744 = vsel %vm688, %v1739, 0
      %v1747 = vsel %vm688, %v1740, 0
      %v1750 = vsel %vm860, %v1742, 0
      %1752 = vmatprep.subr.bf16.mxu0 0
      %1753 = vmatpush1.bf16.msra.mxu0 %v1750
      %1754 = vmatprep.subr.bf16.mxu0 0
      %1755 = vmatpush1.bf16.msra.mxu0 0
      %1756 = vmatprep.subr.bf16.mxu0 0
      %1757 = vmatpush1.bf16.msra.mxu0 0
      %1758 = vmatprep.subr.bf16.mxu0 0
      %1759 = vmatpush1.bf16.msra.mxu0 0
      %1760 = vmatprep.subr.bf16.mxu0 0
      %1761 = vmatpush1.bf16.msra.mxu0 0
      %1762 = vmatprep.subr.bf16.mxu0 0
      %1763 = vmatpush1.bf16.msra.mxu0 0
      %1764 = vmatprep.subr.bf16.mxu0 0
      %1765 = vmatpush1.bf16.msra.mxu0 0
      %1766 = vmatprep.subr.bf16.mxu0 0
      %1767 = vmatpush1.bf16.msra.mxu0 0
      %1768 = vmatprep.subr.bf16.mxu0 0
      %1769 = vmatpush1.bf16.msra.mxu0 0
      %1770 = vmatprep.subr.bf16.mxu0 0
      %1771 = vmatpush1.bf16.msra.mxu0 0
      %1772 = vmatprep.subr.bf16.mxu0 0
      %1773 = vmatpush1.bf16.msra.mxu0 0
      %1774 = vmatprep.subr.bf16.mxu0 0
      %1775 = vmatpush1.bf16.msra.mxu0 0
      %1776 = vmatprep.subr.bf16.mxu0 0
      %1777 = vmatpush1.bf16.msra.mxu0 0
      %1778 = vmatprep.subr.bf16.mxu0 0
      %1779 = vmatpush1.bf16.msra.mxu0 0
      %1780 = vmatprep.subr.bf16.mxu0 0
      %1781 = vmatpush1.bf16.msra.mxu0 0
      %1782 = vmatprep.subr.bf16.mxu0 0
      %1783 = vmatpush1.bf16.msra.mxu0 0
      %1784 = vmatprep.mubr.bf16.mxu0 0
      %1785 = vmatmul.mubr.bf16.gmra.mrb[0].mxu0 %v1744
      %v1786 = vpop.f32.mrb[0].mxu0
      %v1787 = vadd.f32 0.0, %v1786
      %v1788 = vpop.f32.mrb[0].mxu0
      %v1789 = vpop.f32.mrb[0].mxu0
      %v1790 = vadd.f32 0.0, %v1789
      %v1791 = vpop.f32.mrb[0].mxu0
      %1792 = vmatprep.mubr.bf16.mxu0 0
      %1793 = vmatmul.mubr.bf16.gmra.mrb[0].mxu0 %v1747
      %v1794 = vpop.f32.mrb[0].mxu0
      %v1795 = vadd.f32 0.0, %v1794
      %v1796 = vpop.f32.mrb[0].mxu0
      %v1797 = vpop.f32.mrb[0].mxu0
      %v1798 = vpop.f32.mrb[0].mxu0
      %1799 = vdwg.mxu0
      %v1800 = vadd.f32 %v1356, %v1787
      %v1801 = vadd.f32 %v1357, %v1790
      %v1802 = vadd.f32 %v1358, %v1795
      %s1803 = scalar_lea.vmem %s3, 48
      %v1804 = vld [vmem:[%s1803] sm:$0xf]
      %v1805 = vld [vmem:[%s1803 + $0x4] sm:$0xf]
      %v1806 = vld [vmem:[%s1803 + $0x8] sm:$0xf]
      %v1807 = vld [vmem:[%s1803 + $0xc] sm:$0xf]
      %s1808 = scalar_lea.vmem %s6, 3
      %v1809 = vld [vmem:[%s1808] sm:$0x1]
      %v1811 = vlaneseq
      %v1812 = vshrl.u32 %v1811, 7
      %v1813 = vsub.s32 0, %v1812
      %v1814 = vrot.slane %v1809, %v1813
      %v1820 = vunpack.c.l.b16 %v1804
      %v1821 = vunpack.c.l.b16 %v1805
      %v1822 = vunpack.c.l.b16 %v1806
      %v1823 = vunpack.c.l.b16 %v1807
      %v1824 = vpack.c.b16 %v1821, %v1820
      %v1825 = vpack.c.b16 %v1823, %v1822
      %1828 = vmatprep.subr.bf16.mxu0 0
      %1829 = vmatpush1.bf16.msra.mxu0 %v1824
      %1830 = vmatprep.subr.bf16.mxu0 0
      %1831 = vmatpush1.bf16.msra.mxu0 %v1825
      %1832 = vmatprep.subr.bf16.mxu0 0
      %1833 = vmatpush1.bf16.msra.mxu0 0
      %1834 = vmatprep.subr.bf16.mxu0 0
      %1835 = vmatpush1.bf16.msra.mxu0 0
      %1836 = vmatprep.subr.bf16.mxu0 0
      %1837 = vmatpush1.bf16.msra.mxu0 0
      %1838 = vmatprep.subr.bf16.mxu0 0
      %1839 = vmatpush1.bf16.msra.mxu0 0
      %1840 = vmatprep.subr.bf16.mxu0 0
      %1841 = vmatpush1.bf16.msra.mxu0 0
      %1842 = vmatprep.subr.bf16.mxu0 0
      %1843 = vmatpush1.bf16.msra.mxu0 0
      %1844 = vmatprep.subr.bf16.mxu0 0
      %1845 = vmatpush1.bf16.msra.mxu0 0
      %1846 = vmatprep.subr.bf16.mxu0 0
      %1847 = vmatpush1.bf16.msra.mxu0 0
      %1848 = vmatprep.subr.bf16.mxu0 0
      %1849 = vmatpush1.bf16.msra.mxu0 0
      %1850 = vmatprep.subr.bf16.mxu0 0
      %1851 = vmatpush1.bf16.msra.mxu0 0
      %1852 = vmatprep.subr.bf16.mxu0 0
      %1853 = vmatpush1.bf16.msra.mxu0 0
      %1854 = vmatprep.subr.bf16.mxu0 0
      %1855 = vmatpush1.bf16.msra.mxu0 0
      %1856 = vmatprep.subr.bf16.mxu0 0
      %1857 = vmatpush1.bf16.msra.mxu0 0
      %1858 = vmatprep.subr.bf16.mxu0 0
      %1859 = vmatpush1.bf16.msra.mxu0 0
      %1860 = vmatprep.mubr.bf16.mxu0 0
      %1861 = vmatmul.mubr.bf16.gmra.mrb[0].mxu0 %v489
      %v1862 = vpop.f32.mrb[0].mxu0
      %v1863 = vadd.f32 %v1814, %v1862
      %v1864 = vpop.f32.mrb[0].mxu0
      %v1865 = vpop.f32.mrb[0].mxu0
      %v1866 = vadd.f32 %v1814, %v1865
      %v1867 = vpop.f32.mrb[0].mxu0
      %1868 = vmatprep.mubr.bf16.mxu0 0
      %1869 = vmatmul.mubr.bf16.gmra.mrb[0].mxu0 %v492
      %v1870 = vpop.f32.mrb[0].mxu0
      %v1871 = vadd.f32 %v1814, %v1870
      %v1872 = vpop.f32.mrb[0].mxu0
      %v1873 = vpop.f32.mrb[0].mxu0
      %v1874 = vpop.f32.mrb[0].mxu0
      %1875 = vdwg.mxu0
      %s1876 = scalar_lea.vmem %s4, 48
      %v1877 = vld [vmem:[%s1876] sm:$0xf]
      %v1878 = vld [vmem:[%s1876 + $0x4] sm:$0xf]
      %v1879 = vld [vmem:[%s1876 + $0x8] sm:$0xf]
      %v1880 = vld [vmem:[%s1876 + $0xc] sm:$0xf]
      %s1881 = scalar_lea.vmem %s7, 3
      %v1882 = vld [vmem:[%s1881] sm:$0x1]
      %v1884 = vlaneseq
      %v1885 = vshrl.u32 %v1884, 7
      %v1886 = vsub.s32 0, %v1885
      %v1887 = vrot.slane %v1882, %v1886
      %v1893 = vunpack.c.l.b16 %v1877
      %v1894 = vunpack.c.l.b16 %v1878
      %v1895 = vunpack.c.l.b16 %v1879
      %v1896 = vunpack.c.l.b16 %v1880
      %v1897 = vpack.c.b16 %v1894, %v1893
      %v1898 = vpack.c.b16 %v1896, %v1895
      %1901 = vmatprep.subr.bf16.mxu0 0
      %1902 = vmatpush1.bf16.msra.mxu0 %v1897
      %1903 = vmatprep.subr.bf16.mxu0 0
      %1904 = vmatpush1.bf16.msra.mxu0 %v1898
      %1905 = vmatprep.subr.bf16.mxu0 0
      %1906 = vmatpush1.bf16.msra.mxu0 0
      %1907 = vmatprep.subr.bf16.mxu0 0
      %1908 = vmatpush1.bf16.msra.mxu0 0
      %1909 = vmatprep.subr.bf16.mxu0 0
      %1910 = vmatpush1.bf16.msra.mxu0 0
      %1911 = vmatprep.subr.bf16.mxu0 0
      %1912 = vmatpush1.bf16.msra.mxu0 0
      %1913 = vmatprep.subr.bf16.mxu0 0
      %1914 = vmatpush1.bf16.msra.mxu0 0
      %1915 = vmatprep.subr.bf16.mxu0 0
      %1916 = vmatpush1.bf16.msra.mxu0 0
      %1917 = vmatprep.subr.bf16.mxu0 0
      %1918 = vmatpush1.bf16.msra.mxu0 0
      %1919 = vmatprep.subr.bf16.mxu0 0
      %1920 = vmatpush1.bf16.msra.mxu0 0
      %1921 = vmatprep.subr.bf16.mxu0 0
      %1922 = vmatpush1.bf16.msra.mxu0 0
      %1923 = vmatprep.subr.bf16.mxu0 0
      %1924 = vmatpush1.bf16.msra.mxu0 0
      %1925 = vmatprep.subr.bf16.mxu0 0
      %1926 = vmatpush1.bf16.msra.mxu0 0
      %1927 = vmatprep.subr.bf16.mxu0 0
      %1928 = vmatpush1.bf16.msra.mxu0 0
      %1929 = vmatprep.subr.bf16.mxu0 0
      %1930 = vmatpush1.bf16.msra.mxu0 0
      %1931 = vmatprep.subr.bf16.mxu0 0
      %1932 = vmatpush1.bf16.msra.mxu0 0
      %1933 = vmatprep.mubr.bf16.mxu0 0
      %1934 = vmatmul.mubr.bf16.gmra.mrb[0].mxu0 %v489
      %v1935 = vpop.f32.mrb[0].mxu0
      %v1936 = vadd.f32 %v1887, %v1935
      %v1937 = vpop.f32.mrb[0].mxu0
      %v1938 = vpop.f32.mrb[0].mxu0
      %v1939 = vadd.f32 %v1887, %v1938
      %v1940 = vpop.f32.mrb[0].mxu0
      %1941 = vmatprep.mubr.bf16.mxu0 0
      %1942 = vmatmul.mubr.bf16.gmra.mrb[0].mxu0 %v492
      %v1943 = vpop.f32.mrb[0].mxu0
      %v1944 = vadd.f32 %v1887, %v1943
      %v1945 = vpop.f32.mrb[0].mxu0
      %v1946 = vpop.f32.mrb[0].mxu0
      %v1947 = vpop.f32.mrb[0].mxu0
      %1948 = vdwg.mxu0
      %s1949 = scalar_lea.vmem %s5, 48
      %v1950 = vld [vmem:[%s1949] sm:$0xf]
      %v1951 = vld [vmem:[%s1949 + $0x4] sm:$0xf]
      %v1952 = vld [vmem:[%s1949 + $0x8] sm:$0xf]
      %v1953 = vld [vmem:[%s1949 + $0xc] sm:$0xf]
      %s1954 = scalar_lea.vmem %s8, 3
      %v1955 = vld [vmem:[%s1954] sm:$0x1]
      %v1957 = vlaneseq
      %v1958 = vshrl.u32 %v1957, 7
      %v1959 = vsub.s32 0, %v1958
      %v1960 = vrot.slane %v1955, %v1959
      %v1966 = vunpack.c.l.b16 %v1950
      %v1967 = vunpack.c.l.b16 %v1951
      %v1968 = vunpack.c.l.b16 %v1952
      %v1969 = vunpack.c.l.b16 %v1953
      %v1970 = vpack.c.b16 %v1967, %v1966
      %v1971 = vpack.c.b16 %v1969, %v1968
      %1974 = vmatprep.subr.bf16.mxu0 0
      %1975 = vmatpush1.bf16.msra.mxu0 %v1970
      %1976 = vmatprep.subr.bf16.mxu0 0
      %1977 = vmatpush1.bf16.msra.mxu0 %v1971
      %1978 = vmatprep.subr.bf16.mxu0 0
      %1979 = vmatpush1.bf16.msra.mxu0 0
      %1980 = vmatprep.subr.bf16.mxu0 0
      %1981 = vmatpush1.bf16.msra.mxu0 0
      %1982 = vmatprep.subr.bf16.mxu0 0
      %1983 = vmatpush1.bf16.msra.mxu0 0
      %1984 = vmatprep.subr.bf16.mxu0 0
      %1985 = vmatpush1.bf16.msra.mxu0 0
      %1986 = vmatprep.subr.bf16.mxu0 0
      %1987 = vmatpush1.bf16.msra.mxu0 0
      %1988 = vmatprep.subr.bf16.mxu0 0
      %1989 = vmatpush1.bf16.msra.mxu0 0
      %1990 = vmatprep.subr.bf16.mxu0 0
      %1991 = vmatpush1.bf16.msra.mxu0 0
      %1992 = vmatprep.subr.bf16.mxu0 0
      %1993 = vmatpush1.bf16.msra.mxu0 0
      %1994 = vmatprep.subr.bf16.mxu0 0
      %1995 = vmatpush1.bf16.msra.mxu0 0
      %1996 = vmatprep.subr.bf16.mxu0 0
      %1997 = vmatpush1.bf16.msra.mxu0 0
      %1998 = vmatprep.subr.bf16.mxu0 0
      %1999 = vmatpush1.bf16.msra.mxu0 0
      %2000 = vmatprep.subr.bf16.mxu0 0
      %2001 = vmatpush1.bf16.msra.mxu0 0
      %2002 = vmatprep.subr.bf16.mxu0 0
      %2003 = vmatpush1.bf16.msra.mxu0 0
      %2004 = vmatprep.subr.bf16.mxu0 0
      %2005 = vmatpush1.bf16.msra.mxu0 0
      %2006 = vmatprep.mubr.bf16.mxu0 0
      %2007 = vmatmul.mubr.bf16.gmra.mrb[0].mxu0 %v489
      %v2008 = vpop.f32.mrb[0].mxu0
      %v2009 = vadd.f32 %v1960, %v2008
      %v2010 = vpop.f32.mrb[0].mxu0
      %v2011 = vpop.f32.mrb[0].mxu0
      %v2012 = vadd.f32 %v1960, %v2011
      %v2013 = vpop.f32.mrb[0].mxu0
      %2014 = vmatprep.mubr.bf16.mxu0 0
      %2015 = vmatmul.mubr.bf16.gmra.mrb[0].mxu0 %v492
      %v2016 = vpop.f32.mrb[0].mxu0
      %v2017 = vadd.f32 %v1960, %v2016
      %v2018 = vpop.f32.mrb[0].mxu0
      %v2019 = vpop.f32.mrb[0].mxu0
      %v2020 = vpop.f32.mrb[0].mxu0
      %2021 = vdwg.mxu0
      %v2022 = vpack.c.bf16 %v1866, %v1863
      %v2023 = vpack.c.bf16 %v1871, %v1871
      %v2024 = vpack.c.bf16 %v1939, %v1936
      %v2025 = vpack.c.bf16 %v1944, %v1944
      %v2027 = vsel %vm688, %v2022, 0
      %v2030 = vsel %vm688, %v2023, 0
      %v2033 = vsel %vm688, %v2024, 0
      %v2036 = vsel %vm688, %v2025, 0
      %2038 = vmatprep.subr.bf16.mxu0 0
      %2039 = vmatpush1.bf16.xpose.msra.mxu0 %v2033
      %2040 = vmatprep.subr.bf16.mxu0 0
      %2041 = vmatpush1.bf16.xpose.msra.mxu0 %v2036
      %2042 = vmatprep.subr.bf16.mxu0 0
      %2043 = vmatpush1.bf16.xpose.msra.mxu0 0
      %2044 = vmatprep.subr.bf16.mxu0 0
      %2045 = vmatpush1.bf16.xpose.msra.mxu0 0
      %2046 = vmatprep.subr.bf16.mxu0 0
      %2047 = vmatpush1.bf16.xpose.msra.mxu0 0
      %2048 = vmatprep.subr.bf16.mxu0 0
      %2049 = vmatpush1.bf16.xpose.msra.mxu0 0
      %2050 = vmatprep.subr.bf16.mxu0 0
      %2051 = vmatpush1.bf16.xpose.msra.mxu0 0
      %2052 = vmatprep.subr.bf16.mxu0 0
      %2053 = vmatpush1.bf16.xpose.msra.mxu0 0
      %2054 = vmatprep.subr.bf16.mxu0 0
      %2055 = vmatpush1.bf16.xpose.msra.mxu0 0
      %2056 = vmatprep.subr.bf16.mxu0 0
      %2057 = vmatpush1.bf16.xpose.msra.mxu0 0
      %2058 = vmatprep.subr.bf16.mxu0 0
      %2059 = vmatpush1.bf16.xpose.msra.mxu0 0
      %2060 = vmatprep.subr.bf16.mxu0 0
      %2061 = vmatpush1.bf16.xpose.msra.mxu0 0
      %2062 = vmatprep.subr.bf16.mxu0 0
      %2063 = vmatpush1.bf16.xpose.msra.mxu0 0
      %2064 = vmatprep.subr.bf16.mxu0 0
      %2065 = vmatpush1.bf16.xpose.msra.mxu0 0
      %2066 = vmatprep.subr.bf16.mxu0 0
      %2067 = vmatpush1.bf16.xpose.msra.mxu0 0
      %2068 = vmatprep.subr.bf16.mxu0 0
      %2069 = vmatpush1.bf16.xpose.msra.mxu0 0
      %2070 = vmatprep.mubr.bf16.mxu0 0
      %2071 = vmatmul.mubr.bf16.gmra.mrb[0].mxu0 %v2027
      %v2072 = vpop.f32.mrb[0].mxu0
      %v2073 = vadd.f32 0.0, %v2072
      %v2074 = vpop.f32.mrb[0].mxu0
      %v2075 = vpop.f32.mrb[0].mxu0
      %v2076 = vadd.f32 0.0, %v2075
      %v2077 = vpop.f32.mrb[0].mxu0
      %2078 = vmatprep.mubr.bf16.mxu0 0
      %2079 = vmatmul.mubr.bf16.gmra.mrb[0].mxu0 %v2030
      %v2080 = vpop.f32.mrb[0].mxu0
      %v2081 = vadd.f32 0.0, %v2080
      %v2082 = vpop.f32.mrb[0].mxu0
      %v2083 = vpop.f32.mrb[0].mxu0
      %v2084 = vpop.f32.mrb[0].mxu0
      %2085 = vdwg.mxu0
      %v2086 = vmul.f32 %v2073, 0.35355338
      %v2087 = vmul.f32 %v2076, 0.35355338
      %v2088 = vmul.f32 %v2081, 0.35355338
      %v2089 = vsel %vm752, %v2086, -inf
      %2090 = vmax.xlane.f32.xlu0 %v2089
      %v2091 = vpop.xlane.xlu0 %2090
      %v2092 = vsel %vm752, %v2087, -inf
      %2093 = vmax.xlane.f32.xlu0 %v2092
      %v2094 = vpop.xlane.xlu0 %2093
      %v2095 = vsel %vm759, %v2088, -inf
      %2096 = vmax.xlane.f32.xlu0 %v2095
      %v2097 = vpop.xlane.xlu0 %2096
      %v2098 = vsub.f32 %v2086, %v2091
      %v2099 = vsub.f32 %v2087, %v2094
      %v2100 = vsub.f32 %v2088, %v2097
      %v2101 = vmul.f32 %v2098, 1.442695
      %v2102 = vpow.pop %v2101
      %v2103 = vmul.f32 %v2099, 1.442695
      %v2104 = vpow.pop %v2103
      %v2105 = vmul.f32 %v2100, 1.442695
      %v2106 = vpow.pop %v2105
      %v2107 = vsel %vm752, %v2102, 0.0
      %2108 = vadd.xlane.f32.xlu0 %v2107
      %v2109 = vpop.xlane.xlu0 %2108
      %v2110 = vsel %vm752, %v2104, 0.0
      %2111 = vadd.xlane.f32.xlu0 %v2110
      %v2112 = vpop.xlane.xlu0 %2111
      %v2113 = vsel %vm759, %v2106, 0.0
      %2114 = vadd.xlane.f32.xlu0 %v2113
      %v2115 = vpop.xlane.xlu0 %2114
      %v2116 = vrcp.pop %v2109
      %v2117 = vrcp.pop %v2112
      %v2118 = vrcp.pop %v2115
      %v2119 = vmul.f32 %v2102, %v2116
      %v2120 = vmul.f32 %v2104, %v2117
      %v2121 = vmul.f32 %v2106, %v2118
      %v2122 = vpack.c.bf16 %v2120, %v2119
      %v2123 = vpack.c.bf16 %v2121, %v2121
      %v2124 = vpack.c.bf16 %v2012, %v2009
      %v2125 = vpack.c.bf16 %v2017, %v2017
      %v2127 = vsel %vm752, %v2122, 0
      %v2130 = vsel %vm752, %v2123, 0
      %v2133 = vand.u32 %v2125, %v799
      %2135 = vmatprep.subr.bf16.mxu0 0
      %2136 = vmatpush1.bf16.msra.mxu0 %v2124
      %2137 = vmatprep.subr.bf16.mxu0 0
      %2138 = vmatpush1.bf16.msra.mxu0 %v2133
      %2139 = vmatprep.subr.bf16.mxu0 0
      %2140 = vmatpush1.bf16.msra.mxu0 0
      %2141 = vmatprep.subr.bf16.mxu0 0
      %2142 = vmatpush1.bf16.msra.mxu0 0
      %2143 = vmatprep.subr.bf16.mxu0 0
      %2144 = vmatpush1.bf16.msra.mxu0 0
      %2145 = vmatprep.subr.bf16.mxu0 0
      %2146 = vmatpush1.bf16.msra.mxu0 0
      %2147 = vmatprep.subr.bf16.mxu0 0
      %2148 = vmatpush1.bf16.msra.mxu0 0
      %2149 = vmatprep.subr.bf16.mxu0 0
      %2150 = vmatpush1.bf16.msra.mxu0 0
      %2151 = vmatprep.subr.bf16.mxu0 0
      %2152 = vmatpush1.bf16.msra.mxu0 0
      %2153 = vmatprep.subr.bf16.mxu0 0
      %2154 = vmatpush1.bf16.msra.mxu0 0
      %2155 = vmatprep.subr.bf16.mxu0 0
      %2156 = vmatpush1.bf16.msra.mxu0 0
      %2157 = vmatprep.subr.bf16.mxu0 0
      %2158 = vmatpush1.bf16.msra.mxu0 0
      %2159 = vmatprep.subr.bf16.mxu0 0
      %2160 = vmatpush1.bf16.msra.mxu0 0
      %2161 = vmatprep.subr.bf16.mxu0 0
      %2162 = vmatpush1.bf16.msra.mxu0 0
      %2163 = vmatprep.subr.bf16.mxu0 0
      %2164 = vmatpush1.bf16.msra.mxu0 0
      %2165 = vmatprep.subr.bf16.mxu0 0
      %2166 = vmatpush1.bf16.msra.mxu0 0
      %2167 = vmatprep.mubr.bf16.mxu0 0
      %2168 = vmatmul.mubr.bf16.gmra.mrb[0].mxu0 %v2127
      %v2169 = vpop.f32.mrb[0].mxu0
      %v2170 = vadd.f32 0.0, %v2169
      %v2171 = vpop.f32.mrb[0].mxu0
      %v2172 = vpop.f32.mrb[0].mxu0
      %v2173 = vadd.f32 0.0, %v2172
      %v2174 = vpop.f32.mrb[0].mxu0
      %2175 = vmatprep.mubr.bf16.mxu0 0
      %2176 = vmatmul.mubr.bf16.gmra.mrb[0].mxu0 %v2130
      %v2177 = vpop.f32.mrb[0].mxu0
      %v2178 = vadd.f32 0.0, %v2177
      %v2179 = vpop.f32.mrb[0].mxu0
      %v2180 = vpop.f32.mrb[0].mxu0
      %v2181 = vpop.f32.mrb[0].mxu0
      %2182 = vdwg.mxu0
      %v2183 = vpack.c.bf16 %v2173, %v2170
      %v2184 = vpack.c.bf16 %v2178, %v2178
      %s2185 = scalar_lea.vmem %s9, 12
      %v2186 = vld [vmem:[%s2185] sm:$0xf]
      %v2188 = vsel %vm688, %v2183, 0
      %v2191 = vsel %vm688, %v2184, 0
      %v2194 = vsel %vm860, %v2186, 0
      %2196 = vmatprep.subr.bf16.mxu0 0
      %2197 = vmatpush1.bf16.msra.mxu0 %v2194
      %2198 = vmatprep.subr.bf16.mxu0 0
      %2199 = vmatpush1.bf16.msra.mxu0 0
      %2200 = vmatprep.subr.bf16.mxu0 0
      %2201 = vmatpush1.bf16.msra.mxu0 0
      %2202 = vmatprep.subr.bf16.mxu0 0
      %2203 = vmatpush1.bf16.msra.mxu0 0
      %2204 = vmatprep.subr.bf16.mxu0 0
      %2205 = vmatpush1.bf16.msra.mxu0 0
      %2206 = vmatprep.subr.bf16.mxu0 0
      %2207 = vmatpush1.bf16.msra.mxu0 0
      %2208 = vmatprep.subr.bf16.mxu0 0
      %2209 = vmatpush1.bf16.msra.mxu0 0
      %2210 = vmatprep.subr.bf16.mxu0 0
      %2211 = vmatpush1.bf16.msra.mxu0 0
      %2212 = vmatprep.subr.bf16.mxu0 0
      %2213 = vmatpush1.bf16.msra.mxu0 0
      %2214 = vmatprep.subr.bf16.mxu0 0
      %2215 = vmatpush1.bf16.msra.mxu0 0
      %2216 = vmatprep.subr.bf16.mxu0 0
      %2217 = vmatpush1.bf16.msra.mxu0 0
      %2218 = vmatprep.subr.bf16.mxu0 0
      %2219 = vmatpush1.bf16.msra.mxu0 0
      %2220 = vmatprep.subr.bf16.mxu0 0
      %2221 = vmatpush1.bf16.msra.mxu0 0
      %2222 = vmatprep.subr.bf16.mxu0 0
      %2223 = vmatpush1.bf16.msra.mxu0 0
      %2224 = vmatprep.subr.bf16.mxu0 0
      %2225 = vmatpush1.bf16.msra.mxu0 0
      %2226 = vmatprep.subr.bf16.mxu0 0
      %2227 = vmatpush1.bf16.msra.mxu0 0
      %2228 = vmatprep.mubr.bf16.mxu0 0
      %2229 = vmatmul.mubr.bf16.gmra.mrb[0].mxu0 %v2188
      %v2230 = vpop.f32.mrb[0].mxu0
      %v2231 = vadd.f32 0.0, %v2230
      %v2232 = vpop.f32.mrb[0].mxu0
      %v2233 = vpop.f32.mrb[0].mxu0
      %v2234 = vadd.f32 0.0, %v2233
      %v2235 = vpop.f32.mrb[0].mxu0
      %2236 = vmatprep.mubr.bf16.mxu0 0
      %2237 = vmatmul.mubr.bf16.gmra.mrb[0].mxu0 %v2191
      %v2238 = vpop.f32.mrb[0].mxu0
      %v2239 = vadd.f32 0.0, %v2238
      %v2240 = vpop.f32.mrb[0].mxu0
      %v2241 = vpop.f32.mrb[0].mxu0
      %v2242 = vpop.f32.mrb[0].mxu0
      %2243 = vdwg.mxu0
      %v2244 = vadd.f32 %v1800, %v2231
      %v2245 = vadd.f32 %v1801, %v2234
      %v2246 = vadd.f32 %v1802, %v2239
      %2247 = vst.msk [vmem:[%s386] sm:$0xff] %vm393, %v2244
      %2248 = vst.msk [vmem:[%s386 + $0x8] sm:$0xff] %vm393, %v2245
      %2249 = vst.msk [vmem:[%s386 + $0x10] sm:$0x1] %vm400, %v2246
      %p2250 = scmp.lt.s32.totalorder %s22, 1
      %s2251 = scalar_select %p2250, %s22, 1
      %s2252 = smul.addr %s2251, 3
      %s2253 = smul.addr %s2252, 8
      %s2254 = scalar_lea.vmem %s11, %s2253
      // Predicated region
      $region65: #{_lambda_.45} parent=63 // pred_check
        %p2255 = pneg %p276
      $region66: #{_lambda_.45} parent=63 // pred_check_branch
        %2257 = sbr.rel (%p2255) target = $region68
      $region67: #{_lambda_.45} parent=63 // pred_region
        _
      $region68: #{_lambda_.45} parent=63 // pred_fallthru
        _
    $region64: #{_lambda_.45} parent=5 // pred_fallthru
      _
    %p2258 = scmp.le.s32.totalorder 2, %s17
    // Predicated region
    $region69: #{_lambda_.45} parent=5 // pred_check
      %p2259 = pneg %p2258
    $region70: #{_lambda_.45} parent=5 // pred_check_branch
      %2261 = sbr.rel (%p2259) target = $region72
    $region71: #{_lambda_.45} parent=5 // pred_region
      %s2262 = ssub.s32 %s17, 2
      // Predicated region
      $region73: #{_lambda_.45} parent=71 // pred_check
        %p2263 = pneg %p282
      $region74: #{_lambda_.45} parent=71 // pred_check_branch
        %2265 = sbr.rel (%p2263) target = $region76
      $region75: #{_lambda_.45} parent=71 // pred_region
        %p2266 = scmp.lt.s32.totalorder %s23, 1
        %s2267 = scalar_select %p2266, %s23, 1
        %s2268 = smul.addr %s2267, 3
        %s2269 = smul.addr %s2268, 8
        %s2270 = scalar_lea.vmem %s11, %s2269
      $region76: #{_lambda_.45} parent=71 // pred_fallthru
        _
    $region72: #{_lambda_.45} parent=5 // pred_fallthru
      _
  $region6: #{_lambda_.45} parent=0 // loop_footer
    %s21 = sadd.s32 1, %s17
  $region7: #{_lambda_.45} parent=0 // loop_footer_branch
    %16 = sbr.rel target = $region3
  $region8: #{_lambda_.45} parent=0 // loop_exit
    _

</llo_original>
